<compile_context>
chip_gen: v7x
topology: tpu7x:2x2x1
jax: 0.10.0
libtpu: 0.0.40
codegen_flags: <defaults>
</compile_context>

<pallas_src>
import functools

import jax
import jax.numpy as jnp
from jax.experimental import pallas as pl
from jax.experimental.pallas import tpu as pltpu


def _c3_tile(c3):
    """Output-channel chunk (lane) width for the per-point branch."""
    for cand in (512, 256, 128):
        if c3 % cand == 0:
            return cand
    return c3


# -----------------------------------------------------------------------------
# Kernel 1: fused per-point MLP (conv1->conv2->conv3, BN folded) + max over points.
#   grid = (B, C3//TN, cdiv(N, TM)); batch and C3-chunk axes are 'parallel'
#   (megacore / 2-TC split), point-tile axis is the reduction ('arbitrary')
#   with the running max accumulated directly in the output block.
# -----------------------------------------------------------------------------
def _pointnet_branch_kernel(last_relu, n_pts, tm,
                            x_ref, w1_ref, b1_ref,
                            w2_ref, b2_ref,
                            w3_ref, b3_ref,
                            o_ref):
    t = pl.program_id(2)

    @pl.when(t == 0)
    def _():
        o_ref[...] = jnp.full(o_ref.shape, -jnp.inf, o_ref.dtype)

    xt = x_ref[0]        # (3, TM)  f32, points on lanes
    w1 = w1_ref[0]       # (C1, 3)  f32, per-batch (3x3 transform + BN scale folded)

    # conv1: K=3 -> three VPU broadcast-MACs (outer products); keeps the MXU free.
    h = (w1[:, 0:1] * xt[0:1, :]
         + w1[:, 1:2] * xt[1:2, :]
         + w1[:, 2:3] * xt[2:3, :])                      # (C1, TM) f32
    h = jnp.maximum(h + b1_ref[...], 0.0)

    # conv2: bf16 MXU matmul (BN scale pre-folded), f32 accumulation, +shift, ReLU.
    h2 = jnp.dot(w2_ref[...], h.astype(jnp.bfloat16),
                 preferred_element_type=jnp.float32)     # (C2, TM)
    h2 = jnp.maximum(h2 + b2_ref[...], 0.0)

    # conv3 (this C3 chunk): bf16 MXU matmul, +shift (ReLU only for the STN branch).
    h3 = jnp.dot(w3_ref[...], h2.astype(jnp.bfloat16),
                 preferred_element_type=jnp.float32)     # (TN, TM)
    h3 = h3 + b3_ref[...]
    if last_relu:
        h3 = jnp.maximum(h3, 0.0)

    # Mask ragged point tiles (only emitted when N % TM != 0).
    if n_pts % tm != 0:
        col = jax.lax.broadcasted_iota(jnp.int32, h3.shape, 1) + t * tm
        h3 = jnp.where(col < n_pts, h3, -jnp.inf)

    # Running max over points, accumulated directly in the VMEM-resident output block.
    o_ref[0] = jnp.maximum(o_ref[0], jnp.max(h3, axis=1, keepdims=True))


def pointnet_branch(x, w1b, s1, b1, w2, s2, b2, w3, s3, b3, *, last_relu):
    """x: (B, 3, N) f32 (native NCW); w1b: (B, 3, C1) per-batch first-layer weights.
    Returns (B, C3) max-pooled per-point features."""
    B, _, N = x.shape
    C1 = w1b.shape[-1]
    C2 = w2.shape[-1]
    C3 = w3.shape[-1]

    TM = N if N <= 256 else 256          # cap point tile: bounds the (TN, TM) conv3 temp
    n_t = pl.cdiv(N, TM)
    TN = _c3_tile(C3)                    # chunk C3: smaller spill + v7x core parallelism
    n_c = C3 // TN

    # Fold BN scales into the weights (epilogue = +shift only); bf16 for the MXU.
    w1t = jnp.swapaxes(w1b.astype(jnp.float32) * s1[None, None, :], 1, 2)  # (B, C1, 3)
    w2t = (w2 * s2[None, :]).T.astype(jnp.bfloat16)                        # (C2, C1)
    w3t = (w3 * s3[None, :]).T.astype(jnp.bfloat16)                        # (C3, C2)
    b1c = b1.reshape(-1, 1).astype(jnp.float32)
    b2c = b2.reshape(-1, 1).astype(jnp.float32)
    b3c = b3.reshape(-1, 1).astype(jnp.float32)

    cost = pl.CostEstimate(
        flops=2 * B * N * (n_c * (3 * C1 + C1 * C2) + C2 * C3),
        transcendentals=0,
        bytes_accessed=(n_c * x.size * 4 + w1t.size * 4 + w2t.size * 2
                        + w3t.size * 2 + (C1 + C2 + C3) * 4 + B * C3 * 4),
    )

    out = pl.pallas_call(
        functools.partial(_pointnet_branch_kernel, last_relu, N, TM),
        out_shape=jax.ShapeDtypeStruct((B, C3, 1), jnp.float32),
        grid=(B, n_c, n_t),
        in_specs=[
            pl.BlockSpec((1, 3, TM), lambda b, c, t: (b, 0, t)),   # points (lane-dense DMA)
            pl.BlockSpec((1, C1, 3), lambda b, c, t: (b, 0, 0)),   # per-batch folded W1
            pl.BlockSpec((C1, 1), lambda b, c, t: (0, 0)),
            pl.BlockSpec((C2, C1), lambda b, c, t: (0, 0)),
            pl.BlockSpec((C2, 1), lambda b, c, t: (0, 0)),
            pl.BlockSpec((TN, C2), lambda b, c, t: (c, 0)),
            pl.BlockSpec((TN, 1), lambda b, c, t: (c, 0)),
        ],
        out_specs=pl.BlockSpec((1, TN, 1), lambda b, c, t: (b, c, 0)),
        compiler_params=pltpu.CompilerParams(
            dimension_semantics=("parallel", "parallel", "arbitrary"),
            vmem_limit_bytes=16 * 1024 * 1024,   # actual working set is well below this
        ),
        cost_estimate=cost,
    )(x.astype(jnp.float32), w1t, b1c, w2t, b2c, w3t, b3c)
    return out.reshape(B, C3)


# -----------------------------------------------------------------------------
# Kernel 2: fused 3-layer FC chain on the (B, 1024) global features.
#   fc1+BN+ReLU -> fc2+BN+ReLU -> fc3 (+optional sigmoid); bf16 matmuls with
#   BN scales folded into the weights.  Final output padded to 128 lanes
#   (lane-dense stores) and sliced in the wrapper.
#   TODO(synk): add a batch-tiled 'parallel' grid once B >= ~16 (B is tiny here).
# -----------------------------------------------------------------------------
def _fc_chain_kernel(final_act,
                     x_ref, w1_ref, b1_ref,
                     w2_ref, b2_ref, w3_ref, b3_ref, o_ref):
    # fc1 + folded BN + ReLU (bf16 MXU, f32 accumulation; scale folded into w1)
    h = jnp.dot(x_ref[...], w1_ref[...], preferred_element_type=jnp.float32)
    h = jnp.maximum(h + b1_ref[...], 0.0)
    # fc2 + folded BN + ReLU
    h = jnp.dot(h.astype(jnp.bfloat16), w2_ref[...], preferred_element_type=jnp.float32)
    h = jnp.maximum(h + b2_ref[...], 0.0)
    # fc3 (tiny, kept f32 for final-logit precision)
    h = jnp.dot(h, w3_ref[...], preferred_element_type=jnp.float32)
    h = h + b3_ref[...]
    if final_act == "sigmoid":
        h = jax.nn.sigmoid(h)
    o_ref[...] = h.astype(o_ref.dtype)


def fc_chain(x, w1, s1, b1, w2, s2, b2, w3, b3, *, final_act, out_dim):
    B, K = x.shape
    H1 = w1.shape[1]
    H2 = w2.shape[1]
    NPAD = 128
    # Fold BN scales into the weights; bf16 for the MXU.
    w1b = (w1 * s1[None, :]).astype(jnp.bfloat16)
    w2b = (w2 * s2[None, :]).astype(jnp.bfloat16)
    # Pad the narrow final layer to 128 lanes (lane-dense stores).
    w3p = jnp.zeros((H2, NPAD), jnp.float32).at[:, :w3.shape[1]].set(
        w3.astype(jnp.float32))
    b3p = jnp.zeros((1, NPAD), jnp.float32).at[:, :w3.shape[1]].set(
        b3.reshape(1, -1).astype(jnp.float32))

    def r2(v):
        return v.reshape(1, -1).astype(jnp.float32)

    cost = pl.CostEstimate(
        flops=2 * B * (K * H1 + H1 * H2 + H2 * NPAD),
        transcendentals=B * NPAD if final_act == "sigmoid" else 0,
        bytes_accessed=(x.size * 2 + w1b.size * 2 + w2b.size * 2
                        + w3p.size * 4 + B * NPAD * 4),
    )

    out = pl.pallas_call(
        functools.partial(_fc_chain_kernel, final_act),
        out_shape=jax.ShapeDtypeStruct((B, NPAD), jnp.float32),
        grid=(1,),
        in_specs=[
            pl.BlockSpec((B, K), lambda i: (0, 0)),
            pl.BlockSpec((K, H1), lambda i: (0, 0)),
            pl.BlockSpec((1, H1), lambda i: (0, 0)),
            pl.BlockSpec((H1, H2), lambda i: (0, 0)),
            pl.BlockSpec((1, H2), lambda i: (0, 0)),
            pl.BlockSpec((H2, NPAD), lambda i: (0, 0)),
            pl.BlockSpec((1, NPAD), lambda i: (0, 0)),
        ],
        out_specs=pl.BlockSpec((B, NPAD), lambda i: (0, 0)),
        compiler_params=pltpu.CompilerParams(
            dimension_semantics=("arbitrary",),
            vmem_limit_bytes=16 * 1024 * 1024,
        ),
        cost_estimate=cost,
    )(x.astype(jnp.bfloat16), w1b, r2(b1), w2b, r2(b2), w3p, b3p)
    return out[:, :out_dim]


# -----------------------------------------------------------------------------
# Deterministic parameter construction (synthetic weights, no checkpoint).
# BN (eval mode, eps=1e-5) + bias are folded into per-channel (scale, shift).
# -----------------------------------------------------------------------------
def init_params(key):
    def dense(k, cin, cout):
        kw, kb = jax.random.split(k)
        w = 0.05 * jax.random.normal(kw, (cin, cout), jnp.float32)
        b = 0.01 * jax.random.normal(kb, (cout,), jnp.float32)
        return w, b

    def bn(k, c):
        k1, k2, k3, k4 = jax.random.split(k, 4)
        gamma = 1.0 + 0.05 * jax.random.normal(k1, (c,), jnp.float32)
        beta = 0.05 * jax.random.normal(k2, (c,), jnp.float32)
        mean = 0.05 * jax.random.normal(k3, (c,), jnp.float32)
        var = 1.0 + 0.1 * jax.random.uniform(k4, (c,), jnp.float32)
        return gamma, beta, mean, var

    def dense_bn(k, cin, cout):
        k1, k2 = jax.random.split(k)
        w, b = dense(k1, cin, cout)
        gamma, beta, mean, var = bn(k2, cout)
        s = gamma * jax.lax.rsqrt(var + 1e-5)
        shift = (b - mean) * s + beta
        return w, s, shift

    keys = jax.random.split(key, 12)
    return {
        # STN3d (input transform net)
        "stn_conv1": dense_bn(keys[0], 3, 64),
        "stn_conv2": dense_bn(keys[1], 64, 128),
        "stn_conv3": dense_bn(keys[2], 128, 1024),
        "stn_fc1":   dense_bn(keys[3], 1024, 512),
        "stn_fc2":   dense_bn(keys[4], 512, 256),
        "stn_fc3":   dense(keys[5], 256, 9),
        # PointNetEncoder trunk
        "enc_conv1": dense_bn(keys[6], 3, 64),
        "enc_conv2": dense_bn(keys[7], 64, 128),
        "enc_conv3": dense_bn(keys[8], 128, 1024),
        # Classification head (Local_feature2.fc1/fc2/fc3)
        "head_fc1":  dense_bn(keys[9], 1024, 512),
        "head_fc2":  dense_bn(keys[10], 512, 256),
        "head_fc3":  dense(keys[11], 256, 33),
    }


# -----------------------------------------------------------------------------
# Full forward pass of Local_feature2 (PointNetEncoder + MLP head).
# -----------------------------------------------------------------------------
def local_feature2_forward(params, xyz):
    # xyz: (B, 3, N) float32 -- same NCW convention as the PyTorch module.
    p = params
    B, _, N = xyz.shape
    x = xyz.astype(jnp.float32)                                  # native (B, 3, N)

    # ---- STN3d: fused per-point MLP + global max, then fused FC chain ----
    w1_stn = jnp.broadcast_to(p["stn_conv1"][0][None], (B, 3, 64))
    g = pointnet_branch(x, w1_stn, p["stn_conv1"][1], p["stn_conv1"][2],
                        *p["stn_conv2"], *p["stn_conv3"], last_relu=True)
    t9 = fc_chain(g, *p["stn_fc1"], *p["stn_fc2"], *p["stn_fc3"],
                  final_act="none", out_dim=9)                   # (B, 9)
    trans = t9.reshape(B, 3, 3) + jnp.eye(3, dtype=jnp.float32)[None]

    # ---- encoder trunk: fold the 3x3 transform into conv1: (x@T)@W == x@(T@W) ----
    w1_enc = jnp.einsum("bij,jk->bik", trans, p["enc_conv1"][0])  # (B, 3, 64)
    feat = pointnet_branch(x, w1_enc, p["enc_conv1"][1], p["enc_conv1"][2],
                           *p["enc_conv2"], *p["enc_conv3"], last_relu=False)

    # ---- head: fc1+bn1+relu, dropout(eval)+fc2+bn2+relu, fc3+sigmoid ----
    out = fc_chain(feat, *p["head_fc1"], *p["head_fc2"], *p["head_fc3"],
                   final_act="sigmoid", out_dim=33)              # (B, 33)
    return out


if __name__ == "__main__":
    root = jax.random.PRNGKey(0)
    k_x, k_params = jax.random.split(root)

    B, N = 2, 16
    xyz = jax.random.normal(k_x, (B, 3, N), jnp.float32)         # (B, C=3, N) like PyTorch NCW
    params = init_params(k_params)

    fwd = jax.jit(local_feature2_forward)
    out = fwd(params, xyz)
    out = jax.block_until_ready(out)

    assert out.shape == (B, 33), out.shape
    assert bool(jnp.all(jnp.isfinite(out)))
    assert bool(jnp.all((out >= 0.0) & (out <= 1.0)))            # sigmoid output range
    print("KERNEL_OK")
</pallas_src>

<mosaic_0001>
module attributes {stable_mosaic.version = 11 : i64} {
  func.func @_pointnet_branch_kernel(%arg0: i32, %arg1: i32, %arg2: i32, %arg3: memref<1x3x16xf32, #tpu.memory_space<vmem>>, %arg4: memref<1x64x3xf32, #tpu.memory_space<vmem>>, %arg5: memref<64x1xf32, #tpu.memory_space<vmem>>, %arg6: memref<128x64xbf16, #tpu.memory_space<vmem>>, %arg7: memref<128x1xf32, #tpu.memory_space<vmem>>, %arg8: memref<512x128xbf16, #tpu.memory_space<vmem>>, %arg9: memref<512x1xf32, #tpu.memory_space<vmem>>, %arg10: memref<1x512x1xf32, #tpu.memory_space<vmem>>) attributes {dimension_semantics = [#tpu.dimension_semantics<parallel>, #tpu.dimension_semantics<parallel>, #tpu.dimension_semantics<arbitrary>], iteration_bounds = array<i64: 2, 2, 1>, scalar_prefetch = 0 : i64, scratch_operands = 0 : i64, tpu.core_type = #tpu.core_type<tc>, window_params = [{transform_indices = @transform_0, window_bounds = array<i64: 1, 3, 16>}, {transform_indices = @transform_1, window_bounds = array<i64: 1, 64, 3>}, {pipeline_mode = #tpu.pipeline_mode<synchronous>, transform_indices = @transform_2, window_bounds = array<i64: 64, 1>}, {pipeline_mode = #tpu.pipeline_mode<synchronous>, transform_indices = @transform_3, window_bounds = array<i64: 128, 64>}, {pipeline_mode = #tpu.pipeline_mode<synchronous>, transform_indices = @transform_4, window_bounds = array<i64: 128, 1>}, {transform_indices = @transform_5, window_bounds = array<i64: 512, 128>}, {transform_indices = @transform_6, window_bounds = array<i64: 512, 1>}, {transform_indices = @transform_7, window_bounds = array<i64: 1, 512, 1>}]} {
    %c0_i32 = arith.constant 0 : i32
    %0 = arith.cmpi eq, %arg2, %c0_i32 : i32
    %1 = arith.extui %0 : i1 to i32
    %c0_i32_0 = arith.constant 0 : i32
    %2 = arith.cmpi ne, %1, %c0_i32_0 : i32
    scf.if %2 {
      %cst_27 = arith.constant 0xFF800000 : f32
      %53 = vector.broadcast %cst_27 : f32 to vector<1x512x1xf32>
      %c0_28 = arith.constant 0 : index
      %c0_29 = arith.constant 0 : index
      %c0_30 = arith.constant 0 : index
      %54 = vector.load %arg10[%c0_28, %c0_29, %c0_30] : memref<1x512x1xf32, #tpu.memory_space<vmem>>, vector<1x512x1xf32>
      tpu.vector_store %arg10[%c0_28, %c0_29, %c0_30], %53 {strides = array<i32>} : memref<1x512x1xf32, #tpu.memory_space<vmem>>, vector<1x512x1xf32>,
    } else {
    }
    %c0 = arith.constant 0 : index
    %c0_1 = arith.constant 0 : index
    %c0_2 = arith.constant 0 : index
    %3 = vector.load %arg3[%c0, %c0_1, %c0_2] : memref<1x3x16xf32, #tpu.memory_space<vmem>>, vector<1x3x16xf32>
    %4 = vector.shape_cast %3 : vector<1x3x16xf32> to vector<3x16xf32>
    %c0_3 = arith.constant 0 : index
    %c0_4 = arith.constant 0 : index
    %c0_5 = arith.constant 0 : index
    %5 = vector.load %arg4[%c0_3, %c0_4, %c0_5] : memref<1x64x3xf32, #tpu.memory_space<vmem>>, vector<1x64x3xf32>
    %6 = vector.shape_cast %5 : vector<1x64x3xf32> to vector<64x3xf32>
    %7 = vector.extract_strided_slice %6 {offsets = [0, 0], sizes = [64, 1], strides = [1, 1]} : vector<64x3xf32> to vector<64x1xf32>
    %8 = vector.extract_strided_slice %4 {offsets = [0, 0], sizes = [1, 16], strides = [1, 1]} : vector<3x16xf32> to vector<1x16xf32>
    %9 = vector.broadcast %7 : vector<64x1xf32> to vector<64x16xf32>
    %10 = vector.broadcast %8 : vector<1x16xf32> to vector<64x16xf32>
    %11 = arith.mulf %9, %10 : vector<64x16xf32>
    %12 = vector.extract_strided_slice %6 {offsets = [0, 1], sizes = [64, 1], strides = [1, 1]} : vector<64x3xf32> to vector<64x1xf32>
    %13 = vector.extract_strided_slice %4 {offsets = [1, 0], sizes = [1, 16], strides = [1, 1]} : vector<3x16xf32> to vector<1x16xf32>
    %14 = vector.broadcast %12 : vector<64x1xf32> to vector<64x16xf32>
    %15 = vector.broadcast %13 : vector<1x16xf32> to vector<64x16xf32>
    %16 = arith.mulf %14, %15 : vector<64x16xf32>
    %17 = arith.addf %11, %16 : vector<64x16xf32>
    %18 = vector.extract_strided_slice %6 {offsets = [0, 2], sizes = [64, 1], strides = [1, 1]} : vector<64x3xf32> to vector<64x1xf32>
    %19 = vector.extract_strided_slice %4 {offsets = [2, 0], sizes = [1, 16], strides = [1, 1]} : vector<3x16xf32> to vector<1x16xf32>
    %20 = vector.broadcast %18 : vector<64x1xf32> to vector<64x16xf32>
    %21 = vector.broadcast %19 : vector<1x16xf32> to vector<64x16xf32>
    %22 = arith.mulf %20, %21 : vector<64x16xf32>
    %23 = arith.addf %17, %22 : vector<64x16xf32>
    %c0_6 = arith.constant 0 : index
    %c0_7 = arith.constant 0 : index
    %24 = vector.load %arg5[%c0_6, %c0_7] : memref<64x1xf32, #tpu.memory_space<vmem>>, vector<64x1xf32>
    %25 = vector.broadcast %24 : vector<64x1xf32> to vector<64x16xf32>
    %26 = arith.addf %23, %25 : vector<64x16xf32>
    %cst = arith.constant 0.000000e+00 : f32
    %27 = vector.broadcast %cst : f32 to vector<64x16xf32>
    %28 = arith.maximumf %26, %27 : vector<64x16xf32>
    %c0_8 = arith.constant 0 : index
    %c0_9 = arith.constant 0 : index
    %29 = vector.load %arg6[%c0_8, %c0_9] : memref<128x64xbf16, #tpu.memory_space<vmem>>, vector<128x64xbf16>
    %30 = arith.truncf %28 : vector<64x16xf32> to vector<64x16xbf16>
    %cst_10 = arith.constant dense<0.000000e+00> : vector<128x16xf32>
    %31 = tpu.matmul %29, %30, %cst_10 {dimension_numbers = #tpu.dot_dimension_numbers<[1], [0], [0], [1], [0, 0, 1, 1], [], []>} : vector<128x64xbf16>, vector<64x16xbf16>, vector<128x16xf32> -> vector<128x16xf32>
    %c0_11 = arith.constant 0 : index
    %c0_12 = arith.constant 0 : index
    %32 = vector.load %arg7[%c0_11, %c0_12] : memref<128x1xf32, #tpu.memory_space<vmem>>, vector<128x1xf32>
    %33 = vector.broadcast %32 : vector<128x1xf32> to vector<128x16xf32>
    %34 = arith.addf %31, %33 : vector<128x16xf32>
    %cst_13 = arith.constant 0.000000e+00 : f32
    %35 = vector.broadcast %cst_13 : f32 to vector<128x16xf32>
    %36 = arith.maximumf %34, %35 : vector<128x16xf32>
    %c0_14 = arith.constant 0 : index
    %c0_15 = arith.constant 0 : index
    %37 = vector.load %arg8[%c0_14, %c0_15] : memref<512x128xbf16, #tpu.memory_space<vmem>>, vector<512x128xbf16>
    %38 = arith.truncf %36 : vector<128x16xf32> to vector<128x16xbf16>
    %cst_16 = arith.constant dense<0.000000e+00> : vector<512x16xf32>
    %39 = tpu.matmul %37, %38, %cst_16 {dimension_numbers = #tpu.dot_dimension_numbers<[1], [0], [0], [1], [0, 0, 1, 1], [], []>} : vector<512x128xbf16>, vector<128x16xbf16>, vector<512x16xf32> -> vector<512x16xf32>
    %c0_17 = arith.constant 0 : index
    %c0_18 = arith.constant 0 : index
    %40 = vector.load %arg9[%c0_17, %c0_18] : memref<512x1xf32, #tpu.memory_space<vmem>>, vector<512x1xf32>
    %41 = vector.broadcast %40 : vector<512x1xf32> to vector<512x16xf32>
    %42 = arith.addf %39, %41 : vector<512x16xf32>
    %cst_19 = arith.constant 0.000000e+00 : f32
    %43 = vector.broadcast %cst_19 : f32 to vector<512x16xf32>
    %44 = arith.maximumf %42, %43 : vector<512x16xf32>
    %c0_20 = arith.constant 0 : index
    %c0_21 = arith.constant 0 : index
    %c0_22 = arith.constant 0 : index
    %45 = vector.load %arg10[%c0_20, %c0_21, %c0_22] : memref<1x512x1xf32, #tpu.memory_space<vmem>>, vector<1x512x1xf32>
    %46 = vector.shape_cast %45 : vector<1x512x1xf32> to vector<512x1xf32>
    %cst_23 = arith.constant dense<0xFF800000> : vector<512xf32>
    %47 = vector.multi_reduction <maximumf>, %44, %cst_23 [1] : vector<512x16xf32> to vector<512xf32>
    %48 = vector.shape_cast %47 : vector<512xf32> to vector<512x1xf32>
    %49 = arith.maximumf %46, %48 : vector<512x1xf32>
    %c0_24 = arith.constant 0 : index
    %c0_25 = arith.constant 0 : index
    %c0_26 = arith.constant 0 : index
    %50 = vector.load %arg10[%c0_24, %c0_25, %c0_26] : memref<1x512x1xf32, #tpu.memory_space<vmem>>, vector<1x512x1xf32>
    %51 = vector.shape_cast %50 : vector<1x512x1xf32> to vector<512x1xf32>
    %52 = vector.shape_cast %49 : vector<512x1xf32> to vector<1x512x1xf32>
    tpu.vector_store %arg10[%c0_24, %c0_25, %c0_26], %52 {strides = array<i32>} : memref<1x512x1xf32, #tpu.memory_space<vmem>>, vector<1x512x1xf32>,
    return
  }
  func.func @transform_0(%arg0: i32, %arg1: i32, %arg2: i32) -> (i32, i32, i32) {
    %c0_i32 = arith.constant 0 : i32
    %c0_i32_0 = arith.constant 0 : i32
    return %arg0, %c0_i32, %arg2 : i32, i32, i32
  }
  func.func @transform_1(%arg0: i32, %arg1: i32, %arg2: i32) -> (i32, i32, i32) {
    %c0_i32 = arith.constant 0 : i32
    %c0_i32_0 = arith.constant 0 : i32
    %c0_i32_1 = arith.constant 0 : i32
    return %arg0, %c0_i32, %c0_i32_0 : i32, i32, i32
  }
  func.func @transform_2(%arg0: i32, %arg1: i32, %arg2: i32) -> (i32, i32) {
    %c0_i32 = arith.constant 0 : i32
    %c0_i32_0 = arith.constant 0 : i32
    %c0_i32_1 = arith.constant 0 : i32
    return %c0_i32, %c0_i32_0 : i32, i32
  }
  func.func @transform_3(%arg0: i32, %arg1: i32, %arg2: i32) -> (i32, i32) {
    %c0_i32 = arith.constant 0 : i32
    %c0_i32_0 = arith.constant 0 : i32
    %c0_i32_1 = arith.constant 0 : i32
    return %c0_i32, %c0_i32_0 : i32, i32
  }
  func.func @transform_4(%arg0: i32, %arg1: i32, %arg2: i32) -> (i32, i32) {
    %c0_i32 = arith.constant 0 : i32
    %c0_i32_0 = arith.constant 0 : i32
    %c0_i32_1 = arith.constant 0 : i32
    return %c0_i32, %c0_i32_0 : i32, i32
  }
  func.func @transform_5(%arg0: i32, %arg1: i32, %arg2: i32) -> (i32, i32) {
    %c0_i32 = arith.constant 0 : i32
    %c0_i32_0 = arith.constant 0 : i32
    return %arg1, %c0_i32 : i32, i32
  }
  func.func @transform_6(%arg0: i32, %arg1: i32, %arg2: i32) -> (i32, i32) {
    %c0_i32 = arith.constant 0 : i32
    %c0_i32_0 = arith.constant 0 : i32
    return %arg1, %c0_i32 : i32, i32
  }
  func.func @transform_7(%arg0: i32, %arg1: i32, %arg2: i32) -> (i32, i32, i32) {
    %c0_i32 = arith.constant 0 : i32
    %c0_i32_0 = arith.constant 0 : i32
    return %arg0, %arg1, %c0_i32 : i32, i32, i32
  }
}

module attributes {stable_mosaic.version = 11 : i64} {
  func.func @_fc_chain_kernel(%arg0: i32, %arg1: memref<2x1024xbf16, #tpu.memory_space<vmem>>, %arg2: memref<1024x512xbf16, #tpu.memory_space<vmem>>, %arg3: memref<1x512xf32, #tpu.memory_space<vmem>>, %arg4: memref<512x256xbf16, #tpu.memory_space<vmem>>, %arg5: memref<1x256xf32, #tpu.memory_space<vmem>>, %arg6: memref<256x128xf32, #tpu.memory_space<vmem>>, %arg7: memref<1x128xf32, #tpu.memory_space<vmem>>, %arg8: memref<2x128xf32, #tpu.memory_space<vmem>>) attributes {dimension_semantics = [#tpu.dimension_semantics<arbitrary>], iteration_bounds = array<i64: 1>, scalar_prefetch = 0 : i64, scratch_operands = 0 : i64, tpu.core_type = #tpu.core_type<tc>, window_params = [{pipeline_mode = #tpu.pipeline_mode<synchronous>, transform_indices = @transform_0, window_bounds = array<i64: 2, 1024>}, {pipeline_mode = #tpu.pipeline_mode<synchronous>, transform_indices = @transform_1, window_bounds = array<i64: 1024, 512>}, {pipeline_mode = #tpu.pipeline_mode<synchronous>, transform_indices = @transform_2, window_bounds = array<i64: 1, 512>}, {pipeline_mode = #tpu.pipeline_mode<synchronous>, transform_indices = @transform_3, window_bounds = array<i64: 512, 256>}, {pipeline_mode = #tpu.pipeline_mode<synchronous>, transform_indices = @transform_4, window_bounds = array<i64: 1, 256>}, {pipeline_mode = #tpu.pipeline_mode<synchronous>, transform_indices = @transform_5, window_bounds = array<i64: 256, 128>}, {pipeline_mode = #tpu.pipeline_mode<synchronous>, transform_indices = @transform_6, window_bounds = array<i64: 1, 128>}, {pipeline_mode = #tpu.pipeline_mode<synchronous>, transform_indices = @transform_7, window_bounds = array<i64: 2, 128>}]} {
    %c0 = arith.constant 0 : index
    %c0_0 = arith.constant 0 : index
    %0 = vector.load %arg1[%c0, %c0_0] : memref<2x1024xbf16, #tpu.memory_space<vmem>>, vector<2x1024xbf16>
    %c0_1 = arith.constant 0 : index
    %c0_2 = arith.constant 0 : index
    %1 = vector.load %arg2[%c0_1, %c0_2] : memref<1024x512xbf16, #tpu.memory_space<vmem>>, vector<1024x512xbf16>
    %cst = arith.constant dense<0.000000e+00> : vector<2x512xf32>
    %2 = tpu.matmul %0, %1, %cst {dimension_numbers = #tpu.dot_dimension_numbers<[1], [0], [0], [1], [0, 0, 1, 1], [], []>} : vector<2x1024xbf16>, vector<1024x512xbf16>, vector<2x512xf32> -> vector<2x512xf32>
    %c0_3 = arith.constant 0 : index
    %c0_4 = arith.constant 0 : index
    %3 = vector.load %arg3[%c0_3, %c0_4] : memref<1x512xf32, #tpu.memory_space<vmem>>, vector<1x512xf32>
    %4 = vector.broadcast %3 : vector<1x512xf32> to vector<2x512xf32>
    %5 = arith.addf %2, %4 : vector<2x512xf32>
    %cst_5 = arith.constant 0.000000e+00 : f32
    %6 = vector.broadcast %cst_5 : f32 to vector<2x512xf32>
    %7 = arith.maximumf %5, %6 : vector<2x512xf32>
    %8 = arith.truncf %7 : vector<2x512xf32> to vector<2x512xbf16>
    %c0_6 = arith.constant 0 : index
    %c0_7 = arith.constant 0 : index
    %9 = vector.load %arg4[%c0_6, %c0_7] : memref<512x256xbf16, #tpu.memory_space<vmem>>, vector<512x256xbf16>
    %cst_8 = arith.constant dense<0.000000e+00> : vector<2x256xf32>
    %10 = tpu.matmul %8, %9, %cst_8 {dimension_numbers = #tpu.dot_dimension_numbers<[1], [0], [0], [1], [0, 0, 1, 1], [], []>} : vector<2x512xbf16>, vector<512x256xbf16>, vector<2x256xf32> -> vector<2x256xf32>
    %c0_9 = arith.constant 0 : index
    %c0_10 = arith.constant 0 : index
    %11 = vector.load %arg5[%c0_9, %c0_10] : memref<1x256xf32, #tpu.memory_space<vmem>>, vector<1x256xf32>
    %12 = vector.broadcast %11 : vector<1x256xf32> to vector<2x256xf32>
    %13 = arith.addf %10, %12 : vector<2x256xf32>
    %cst_11 = arith.constant 0.000000e+00 : f32
    %14 = vector.broadcast %cst_11 : f32 to vector<2x256xf32>
    %15 = arith.maximumf %13, %14 : vector<2x256xf32>
    %c0_12 = arith.constant 0 : index
    %c0_13 = arith.constant 0 : index
    %16 = vector.load %arg6[%c0_12, %c0_13] : memref<256x128xf32, #tpu.memory_space<vmem>>, vector<256x128xf32>
    %cst_14 = arith.constant dense<0.000000e+00> : vector<2x128xf32>
    %17 = tpu.matmul %15, %16, %cst_14 {dimension_numbers = #tpu.dot_dimension_numbers<[1], [0], [0], [1], [0, 0, 1, 1], [], []>} : vector<2x256xf32>, vector<256x128xf32>, vector<2x128xf32> -> vector<2x128xf32>
    %c0_15 = arith.constant 0 : index
    %c0_16 = arith.constant 0 : index
    %18 = vector.load %arg7[%c0_15, %c0_16] : memref<1x128xf32, #tpu.memory_space<vmem>>, vector<1x128xf32>
    %19 = vector.broadcast %18 : vector<1x128xf32> to vector<2x128xf32>
    %20 = arith.addf %17, %19 : vector<2x128xf32>
    %c0_17 = arith.constant 0 : index
    %c0_18 = arith.constant 0 : index
    %21 = vector.load %arg8[%c0_17, %c0_18] : memref<2x128xf32, #tpu.memory_space<vmem>>, vector<2x128xf32>
    tpu.vector_store %arg8[%c0_17, %c0_18], %20 {strides = array<i32>} : memref<2x128xf32, #tpu.memory_space<vmem>>, vector<2x128xf32>,
    return
  }
  func.func @transform_0(%arg0: i32) -> (i32, i32) {
    %c0_i32 = arith.constant 0 : i32
    %c0_i32_0 = arith.constant 0 : i32
    %c0_i32_1 = arith.constant 0 : i32
    return %c0_i32, %c0_i32_0 : i32, i32
  }
  func.func @transform_1(%arg0: i32) -> (i32, i32) {
    %c0_i32 = arith.constant 0 : i32
    %c0_i32_0 = arith.constant 0 : i32
    %c0_i32_1 = arith.constant 0 : i32
    return %c0_i32, %c0_i32_0 : i32, i32
  }
  func.func @transform_2(%arg0: i32) -> (i32, i32) {
    %c0_i32 = arith.constant 0 : i32
    %c0_i32_0 = arith.constant 0 : i32
    %c0_i32_1 = arith.constant 0 : i32
    return %c0_i32, %c0_i32_0 : i32, i32
  }
  func.func @transform_3(%arg0: i32) -> (i32, i32) {
    %c0_i32 = arith.constant 0 : i32
    %c0_i32_0 = arith.constant 0 : i32
    %c0_i32_1 = arith.constant 0 : i32
    return %c0_i32, %c0_i32_0 : i32, i32
  }
  func.func @transform_4(%arg0: i32) -> (i32, i32) {
    %c0_i32 = arith.constant 0 : i32
    %c0_i32_0 = arith.constant 0 : i32
    %c0_i32_1 = arith.constant 0 : i32
    return %c0_i32, %c0_i32_0 : i32, i32
  }
  func.func @transform_5(%arg0: i32) -> (i32, i32) {
    %c0_i32 = arith.constant 0 : i32
    %c0_i32_0 = arith.constant 0 : i32
    %c0_i32_1 = arith.constant 0 : i32
    return %c0_i32, %c0_i32_0 : i32, i32
  }
  func.func @transform_6(%arg0: i32) -> (i32, i32) {
    %c0_i32 = arith.constant 0 : i32
    %c0_i32_0 = arith.constant 0 : i32
    %c0_i32_1 = arith.constant 0 : i32
    return %c0_i32, %c0_i32_0 : i32, i32
  }
  func.func @transform_7(%arg0: i32) -> (i32, i32) {
    %c0_i32 = arith.constant 0 : i32
    %c0_i32_0 = arith.constant 0 : i32
    %c0_i32_1 = arith.constant 0 : i32
    return %c0_i32, %c0_i32_0 : i32, i32
  }
}

module attributes {stable_mosaic.version = 11 : i64} {
  func.func @_pointnet_branch_kernel(%arg0: i32, %arg1: i32, %arg2: i32, %arg3: memref<1x3x16xf32, #tpu.memory_space<vmem>>, %arg4: memref<1x64x3xf32, #tpu.memory_space<vmem>>, %arg5: memref<64x1xf32, #tpu.memory_space<vmem>>, %arg6: memref<128x64xbf16, #tpu.memory_space<vmem>>, %arg7: memref<128x1xf32, #tpu.memory_space<vmem>>, %arg8: memref<512x128xbf16, #tpu.memory_space<vmem>>, %arg9: memref<512x1xf32, #tpu.memory_space<vmem>>, %arg10: memref<1x512x1xf32, #tpu.memory_space<vmem>>) attributes {dimension_semantics = [#tpu.dimension_semantics<parallel>, #tpu.dimension_semantics<parallel>, #tpu.dimension_semantics<arbitrary>], iteration_bounds = array<i64: 2, 2, 1>, scalar_prefetch = 0 : i64, scratch_operands = 0 : i64, tpu.core_type = #tpu.core_type<tc>, window_params = [{transform_indices = @transform_0, window_bounds = array<i64: 1, 3, 16>}, {transform_indices = @transform_1, window_bounds = array<i64: 1, 64, 3>}, {pipeline_mode = #tpu.pipeline_mode<synchronous>, transform_indices = @transform_2, window_bounds = array<i64: 64, 1>}, {pipeline_mode = #tpu.pipeline_mode<synchronous>, transform_indices = @transform_3, window_bounds = array<i64: 128, 64>}, {pipeline_mode = #tpu.pipeline_mode<synchronous>, transform_indices = @transform_4, window_bounds = array<i64: 128, 1>}, {transform_indices = @transform_5, window_bounds = array<i64: 512, 128>}, {transform_indices = @transform_6, window_bounds = array<i64: 512, 1>}, {transform_indices = @transform_7, window_bounds = array<i64: 1, 512, 1>}]} {
    %c0_i32 = arith.constant 0 : i32
    %0 = arith.cmpi eq, %arg2, %c0_i32 : i32
    %1 = arith.extui %0 : i1 to i32
    %c0_i32_0 = arith.constant 0 : i32
    %2 = arith.cmpi ne, %1, %c0_i32_0 : i32
    scf.if %2 {
      %cst_26 = arith.constant 0xFF800000 : f32
      %51 = vector.broadcast %cst_26 : f32 to vector<1x512x1xf32>
      %c0_27 = arith.constant 0 : index
      %c0_28 = arith.constant 0 : index
      %c0_29 = arith.constant 0 : index
      %52 = vector.load %arg10[%c0_27, %c0_28, %c0_29] : memref<1x512x1xf32, #tpu.memory_space<vmem>>, vector<1x512x1xf32>
      tpu.vector_store %arg10[%c0_27, %c0_28, %c0_29], %51 {strides = array<i32>} : memref<1x512x1xf32, #tpu.memory_space<vmem>>, vector<1x512x1xf32>,
    } else {
    }
    %c0 = arith.constant 0 : index
    %c0_1 = arith.constant 0 : index
    %c0_2 = arith.constant 0 : index
    %3 = vector.load %arg3[%c0, %c0_1, %c0_2] : memref<1x3x16xf32, #tpu.memory_space<vmem>>, vector<1x3x16xf32>
    %4 = vector.shape_cast %3 : vector<1x3x16xf32> to vector<3x16xf32>
    %c0_3 = arith.constant 0 : index
    %c0_4 = arith.constant 0 : index
    %c0_5 = arith.constant 0 : index
    %5 = vector.load %arg4[%c0_3, %c0_4, %c0_5] : memref<1x64x3xf32, #tpu.memory_space<vmem>>, vector<1x64x3xf32>
    %6 = vector.shape_cast %5 : vector<1x64x3xf32> to vector<64x3xf32>
    %7 = vector.extract_strided_slice %6 {offsets = [0, 0], sizes = [64, 1], strides = [1, 1]} : vector<64x3xf32> to vector<64x1xf32>
    %8 = vector.extract_strided_slice %4 {offsets = [0, 0], sizes = [1, 16], strides = [1, 1]} : vector<3x16xf32> to vector<1x16xf32>
    %9 = vector.broadcast %7 : vector<64x1xf32> to vector<64x16xf32>
    %10 = vector.broadcast %8 : vector<1x16xf32> to vector<64x16xf32>
    %11 = arith.mulf %9, %10 : vector<64x16xf32>
    %12 = vector.extract_strided_slice %6 {offsets = [0, 1], sizes = [64, 1], strides = [1, 1]} : vector<64x3xf32> to vector<64x1xf32>
    %13 = vector.extract_strided_slice %4 {offsets = [1, 0], sizes = [1, 16], strides = [1, 1]} : vector<3x16xf32> to vector<1x16xf32>
    %14 = vector.broadcast %12 : vector<64x1xf32> to vector<64x16xf32>
    %15 = vector.broadcast %13 : vector<1x16xf32> to vector<64x16xf32>
    %16 = arith.mulf %14, %15 : vector<64x16xf32>
    %17 = arith.addf %11, %16 : vector<64x16xf32>
    %18 = vector.extract_strided_slice %6 {offsets = [0, 2], sizes = [64, 1], strides = [1, 1]} : vector<64x3xf32> to vector<64x1xf32>
    %19 = vector.extract_strided_slice %4 {offsets = [2, 0], sizes = [1, 16], strides = [1, 1]} : vector<3x16xf32> to vector<1x16xf32>
    %20 = vector.broadcast %18 : vector<64x1xf32> to vector<64x16xf32>
    %21 = vector.broadcast %19 : vector<1x16xf32> to vector<64x16xf32>
    %22 = arith.mulf %20, %21 : vector<64x16xf32>
    %23 = arith.addf %17, %22 : vector<64x16xf32>
    %c0_6 = arith.constant 0 : index
    %c0_7 = arith.constant 0 : index
    %24 = vector.load %arg5[%c0_6, %c0_7] : memref<64x1xf32, #tpu.memory_space<vmem>>, vector<64x1xf32>
    %25 = vector.broadcast %24 : vector<64x1xf32> to vector<64x16xf32>
    %26 = arith.addf %23, %25 : vector<64x16xf32>
    %cst = arith.constant 0.000000e+00 : f32
    %27 = vector.broadcast %cst : f32 to vector<64x16xf32>
    %28 = arith.maximumf %26, %27 : vector<64x16xf32>
    %c0_8 = arith.constant 0 : index
    %c0_9 = arith.constant 0 : index
    %29 = vector.load %arg6[%c0_8, %c0_9] : memref<128x64xbf16, #tpu.memory_space<vmem>>, vector<128x64xbf16>
    %30 = arith.truncf %28 : vector<64x16xf32> to vector<64x16xbf16>
    %cst_10 = arith.constant dense<0.000000e+00> : vector<128x16xf32>
    %31 = tpu.matmul %29, %30, %cst_10 {dimension_numbers = #tpu.dot_dimension_numbers<[1], [0], [0], [1], [0, 0, 1, 1], [], []>} : vector<128x64xbf16>, vector<64x16xbf16>, vector<128x16xf32> -> vector<128x16xf32>
    %c0_11 = arith.constant 0 : index
    %c0_12 = arith.constant 0 : index
    %32 = vector.load %arg7[%c0_11, %c0_12] : memref<128x1xf32, #tpu.memory_space<vmem>>, vector<128x1xf32>
    %33 = vector.broadcast %32 : vector<128x1xf32> to vector<128x16xf32>
    %34 = arith.addf %31, %33 : vector<128x16xf32>
    %cst_13 = arith.constant 0.000000e+00 : f32
    %35 = vector.broadcast %cst_13 : f32 to vector<128x16xf32>
    %36 = arith.maximumf %34, %35 : vector<128x16xf32>
    %c0_14 = arith.constant 0 : index
    %c0_15 = arith.constant 0 : index
    %37 = vector.load %arg8[%c0_14, %c0_15] : memref<512x128xbf16, #tpu.memory_space<vmem>>, vector<512x128xbf16>
    %38 = arith.truncf %36 : vector<128x16xf32> to vector<128x16xbf16>
    %cst_16 = arith.constant dense<0.000000e+00> : vector<512x16xf32>
    %39 = tpu.matmul %37, %38, %cst_16 {dimension_numbers = #tpu.dot_dimension_numbers<[1], [0], [0], [1], [0, 0, 1, 1], [], []>} : vector<512x128xbf16>, vector<128x16xbf16>, vector<512x16xf32> -> vector<512x16xf32>
    %c0_17 = arith.constant 0 : index
    %c0_18 = arith.constant 0 : index
    %40 = vector.load %arg9[%c0_17, %c0_18] : memref<512x1xf32, #tpu.memory_space<vmem>>, vector<512x1xf32>
    %41 = vector.broadcast %40 : vector<512x1xf32> to vector<512x16xf32>
    %42 = arith.addf %39, %41 : vector<512x16xf32>
    %c0_19 = arith.constant 0 : index
    %c0_20 = arith.constant 0 : index
    %c0_21 = arith.constant 0 : index
    %43 = vector.load %arg10[%c0_19, %c0_20, %c0_21] : memref<1x512x1xf32, #tpu.memory_space<vmem>>, vector<1x512x1xf32>
    %44 = vector.shape_cast %43 : vector<1x512x1xf32> to vector<512x1xf32>
    %cst_22 = arith.constant dense<0xFF800000> : vector<512xf32>
    %45 = vector.multi_reduction <maximumf>, %42, %cst_22 [1] : vector<512x16xf32> to vector<512xf32>
    %46 = vector.shape_cast %45 : vector<512xf32> to vector<512x1xf32>
    %47 = arith.maximumf %44, %46 : vector<512x1xf32>
    %c0_23 = arith.constant 0 : index
    %c0_24 = arith.constant 0 : index
    %c0_25 = arith.constant 0 : index
    %48 = vector.load %arg10[%c0_23, %c0_24, %c0_25] : memref<1x512x1xf32, #tpu.memory_space<vmem>>, vector<1x512x1xf32>
    %49 = vector.shape_cast %48 : vector<1x512x1xf32> to vector<512x1xf32>
    %50 = vector.shape_cast %47 : vector<512x1xf32> to vector<1x512x1xf32>
    tpu.vector_store %arg10[%c0_23, %c0_24, %c0_25], %50 {strides = array<i32>} : memref<1x512x1xf32, #tpu.memory_space<vmem>>, vector<1x512x1xf32>,
    return
  }
  func.func @transform_0(%arg0: i32, %arg1: i32, %arg2: i32) -> (i32, i32, i32) {
    %c0_i32 = arith.constant 0 : i32
    %c0_i32_0 = arith.constant 0 : i32
    return %arg0, %c0_i32, %arg2 : i32, i32, i32
  }
  func.func @transform_1(%arg0: i32, %arg1: i32, %arg2: i32) -> (i32, i32, i32) {
    %c0_i32 = arith.constant 0 : i32
    %c0_i32_0 = arith.constant 0 : i32
    %c0_i32_1 = arith.constant 0 : i32
    return %arg0, %c0_i32, %c0_i32_0 : i32, i32, i32
  }
  func.func @transform_2(%arg0: i32, %arg1: i32, %arg2: i32) -> (i32, i32) {
    %c0_i32 = arith.constant 0 : i32
    %c0_i32_0 = arith.constant 0 : i32
    %c0_i32_1 = arith.constant 0 : i32
    return %c0_i32, %c0_i32_0 : i32, i32
  }
  func.func @transform_3(%arg0: i32, %arg1: i32, %arg2: i32) -> (i32, i32) {
    %c0_i32 = arith.constant 0 : i32
    %c0_i32_0 = arith.constant 0 : i32
    %c0_i32_1 = arith.constant 0 : i32
    return %c0_i32, %c0_i32_0 : i32, i32
  }
  func.func @transform_4(%arg0: i32, %arg1: i32, %arg2: i32) -> (i32, i32) {
    %c0_i32 = arith.constant 0 : i32
    %c0_i32_0 = arith.constant 0 : i32
    %c0_i32_1 = arith.constant 0 : i32
    return %c0_i32, %c0_i32_0 : i32, i32
  }
  func.func @transform_5(%arg0: i32, %arg1: i32, %arg2: i32) -> (i32, i32) {
    %c0_i32 = arith.constant 0 : i32
    %c0_i32_0 = arith.constant 0 : i32
    return %arg1, %c0_i32 : i32, i32
  }
  func.func @transform_6(%arg0: i32, %arg1: i32, %arg2: i32) -> (i32, i32) {
    %c0_i32 = arith.constant 0 : i32
    %c0_i32_0 = arith.constant 0 : i32
    return %arg1, %c0_i32 : i32, i32
  }
  func.func @transform_7(%arg0: i32, %arg1: i32, %arg2: i32) -> (i32, i32, i32) {
    %c0_i32 = arith.constant 0 : i32
    %c0_i32_0 = arith.constant 0 : i32
    return %arg0, %arg1, %c0_i32 : i32, i32, i32
  }
}

module attributes {stable_mosaic.version = 11 : i64} {
  func.func @_fc_chain_kernel(%arg0: i32, %arg1: memref<2x1024xbf16, #tpu.memory_space<vmem>>, %arg2: memref<1024x512xbf16, #tpu.memory_space<vmem>>, %arg3: memref<1x512xf32, #tpu.memory_space<vmem>>, %arg4: memref<512x256xbf16, #tpu.memory_space<vmem>>, %arg5: memref<1x256xf32, #tpu.memory_space<vmem>>, %arg6: memref<256x128xf32, #tpu.memory_space<vmem>>, %arg7: memref<1x128xf32, #tpu.memory_space<vmem>>, %arg8: memref<2x128xf32, #tpu.memory_space<vmem>>) attributes {dimension_semantics = [#tpu.dimension_semantics<arbitrary>], iteration_bounds = array<i64: 1>, scalar_prefetch = 0 : i64, scratch_operands = 0 : i64, tpu.core_type = #tpu.core_type<tc>, window_params = [{pipeline_mode = #tpu.pipeline_mode<synchronous>, transform_indices = @transform_0, window_bounds = array<i64: 2, 1024>}, {pipeline_mode = #tpu.pipeline_mode<synchronous>, transform_indices = @transform_1, window_bounds = array<i64: 1024, 512>}, {pipeline_mode = #tpu.pipeline_mode<synchronous>, transform_indices = @transform_2, window_bounds = array<i64: 1, 512>}, {pipeline_mode = #tpu.pipeline_mode<synchronous>, transform_indices = @transform_3, window_bounds = array<i64: 512, 256>}, {pipeline_mode = #tpu.pipeline_mode<synchronous>, transform_indices = @transform_4, window_bounds = array<i64: 1, 256>}, {pipeline_mode = #tpu.pipeline_mode<synchronous>, transform_indices = @transform_5, window_bounds = array<i64: 256, 128>}, {pipeline_mode = #tpu.pipeline_mode<synchronous>, transform_indices = @transform_6, window_bounds = array<i64: 1, 128>}, {pipeline_mode = #tpu.pipeline_mode<synchronous>, transform_indices = @transform_7, window_bounds = array<i64: 2, 128>}]} {
    %c0 = arith.constant 0 : index
    %c0_0 = arith.constant 0 : index
    %0 = vector.load %arg1[%c0, %c0_0] : memref<2x1024xbf16, #tpu.memory_space<vmem>>, vector<2x1024xbf16>
    %c0_1 = arith.constant 0 : index
    %c0_2 = arith.constant 0 : index
    %1 = vector.load %arg2[%c0_1, %c0_2] : memref<1024x512xbf16, #tpu.memory_space<vmem>>, vector<1024x512xbf16>
    %cst = arith.constant dense<0.000000e+00> : vector<2x512xf32>
    %2 = tpu.matmul %0, %1, %cst {dimension_numbers = #tpu.dot_dimension_numbers<[1], [0], [0], [1], [0, 0, 1, 1], [], []>} : vector<2x1024xbf16>, vector<1024x512xbf16>, vector<2x512xf32> -> vector<2x512xf32>
    %c0_3 = arith.constant 0 : index
    %c0_4 = arith.constant 0 : index
    %3 = vector.load %arg3[%c0_3, %c0_4] : memref<1x512xf32, #tpu.memory_space<vmem>>, vector<1x512xf32>
    %4 = vector.broadcast %3 : vector<1x512xf32> to vector<2x512xf32>
    %5 = arith.addf %2, %4 : vector<2x512xf32>
    %cst_5 = arith.constant 0.000000e+00 : f32
    %6 = vector.broadcast %cst_5 : f32 to vector<2x512xf32>
    %7 = arith.maximumf %5, %6 : vector<2x512xf32>
    %8 = arith.truncf %7 : vector<2x512xf32> to vector<2x512xbf16>
    %c0_6 = arith.constant 0 : index
    %c0_7 = arith.constant 0 : index
    %9 = vector.load %arg4[%c0_6, %c0_7] : memref<512x256xbf16, #tpu.memory_space<vmem>>, vector<512x256xbf16>
    %cst_8 = arith.constant dense<0.000000e+00> : vector<2x256xf32>
    %10 = tpu.matmul %8, %9, %cst_8 {dimension_numbers = #tpu.dot_dimension_numbers<[1], [0], [0], [1], [0, 0, 1, 1], [], []>} : vector<2x512xbf16>, vector<512x256xbf16>, vector<2x256xf32> -> vector<2x256xf32>
    %c0_9 = arith.constant 0 : index
    %c0_10 = arith.constant 0 : index
    %11 = vector.load %arg5[%c0_9, %c0_10] : memref<1x256xf32, #tpu.memory_space<vmem>>, vector<1x256xf32>
    %12 = vector.broadcast %11 : vector<1x256xf32> to vector<2x256xf32>
    %13 = arith.addf %10, %12 : vector<2x256xf32>
    %cst_11 = arith.constant 0.000000e+00 : f32
    %14 = vector.broadcast %cst_11 : f32 to vector<2x256xf32>
    %15 = arith.maximumf %13, %14 : vector<2x256xf32>
    %c0_12 = arith.constant 0 : index
    %c0_13 = arith.constant 0 : index
    %16 = vector.load %arg6[%c0_12, %c0_13] : memref<256x128xf32, #tpu.memory_space<vmem>>, vector<256x128xf32>
    %cst_14 = arith.constant dense<0.000000e+00> : vector<2x128xf32>
    %17 = tpu.matmul %15, %16, %cst_14 {dimension_numbers = #tpu.dot_dimension_numbers<[1], [0], [0], [1], [0, 0, 1, 1], [], []>} : vector<2x256xf32>, vector<256x128xf32>, vector<2x128xf32> -> vector<2x128xf32>
    %c0_15 = arith.constant 0 : index
    %c0_16 = arith.constant 0 : index
    %18 = vector.load %arg7[%c0_15, %c0_16] : memref<1x128xf32, #tpu.memory_space<vmem>>, vector<1x128xf32>
    %19 = vector.broadcast %18 : vector<1x128xf32> to vector<2x128xf32>
    %20 = arith.addf %17, %19 : vector<2x128xf32>
    %21 = arith.negf %20 : vector<2x128xf32>
    %22 = math.exp %21 : vector<2x128xf32>
    %cst_17 = arith.constant 1.000000e+00 : f32
    %23 = vector.broadcast %cst_17 : f32 to vector<2x128xf32>
    %24 = arith.addf %23, %22 : vector<2x128xf32>
    %25 = arith.divf %23, %24 : vector<2x128xf32>
    %c0_18 = arith.constant 0 : index
    %c0_19 = arith.constant 0 : index
    %26 = vector.load %arg8[%c0_18, %c0_19] : memref<2x128xf32, #tpu.memory_space<vmem>>, vector<2x128xf32>
    tpu.vector_store %arg8[%c0_18, %c0_19], %25 {strides = array<i32>} : memref<2x128xf32, #tpu.memory_space<vmem>>, vector<2x128xf32>,
    return
  }
  func.func @transform_0(%arg0: i32) -> (i32, i32) {
    %c0_i32 = arith.constant 0 : i32
    %c0_i32_0 = arith.constant 0 : i32
    %c0_i32_1 = arith.constant 0 : i32
    return %c0_i32, %c0_i32_0 : i32, i32
  }
  func.func @transform_1(%arg0: i32) -> (i32, i32) {
    %c0_i32 = arith.constant 0 : i32
    %c0_i32_0 = arith.constant 0 : i32
    %c0_i32_1 = arith.constant 0 : i32
    return %c0_i32, %c0_i32_0 : i32, i32
  }
  func.func @transform_2(%arg0: i32) -> (i32, i32) {
    %c0_i32 = arith.constant 0 : i32
    %c0_i32_0 = arith.constant 0 : i32
    %c0_i32_1 = arith.constant 0 : i32
    return %c0_i32, %c0_i32_0 : i32, i32
  }
  func.func @transform_3(%arg0: i32) -> (i32, i32) {
    %c0_i32 = arith.constant 0 : i32
    %c0_i32_0 = arith.constant 0 : i32
    %c0_i32_1 = arith.constant 0 : i32
    return %c0_i32, %c0_i32_0 : i32, i32
  }
  func.func @transform_4(%arg0: i32) -> (i32, i32) {
    %c0_i32 = arith.constant 0 : i32
    %c0_i32_0 = arith.constant 0 : i32
    %c0_i32_1 = arith.constant 0 : i32
    return %c0_i32, %c0_i32_0 : i32, i32
  }
  func.func @transform_5(%arg0: i32) -> (i32, i32) {
    %c0_i32 = arith.constant 0 : i32
    %c0_i32_0 = arith.constant 0 : i32
    %c0_i32_1 = arith.constant 0 : i32
    return %c0_i32, %c0_i32_0 : i32, i32
  }
  func.func @transform_6(%arg0: i32) -> (i32, i32) {
    %c0_i32 = arith.constant 0 : i32
    %c0_i32_0 = arith.constant 0 : i32
    %c0_i32_1 = arith.constant 0 : i32
    return %c0_i32, %c0_i32_0 : i32, i32
  }
  func.func @transform_7(%arg0: i32) -> (i32, i32) {
    %c0_i32 = arith.constant 0 : i32
    %c0_i32_0 = arith.constant 0 : i32
    %c0_i32_1 = arith.constant 0 : i32
    return %c0_i32, %c0_i32_0 : i32, i32
  }
}

</mosaic_0001>

<llo_original>
// kernel: local_feature2_forward.4
$region0: #{local_feature2_forward.4}
  #allocation0 [shape = 'u32[]', space=smem, size = 0x4, offset = 0x4, fixed_abs, tag = 'smem constant byte address 0x4 - core index']
  #allocation1 [shape = 'u32[144,128]{1,0:T(1,128)}', space=vmem, size = 0x12000, scoped, tag = 'internal scratch']
  %s0 = inlined_call_operand.vmem [shape: f32[2,3,16], index: 0, kind: input, shape index: {}]
  %s1 = inlined_call_operand.vmem [shape: f32[2,64,3], index: 1, kind: input, shape index: {}]
  %s2 = inlined_call_operand.vmem [shape: f32[64,1], index: 2, kind: input, shape index: {}]
  %s3 = inlined_call_operand.vmem [shape: bf16[128,64], index: 3, kind: input, shape index: {}]
  %s4 = inlined_call_operand.vmem [shape: f32[128,1], index: 4, kind: input, shape index: {}]
  %s5 = inlined_call_operand.vmem [shape: bf16[1024,128], index: 5, kind: input, shape index: {}]
  %s6 = inlined_call_operand.vmem [shape: f32[1024,1], index: 6, kind: input, shape index: {}]
  %s7 = inlined_call_operand.vmem [shape: f32[2,1024,1], index: 7, kind: output, shape index: {}]
  %s8 = sld [smem:[#allocation0]]
  $region65: #{local_feature2_forward.4} parent=0
    _
  %s10 = ssub.s32 1, %s8
  %s11 = scalar_select 0, %s10, %s8
  loop: start=0, step=1, limit=6
  $region2: #{local_feature2_forward.4} parent=0 // loop_pre_header
    _
  $region3: #{local_feature2_forward.4} parent=0 // loop_header
    %s13 = sphi 0, %s17
    %p14 = scmp.ge.s32.totalorder %s13, 6
    %s20 = sphi 0, %s39
    %s21 = sphi 0, %s35
    %s22 = sphi 0, %s31
    %s23 = sphi 0, %s20
    %s24 = sphi 0, %s21
    %s25 = sphi 0, %s22
    %s26 = sphi 0, %s23
    %s27 = sphi 0, %s24
    %s28 = sphi 0, %s25
    %s44 = sphi 0, %s46
    %s47 = sphi 0, %s44
    %s48 = sphi 0, %s47
    %s64 = sphi 0, %s48
    %s70 = sphi 0, %s72
    %s73 = sphi 0, %s70
    %s74 = sphi 0, %s73
    %s90 = sphi 0, %s74
    %s94 = sphi 0, %s94
    %s96 = sphi 0, %s94
    %s97 = sphi 0, %s96
    %s111 = sphi 0, %s97
    %s115 = sphi 0, %s115
    %s117 = sphi 0, %s115
    %s118 = sphi 0, %s117
    %s132 = sphi 0, %s118
    %s136 = sphi 0, %s136
    %s138 = sphi 0, %s136
    %s139 = sphi 0, %s138
    %s153 = sphi 0, %s139
    %s159 = sphi 0, %s161
    %s162 = sphi 0, %s159
    %s163 = sphi 0, %s162
    %s179 = sphi 0, %s163
    %s185 = sphi 0, %s187
    %s188 = sphi 0, %s185
    %s189 = sphi 0, %s188
    %s205 = sphi 0, %s189
    %s213 = sphi 0, %s215
    %s216 = sphi 0, %s213
    %s217 = sphi 0, %s216
    %s233 = sphi 0, %s217
  $region4: #{local_feature2_forward.4} parent=0 // loop_header_branch
    %16 = sbr.rel (%p14) target = $region8
  $region5: #{local_feature2_forward.4} parent=0 // loop_body
    %s18 = ssub.s32 %s13, 1
    %s19 = ssub.s32 %s13, 2
    %s29 = sadd.s32 1, %s22
    %p30 = scmp.ge.s32.totalorder %s29, 1
    %s31 = scalar_select %p30, 0, %s29
    %s32 = sadd.s32 1, %s21
    %s33 = scalar_select %p30, %s32, %s21
    %p34 = scmp.ge.s32.totalorder %s33, 2
    %s35 = scalar_select %p34, 0, %s33
    %s36 = sadd.s32 1, %s20
    %s37 = scalar_select %p34, %s36, %s20
    %p38 = scmp.ge.s32.totalorder %s37, 2
    %s39 = scalar_select %p38, 0, %s37
    %s40 = ssub.s32 %s20, %s39
    %s41 = ssub.s32 %s22, %s31
    %s42 = sor.u32 %s40, %s41
    %p43 = scmp.eq.s32.totalorder %s42, 0
    %s45 = sadd.s32 %s44, 1
    %s46 = scalar_select %p43, %s44, %s45
    %p49 = pneg %p43
    %p50 = scmp.eq.s32.totalorder %s13, 3
    %p51 = por %p49, %p50
    %p52 = scmp.ne.s32.totalorder %s44, %s47
    %p53 = scmp.eq.s32.totalorder %s13, 0
    %p54 = por %p52, %p53
    %p55 = scmp.ne.s32.totalorder %s44, %s47
    %p56 = scmp.eq.s32.totalorder %s18, 3
    %p57 = por %p55, %p56
    %p58 = scmp.ne.s32.totalorder %s47, %s48
    %p59 = scmp.eq.s32.totalorder %s18, 0
    %p60 = por %p58, %p59
    %p61 = scmp.ne.s32.totalorder %s47, %s48
    %p62 = scmp.eq.s32.totalorder %s19, 3
    %p63 = por %p61, %p62
    %p65 = scmp.ne.s32.totalorder %s48, %s64
    %p66 = scmp.eq.s32.totalorder %s19, 0
    %p67 = por %p65, %p66
    %s68 = ssub.s32 %s20, %s39
    %p69 = scmp.eq.s32.totalorder %s68, 0
    %s71 = sadd.s32 %s70, 1
    %s72 = scalar_select %p69, %s70, %s71
    %p75 = pneg %p69
    %p76 = scmp.eq.s32.totalorder %s13, 3
    %p77 = por %p75, %p76
    %p78 = scmp.ne.s32.totalorder %s70, %s73
    %p79 = scmp.eq.s32.totalorder %s13, 0
    %p80 = por %p78, %p79
    %p81 = scmp.ne.s32.totalorder %s70, %s73
    %p82 = scmp.eq.s32.totalorder %s18, 3
    %p83 = por %p81, %p82
    %p84 = scmp.ne.s32.totalorder %s73, %s74
    %p85 = scmp.eq.s32.totalorder %s18, 0
    %p86 = por %p84, %p85
    %p87 = scmp.ne.s32.totalorder %s73, %s74
    %p88 = scmp.eq.s32.totalorder %s19, 3
    %p89 = por %p87, %p88
    %p91 = scmp.ne.s32.totalorder %s74, %s90
    %p92 = scmp.eq.s32.totalorder %s19, 0
    %p93 = por %p91, %p92
    %s95 = sadd.s32 %s94, 1
    %p98 = scmp.eq.s32.totalorder %s13, 3
    %p99 = scmp.ne.s32.totalorder %s94, %s96
    %p100 = scmp.eq.s32.totalorder %s13, 0
    %p101 = por %p99, %p100
    %p102 = scmp.ne.s32.totalorder %s94, %s96
    %p103 = scmp.eq.s32.totalorder %s18, 3
    %p104 = por %p102, %p103
    %p105 = scmp.ne.s32.totalorder %s96, %s97
    %p106 = scmp.eq.s32.totalorder %s18, 0
    %p107 = por %p105, %p106
    %p108 = scmp.ne.s32.totalorder %s96, %s97
    %p109 = scmp.eq.s32.totalorder %s19, 3
    %p110 = por %p108, %p109
    %p112 = scmp.ne.s32.totalorder %s97, %s111
    %p113 = scmp.eq.s32.totalorder %s19, 0
    %p114 = por %p112, %p113
    %s116 = sadd.s32 %s115, 1
    %p119 = scmp.eq.s32.totalorder %s13, 3
    %p120 = scmp.ne.s32.totalorder %s115, %s117
    %p121 = scmp.eq.s32.totalorder %s13, 0
    %p122 = por %p120, %p121
    %p123 = scmp.ne.s32.totalorder %s115, %s117
    %p124 = scmp.eq.s32.totalorder %s18, 3
    %p125 = por %p123, %p124
    %p126 = scmp.ne.s32.totalorder %s117, %s118
    %p127 = scmp.eq.s32.totalorder %s18, 0
    %p128 = por %p126, %p127
    %p129 = scmp.ne.s32.totalorder %s117, %s118
    %p130 = scmp.eq.s32.totalorder %s19, 3
    %p131 = por %p129, %p130
    %p133 = scmp.ne.s32.totalorder %s118, %s132
    %p134 = scmp.eq.s32.totalorder %s19, 0
    %p135 = por %p133, %p134
    %s137 = sadd.s32 %s136, 1
    %p140 = scmp.eq.s32.totalorder %s13, 3
    %p141 = scmp.ne.s32.totalorder %s136, %s138
    %p142 = scmp.eq.s32.totalorder %s13, 0
    %p143 = por %p141, %p142
    %p144 = scmp.ne.s32.totalorder %s136, %s138
    %p145 = scmp.eq.s32.totalorder %s18, 3
    %p146 = por %p144, %p145
    %p147 = scmp.ne.s32.totalorder %s138, %s139
    %p148 = scmp.eq.s32.totalorder %s18, 0
    %p149 = por %p147, %p148
    %p150 = scmp.ne.s32.totalorder %s138, %s139
    %p151 = scmp.eq.s32.totalorder %s19, 3
    %p152 = por %p150, %p151
    %p154 = scmp.ne.s32.totalorder %s139, %s153
    %p155 = scmp.eq.s32.totalorder %s19, 0
    %p156 = por %p154, %p155
    %s157 = ssub.s32 %s21, %s35
    %p158 = scmp.eq.s32.totalorder %s157, 0
    %s160 = sadd.s32 %s159, 1
    %s161 = scalar_select %p158, %s159, %s160
    %p164 = pneg %p158
    %p165 = scmp.eq.s32.totalorder %s13, 3
    %p166 = por %p164, %p165
    %p167 = scmp.ne.s32.totalorder %s159, %s162
    %p168 = scmp.eq.s32.totalorder %s13, 0
    %p169 = por %p167, %p168
    %p170 = scmp.ne.s32.totalorder %s159, %s162
    %p171 = scmp.eq.s32.totalorder %s18, 3
    %p172 = por %p170, %p171
    %p173 = scmp.ne.s32.totalorder %s162, %s163
    %p174 = scmp.eq.s32.totalorder %s18, 0
    %p175 = por %p173, %p174
    %p176 = scmp.ne.s32.totalorder %s162, %s163
    %p177 = scmp.eq.s32.totalorder %s19, 3
    %p178 = por %p176, %p177
    %p180 = scmp.ne.s32.totalorder %s163, %s179
    %p181 = scmp.eq.s32.totalorder %s19, 0
    %p182 = por %p180, %p181
    %s183 = ssub.s32 %s21, %s35
    %p184 = scmp.eq.s32.totalorder %s183, 0
    %s186 = sadd.s32 %s185, 1
    %s187 = scalar_select %p184, %s185, %s186
    %p190 = pneg %p184
    %p191 = scmp.eq.s32.totalorder %s13, 3
    %p192 = por %p190, %p191
    %p193 = scmp.ne.s32.totalorder %s185, %s188
    %p194 = scmp.eq.s32.totalorder %s13, 0
    %p195 = por %p193, %p194
    %p196 = scmp.ne.s32.totalorder %s185, %s188
    %p197 = scmp.eq.s32.totalorder %s18, 3
    %p198 = por %p196, %p197
    %p199 = scmp.ne.s32.totalorder %s188, %s189
    %p200 = scmp.eq.s32.totalorder %s18, 0
    %p201 = por %p199, %p200
    %p202 = scmp.ne.s32.totalorder %s188, %s189
    %p203 = scmp.eq.s32.totalorder %s19, 3
    %p204 = por %p202, %p203
    %p206 = scmp.ne.s32.totalorder %s189, %s205
    %p207 = scmp.eq.s32.totalorder %s19, 0
    %p208 = por %p206, %p207
    %s209 = ssub.s32 %s20, %s39
    %s210 = ssub.s32 %s21, %s35
    %s211 = sor.u32 %s209, %s210
    %p212 = scmp.eq.s32.totalorder %s211, 0
    %s214 = sadd.s32 %s213, 1
    %s215 = scalar_select %p212, %s213, %s214
    %p218 = pneg %p212
    %p219 = scmp.eq.s32.totalorder %s13, 3
    %p220 = por %p218, %p219
    %p221 = scmp.ne.s32.totalorder %s213, %s216
    %p222 = scmp.eq.s32.totalorder %s13, 0
    %p223 = por %p221, %p222
    %p224 = scmp.ne.s32.totalorder %s213, %s216
    %p225 = scmp.eq.s32.totalorder %s18, 3
    %p226 = por %p224, %p225
    %p227 = scmp.ne.s32.totalorder %s216, %s217
    %p228 = scmp.eq.s32.totalorder %s18, 0
    %p229 = por %p227, %p228
    %p230 = scmp.ne.s32.totalorder %s216, %s217
    %p231 = scmp.eq.s32.totalorder %s19, 3
    %p232 = por %p230, %p231
    %p234 = scmp.ne.s32.totalorder %s217, %s233
    %p235 = scmp.eq.s32.totalorder %s19, 0
    %p236 = por %p234, %p235
    %p237 = scmp.le.s32.totalorder 1, %s13
    %p238 = scmp.lt.s32.totalorder %s13, 5
    %p239 = pnand %p237, %p238
    %p240 = pneg %p239
    // Predicated region
    $region9: #{local_feature2_forward.4} parent=5 // pred_check
      _
    $region10: #{local_feature2_forward.4} parent=5 // pred_check_branch
      %242 = sbr.rel (%p239) target = $region12
    $region11: #{local_feature2_forward.4} parent=5 // pred_region
      %s243 = ssub.s32 %s13, 1
      // Predicated region
      $region13: #{local_feature2_forward.4} parent=11 // pred_check
        %p244 = pneg %p107
      $region14: #{local_feature2_forward.4} parent=11 // pred_check_branch
        %246 = sbr.rel (%p244) target = $region16
      $region15: #{local_feature2_forward.4} parent=11 // pred_region
        _
      $region16: #{local_feature2_forward.4} parent=11 // pred_fallthru
        _
      // Predicated region
      $region17: #{local_feature2_forward.4} parent=11 // pred_check
        %p247 = pneg %p128
      $region18: #{local_feature2_forward.4} parent=11 // pred_check_branch
        %249 = sbr.rel (%p247) target = $region20
      $region19: #{local_feature2_forward.4} parent=11 // pred_region
        _
      $region20: #{local_feature2_forward.4} parent=11 // pred_fallthru
        _
      // Predicated region
      $region21: #{local_feature2_forward.4} parent=11 // pred_check
        %p250 = pneg %p149
      $region22: #{local_feature2_forward.4} parent=11 // pred_check_branch
        %252 = sbr.rel (%p250) target = $region24
      $region23: #{local_feature2_forward.4} parent=11 // pred_region
        _
      $region24: #{local_feature2_forward.4} parent=11 // pred_fallthru
        _
    $region12: #{local_feature2_forward.4} parent=5 // pred_fallthru
      _
    %p253 = scmp.lt.s32.totalorder %s13, 4
    // Predicated region
    $region25: #{local_feature2_forward.4} parent=5 // pred_check
      %p254 = pneg %p253
    $region26: #{local_feature2_forward.4} parent=5 // pred_check_branch
      %256 = sbr.rel (%p254) target = $region28
    $region27: #{local_feature2_forward.4} parent=5 // pred_region
      // Predicated region
      $region29: #{local_feature2_forward.4} parent=27 // pred_check
        %p257 = pneg %p54
      $region30: #{local_feature2_forward.4} parent=27 // pred_check_branch
        %259 = sbr.rel (%p257) target = $region32
      $region31: #{local_feature2_forward.4} parent=27 // pred_region
        %p260 = scmp.lt.s32.totalorder %s20, 1
        %s261 = scalar_select %p260, %s20, 1
        %p262 = scmp.lt.s32.totalorder %s22, 0
        %s263 = scalar_select %p262, %s22, 0
        %s264 = sadd.s32 %s263, %s261
        %s265 = smul.addr %s264, 4
        %s266 = scalar_lea.vmem %s0, %s265
      $region32: #{local_feature2_forward.4} parent=27 // pred_fallthru
        _
      // Predicated region
      $region33: #{local_feature2_forward.4} parent=27 // pred_check
        %p267 = pneg %p80
      $region34: #{local_feature2_forward.4} parent=27 // pred_check_branch
        %269 = sbr.rel (%p267) target = $region36
      $region35: #{local_feature2_forward.4} parent=27 // pred_region
        %p270 = scmp.lt.s32.totalorder %s20, 1
        %s271 = scalar_select %p270, %s20, 1
        %s272 = smul.addr %s271, 8
        %s273 = smul.addr %s272, 8
        %s274 = scalar_lea.vmem %s1, %s273
      $region36: #{local_feature2_forward.4} parent=27 // pred_fallthru
        _
      // Predicated region
      $region37: #{local_feature2_forward.4} parent=27 // pred_check
        %p275 = pneg %p169
      $region38: #{local_feature2_forward.4} parent=27 // pred_check_branch
        %277 = sbr.rel (%p275) target = $region40
      $region39: #{local_feature2_forward.4} parent=27 // pred_region
        %s278 = smul.u32 64, %s21
        %p279 = scmp.lt.s32.totalorder %s278, 127
        %s280 = scalar_select %p279, %s278, 127
        %s281 = smul.addr %s280, 4
        %s282 = scalar_lea.vmem %s5, %s281
        %s283 = smul.u32 64, %s21
      $region40: #{local_feature2_forward.4} parent=27 // pred_fallthru
        _
      // Predicated region
      $region41: #{local_feature2_forward.4} parent=27 // pred_check
        %p284 = pneg %p195
      $region42: #{local_feature2_forward.4} parent=27 // pred_check_branch
        %286 = sbr.rel (%p284) target = $region44
      $region43: #{local_feature2_forward.4} parent=27 // pred_region
        %s287 = smul.u32 64, %s21
        %p288 = scmp.lt.s32.totalorder %s287, 127
        %s289 = scalar_select %p288, %s287, 127
        %s290 = smul.addr %s289, 8
        %s291 = scalar_lea.vmem %s6, %s290
        %s292 = smul.u32 64, %s21
      $region44: #{local_feature2_forward.4} parent=27 // pred_fallthru
        _
    $region28: #{local_feature2_forward.4} parent=5 // pred_fallthru
      _
    %p293 = scmp.le.s32.totalorder 1, %s13
    %p294 = scmp.lt.s32.totalorder %s13, 5
    %p295 = pnand %p293, %p294
    %p296 = pneg %p295
    // Predicated region
    $region45: #{local_feature2_forward.4} parent=5 // pred_check
      _
    $region46: #{local_feature2_forward.4} parent=5 // pred_check_branch
      %298 = sbr.rel (%p295) target = $region48
    $region47: #{local_feature2_forward.4} parent=5 // pred_region
      %s299 = ssub.s32 %s13, 1
      %p300 = scmp.lt.s32.totalorder %s23, 1
      %s301 = scalar_select %p300, %s23, 1
      %p302 = scmp.lt.s32.totalorder %s25, 0
      %s303 = scalar_select %p302, %s25, 0
      %s304 = sadd.s32 %s303, %s301
      %s305 = smul.addr %s304, 4
      %s306 = scalar_lea.vmem %s0, %s305
      %p307 = pneg %p60
      %p308 = pneg %p57
      %p309 = scmp.lt.s32.totalorder %s23, 1
      %s310 = scalar_select %p309, %s23, 1
      %s311 = smul.addr %s310, 8
      %s312 = smul.addr %s311, 8
      %s313 = scalar_lea.vmem %s1, %s312
      %p314 = pneg %p86
      %p315 = pneg %p83
      %p316 = pneg %p107
      %p317 = pneg %p104
      %p318 = pneg %p128
      %p319 = pneg %p125
      %p320 = pneg %p149
      %p321 = pneg %p146
      %s322 = smul.u32 64, %s24
      %p323 = scmp.lt.s32.totalorder %s322, 127
      %s324 = scalar_select %p323, %s322, 127
      %s325 = smul.addr %s324, 4
      %s326 = scalar_lea.vmem %s5, %s325
      %p327 = pneg %p175
      %p328 = pneg %p172
      %s329 = smul.u32 64, %s24
      %p330 = scmp.lt.s32.totalorder %s329, 127
      %s331 = scalar_select %p330, %s329, 127
      %s332 = smul.addr %s331, 8
      %s333 = scalar_lea.vmem %s6, %s332
      %p334 = pneg %p201
      %p335 = pneg %p198
      %p336 = pneg %p229
      %p337 = pneg %p226
      %s338 = smul.u32 64, %s24
      %p339 = scmp.lt.s32.totalorder %s23, 1
      %s340 = scalar_select %p339, %s23, 1
      %p341 = scmp.lt.s32.totalorder %s338, 127
      %s342 = scalar_select %p341, %s338, 127
      %s343 = smul.addr %s340, 128
      %s344 = sadd.s32 %s342, %s343
      %s345 = smul.addr %s344, 8
      %s346 = scalar_lea.vmem %s7, %s345
      %p347 = scmp.lt.s32.totalorder %s23, 1
      %s348 = scalar_select %p347, %s23, 1
      %p349 = scmp.lt.s32.totalorder %s25, 0
      %s350 = scalar_select %p349, %s25, 0
      %s351 = sadd.s32 %s350, %s348
      %s352 = smul.addr %s351, 4
      %s353 = scalar_lea.vmem %s0, %s352
      %p354 = scmp.lt.s32.totalorder %s23, 1
      %s355 = scalar_select %p354, %s23, 1
      %s356 = smul.addr %s355, 8
      %s357 = smul.addr %s356, 8
      %s358 = scalar_lea.vmem %s1, %s357
      %s359 = smul.u32 64, %s24
      %p360 = scmp.lt.s32.totalorder %s359, 127
      %s361 = scalar_select %p360, %s359, 127
      %s362 = smul.addr %s361, 4
      %s363 = scalar_lea.vmem %s5, %s362
      %s364 = smul.u32 64, %s24
      %s365 = smul.u32 64, %s24
      %p366 = scmp.lt.s32.totalorder %s365, 127
      %s367 = scalar_select %p366, %s365, 127
      %s368 = smul.addr %s367, 8
      %s369 = scalar_lea.vmem %s6, %s368
      %s370 = smul.u32 64, %s24
      %s371 = smul.u32 64, %s24
      %p372 = scmp.lt.s32.totalorder %s23, 1
      %s373 = scalar_select %p372, %s23, 1
      %p374 = scmp.lt.s32.totalorder %s371, 127
      %s375 = scalar_select %p374, %s371, 127
      %s376 = smul.addr %s373, 128
      %s377 = sadd.s32 %s375, %s376
      %s378 = smul.addr %s377, 8
      %s379 = scalar_lea.vmem %s7, %s378
      %s380 = smul.u32 64, %s24
      %p382 = scmp.eq.s32.totalorder %s25, 0
      // Predicated region
      $region49: #{local_feature2_forward.4} parent=47 // pred_check
        %p383 = pneg %p382
      $region50: #{local_feature2_forward.4} parent=47 // pred_check_branch
        %385 = sbr.rel (%p383) target = $region52
      $region51: #{local_feature2_forward.4} parent=47 // pred_region
        %vm386 = vcmask 7168
        %387 = vst.msk [vmem:[%s379] sm:$0xff] %vm386, -inf
        %388 = vst.msk [vmem:[%s379 + $0x8] sm:$0xff] %vm386, -inf
        %389 = vst.msk [vmem:[%s379 + $0x10] sm:$0xff] %vm386, -inf
        %390 = vst.msk [vmem:[%s379 + $0x18] sm:$0xff] %vm386, -inf
        %391 = vst.msk [vmem:[%s379 + $0x20] sm:$0xff] %vm386, -inf
        %392 = vst.msk [vmem:[%s379 + $0x28] sm:$0xff] %vm386, -inf
        %393 = vst.msk [vmem:[%s379 + $0x30] sm:$0xff] %vm386, -inf
        %394 = vst.msk [vmem:[%s379 + $0x38] sm:$0xff] %vm386, -inf
        %395 = vst.msk [vmem:[%s379 + $0x40] sm:$0xff] %vm386, -inf
        %396 = vst.msk [vmem:[%s379 + $0x48] sm:$0xff] %vm386, -inf
        %397 = vst.msk [vmem:[%s379 + $0x50] sm:$0xff] %vm386, -inf
        %398 = vst.msk [vmem:[%s379 + $0x58] sm:$0xff] %vm386, -inf
        %399 = vst.msk [vmem:[%s379 + $0x60] sm:$0xff] %vm386, -inf
        %400 = vst.msk [vmem:[%s379 + $0x68] sm:$0xff] %vm386, -inf
        %401 = vst.msk [vmem:[%s379 + $0x70] sm:$0xff] %vm386, -inf
        %402 = vst.msk [vmem:[%s379 + $0x78] sm:$0xff] %vm386, -inf
        %403 = vst.msk [vmem:[%s379 + $0x80] sm:$0xff] %vm386, -inf
        %404 = vst.msk [vmem:[%s379 + $0x88] sm:$0xff] %vm386, -inf
        %405 = vst.msk [vmem:[%s379 + $0x90] sm:$0xff] %vm386, -inf
        %406 = vst.msk [vmem:[%s379 + $0x98] sm:$0xff] %vm386, -inf
        %407 = vst.msk [vmem:[%s379 + $0xa0] sm:$0xff] %vm386, -inf
        %408 = vst.msk [vmem:[%s379 + $0xa8] sm:$0xff] %vm386, -inf
        %409 = vst.msk [vmem:[%s379 + $0xb0] sm:$0xff] %vm386, -inf
        %410 = vst.msk [vmem:[%s379 + $0xb8] sm:$0xff] %vm386, -inf
        %411 = vst.msk [vmem:[%s379 + $0xc0] sm:$0xff] %vm386, -inf
        %412 = vst.msk [vmem:[%s379 + $0xc8] sm:$0xff] %vm386, -inf
        %413 = vst.msk [vmem:[%s379 + $0xd0] sm:$0xff] %vm386, -inf
        %414 = vst.msk [vmem:[%s379 + $0xd8] sm:$0xff] %vm386, -inf
        %415 = vst.msk [vmem:[%s379 + $0xe0] sm:$0xff] %vm386, -inf
        %416 = vst.msk [vmem:[%s379 + $0xe8] sm:$0xff] %vm386, -inf
        %417 = vst.msk [vmem:[%s379 + $0xf0] sm:$0xff] %vm386, -inf
        %418 = vst.msk [vmem:[%s379 + $0xf8] sm:$0xff] %vm386, -inf
        %419 = vst.msk [vmem:[%s379 + $0x100] sm:$0xff] %vm386, -inf
        %420 = vst.msk [vmem:[%s379 + $0x108] sm:$0xff] %vm386, -inf
        %421 = vst.msk [vmem:[%s379 + $0x110] sm:$0xff] %vm386, -inf
        %422 = vst.msk [vmem:[%s379 + $0x118] sm:$0xff] %vm386, -inf
        %423 = vst.msk [vmem:[%s379 + $0x120] sm:$0xff] %vm386, -inf
        %424 = vst.msk [vmem:[%s379 + $0x128] sm:$0xff] %vm386, -inf
        %425 = vst.msk [vmem:[%s379 + $0x130] sm:$0xff] %vm386, -inf
        %426 = vst.msk [vmem:[%s379 + $0x138] sm:$0xff] %vm386, -inf
        %427 = vst.msk [vmem:[%s379 + $0x140] sm:$0xff] %vm386, -inf
        %428 = vst.msk [vmem:[%s379 + $0x148] sm:$0xff] %vm386, -inf
        %429 = vst.msk [vmem:[%s379 + $0x150] sm:$0xff] %vm386, -inf
        %430 = vst.msk [vmem:[%s379 + $0x158] sm:$0xff] %vm386, -inf
        %431 = vst.msk [vmem:[%s379 + $0x160] sm:$0xff] %vm386, -inf
        %432 = vst.msk [vmem:[%s379 + $0x168] sm:$0xff] %vm386, -inf
        %433 = vst.msk [vmem:[%s379 + $0x170] sm:$0xff] %vm386, -inf
        %434 = vst.msk [vmem:[%s379 + $0x178] sm:$0xff] %vm386, -inf
        %435 = vst.msk [vmem:[%s379 + $0x180] sm:$0xff] %vm386, -inf
        %436 = vst.msk [vmem:[%s379 + $0x188] sm:$0xff] %vm386, -inf
        %437 = vst.msk [vmem:[%s379 + $0x190] sm:$0xff] %vm386, -inf
        %438 = vst.msk [vmem:[%s379 + $0x198] sm:$0xff] %vm386, -inf
        %439 = vst.msk [vmem:[%s379 + $0x1a0] sm:$0xff] %vm386, -inf
        %440 = vst.msk [vmem:[%s379 + $0x1a8] sm:$0xff] %vm386, -inf
        %441 = vst.msk [vmem:[%s379 + $0x1b0] sm:$0xff] %vm386, -inf
        %442 = vst.msk [vmem:[%s379 + $0x1b8] sm:$0xff] %vm386, -inf
        %443 = vst.msk [vmem:[%s379 + $0x1c0] sm:$0xff] %vm386, -inf
        %444 = vst.msk [vmem:[%s379 + $0x1c8] sm:$0xff] %vm386, -inf
        %445 = vst.msk [vmem:[%s379 + $0x1d0] sm:$0xff] %vm386, -inf
        %446 = vst.msk [vmem:[%s379 + $0x1d8] sm:$0xff] %vm386, -inf
        %447 = vst.msk [vmem:[%s379 + $0x1e0] sm:$0xff] %vm386, -inf
        %448 = vst.msk [vmem:[%s379 + $0x1e8] sm:$0xff] %vm386, -inf
        %449 = vst.msk [vmem:[%s379 + $0x1f0] sm:$0xff] %vm386, -inf
        %450 = vst.msk [vmem:[%s379 + $0x1f8] sm:$0xff] %vm386, -inf
      $region52: #{local_feature2_forward.4} parent=47 // pred_fallthru
        _
      %v451 = vld [vmem:[%s353] sm:$0x7]
      %v452 = vld [vmem:[%s358] sm:$0xff]
      %v453 = vld [vmem:[%s358 + $0x8] sm:$0xff]
      %v454 = vld [vmem:[%s358 + $0x10] sm:$0xff]
      %v455 = vld [vmem:[%s358 + $0x18] sm:$0xff]
      %v456 = vld [vmem:[%s358 + $0x20] sm:$0xff]
      %v457 = vld [vmem:[%s358 + $0x28] sm:$0xff]
      %v458 = vld [vmem:[%s358 + $0x30] sm:$0xff]
      %v459 = vld [vmem:[%s358 + $0x38] sm:$0xff]
      %461 = vset.pattern.permute.xlu0 0
      %462 = vperm.xlu0 %461, %v452
      %v463 = vpop.permute.xlu0 %462
      %466 = vset.pattern.permute.xlu0 0
      %467 = vperm.xlu0 %466, %v453
      %v468 = vpop.permute.xlu0 %467
      %471 = vset.pattern.permute.xlu0 0
      %472 = vperm.xlu0 %471, %v454
      %v473 = vpop.permute.xlu0 %472
      %476 = vset.pattern.permute.xlu0 0
      %477 = vperm.xlu0 %476, %v455
      %v478 = vpop.permute.xlu0 %477
      %481 = vset.pattern.permute.xlu0 0
      %482 = vperm.xlu0 %481, %v456
      %v483 = vpop.permute.xlu0 %482
      %486 = vset.pattern.permute.xlu0 0
      %487 = vperm.xlu0 %486, %v457
      %v488 = vpop.permute.xlu0 %487
      %491 = vset.pattern.permute.xlu0 0
      %492 = vperm.xlu0 %491, %v458
      %v493 = vpop.permute.xlu0 %492
      %496 = vset.pattern.permute.xlu0 0
      %497 = vperm.xlu0 %496, %v459
      %v498 = vpop.permute.xlu0 %497
      %v500 = vlaneseq
      %v501 = vshrl.u32 %v500, 7
      %v502 = vsub.s32 0, %v501
      %v503 = vrot.slane %v451, %v502
      %v504 = vmul.f32 %v463, %v503
      %v505 = vmul.f32 %v468, %v503
      %v506 = vmul.f32 %v473, %v503
      %v507 = vmul.f32 %v478, %v503
      %v508 = vmul.f32 %v483, %v503
      %v509 = vmul.f32 %v488, %v503
      %v510 = vmul.f32 %v493, %v503
      %v511 = vmul.f32 %v498, %v503
      %512 = vset.pattern.permute.xlu0 1
      %513 = vperm.xlu0 %512, %v452
      %v514 = vpop.permute.xlu0 %513
      %516 = vset.pattern.permute.xlu0 1
      %517 = vperm.xlu0 %516, %v453
      %v518 = vpop.permute.xlu0 %517
      %520 = vset.pattern.permute.xlu0 1
      %521 = vperm.xlu0 %520, %v454
      %v522 = vpop.permute.xlu0 %521
      %524 = vset.pattern.permute.xlu0 1
      %525 = vperm.xlu0 %524, %v455
      %v526 = vpop.permute.xlu0 %525
      %528 = vset.pattern.permute.xlu0 1
      %529 = vperm.xlu0 %528, %v456
      %v530 = vpop.permute.xlu0 %529
      %532 = vset.pattern.permute.xlu0 1
      %533 = vperm.xlu0 %532, %v457
      %v534 = vpop.permute.xlu0 %533
      %536 = vset.pattern.permute.xlu0 1
      %537 = vperm.xlu0 %536, %v458
      %v538 = vpop.permute.xlu0 %537
      %540 = vset.pattern.permute.xlu0 1
      %541 = vperm.xlu0 %540, %v459
      %v542 = vpop.permute.xlu0 %541
      %v544 = vlaneseq
      %v545 = vshrl.u32 %v544, 7
      %v546 = vsub.s32 1, %v545
      %v547 = vrot.slane %v451, %v546
      %v548 = vmul.f32 %v514, %v547
      %v549 = vmul.f32 %v518, %v547
      %v550 = vmul.f32 %v522, %v547
      %v551 = vmul.f32 %v526, %v547
      %v552 = vmul.f32 %v530, %v547
      %v553 = vmul.f32 %v534, %v547
      %v554 = vmul.f32 %v538, %v547
      %v555 = vmul.f32 %v542, %v547
      %v556 = vadd.f32 %v504, %v548
      %v557 = vadd.f32 %v505, %v549
      %v558 = vadd.f32 %v506, %v550
      %v559 = vadd.f32 %v507, %v551
      %v560 = vadd.f32 %v508, %v552
      %v561 = vadd.f32 %v509, %v553
      %v562 = vadd.f32 %v510, %v554
      %v563 = vadd.f32 %v511, %v555
      %564 = vset.pattern.permute.xlu0 2
      %565 = vperm.xlu0 %564, %v452
      %v566 = vpop.permute.xlu0 %565
      %568 = vset.pattern.permute.xlu0 2
      %569 = vperm.xlu0 %568, %v453
      %v570 = vpop.permute.xlu0 %569
      %572 = vset.pattern.permute.xlu0 2
      %573 = vperm.xlu0 %572, %v454
      %v574 = vpop.permute.xlu0 %573
      %576 = vset.pattern.permute.xlu0 2
      %577 = vperm.xlu0 %576, %v455
      %v578 = vpop.permute.xlu0 %577
      %580 = vset.pattern.permute.xlu0 2
      %581 = vperm.xlu0 %580, %v456
      %v582 = vpop.permute.xlu0 %581
      %584 = vset.pattern.permute.xlu0 2
      %585 = vperm.xlu0 %584, %v457
      %v586 = vpop.permute.xlu0 %585
      %588 = vset.pattern.permute.xlu0 2
      %589 = vperm.xlu0 %588, %v458
      %v590 = vpop.permute.xlu0 %589
      %592 = vset.pattern.permute.xlu0 2
      %593 = vperm.xlu0 %592, %v459
      %v594 = vpop.permute.xlu0 %593
      %v596 = vlaneseq
      %v597 = vshrl.u32 %v596, 7
      %v598 = vsub.s32 2, %v597
      %v599 = vrot.slane %v451, %v598
      %v600 = vmul.f32 %v566, %v599
      %v601 = vmul.f32 %v570, %v599
      %v602 = vmul.f32 %v574, %v599
      %v603 = vmul.f32 %v578, %v599
      %v604 = vmul.f32 %v582, %v599
      %v605 = vmul.f32 %v586, %v599
      %v606 = vmul.f32 %v590, %v599
      %v607 = vmul.f32 %v594, %v599
      %v608 = vadd.f32 %v556, %v600
      %v609 = vadd.f32 %v557, %v601
      %v610 = vadd.f32 %v558, %v602
      %v611 = vadd.f32 %v559, %v603
      %v612 = vadd.f32 %v560, %v604
      %v613 = vadd.f32 %v561, %v605
      %v614 = vadd.f32 %v562, %v606
      %v615 = vadd.f32 %v563, %v607
      %v616 = vld [vmem:[%s2] sm:$0xff]
      %v617 = vld [vmem:[%s2 + $0x8] sm:$0xff]
      %v618 = vld [vmem:[%s2 + $0x10] sm:$0xff]
      %v619 = vld [vmem:[%s2 + $0x18] sm:$0xff]
      %v620 = vld [vmem:[%s2 + $0x20] sm:$0xff]
      %v621 = vld [vmem:[%s2 + $0x28] sm:$0xff]
      %v622 = vld [vmem:[%s2 + $0x30] sm:$0xff]
      %v623 = vld [vmem:[%s2 + $0x38] sm:$0xff]
      %625 = vset.pattern.permute.xlu0 0
      %626 = vperm.xlu0 %625, %v616
      %v627 = vpop.permute.xlu0 %626
      %630 = vset.pattern.permute.xlu0 0
      %631 = vperm.xlu0 %630, %v617
      %v632 = vpop.permute.xlu0 %631
      %635 = vset.pattern.permute.xlu0 0
      %636 = vperm.xlu0 %635, %v618
      %v637 = vpop.permute.xlu0 %636
      %640 = vset.pattern.permute.xlu0 0
      %641 = vperm.xlu0 %640, %v619
      %v642 = vpop.permute.xlu0 %641
      %645 = vset.pattern.permute.xlu0 0
      %646 = vperm.xlu0 %645, %v620
      %v647 = vpop.permute.xlu0 %646
      %650 = vset.pattern.permute.xlu0 0
      %651 = vperm.xlu0 %650, %v621
      %v652 = vpop.permute.xlu0 %651
      %655 = vset.pattern.permute.xlu0 0
      %656 = vperm.xlu0 %655, %v622
      %v657 = vpop.permute.xlu0 %656
      %660 = vset.pattern.permute.xlu0 0
      %661 = vperm.xlu0 %660, %v623
      %v662 = vpop.permute.xlu0 %661
      %v664 = vadd.f32 %v608, %v627
      %v665 = vadd.f32 %v609, %v632
      %v666 = vadd.f32 %v610, %v637
      %v667 = vadd.f32 %v611, %v642
      %v668 = vadd.f32 %v612, %v647
      %v669 = vadd.f32 %v613, %v652
      %v670 = vadd.f32 %v614, %v657
      %v671 = vadd.f32 %v615, %v662
      %v672 = vmax.f32 %v664, 0.0
      %v673 = vmax.f32 %v665, 0.0
      %v674 = vmax.f32 %v666, 0.0
      %v675 = vmax.f32 %v667, 0.0
      %v676 = vmax.f32 %v668, 0.0
      %v677 = vmax.f32 %v669, 0.0
      %v678 = vmax.f32 %v670, 0.0
      %v679 = vmax.f32 %v671, 0.0
      %v680 = vld [vmem:[%s3] sm:$0xf]
      %v681 = vld [vmem:[%s3 + $0x4] sm:$0xf]
      %v682 = vld [vmem:[%s3 + $0x8] sm:$0xf]
      %v683 = vld [vmem:[%s3 + $0xc] sm:$0xf]
      %v684 = vld [vmem:[%s3 + $0x10] sm:$0xf]
      %v685 = vld [vmem:[%s3 + $0x14] sm:$0xf]
      %v686 = vld [vmem:[%s3 + $0x18] sm:$0xf]
      %v687 = vld [vmem:[%s3 + $0x1c] sm:$0xf]
      %v688 = vld [vmem:[%s3 + $0x20] sm:$0xf]
      %v689 = vld [vmem:[%s3 + $0x24] sm:$0xf]
      %v690 = vld [vmem:[%s3 + $0x28] sm:$0xf]
      %v691 = vld [vmem:[%s3 + $0x2c] sm:$0xf]
      %v692 = vld [vmem:[%s3 + $0x30] sm:$0xf]
      %v693 = vld [vmem:[%s3 + $0x34] sm:$0xf]
      %v694 = vld [vmem:[%s3 + $0x38] sm:$0xf]
      %v695 = vld [vmem:[%s3 + $0x3c] sm:$0xf]
      %v696 = vpack.c.bf16 %v673, %v672
      %v697 = vpack.c.bf16 %v675, %v674
      %v698 = vpack.c.bf16 %v677, %v676
      %v699 = vpack.c.bf16 %v679, %v678
      %v700 = vld [vmem:[%s4] sm:$0xff]
      %v701 = vld [vmem:[%s4 + $0x8] sm:$0xff]
      %v702 = vld [vmem:[%s4 + $0x10] sm:$0xff]
      %v703 = vld [vmem:[%s4 + $0x18] sm:$0xff]
      %v704 = vld [vmem:[%s4 + $0x20] sm:$0xff]
      %v705 = vld [vmem:[%s4 + $0x28] sm:$0xff]
      %v706 = vld [vmem:[%s4 + $0x30] sm:$0xff]
      %v707 = vld [vmem:[%s4 + $0x38] sm:$0xff]
      %v708 = vld [vmem:[%s4 + $0x40] sm:$0xff]
      %v709 = vld [vmem:[%s4 + $0x48] sm:$0xff]
      %v710 = vld [vmem:[%s4 + $0x50] sm:$0xff]
      %v711 = vld [vmem:[%s4 + $0x58] sm:$0xff]
      %v712 = vld [vmem:[%s4 + $0x60] sm:$0xff]
      %v713 = vld [vmem:[%s4 + $0x68] sm:$0xff]
      %v714 = vld [vmem:[%s4 + $0x70] sm:$0xff]
      %v715 = vld [vmem:[%s4 + $0x78] sm:$0xff]
      %717 = vset.pattern.permute.xlu0 0
      %718 = vperm.xlu0 %717, %v700
      %v719 = vpop.permute.xlu0 %718
      %722 = vset.pattern.permute.xlu0 0
      %723 = vperm.xlu0 %722, %v701
      %v724 = vpop.permute.xlu0 %723
      %727 = vset.pattern.permute.xlu0 0
      %728 = vperm.xlu0 %727, %v702
      %v729 = vpop.permute.xlu0 %728
      %732 = vset.pattern.permute.xlu0 0
      %733 = vperm.xlu0 %732, %v703
      %v734 = vpop.permute.xlu0 %733
      %737 = vset.pattern.permute.xlu0 0
      %738 = vperm.xlu0 %737, %v704
      %v739 = vpop.permute.xlu0 %738
      %742 = vset.pattern.permute.xlu0 0
      %743 = vperm.xlu0 %742, %v705
      %v744 = vpop.permute.xlu0 %743
      %747 = vset.pattern.permute.xlu0 0
      %748 = vperm.xlu0 %747, %v706
      %v749 = vpop.permute.xlu0 %748
      %752 = vset.pattern.permute.xlu0 0
      %753 = vperm.xlu0 %752, %v707
      %v754 = vpop.permute.xlu0 %753
      %757 = vset.pattern.permute.xlu0 0
      %758 = vperm.xlu0 %757, %v708
      %v759 = vpop.permute.xlu0 %758
      %762 = vset.pattern.permute.xlu0 0
      %763 = vperm.xlu0 %762, %v709
      %v764 = vpop.permute.xlu0 %763
      %767 = vset.pattern.permute.xlu0 0
      %768 = vperm.xlu0 %767, %v710
      %v769 = vpop.permute.xlu0 %768
      %772 = vset.pattern.permute.xlu0 0
      %773 = vperm.xlu0 %772, %v711
      %v774 = vpop.permute.xlu0 %773
      %777 = vset.pattern.permute.xlu0 0
      %778 = vperm.xlu0 %777, %v712
      %v779 = vpop.permute.xlu0 %778
      %782 = vset.pattern.permute.xlu0 0
      %783 = vperm.xlu0 %782, %v713
      %v784 = vpop.permute.xlu0 %783
      %787 = vset.pattern.permute.xlu0 0
      %788 = vperm.xlu0 %787, %v714
      %v789 = vpop.permute.xlu0 %788
      %792 = vset.pattern.permute.xlu0 0
      %793 = vperm.xlu0 %792, %v715
      %v794 = vpop.permute.xlu0 %793
      %v812 = vunpack.c.l.b16 %v680
      %v813 = vunpack.c.l.b16 %v681
      %v814 = vunpack.c.l.b16 %v682
      %v815 = vunpack.c.l.b16 %v683
      %v816 = vunpack.c.l.b16 %v684
      %v817 = vunpack.c.l.b16 %v685
      %v818 = vunpack.c.l.b16 %v686
      %v819 = vunpack.c.l.b16 %v687
      %v820 = vunpack.c.l.b16 %v688
      %v821 = vunpack.c.l.b16 %v689
      %v822 = vunpack.c.l.b16 %v690
      %v823 = vunpack.c.l.b16 %v691
      %v824 = vunpack.c.l.b16 %v692
      %v825 = vunpack.c.l.b16 %v693
      %v826 = vunpack.c.l.b16 %v694
      %v827 = vunpack.c.l.b16 %v695
      %v828 = vpack.c.b16 %v813, %v812
      %v829 = vpack.c.b16 %v815, %v814
      %v830 = vpack.c.b16 %v817, %v816
      %v831 = vpack.c.b16 %v819, %v818
      %v832 = vpack.c.b16 %v821, %v820
      %v833 = vpack.c.b16 %v823, %v822
      %v834 = vpack.c.b16 %v825, %v824
      %v835 = vpack.c.b16 %v827, %v826
      %vm836 = vcmask 523264
      %v838 = vsel %vm836, %v828, 0
      %v841 = vsel %vm836, %v829, 0
      %v844 = vsel %vm836, %v830, 0
      %v847 = vsel %vm836, %v831, 0
      %v850 = vsel %vm836, %v832, 0
      %v853 = vsel %vm836, %v833, 0
      %v856 = vsel %vm836, %v834, 0
      %v859 = vsel %vm836, %v835, 0
      %861 = vmatprep.subr.bf16.mxu0 0
      %862 = vmatpush1.bf16.msra.mxu0 %v696
      %863 = vmatprep.subr.bf16.mxu0 0
      %864 = vmatpush1.bf16.msra.mxu0 %v697
      %865 = vmatprep.subr.bf16.mxu0 0
      %866 = vmatpush1.bf16.msra.mxu0 %v698
      %867 = vmatprep.subr.bf16.mxu0 0
      %868 = vmatpush1.bf16.msra.mxu0 %v699
      %869 = vmatprep.subr.bf16.mxu0 0
      %870 = vmatpush1.bf16.msra.mxu0 0
      %871 = vmatprep.subr.bf16.mxu0 0
      %872 = vmatpush1.bf16.msra.mxu0 0
      %873 = vmatprep.subr.bf16.mxu0 0
      %874 = vmatpush1.bf16.msra.mxu0 0
      %875 = vmatprep.subr.bf16.mxu0 0
      %876 = vmatpush1.bf16.msra.mxu0 0
      %877 = vmatprep.subr.bf16.mxu0 0
      %878 = vmatpush1.bf16.msra.mxu0 0
      %879 = vmatprep.subr.bf16.mxu0 0
      %880 = vmatpush1.bf16.msra.mxu0 0
      %881 = vmatprep.subr.bf16.mxu0 0
      %882 = vmatpush1.bf16.msra.mxu0 0
      %883 = vmatprep.subr.bf16.mxu0 0
      %884 = vmatpush1.bf16.msra.mxu0 0
      %885 = vmatprep.subr.bf16.mxu0 0
      %886 = vmatpush1.bf16.msra.mxu0 0
      %887 = vmatprep.subr.bf16.mxu0 0
      %888 = vmatpush1.bf16.msra.mxu0 0
      %889 = vmatprep.subr.bf16.mxu0 0
      %890 = vmatpush1.bf16.msra.mxu0 0
      %891 = vmatprep.subr.bf16.mxu0 0
      %892 = vmatpush1.bf16.msra.mxu0 0
      %893 = vmatprep.mubr.bf16.mxu0 0
      %894 = vmatmul.mubr.bf16.gmra.mrb[0].mxu0 %v838
      %v895 = vpop.f32.mrb[0].mxu0
      %v896 = vadd.f32 %v719, %v895
      %v897 = vpop.f32.mrb[0].mxu0
      %v898 = vpop.f32.mrb[0].mxu0
      %v899 = vadd.f32 %v724, %v898
      %v900 = vpop.f32.mrb[0].mxu0
      %901 = vmatprep.mubr.bf16.mxu0 0
      %902 = vmatmul.mubr.bf16.gmra.mrb[0].mxu0 %v841
      %v903 = vpop.f32.mrb[0].mxu0
      %v904 = vadd.f32 %v729, %v903
      %v905 = vpop.f32.mrb[0].mxu0
      %v906 = vpop.f32.mrb[0].mxu0
      %v907 = vadd.f32 %v734, %v906
      %v908 = vpop.f32.mrb[0].mxu0
      %909 = vmatprep.mubr.bf16.mxu0 0
      %910 = vmatmul.mubr.bf16.gmra.mrb[0].mxu0 %v844
      %v911 = vpop.f32.mrb[0].mxu0
      %v912 = vadd.f32 %v739, %v911
      %v913 = vpop.f32.mrb[0].mxu0
      %v914 = vpop.f32.mrb[0].mxu0
      %v915 = vadd.f32 %v744, %v914
      %v916 = vpop.f32.mrb[0].mxu0
      %917 = vmatprep.mubr.bf16.mxu0 0
      %918 = vmatmul.mubr.bf16.gmra.mrb[0].mxu0 %v847
      %v919 = vpop.f32.mrb[0].mxu0
      %v920 = vadd.f32 %v749, %v919
      %v921 = vpop.f32.mrb[0].mxu0
      %v922 = vpop.f32.mrb[0].mxu0
      %v923 = vadd.f32 %v754, %v922
      %v924 = vpop.f32.mrb[0].mxu0
      %925 = vmatprep.mubr.bf16.mxu0 0
      %926 = vmatmul.mubr.bf16.gmra.mrb[0].mxu0 %v850
      %v927 = vpop.f32.mrb[0].mxu0
      %v928 = vadd.f32 %v759, %v927
      %v929 = vpop.f32.mrb[0].mxu0
      %v930 = vpop.f32.mrb[0].mxu0
      %v931 = vadd.f32 %v764, %v930
      %v932 = vpop.f32.mrb[0].mxu0
      %933 = vmatprep.mubr.bf16.mxu0 0
      %934 = vmatmul.mubr.bf16.gmra.mrb[0].mxu0 %v853
      %v935 = vpop.f32.mrb[0].mxu0
      %v936 = vadd.f32 %v769, %v935
      %v937 = vpop.f32.mrb[0].mxu0
      %v938 = vpop.f32.mrb[0].mxu0
      %v939 = vadd.f32 %v774, %v938
      %v940 = vpop.f32.mrb[0].mxu0
      %941 = vmatprep.mubr.bf16.mxu0 0
      %942 = vmatmul.mubr.bf16.gmra.mrb[0].mxu0 %v856
      %v943 = vpop.f32.mrb[0].mxu0
      %v944 = vadd.f32 %v779, %v943
      %v945 = vpop.f32.mrb[0].mxu0
      %v946 = vpop.f32.mrb[0].mxu0
      %v947 = vadd.f32 %v784, %v946
      %v948 = vpop.f32.mrb[0].mxu0
      %949 = vmatprep.mubr.bf16.mxu0 0
      %950 = vmatmul.mubr.bf16.gmra.mrb[0].mxu0 %v859
      %v951 = vpop.f32.mrb[0].mxu0
      %v952 = vadd.f32 %v789, %v951
      %v953 = vpop.f32.mrb[0].mxu0
      %v954 = vpop.f32.mrb[0].mxu0
      %v955 = vadd.f32 %v794, %v954
      %v956 = vpop.f32.mrb[0].mxu0
      %957 = vdwg.mxu0
      %v958 = vmax.f32 %v896, 0.0
      %v959 = vmax.f32 %v899, 0.0
      %v960 = vmax.f32 %v904, 0.0
      %v961 = vmax.f32 %v907, 0.0
      %v962 = vmax.f32 %v912, 0.0
      %v963 = vmax.f32 %v915, 0.0
      %v964 = vmax.f32 %v920, 0.0
      %v965 = vmax.f32 %v923, 0.0
      %v966 = vmax.f32 %v928, 0.0
      %v967 = vmax.f32 %v931, 0.0
      %v968 = vmax.f32 %v936, 0.0
      %v969 = vmax.f32 %v939, 0.0
      %v970 = vmax.f32 %v944, 0.0
      %v971 = vmax.f32 %v947, 0.0
      %v972 = vmax.f32 %v952, 0.0
      %v973 = vmax.f32 %v955, 0.0
      %v974 = vld [vmem:[%s363] sm:$0xf]
      %v975 = vld [vmem:[%s363 + $0x4] sm:$0xf]
      %v976 = vld [vmem:[%s363 + $0x8] sm:$0xf]
      %v977 = vld [vmem:[%s363 + $0xc] sm:$0xf]
      %v978 = vld [vmem:[%s363 + $0x10] sm:$0xf]
      %v979 = vld [vmem:[%s363 + $0x14] sm:$0xf]
      %v980 = vld [vmem:[%s363 + $0x18] sm:$0xf]
      %v981 = vld [vmem:[%s363 + $0x1c] sm:$0xf]
      %v982 = vld [vmem:[%s363 + $0x20] sm:$0xf]
      %v983 = vld [vmem:[%s363 + $0x24] sm:$0xf]
      %v984 = vld [vmem:[%s363 + $0x28] sm:$0xf]
      %v985 = vld [vmem:[%s363 + $0x2c] sm:$0xf]
      %v986 = vld [vmem:[%s363 + $0x30] sm:$0xf]
      %v987 = vld [vmem:[%s363 + $0x34] sm:$0xf]
      %v988 = vld [vmem:[%s363 + $0x38] sm:$0xf]
      %v989 = vld [vmem:[%s363 + $0x3c] sm:$0xf]
      %v990 = vld [vmem:[%s363 + $0x40] sm:$0xf]
      %v991 = vld [vmem:[%s363 + $0x44] sm:$0xf]
      %v992 = vld [vmem:[%s363 + $0x48] sm:$0xf]
      %v993 = vld [vmem:[%s363 + $0x4c] sm:$0xf]
      %v994 = vld [vmem:[%s363 + $0x50] sm:$0xf]
      %v995 = vld [vmem:[%s363 + $0x54] sm:$0xf]
      %v996 = vld [vmem:[%s363 + $0x58] sm:$0xf]
      %v997 = vld [vmem:[%s363 + $0x5c] sm:$0xf]
      %v998 = vld [vmem:[%s363 + $0x60] sm:$0xf]
      %v999 = vld [vmem:[%s363 + $0x64] sm:$0xf]
      %v1000 = vld [vmem:[%s363 + $0x68] sm:$0xf]
      %v1001 = vld [vmem:[%s363 + $0x6c] sm:$0xf]
      %v1002 = vld [vmem:[%s363 + $0x70] sm:$0xf]
      %v1003 = vld [vmem:[%s363 + $0x74] sm:$0xf]
      %v1004 = vld [vmem:[%s363 + $0x78] sm:$0xf]
      %v1005 = vld [vmem:[%s363 + $0x7c] sm:$0xf]
      %v1006 = vld [vmem:[%s363 + $0x80] sm:$0xf]
      %v1007 = vld [vmem:[%s363 + $0x84] sm:$0xf]
      %v1008 = vld [vmem:[%s363 + $0x88] sm:$0xf]
      %v1009 = vld [vmem:[%s363 + $0x8c] sm:$0xf]
      %v1010 = vld [vmem:[%s363 + $0x90] sm:$0xf]
      %v1011 = vld [vmem:[%s363 + $0x94] sm:$0xf]
      %v1012 = vld [vmem:[%s363 + $0x98] sm:$0xf]
      %v1013 = vld [vmem:[%s363 + $0x9c] sm:$0xf]
      %v1014 = vld [vmem:[%s363 + $0xa0] sm:$0xf]
      %v1015 = vld [vmem:[%s363 + $0xa4] sm:$0xf]
      %v1016 = vld [vmem:[%s363 + $0xa8] sm:$0xf]
      %v1017 = vld [vmem:[%s363 + $0xac] sm:$0xf]
      %v1018 = vld [vmem:[%s363 + $0xb0] sm:$0xf]
      %v1019 = vld [vmem:[%s363 + $0xb4] sm:$0xf]
      %v1020 = vld [vmem:[%s363 + $0xb8] sm:$0xf]
      %v1021 = vld [vmem:[%s363 + $0xbc] sm:$0xf]
      %v1022 = vld [vmem:[%s363 + $0xc0] sm:$0xf]
      %v1023 = vld [vmem:[%s363 + $0xc4] sm:$0xf]
      %v1024 = vld [vmem:[%s363 + $0xc8] sm:$0xf]
      %v1025 = vld [vmem:[%s363 + $0xcc] sm:$0xf]
      %v1026 = vld [vmem:[%s363 + $0xd0] sm:$0xf]
      %v1027 = vld [vmem:[%s363 + $0xd4] sm:$0xf]
      %v1028 = vld [vmem:[%s363 + $0xd8] sm:$0xf]
      %v1029 = vld [vmem:[%s363 + $0xdc] sm:$0xf]
      %v1030 = vld [vmem:[%s363 + $0xe0] sm:$0xf]
      %v1031 = vld [vmem:[%s363 + $0xe4] sm:$0xf]
      %v1032 = vld [vmem:[%s363 + $0xe8] sm:$0xf]
      %v1033 = vld [vmem:[%s363 + $0xec] sm:$0xf]
      %v1034 = vld [vmem:[%s363 + $0xf0] sm:$0xf]
      %v1035 = vld [vmem:[%s363 + $0xf4] sm:$0xf]
      %v1036 = vld [vmem:[%s363 + $0xf8] sm:$0xf]
      %v1037 = vld [vmem:[%s363 + $0xfc] sm:$0xf]
      %v1038 = vpack.c.bf16 %v959, %v958
      %v1039 = vpack.c.bf16 %v961, %v960
      %v1040 = vpack.c.bf16 %v963, %v962
      %v1041 = vpack.c.bf16 %v965, %v964
      %v1042 = vpack.c.bf16 %v967, %v966
      %v1043 = vpack.c.bf16 %v969, %v968
      %v1044 = vpack.c.bf16 %v971, %v970
      %v1045 = vpack.c.bf16 %v973, %v972
      %v1046 = vld [vmem:[%s369] sm:$0xff]
      %v1047 = vld [vmem:[%s369 + $0x8] sm:$0xff]
      %v1048 = vld [vmem:[%s369 + $0x10] sm:$0xff]
      %v1049 = vld [vmem:[%s369 + $0x18] sm:$0xff]
      %v1050 = vld [vmem:[%s369 + $0x20] sm:$0xff]
      %v1051 = vld [vmem:[%s369 + $0x28] sm:$0xff]
      %v1052 = vld [vmem:[%s369 + $0x30] sm:$0xff]
      %v1053 = vld [vmem:[%s369 + $0x38] sm:$0xff]
      %v1054 = vld [vmem:[%s369 + $0x40] sm:$0xff]
      %v1055 = vld [vmem:[%s369 + $0x48] sm:$0xff]
      %v1056 = vld [vmem:[%s369 + $0x50] sm:$0xff]
      %v1057 = vld [vmem:[%s369 + $0x58] sm:$0xff]
      %v1058 = vld [vmem:[%s369 + $0x60] sm:$0xff]
      %v1059 = vld [vmem:[%s369 + $0x68] sm:$0xff]
      %v1060 = vld [vmem:[%s369 + $0x70] sm:$0xff]
      %v1061 = vld [vmem:[%s369 + $0x78] sm:$0xff]
      %v1062 = vld [vmem:[%s369 + $0x80] sm:$0xff]
      %v1063 = vld [vmem:[%s369 + $0x88] sm:$0xff]
      %v1064 = vld [vmem:[%s369 + $0x90] sm:$0xff]
      %v1065 = vld [vmem:[%s369 + $0x98] sm:$0xff]
      %v1066 = vld [vmem:[%s369 + $0xa0] sm:$0xff]
      %v1067 = vld [vmem:[%s369 + $0xa8] sm:$0xff]
      %v1068 = vld [vmem:[%s369 + $0xb0] sm:$0xff]
      %v1069 = vld [vmem:[%s369 + $0xb8] sm:$0xff]
      %v1070 = vld [vmem:[%s369 + $0xc0] sm:$0xff]
      %v1071 = vld [vmem:[%s369 + $0xc8] sm:$0xff]
      %v1072 = vld [vmem:[%s369 + $0xd0] sm:$0xff]
      %v1073 = vld [vmem:[%s369 + $0xd8] sm:$0xff]
      %v1074 = vld [vmem:[%s369 + $0xe0] sm:$0xff]
      %v1075 = vld [vmem:[%s369 + $0xe8] sm:$0xff]
      %v1076 = vld [vmem:[%s369 + $0xf0] sm:$0xff]
      %v1077 = vld [vmem:[%s369 + $0xf8] sm:$0xff]
      %v1078 = vld [vmem:[%s369 + $0x100] sm:$0xff]
      %v1079 = vld [vmem:[%s369 + $0x108] sm:$0xff]
      %v1080 = vld [vmem:[%s369 + $0x110] sm:$0xff]
      %v1081 = vld [vmem:[%s369 + $0x118] sm:$0xff]
      %v1082 = vld [vmem:[%s369 + $0x120] sm:$0xff]
      %v1083 = vld [vmem:[%s369 + $0x128] sm:$0xff]
      %v1084 = vld [vmem:[%s369 + $0x130] sm:$0xff]
      %v1085 = vld [vmem:[%s369 + $0x138] sm:$0xff]
      %v1086 = vld [vmem:[%s369 + $0x140] sm:$0xff]
      %v1087 = vld [vmem:[%s369 + $0x148] sm:$0xff]
      %v1088 = vld [vmem:[%s369 + $0x150] sm:$0xff]
      %v1089 = vld [vmem:[%s369 + $0x158] sm:$0xff]
      %v1090 = vld [vmem:[%s369 + $0x160] sm:$0xff]
      %v1091 = vld [vmem:[%s369 + $0x168] sm:$0xff]
      %v1092 = vld [vmem:[%s369 + $0x170] sm:$0xff]
      %v1093 = vld [vmem:[%s369 + $0x178] sm:$0xff]
      %v1094 = vld [vmem:[%s369 + $0x180] sm:$0xff]
      %v1095 = vld [vmem:[%s369 + $0x188] sm:$0xff]
      %v1096 = vld [vmem:[%s369 + $0x190] sm:$0xff]
      %v1097 = vld [vmem:[%s369 + $0x198] sm:$0xff]
      %v1098 = vld [vmem:[%s369 + $0x1a0] sm:$0xff]
      %v1099 = vld [vmem:[%s369 + $0x1a8] sm:$0xff]
      %v1100 = vld [vmem:[%s369 + $0x1b0] sm:$0xff]
      %v1101 = vld [vmem:[%s369 + $0x1b8] sm:$0xff]
      %v1102 = vld [vmem:[%s369 + $0x1c0] sm:$0xff]
      %v1103 = vld [vmem:[%s369 + $0x1c8] sm:$0xff]
      %v1104 = vld [vmem:[%s369 + $0x1d0] sm:$0xff]
      %v1105 = vld [vmem:[%s369 + $0x1d8] sm:$0xff]
      %v1106 = vld [vmem:[%s369 + $0x1e0] sm:$0xff]
      %v1107 = vld [vmem:[%s369 + $0x1e8] sm:$0xff]
      %v1108 = vld [vmem:[%s369 + $0x1f0] sm:$0xff]
      %v1109 = vld [vmem:[%s369 + $0x1f8] sm:$0xff]
      %1111 = vset.pattern.permute.xlu0 0
      %1112 = vperm.xlu0 %1111, %v1046
      %v1113 = vpop.permute.xlu0 %1112
      %1116 = vset.pattern.permute.xlu0 0
      %1117 = vperm.xlu0 %1116, %v1047
      %v1118 = vpop.permute.xlu0 %1117
      %1121 = vset.pattern.permute.xlu0 0
      %1122 = vperm.xlu0 %1121, %v1048
      %v1123 = vpop.permute.xlu0 %1122
      %1126 = vset.pattern.permute.xlu0 0
      %1127 = vperm.xlu0 %1126, %v1049
      %v1128 = vpop.permute.xlu0 %1127
      %1131 = vset.pattern.permute.xlu0 0
      %1132 = vperm.xlu0 %1131, %v1050
      %v1133 = vpop.permute.xlu0 %1132
      %1136 = vset.pattern.permute.xlu0 0
      %1137 = vperm.xlu0 %1136, %v1051
      %v1138 = vpop.permute.xlu0 %1137
      %1141 = vset.pattern.permute.xlu0 0
      %1142 = vperm.xlu0 %1141, %v1052
      %v1143 = vpop.permute.xlu0 %1142
      %1146 = vset.pattern.permute.xlu0 0
      %1147 = vperm.xlu0 %1146, %v1053
      %v1148 = vpop.permute.xlu0 %1147
      %1151 = vset.pattern.permute.xlu0 0
      %1152 = vperm.xlu0 %1151, %v1054
      %v1153 = vpop.permute.xlu0 %1152
      %1156 = vset.pattern.permute.xlu0 0
      %1157 = vperm.xlu0 %1156, %v1055
      %v1158 = vpop.permute.xlu0 %1157
      %1161 = vset.pattern.permute.xlu0 0
      %1162 = vperm.xlu0 %1161, %v1056
      %v1163 = vpop.permute.xlu0 %1162
      %1166 = vset.pattern.permute.xlu0 0
      %1167 = vperm.xlu0 %1166, %v1057
      %v1168 = vpop.permute.xlu0 %1167
      %1171 = vset.pattern.permute.xlu0 0
      %1172 = vperm.xlu0 %1171, %v1058
      %v1173 = vpop.permute.xlu0 %1172
      %1176 = vset.pattern.permute.xlu0 0
      %1177 = vperm.xlu0 %1176, %v1059
      %v1178 = vpop.permute.xlu0 %1177
      %1181 = vset.pattern.permute.xlu0 0
      %1182 = vperm.xlu0 %1181, %v1060
      %v1183 = vpop.permute.xlu0 %1182
      %1186 = vset.pattern.permute.xlu0 0
      %1187 = vperm.xlu0 %1186, %v1061
      %v1188 = vpop.permute.xlu0 %1187
      %1191 = vset.pattern.permute.xlu0 0
      %1192 = vperm.xlu0 %1191, %v1062
      %v1193 = vpop.permute.xlu0 %1192
      %1196 = vset.pattern.permute.xlu0 0
      %1197 = vperm.xlu0 %1196, %v1063
      %v1198 = vpop.permute.xlu0 %1197
      %1201 = vset.pattern.permute.xlu0 0
      %1202 = vperm.xlu0 %1201, %v1064
      %v1203 = vpop.permute.xlu0 %1202
      %1206 = vset.pattern.permute.xlu0 0
      %1207 = vperm.xlu0 %1206, %v1065
      %v1208 = vpop.permute.xlu0 %1207
      %1211 = vset.pattern.permute.xlu0 0
      %1212 = vperm.xlu0 %1211, %v1066
      %v1213 = vpop.permute.xlu0 %1212
      %1216 = vset.pattern.permute.xlu0 0
      %1217 = vperm.xlu0 %1216, %v1067
      %v1218 = vpop.permute.xlu0 %1217
      %1221 = vset.pattern.permute.xlu0 0
      %1222 = vperm.xlu0 %1221, %v1068
      %v1223 = vpop.permute.xlu0 %1222
      %1226 = vset.pattern.permute.xlu0 0
      %1227 = vperm.xlu0 %1226, %v1069
      %v1228 = vpop.permute.xlu0 %1227
      %1231 = vset.pattern.permute.xlu0 0
      %1232 = vperm.xlu0 %1231, %v1070
      %v1233 = vpop.permute.xlu0 %1232
      %1236 = vset.pattern.permute.xlu0 0
      %1237 = vperm.xlu0 %1236, %v1071
      %v1238 = vpop.permute.xlu0 %1237
      %1241 = vset.pattern.permute.xlu0 0
      %1242 = vperm.xlu0 %1241, %v1072
      %v1243 = vpop.permute.xlu0 %1242
      %1246 = vset.pattern.permute.xlu0 0
      %1247 = vperm.xlu0 %1246, %v1073
      %v1248 = vpop.permute.xlu0 %1247
      %1251 = vset.pattern.permute.xlu0 0
      %1252 = vperm.xlu0 %1251, %v1074
      %v1253 = vpop.permute.xlu0 %1252
      %1256 = vset.pattern.permute.xlu0 0
      %1257 = vperm.xlu0 %1256, %v1075
      %v1258 = vpop.permute.xlu0 %1257
      %1261 = vset.pattern.permute.xlu0 0
      %1262 = vperm.xlu0 %1261, %v1076
      %v1263 = vpop.permute.xlu0 %1262
      %1266 = vset.pattern.permute.xlu0 0
      %1267 = vperm.xlu0 %1266, %v1077
      %v1268 = vpop.permute.xlu0 %1267
      %1271 = vset.pattern.permute.xlu0 0
      %1272 = vperm.xlu0 %1271, %v1078
      %v1273 = vpop.permute.xlu0 %1272
      %1276 = vset.pattern.permute.xlu0 0
      %1277 = vperm.xlu0 %1276, %v1079
      %v1278 = vpop.permute.xlu0 %1277
      %1281 = vset.pattern.permute.xlu0 0
      %1282 = vperm.xlu0 %1281, %v1080
      %v1283 = vpop.permute.xlu0 %1282
      %1286 = vset.pattern.permute.xlu0 0
      %1287 = vperm.xlu0 %1286, %v1081
      %v1288 = vpop.permute.xlu0 %1287
      %1291 = vset.pattern.permute.xlu0 0
      %1292 = vperm.xlu0 %1291, %v1082
      %v1293 = vpop.permute.xlu0 %1292
      %1296 = vset.pattern.permute.xlu0 0
      %1297 = vperm.xlu0 %1296, %v1083
      %v1298 = vpop.permute.xlu0 %1297
      %1301 = vset.pattern.permute.xlu0 0
      %1302 = vperm.xlu0 %1301, %v1084
      %v1303 = vpop.permute.xlu0 %1302
      %1306 = vset.pattern.permute.xlu0 0
      %1307 = vperm.xlu0 %1306, %v1085
      %v1308 = vpop.permute.xlu0 %1307
      %1311 = vset.pattern.permute.xlu0 0
      %1312 = vperm.xlu0 %1311, %v1086
      %v1313 = vpop.permute.xlu0 %1312
      %1316 = vset.pattern.permute.xlu0 0
      %1317 = vperm.xlu0 %1316, %v1087
      %v1318 = vpop.permute.xlu0 %1317
      %1321 = vset.pattern.permute.xlu0 0
      %1322 = vperm.xlu0 %1321, %v1088
      %v1323 = vpop.permute.xlu0 %1322
      %1326 = vset.pattern.permute.xlu0 0
      %1327 = vperm.xlu0 %1326, %v1089
      %v1328 = vpop.permute.xlu0 %1327
      %1331 = vset.pattern.permute.xlu0 0
      %1332 = vperm.xlu0 %1331, %v1090
      %v1333 = vpop.permute.xlu0 %1332
      %1336 = vset.pattern.permute.xlu0 0
      %1337 = vperm.xlu0 %1336, %v1091
      %v1338 = vpop.permute.xlu0 %1337
      %1341 = vset.pattern.permute.xlu0 0
      %1342 = vperm.xlu0 %1341, %v1092
      %v1343 = vpop.permute.xlu0 %1342
      %1346 = vset.pattern.permute.xlu0 0
      %1347 = vperm.xlu0 %1346, %v1093
      %v1348 = vpop.permute.xlu0 %1347
      %1351 = vset.pattern.permute.xlu0 0
      %1352 = vperm.xlu0 %1351, %v1094
      %v1353 = vpop.permute.xlu0 %1352
      %1356 = vset.pattern.permute.xlu0 0
      %1357 = vperm.xlu0 %1356, %v1095
      %v1358 = vpop.permute.xlu0 %1357
      %1361 = vset.pattern.permute.xlu0 0
      %1362 = vperm.xlu0 %1361, %v1096
      %v1363 = vpop.permute.xlu0 %1362
      %1366 = vset.pattern.permute.xlu0 0
      %1367 = vperm.xlu0 %1366, %v1097
      %v1368 = vpop.permute.xlu0 %1367
      %1371 = vset.pattern.permute.xlu0 0
      %1372 = vperm.xlu0 %1371, %v1098
      %v1373 = vpop.permute.xlu0 %1372
      %1376 = vset.pattern.permute.xlu0 0
      %1377 = vperm.xlu0 %1376, %v1099
      %v1378 = vpop.permute.xlu0 %1377
      %1381 = vset.pattern.permute.xlu0 0
      %1382 = vperm.xlu0 %1381, %v1100
      %v1383 = vpop.permute.xlu0 %1382
      %1386 = vset.pattern.permute.xlu0 0
      %1387 = vperm.xlu0 %1386, %v1101
      %v1388 = vpop.permute.xlu0 %1387
      %1391 = vset.pattern.permute.xlu0 0
      %1392 = vperm.xlu0 %1391, %v1102
      %v1393 = vpop.permute.xlu0 %1392
      %1396 = vset.pattern.permute.xlu0 0
      %1397 = vperm.xlu0 %1396, %v1103
      %v1398 = vpop.permute.xlu0 %1397
      %1401 = vset.pattern.permute.xlu0 0
      %1402 = vperm.xlu0 %1401, %v1104
      %v1403 = vpop.permute.xlu0 %1402
      %1406 = vset.pattern.permute.xlu0 0
      %1407 = vperm.xlu0 %1406, %v1105
      %v1408 = vpop.permute.xlu0 %1407
      %1411 = vset.pattern.permute.xlu0 0
      %1412 = vperm.xlu0 %1411, %v1106
      %v1413 = vpop.permute.xlu0 %1412
      %1416 = vset.pattern.permute.xlu0 0
      %1417 = vperm.xlu0 %1416, %v1107
      %v1418 = vpop.permute.xlu0 %1417
      %1421 = vset.pattern.permute.xlu0 0
      %1422 = vperm.xlu0 %1421, %v1108
      %v1423 = vpop.permute.xlu0 %1422
      %1426 = vset.pattern.permute.xlu0 0
      %1427 = vperm.xlu0 %1426, %v1109
      %v1428 = vpop.permute.xlu0 %1427
      %v1494 = vunpack.c.l.b16 %v974
      %v1495 = vunpack.c.l.b16 %v975
      %v1496 = vunpack.c.l.b16 %v976
      %v1497 = vunpack.c.l.b16 %v977
      %v1498 = vunpack.c.l.b16 %v978
      %v1499 = vunpack.c.l.b16 %v979
      %v1500 = vunpack.c.l.b16 %v980
      %v1501 = vunpack.c.l.b16 %v981
      %v1502 = vunpack.c.l.b16 %v982
      %v1503 = vunpack.c.l.b16 %v983
      %v1504 = vunpack.c.l.b16 %v984
      %v1505 = vunpack.c.l.b16 %v985
      %v1506 = vunpack.c.l.b16 %v986
      %v1507 = vunpack.c.l.b16 %v987
      %v1508 = vunpack.c.l.b16 %v988
      %v1509 = vunpack.c.l.b16 %v989
      %v1510 = vunpack.c.l.b16 %v990
      %v1511 = vunpack.c.l.b16 %v991
      %v1512 = vunpack.c.l.b16 %v992
      %v1513 = vunpack.c.l.b16 %v993
      %v1514 = vunpack.c.l.b16 %v994
      %v1515 = vunpack.c.l.b16 %v995
      %v1516 = vunpack.c.l.b16 %v996
      %v1517 = vunpack.c.l.b16 %v997
      %v1518 = vunpack.c.l.b16 %v998
      %v1519 = vunpack.c.l.b16 %v999
      %v1520 = vunpack.c.l.b16 %v1000
      %v1521 = vunpack.c.l.b16 %v1001
      %v1522 = vunpack.c.l.b16 %v1002
      %v1523 = vunpack.c.l.b16 %v1003
      %v1524 = vunpack.c.l.b16 %v1004
      %v1525 = vunpack.c.l.b16 %v1005
      %v1526 = vunpack.c.l.b16 %v1006
      %v1527 = vunpack.c.l.b16 %v1007
      %v1528 = vunpack.c.l.b16 %v1008
      %v1529 = vunpack.c.l.b16 %v1009
      %v1530 = vunpack.c.l.b16 %v1010
      %v1531 = vunpack.c.l.b16 %v1011
      %v1532 = vunpack.c.l.b16 %v1012
      %v1533 = vunpack.c.l.b16 %v1013
      %v1534 = vunpack.c.l.b16 %v1014
      %v1535 = vunpack.c.l.b16 %v1015
      %v1536 = vunpack.c.l.b16 %v1016
      %v1537 = vunpack.c.l.b16 %v1017
      %v1538 = vunpack.c.l.b16 %v1018
      %v1539 = vunpack.c.l.b16 %v1019
      %v1540 = vunpack.c.l.b16 %v1020
      %v1541 = vunpack.c.l.b16 %v1021
      %v1542 = vunpack.c.l.b16 %v1022
      %v1543 = vunpack.c.l.b16 %v1023
      %v1544 = vunpack.c.l.b16 %v1024
      %v1545 = vunpack.c.l.b16 %v1025
      %v1546 = vunpack.c.l.b16 %v1026
      %v1547 = vunpack.c.l.b16 %v1027
      %v1548 = vunpack.c.l.b16 %v1028
      %v1549 = vunpack.c.l.b16 %v1029
      %v1550 = vunpack.c.l.b16 %v1030
      %v1551 = vunpack.c.l.b16 %v1031
      %v1552 = vunpack.c.l.b16 %v1032
      %v1553 = vunpack.c.l.b16 %v1033
      %v1554 = vunpack.c.l.b16 %v1034
      %v1555 = vunpack.c.l.b16 %v1035
      %v1556 = vunpack.c.l.b16 %v1036
      %v1557 = vunpack.c.l.b16 %v1037
      %v1558 = vpack.c.b16 %v1495, %v1494
      %v1559 = vpack.c.b16 %v1497, %v1496
      %v1560 = vpack.c.b16 %v1499, %v1498
      %v1561 = vpack.c.b16 %v1501, %v1500
      %v1562 = vpack.c.b16 %v1503, %v1502
      %v1563 = vpack.c.b16 %v1505, %v1504
      %v1564 = vpack.c.b16 %v1507, %v1506
      %v1565 = vpack.c.b16 %v1509, %v1508
      %v1566 = vpack.c.b16 %v1511, %v1510
      %v1567 = vpack.c.b16 %v1513, %v1512
      %v1568 = vpack.c.b16 %v1515, %v1514
      %v1569 = vpack.c.b16 %v1517, %v1516
      %v1570 = vpack.c.b16 %v1519, %v1518
      %v1571 = vpack.c.b16 %v1521, %v1520
      %v1572 = vpack.c.b16 %v1523, %v1522
      %v1573 = vpack.c.b16 %v1525, %v1524
      %v1574 = vpack.c.b16 %v1527, %v1526
      %v1575 = vpack.c.b16 %v1529, %v1528
      %v1576 = vpack.c.b16 %v1531, %v1530
      %v1577 = vpack.c.b16 %v1533, %v1532
      %v1578 = vpack.c.b16 %v1535, %v1534
      %v1579 = vpack.c.b16 %v1537, %v1536
      %v1580 = vpack.c.b16 %v1539, %v1538
      %v1581 = vpack.c.b16 %v1541, %v1540
      %v1582 = vpack.c.b16 %v1543, %v1542
      %v1583 = vpack.c.b16 %v1545, %v1544
      %v1584 = vpack.c.b16 %v1547, %v1546
      %v1585 = vpack.c.b16 %v1549, %v1548
      %v1586 = vpack.c.b16 %v1551, %v1550
      %v1587 = vpack.c.b16 %v1553, %v1552
      %v1588 = vpack.c.b16 %v1555, %v1554
      %v1589 = vpack.c.b16 %v1557, %v1556
      %1622 = vmatprep.subr.bf16.mxu0 0
      %1623 = vmatpush1.bf16.msra.mxu0 %v1038
      %1624 = vmatprep.subr.bf16.mxu0 0
      %1625 = vmatpush1.bf16.msra.mxu0 %v1039
      %1626 = vmatprep.subr.bf16.mxu0 0
      %1627 = vmatpush1.bf16.msra.mxu0 %v1040
      %1628 = vmatprep.subr.bf16.mxu0 0
      %1629 = vmatpush1.bf16.msra.mxu0 %v1041
      %1630 = vmatprep.subr.bf16.mxu0 0
      %1631 = vmatpush1.bf16.msra.mxu0 %v1042
      %1632 = vmatprep.subr.bf16.mxu0 0
      %1633 = vmatpush1.bf16.msra.mxu0 %v1043
      %1634 = vmatprep.subr.bf16.mxu0 0
      %1635 = vmatpush1.bf16.msra.mxu0 %v1044
      %1636 = vmatprep.subr.bf16.mxu0 0
      %1637 = vmatpush1.bf16.msra.mxu0 %v1045
      %1638 = vmatprep.subr.bf16.mxu0 0
      %1639 = vmatpush1.bf16.msra.mxu0 0
      %1640 = vmatprep.subr.bf16.mxu0 0
      %1641 = vmatpush1.bf16.msra.mxu0 0
      %1642 = vmatprep.subr.bf16.mxu0 0
      %1643 = vmatpush1.bf16.msra.mxu0 0
      %1644 = vmatprep.subr.bf16.mxu0 0
      %1645 = vmatpush1.bf16.msra.mxu0 0
      %1646 = vmatprep.subr.bf16.mxu0 0
      %1647 = vmatpush1.bf16.msra.mxu0 0
      %1648 = vmatprep.subr.bf16.mxu0 0
      %1649 = vmatpush1.bf16.msra.mxu0 0
      %1650 = vmatprep.subr.bf16.mxu0 0
      %1651 = vmatpush1.bf16.msra.mxu0 0
      %1652 = vmatprep.subr.bf16.mxu0 0
      %1653 = vmatpush1.bf16.msra.mxu0 0
      %1654 = vmatprep.mubr.bf16.mxu0 0
      %1655 = vmatmul.mubr.bf16.gmra.mrb[0].mxu0 %v1558
      %v1656 = vpop.f32.mrb[0].mxu0
      %v1657 = vadd.f32 %v1113, %v1656
      %v1658 = vpop.f32.mrb[0].mxu0
      %v1659 = vpop.f32.mrb[0].mxu0
      %v1660 = vadd.f32 %v1118, %v1659
      %v1661 = vpop.f32.mrb[0].mxu0
      %1662 = vmatprep.mubr.bf16.mxu0 0
      %1663 = vmatmul.mubr.bf16.gmra.mrb[0].mxu0 %v1559
      %v1664 = vpop.f32.mrb[0].mxu0
      %v1665 = vadd.f32 %v1123, %v1664
      %v1666 = vpop.f32.mrb[0].mxu0
      %v1667 = vpop.f32.mrb[0].mxu0
      %v1668 = vadd.f32 %v1128, %v1667
      %v1669 = vpop.f32.mrb[0].mxu0
      %1670 = vmatprep.mubr.bf16.mxu0 0
      %1671 = vmatmul.mubr.bf16.gmra.mrb[0].mxu0 %v1560
      %v1672 = vpop.f32.mrb[0].mxu0
      %v1673 = vadd.f32 %v1133, %v1672
      %v1674 = vpop.f32.mrb[0].mxu0
      %v1675 = vpop.f32.mrb[0].mxu0
      %v1676 = vadd.f32 %v1138, %v1675
      %v1677 = vpop.f32.mrb[0].mxu0
      %1678 = vmatprep.mubr.bf16.mxu0 0
      %1679 = vmatmul.mubr.bf16.gmra.mrb[0].mxu0 %v1561
      %v1680 = vpop.f32.mrb[0].mxu0
      %v1681 = vadd.f32 %v1143, %v1680
      %v1682 = vpop.f32.mrb[0].mxu0
      %v1683 = vpop.f32.mrb[0].mxu0
      %v1684 = vadd.f32 %v1148, %v1683
      %v1685 = vpop.f32.mrb[0].mxu0
      %1686 = vmatprep.mubr.bf16.mxu0 0
      %1687 = vmatmul.mubr.bf16.gmra.mrb[0].mxu0 %v1562
      %v1688 = vpop.f32.mrb[0].mxu0
      %v1689 = vadd.f32 %v1153, %v1688
      %v1690 = vpop.f32.mrb[0].mxu0
      %v1691 = vpop.f32.mrb[0].mxu0
      %v1692 = vadd.f32 %v1158, %v1691
      %v1693 = vpop.f32.mrb[0].mxu0
      %1694 = vmatprep.mubr.bf16.mxu0 0
      %1695 = vmatmul.mubr.bf16.gmra.mrb[0].mxu0 %v1563
      %v1696 = vpop.f32.mrb[0].mxu0
      %v1697 = vadd.f32 %v1163, %v1696
      %v1698 = vpop.f32.mrb[0].mxu0
      %v1699 = vpop.f32.mrb[0].mxu0
      %v1700 = vadd.f32 %v1168, %v1699
      %v1701 = vpop.f32.mrb[0].mxu0
      %1702 = vmatprep.mubr.bf16.mxu0 0
      %1703 = vmatmul.mubr.bf16.gmra.mrb[0].mxu0 %v1564
      %v1704 = vpop.f32.mrb[0].mxu0
      %v1705 = vadd.f32 %v1173, %v1704
      %v1706 = vpop.f32.mrb[0].mxu0
      %v1707 = vpop.f32.mrb[0].mxu0
      %v1708 = vadd.f32 %v1178, %v1707
      %v1709 = vpop.f32.mrb[0].mxu0
      %1710 = vmatprep.mubr.bf16.mxu0 0
      %1711 = vmatmul.mubr.bf16.gmra.mrb[0].mxu0 %v1565
      %v1712 = vpop.f32.mrb[0].mxu0
      %v1713 = vadd.f32 %v1183, %v1712
      %v1714 = vpop.f32.mrb[0].mxu0
      %v1715 = vpop.f32.mrb[0].mxu0
      %v1716 = vadd.f32 %v1188, %v1715
      %v1717 = vpop.f32.mrb[0].mxu0
      %1718 = vmatprep.mubr.bf16.mxu0 0
      %1719 = vmatmul.mubr.bf16.gmra.mrb[0].mxu0 %v1566
      %v1720 = vpop.f32.mrb[0].mxu0
      %v1721 = vadd.f32 %v1193, %v1720
      %v1722 = vpop.f32.mrb[0].mxu0
      %v1723 = vpop.f32.mrb[0].mxu0
      %v1724 = vadd.f32 %v1198, %v1723
      %v1725 = vpop.f32.mrb[0].mxu0
      %1726 = vmatprep.mubr.bf16.mxu0 0
      %1727 = vmatmul.mubr.bf16.gmra.mrb[0].mxu0 %v1567
      %v1728 = vpop.f32.mrb[0].mxu0
      %v1729 = vadd.f32 %v1203, %v1728
      %v1730 = vpop.f32.mrb[0].mxu0
      %v1731 = vpop.f32.mrb[0].mxu0
      %v1732 = vadd.f32 %v1208, %v1731
      %v1733 = vpop.f32.mrb[0].mxu0
      %1734 = vmatprep.mubr.bf16.mxu0 0
      %1735 = vmatmul.mubr.bf16.gmra.mrb[0].mxu0 %v1568
      %v1736 = vpop.f32.mrb[0].mxu0
      %v1737 = vadd.f32 %v1213, %v1736
      %v1738 = vpop.f32.mrb[0].mxu0
      %v1739 = vpop.f32.mrb[0].mxu0
      %v1740 = vadd.f32 %v1218, %v1739
      %v1741 = vpop.f32.mrb[0].mxu0
      %1742 = vmatprep.mubr.bf16.mxu0 0
      %1743 = vmatmul.mubr.bf16.gmra.mrb[0].mxu0 %v1569
      %v1744 = vpop.f32.mrb[0].mxu0
      %v1745 = vadd.f32 %v1223, %v1744
      %v1746 = vpop.f32.mrb[0].mxu0
      %v1747 = vpop.f32.mrb[0].mxu0
      %v1748 = vadd.f32 %v1228, %v1747
      %v1749 = vpop.f32.mrb[0].mxu0
      %1750 = vmatprep.mubr.bf16.mxu0 0
      %1751 = vmatmul.mubr.bf16.gmra.mrb[0].mxu0 %v1570
      %v1752 = vpop.f32.mrb[0].mxu0
      %v1753 = vadd.f32 %v1233, %v1752
      %v1754 = vpop.f32.mrb[0].mxu0
      %v1755 = vpop.f32.mrb[0].mxu0
      %v1756 = vadd.f32 %v1238, %v1755
      %v1757 = vpop.f32.mrb[0].mxu0
      %1758 = vmatprep.mubr.bf16.mxu0 0
      %1759 = vmatmul.mubr.bf16.gmra.mrb[0].mxu0 %v1571
      %v1760 = vpop.f32.mrb[0].mxu0
      %v1761 = vadd.f32 %v1243, %v1760
      %v1762 = vpop.f32.mrb[0].mxu0
      %v1763 = vpop.f32.mrb[0].mxu0
      %v1764 = vadd.f32 %v1248, %v1763
      %v1765 = vpop.f32.mrb[0].mxu0
      %1766 = vmatprep.mubr.bf16.mxu0 0
      %1767 = vmatmul.mubr.bf16.gmra.mrb[0].mxu0 %v1572
      %v1768 = vpop.f32.mrb[0].mxu0
      %v1769 = vadd.f32 %v1253, %v1768
      %v1770 = vpop.f32.mrb[0].mxu0
      %v1771 = vpop.f32.mrb[0].mxu0
      %v1772 = vadd.f32 %v1258, %v1771
      %v1773 = vpop.f32.mrb[0].mxu0
      %1774 = vmatprep.mubr.bf16.mxu0 0
      %1775 = vmatmul.mubr.bf16.gmra.mrb[0].mxu0 %v1573
      %v1776 = vpop.f32.mrb[0].mxu0
      %v1777 = vadd.f32 %v1263, %v1776
      %v1778 = vpop.f32.mrb[0].mxu0
      %v1779 = vpop.f32.mrb[0].mxu0
      %v1780 = vadd.f32 %v1268, %v1779
      %v1781 = vpop.f32.mrb[0].mxu0
      %1782 = vmatprep.mubr.bf16.mxu0 0
      %1783 = vmatmul.mubr.bf16.gmra.mrb[0].mxu0 %v1574
      %v1784 = vpop.f32.mrb[0].mxu0
      %v1785 = vadd.f32 %v1273, %v1784
      %v1786 = vpop.f32.mrb[0].mxu0
      %v1787 = vpop.f32.mrb[0].mxu0
      %v1788 = vadd.f32 %v1278, %v1787
      %v1789 = vpop.f32.mrb[0].mxu0
      %1790 = vmatprep.mubr.bf16.mxu0 0
      %1791 = vmatmul.mubr.bf16.gmra.mrb[0].mxu0 %v1575
      %v1792 = vpop.f32.mrb[0].mxu0
      %v1793 = vadd.f32 %v1283, %v1792
      %v1794 = vpop.f32.mrb[0].mxu0
      %v1795 = vpop.f32.mrb[0].mxu0
      %v1796 = vadd.f32 %v1288, %v1795
      %v1797 = vpop.f32.mrb[0].mxu0
      %1798 = vmatprep.mubr.bf16.mxu0 0
      %1799 = vmatmul.mubr.bf16.gmra.mrb[0].mxu0 %v1576
      %v1800 = vpop.f32.mrb[0].mxu0
      %v1801 = vadd.f32 %v1293, %v1800
      %v1802 = vpop.f32.mrb[0].mxu0
      %v1803 = vpop.f32.mrb[0].mxu0
      %v1804 = vadd.f32 %v1298, %v1803
      %v1805 = vpop.f32.mrb[0].mxu0
      %1806 = vmatprep.mubr.bf16.mxu0 0
      %1807 = vmatmul.mubr.bf16.gmra.mrb[0].mxu0 %v1577
      %v1808 = vpop.f32.mrb[0].mxu0
      %v1809 = vadd.f32 %v1303, %v1808
      %v1810 = vpop.f32.mrb[0].mxu0
      %v1811 = vpop.f32.mrb[0].mxu0
      %v1812 = vadd.f32 %v1308, %v1811
      %v1813 = vpop.f32.mrb[0].mxu0
      %1814 = vmatprep.mubr.bf16.mxu0 0
      %1815 = vmatmul.mubr.bf16.gmra.mrb[0].mxu0 %v1578
      %v1816 = vpop.f32.mrb[0].mxu0
      %v1817 = vadd.f32 %v1313, %v1816
      %v1818 = vpop.f32.mrb[0].mxu0
      %v1819 = vpop.f32.mrb[0].mxu0
      %v1820 = vadd.f32 %v1318, %v1819
      %v1821 = vpop.f32.mrb[0].mxu0
      %1822 = vmatprep.mubr.bf16.mxu0 0
      %1823 = vmatmul.mubr.bf16.gmra.mrb[0].mxu0 %v1579
      %v1824 = vpop.f32.mrb[0].mxu0
      %v1825 = vadd.f32 %v1323, %v1824
      %v1826 = vpop.f32.mrb[0].mxu0
      %v1827 = vpop.f32.mrb[0].mxu0
      %v1828 = vadd.f32 %v1328, %v1827
      %v1829 = vpop.f32.mrb[0].mxu0
      %1830 = vmatprep.mubr.bf16.mxu0 0
      %1831 = vmatmul.mubr.bf16.gmra.mrb[0].mxu0 %v1580
      %v1832 = vpop.f32.mrb[0].mxu0
      %v1833 = vadd.f32 %v1333, %v1832
      %v1834 = vpop.f32.mrb[0].mxu0
      %v1835 = vpop.f32.mrb[0].mxu0
      %v1836 = vadd.f32 %v1338, %v1835
      %v1837 = vpop.f32.mrb[0].mxu0
      %1838 = vmatprep.mubr.bf16.mxu0 0
      %1839 = vmatmul.mubr.bf16.gmra.mrb[0].mxu0 %v1581
      %v1840 = vpop.f32.mrb[0].mxu0
      %v1841 = vadd.f32 %v1343, %v1840
      %v1842 = vpop.f32.mrb[0].mxu0
      %v1843 = vpop.f32.mrb[0].mxu0
      %v1844 = vadd.f32 %v1348, %v1843
      %v1845 = vpop.f32.mrb[0].mxu0
      %1846 = vmatprep.mubr.bf16.mxu0 0
      %1847 = vmatmul.mubr.bf16.gmra.mrb[0].mxu0 %v1582
      %v1848 = vpop.f32.mrb[0].mxu0
      %v1849 = vadd.f32 %v1353, %v1848
      %v1850 = vpop.f32.mrb[0].mxu0
      %v1851 = vpop.f32.mrb[0].mxu0
      %v1852 = vadd.f32 %v1358, %v1851
      %v1853 = vpop.f32.mrb[0].mxu0
      %1854 = vmatprep.mubr.bf16.mxu0 0
      %1855 = vmatmul.mubr.bf16.gmra.mrb[0].mxu0 %v1583
      %v1856 = vpop.f32.mrb[0].mxu0
      %v1857 = vadd.f32 %v1363, %v1856
      %v1858 = vpop.f32.mrb[0].mxu0
      %v1859 = vpop.f32.mrb[0].mxu0
      %v1860 = vadd.f32 %v1368, %v1859
      %v1861 = vpop.f32.mrb[0].mxu0
      %1862 = vmatprep.mubr.bf16.mxu0 0
      %1863 = vmatmul.mubr.bf16.gmra.mrb[0].mxu0 %v1584
      %v1864 = vpop.f32.mrb[0].mxu0
      %v1865 = vadd.f32 %v1373, %v1864
      %v1866 = vpop.f32.mrb[0].mxu0
      %v1867 = vpop.f32.mrb[0].mxu0
      %v1868 = vadd.f32 %v1378, %v1867
      %v1869 = vpop.f32.mrb[0].mxu0
      %1870 = vmatprep.mubr.bf16.mxu0 0
      %1871 = vmatmul.mubr.bf16.gmra.mrb[0].mxu0 %v1585
      %v1872 = vpop.f32.mrb[0].mxu0
      %v1873 = vadd.f32 %v1383, %v1872
      %v1874 = vpop.f32.mrb[0].mxu0
      %v1875 = vpop.f32.mrb[0].mxu0
      %v1876 = vadd.f32 %v1388, %v1875
      %v1877 = vpop.f32.mrb[0].mxu0
      %1878 = vmatprep.mubr.bf16.mxu0 0
      %1879 = vmatmul.mubr.bf16.gmra.mrb[0].mxu0 %v1586
      %v1880 = vpop.f32.mrb[0].mxu0
      %v1881 = vadd.f32 %v1393, %v1880
      %v1882 = vpop.f32.mrb[0].mxu0
      %v1883 = vpop.f32.mrb[0].mxu0
      %v1884 = vadd.f32 %v1398, %v1883
      %v1885 = vpop.f32.mrb[0].mxu0
      %1886 = vmatprep.mubr.bf16.mxu0 0
      %1887 = vmatmul.mubr.bf16.gmra.mrb[0].mxu0 %v1587
      %v1888 = vpop.f32.mrb[0].mxu0
      %v1889 = vadd.f32 %v1403, %v1888
      %v1890 = vpop.f32.mrb[0].mxu0
      %v1891 = vpop.f32.mrb[0].mxu0
      %v1892 = vadd.f32 %v1408, %v1891
      %v1893 = vpop.f32.mrb[0].mxu0
      %1894 = vmatprep.mubr.bf16.mxu0 0
      %1895 = vmatmul.mubr.bf16.gmra.mrb[0].mxu0 %v1588
      %v1896 = vpop.f32.mrb[0].mxu0
      %v1897 = vadd.f32 %v1413, %v1896
      %v1898 = vpop.f32.mrb[0].mxu0
      %v1899 = vpop.f32.mrb[0].mxu0
      %v1900 = vadd.f32 %v1418, %v1899
      %v1901 = vpop.f32.mrb[0].mxu0
      %1902 = vmatprep.mubr.bf16.mxu0 0
      %1903 = vmatmul.mubr.bf16.gmra.mrb[0].mxu0 %v1589
      %v1904 = vpop.f32.mrb[0].mxu0
      %v1905 = vadd.f32 %v1423, %v1904
      %v1906 = vpop.f32.mrb[0].mxu0
      %v1907 = vpop.f32.mrb[0].mxu0
      %v1908 = vadd.f32 %v1428, %v1907
      %v1909 = vpop.f32.mrb[0].mxu0
      %1910 = vdwg.mxu0
      %v1911 = vmax.f32 %v1657, 0.0
      %v1912 = vmax.f32 %v1660, 0.0
      %v1913 = vmax.f32 %v1665, 0.0
      %v1914 = vmax.f32 %v1668, 0.0
      %v1915 = vmax.f32 %v1673, 0.0
      %v1916 = vmax.f32 %v1676, 0.0
      %v1917 = vmax.f32 %v1681, 0.0
      %v1918 = vmax.f32 %v1684, 0.0
      %v1919 = vmax.f32 %v1689, 0.0
      %v1920 = vmax.f32 %v1692, 0.0
      %v1921 = vmax.f32 %v1697, 0.0
      %v1922 = vmax.f32 %v1700, 0.0
      %v1923 = vmax.f32 %v1705, 0.0
      %v1924 = vmax.f32 %v1708, 0.0
      %v1925 = vmax.f32 %v1713, 0.0
      %v1926 = vmax.f32 %v1716, 0.0
      %v1927 = vmax.f32 %v1721, 0.0
      %v1928 = vmax.f32 %v1724, 0.0
      %v1929 = vmax.f32 %v1729, 0.0
      %v1930 = vmax.f32 %v1732, 0.0
      %v1931 = vmax.f32 %v1737, 0.0
      %v1932 = vmax.f32 %v1740, 0.0
      %v1933 = vmax.f32 %v1745, 0.0
      %v1934 = vmax.f32 %v1748, 0.0
      %v1935 = vmax.f32 %v1753, 0.0
      %v1936 = vmax.f32 %v1756, 0.0
      %v1937 = vmax.f32 %v1761, 0.0
      %v1938 = vmax.f32 %v1764, 0.0
      %v1939 = vmax.f32 %v1769, 0.0
      %v1940 = vmax.f32 %v1772, 0.0
      %v1941 = vmax.f32 %v1777, 0.0
      %v1942 = vmax.f32 %v1780, 0.0
      %v1943 = vmax.f32 %v1785, 0.0
      %v1944 = vmax.f32 %v1788, 0.0
      %v1945 = vmax.f32 %v1793, 0.0
      %v1946 = vmax.f32 %v1796, 0.0
      %v1947 = vmax.f32 %v1801, 0.0
      %v1948 = vmax.f32 %v1804, 0.0
      %v1949 = vmax.f32 %v1809, 0.0
      %v1950 = vmax.f32 %v1812, 0.0
      %v1951 = vmax.f32 %v1817, 0.0
      %v1952 = vmax.f32 %v1820, 0.0
      %v1953 = vmax.f32 %v1825, 0.0
      %v1954 = vmax.f32 %v1828, 0.0
      %v1955 = vmax.f32 %v1833, 0.0
      %v1956 = vmax.f32 %v1836, 0.0
      %v1957 = vmax.f32 %v1841, 0.0
      %v1958 = vmax.f32 %v1844, 0.0
      %v1959 = vmax.f32 %v1849, 0.0
      %v1960 = vmax.f32 %v1852, 0.0
      %v1961 = vmax.f32 %v1857, 0.0
      %v1962 = vmax.f32 %v1860, 0.0
      %v1963 = vmax.f32 %v1865, 0.0
      %v1964 = vmax.f32 %v1868, 0.0
      %v1965 = vmax.f32 %v1873, 0.0
      %v1966 = vmax.f32 %v1876, 0.0
      %v1967 = vmax.f32 %v1881, 0.0
      %v1968 = vmax.f32 %v1884, 0.0
      %v1969 = vmax.f32 %v1889, 0.0
      %v1970 = vmax.f32 %v1892, 0.0
      %v1971 = vmax.f32 %v1897, 0.0
      %v1972 = vmax.f32 %v1900, 0.0
      %v1973 = vmax.f32 %v1905, 0.0
      %v1974 = vmax.f32 %v1908, 0.0
      %v1975 = vld [vmem:[%s379] sm:$0xff]
      %v1976 = vld [vmem:[%s379 + $0x8] sm:$0xff]
      %v1977 = vld [vmem:[%s379 + $0x10] sm:$0xff]
      %v1978 = vld [vmem:[%s379 + $0x18] sm:$0xff]
      %v1979 = vld [vmem:[%s379 + $0x20] sm:$0xff]
      %v1980 = vld [vmem:[%s379 + $0x28] sm:$0xff]
      %v1981 = vld [vmem:[%s379 + $0x30] sm:$0xff]
      %v1982 = vld [vmem:[%s379 + $0x38] sm:$0xff]
      %v1983 = vld [vmem:[%s379 + $0x40] sm:$0xff]
      %v1984 = vld [vmem:[%s379 + $0x48] sm:$0xff]
      %v1985 = vld [vmem:[%s379 + $0x50] sm:$0xff]
      %v1986 = vld [vmem:[%s379 + $0x58] sm:$0xff]
      %v1987 = vld [vmem:[%s379 + $0x60] sm:$0xff]
      %v1988 = vld [vmem:[%s379 + $0x68] sm:$0xff]
      %v1989 = vld [vmem:[%s379 + $0x70] sm:$0xff]
      %v1990 = vld [vmem:[%s379 + $0x78] sm:$0xff]
      %v1991 = vld [vmem:[%s379 + $0x80] sm:$0xff]
      %v1992 = vld [vmem:[%s379 + $0x88] sm:$0xff]
      %v1993 = vld [vmem:[%s379 + $0x90] sm:$0xff]
      %v1994 = vld [vmem:[%s379 + $0x98] sm:$0xff]
      %v1995 = vld [vmem:[%s379 + $0xa0] sm:$0xff]
      %v1996 = vld [vmem:[%s379 + $0xa8] sm:$0xff]
      %v1997 = vld [vmem:[%s379 + $0xb0] sm:$0xff]
      %v1998 = vld [vmem:[%s379 + $0xb8] sm:$0xff]
      %v1999 = vld [vmem:[%s379 + $0xc0] sm:$0xff]
      %v2000 = vld [vmem:[%s379 + $0xc8] sm:$0xff]
      %v2001 = vld [vmem:[%s379 + $0xd0] sm:$0xff]
      %v2002 = vld [vmem:[%s379 + $0xd8] sm:$0xff]
      %v2003 = vld [vmem:[%s379 + $0xe0] sm:$0xff]
      %v2004 = vld [vmem:[%s379 + $0xe8] sm:$0xff]
      %v2005 = vld [vmem:[%s379 + $0xf0] sm:$0xff]
      %v2006 = vld [vmem:[%s379 + $0xf8] sm:$0xff]
      %v2007 = vld [vmem:[%s379 + $0x100] sm:$0xff]
      %v2008 = vld [vmem:[%s379 + $0x108] sm:$0xff]
      %v2009 = vld [vmem:[%s379 + $0x110] sm:$0xff]
      %v2010 = vld [vmem:[%s379 + $0x118] sm:$0xff]
      %v2011 = vld [vmem:[%s379 + $0x120] sm:$0xff]
      %v2012 = vld [vmem:[%s379 + $0x128] sm:$0xff]
      %v2013 = vld [vmem:[%s379 + $0x130] sm:$0xff]
      %v2014 = vld [vmem:[%s379 + $0x138] sm:$0xff]
      %v2015 = vld [vmem:[%s379 + $0x140] sm:$0xff]
      %v2016 = vld [vmem:[%s379 + $0x148] sm:$0xff]
      %v2017 = vld [vmem:[%s379 + $0x150] sm:$0xff]
      %v2018 = vld [vmem:[%s379 + $0x158] sm:$0xff]
      %v2019 = vld [vmem:[%s379 + $0x160] sm:$0xff]
      %v2020 = vld [vmem:[%s379 + $0x168] sm:$0xff]
      %v2021 = vld [vmem:[%s379 + $0x170] sm:$0xff]
      %v2022 = vld [vmem:[%s379 + $0x178] sm:$0xff]
      %v2023 = vld [vmem:[%s379 + $0x180] sm:$0xff]
      %v2024 = vld [vmem:[%s379 + $0x188] sm:$0xff]
      %v2025 = vld [vmem:[%s379 + $0x190] sm:$0xff]
      %v2026 = vld [vmem:[%s379 + $0x198] sm:$0xff]
      %v2027 = vld [vmem:[%s379 + $0x1a0] sm:$0xff]
      %v2028 = vld [vmem:[%s379 + $0x1a8] sm:$0xff]
      %v2029 = vld [vmem:[%s379 + $0x1b0] sm:$0xff]
      %v2030 = vld [vmem:[%s379 + $0x1b8] sm:$0xff]
      %v2031 = vld [vmem:[%s379 + $0x1c0] sm:$0xff]
      %v2032 = vld [vmem:[%s379 + $0x1c8] sm:$0xff]
      %v2033 = vld [vmem:[%s379 + $0x1d0] sm:$0xff]
      %v2034 = vld [vmem:[%s379 + $0x1d8] sm:$0xff]
      %v2035 = vld [vmem:[%s379 + $0x1e0] sm:$0xff]
      %v2036 = vld [vmem:[%s379 + $0x1e8] sm:$0xff]
      %v2037 = vld [vmem:[%s379 + $0x1f0] sm:$0xff]
      %v2038 = vld [vmem:[%s379 + $0x1f8] sm:$0xff]
      %vm2039 = vcmask 130048
      %v2040 = vsel %vm2039, %v1911, -inf
      %2041 = vmax.xlane.f32.xlu0 %v2040
      %v2042 = vpop.xlane.xlu0 %2041
      %v2043 = vsel %vm2039, %v1912, -inf
      %2044 = vmax.xlane.f32.xlu0 %v2043
      %v2045 = vpop.xlane.xlu0 %2044
      %v2046 = vsel %vm2039, %v1913, -inf
      %2047 = vmax.xlane.f32.xlu0 %v2046
      %v2048 = vpop.xlane.xlu0 %2047
      %v2049 = vsel %vm2039, %v1914, -inf
      %2050 = vmax.xlane.f32.xlu0 %v2049
      %v2051 = vpop.xlane.xlu0 %2050
      %v2052 = vsel %vm2039, %v1915, -inf
      %2053 = vmax.xlane.f32.xlu0 %v2052
      %v2054 = vpop.xlane.xlu0 %2053
      %v2055 = vsel %vm2039, %v1916, -inf
      %2056 = vmax.xlane.f32.xlu0 %v2055
      %v2057 = vpop.xlane.xlu0 %2056
      %v2058 = vsel %vm2039, %v1917, -inf
      %2059 = vmax.xlane.f32.xlu0 %v2058
      %v2060 = vpop.xlane.xlu0 %2059
      %v2061 = vsel %vm2039, %v1918, -inf
      %2062 = vmax.xlane.f32.xlu0 %v2061
      %v2063 = vpop.xlane.xlu0 %2062
      %v2064 = vsel %vm2039, %v1919, -inf
      %2065 = vmax.xlane.f32.xlu0 %v2064
      %v2066 = vpop.xlane.xlu0 %2065
      %v2067 = vsel %vm2039, %v1920, -inf
      %2068 = vmax.xlane.f32.xlu0 %v2067
      %v2069 = vpop.xlane.xlu0 %2068
      %v2070 = vsel %vm2039, %v1921, -inf
      %2071 = vmax.xlane.f32.xlu0 %v2070
      %v2072 = vpop.xlane.xlu0 %2071
      %v2073 = vsel %vm2039, %v1922, -inf
      %2074 = vmax.xlane.f32.xlu0 %v2073
      %v2075 = vpop.xlane.xlu0 %2074
      %v2076 = vsel %vm2039, %v1923, -inf
      %2077 = vmax.xlane.f32.xlu0 %v2076
      %v2078 = vpop.xlane.xlu0 %2077
      %v2079 = vsel %vm2039, %v1924, -inf
      %2080 = vmax.xlane.f32.xlu0 %v2079
      %v2081 = vpop.xlane.xlu0 %2080
      %v2082 = vsel %vm2039, %v1925, -inf
      %2083 = vmax.xlane.f32.xlu0 %v2082
      %v2084 = vpop.xlane.xlu0 %2083
      %v2085 = vsel %vm2039, %v1926, -inf
      %2086 = vmax.xlane.f32.xlu0 %v2085
      %v2087 = vpop.xlane.xlu0 %2086
      %v2088 = vsel %vm2039, %v1927, -inf
      %2089 = vmax.xlane.f32.xlu0 %v2088
      %v2090 = vpop.xlane.xlu0 %2089
      %v2091 = vsel %vm2039, %v1928, -inf
      %2092 = vmax.xlane.f32.xlu0 %v2091
      %v2093 = vpop.xlane.xlu0 %2092
      %v2094 = vsel %vm2039, %v1929, -inf
      %2095 = vmax.xlane.f32.xlu0 %v2094
      %v2096 = vpop.xlane.xlu0 %2095
      %v2097 = vsel %vm2039, %v1930, -inf
      %2098 = vmax.xlane.f32.xlu0 %v2097
      %v2099 = vpop.xlane.xlu0 %2098
      %v2100 = vsel %vm2039, %v1931, -inf
      %2101 = vmax.xlane.f32.xlu0 %v2100
      %v2102 = vpop.xlane.xlu0 %2101
      %v2103 = vsel %vm2039, %v1932, -inf
      %2104 = vmax.xlane.f32.xlu0 %v2103
      %v2105 = vpop.xlane.xlu0 %2104
      %v2106 = vsel %vm2039, %v1933, -inf
      %2107 = vmax.xlane.f32.xlu0 %v2106
      %v2108 = vpop.xlane.xlu0 %2107
      %v2109 = vsel %vm2039, %v1934, -inf
      %2110 = vmax.xlane.f32.xlu0 %v2109
      %v2111 = vpop.xlane.xlu0 %2110
      %v2112 = vsel %vm2039, %v1935, -inf
      %2113 = vmax.xlane.f32.xlu0 %v2112
      %v2114 = vpop.xlane.xlu0 %2113
      %v2115 = vsel %vm2039, %v1936, -inf
      %2116 = vmax.xlane.f32.xlu0 %v2115
      %v2117 = vpop.xlane.xlu0 %2116
      %v2118 = vsel %vm2039, %v1937, -inf
      %2119 = vmax.xlane.f32.xlu0 %v2118
      %v2120 = vpop.xlane.xlu0 %2119
      %v2121 = vsel %vm2039, %v1938, -inf
      %2122 = vmax.xlane.f32.xlu0 %v2121
      %v2123 = vpop.xlane.xlu0 %2122
      %v2124 = vsel %vm2039, %v1939, -inf
      %2125 = vmax.xlane.f32.xlu0 %v2124
      %v2126 = vpop.xlane.xlu0 %2125
      %v2127 = vsel %vm2039, %v1940, -inf
      %2128 = vmax.xlane.f32.xlu0 %v2127
      %v2129 = vpop.xlane.xlu0 %2128
      %v2130 = vsel %vm2039, %v1941, -inf
      %2131 = vmax.xlane.f32.xlu0 %v2130
      %v2132 = vpop.xlane.xlu0 %2131
      %v2133 = vsel %vm2039, %v1942, -inf
      %2134 = vmax.xlane.f32.xlu0 %v2133
      %v2135 = vpop.xlane.xlu0 %2134
      %v2136 = vsel %vm2039, %v1943, -inf
      %2137 = vmax.xlane.f32.xlu0 %v2136
      %v2138 = vpop.xlane.xlu0 %2137
      %v2139 = vsel %vm2039, %v1944, -inf
      %2140 = vmax.xlane.f32.xlu0 %v2139
      %v2141 = vpop.xlane.xlu0 %2140
      %v2142 = vsel %vm2039, %v1945, -inf
      %2143 = vmax.xlane.f32.xlu0 %v2142
      %v2144 = vpop.xlane.xlu0 %2143
      %v2145 = vsel %vm2039, %v1946, -inf
      %2146 = vmax.xlane.f32.xlu0 %v2145
      %v2147 = vpop.xlane.xlu0 %2146
      %v2148 = vsel %vm2039, %v1947, -inf
      %2149 = vmax.xlane.f32.xlu0 %v2148
      %v2150 = vpop.xlane.xlu0 %2149
      %v2151 = vsel %vm2039, %v1948, -inf
      %2152 = vmax.xlane.f32.xlu0 %v2151
      %v2153 = vpop.xlane.xlu0 %2152
      %v2154 = vsel %vm2039, %v1949, -inf
      %2155 = vmax.xlane.f32.xlu0 %v2154
      %v2156 = vpop.xlane.xlu0 %2155
      %v2157 = vsel %vm2039, %v1950, -inf
      %2158 = vmax.xlane.f32.xlu0 %v2157
      %v2159 = vpop.xlane.xlu0 %2158
      %v2160 = vsel %vm2039, %v1951, -inf
      %2161 = vmax.xlane.f32.xlu0 %v2160
      %v2162 = vpop.xlane.xlu0 %2161
      %v2163 = vsel %vm2039, %v1952, -inf
      %2164 = vmax.xlane.f32.xlu0 %v2163
      %v2165 = vpop.xlane.xlu0 %2164
      %v2166 = vsel %vm2039, %v1953, -inf
      %2167 = vmax.xlane.f32.xlu0 %v2166
      %v2168 = vpop.xlane.xlu0 %2167
      %v2169 = vsel %vm2039, %v1954, -inf
      %2170 = vmax.xlane.f32.xlu0 %v2169
      %v2171 = vpop.xlane.xlu0 %2170
      %v2172 = vsel %vm2039, %v1955, -inf
      %2173 = vmax.xlane.f32.xlu0 %v2172
      %v2174 = vpop.xlane.xlu0 %2173
      %v2175 = vsel %vm2039, %v1956, -inf
      %2176 = vmax.xlane.f32.xlu0 %v2175
      %v2177 = vpop.xlane.xlu0 %2176
      %v2178 = vsel %vm2039, %v1957, -inf
      %2179 = vmax.xlane.f32.xlu0 %v2178
      %v2180 = vpop.xlane.xlu0 %2179
      %v2181 = vsel %vm2039, %v1958, -inf
      %2182 = vmax.xlane.f32.xlu0 %v2181
      %v2183 = vpop.xlane.xlu0 %2182
      %v2184 = vsel %vm2039, %v1959, -inf
      %2185 = vmax.xlane.f32.xlu0 %v2184
      %v2186 = vpop.xlane.xlu0 %2185
      %v2187 = vsel %vm2039, %v1960, -inf
      %2188 = vmax.xlane.f32.xlu0 %v2187
      %v2189 = vpop.xlane.xlu0 %2188
      %v2190 = vsel %vm2039, %v1961, -inf
      %2191 = vmax.xlane.f32.xlu0 %v2190
      %v2192 = vpop.xlane.xlu0 %2191
      %v2193 = vsel %vm2039, %v1962, -inf
      %2194 = vmax.xlane.f32.xlu0 %v2193
      %v2195 = vpop.xlane.xlu0 %2194
      %v2196 = vsel %vm2039, %v1963, -inf
      %2197 = vmax.xlane.f32.xlu0 %v2196
      %v2198 = vpop.xlane.xlu0 %2197
      %v2199 = vsel %vm2039, %v1964, -inf
      %2200 = vmax.xlane.f32.xlu0 %v2199
      %v2201 = vpop.xlane.xlu0 %2200
      %v2202 = vsel %vm2039, %v1965, -inf
      %2203 = vmax.xlane.f32.xlu0 %v2202
      %v2204 = vpop.xlane.xlu0 %2203
      %v2205 = vsel %vm2039, %v1966, -inf
      %2206 = vmax.xlane.f32.xlu0 %v2205
      %v2207 = vpop.xlane.xlu0 %2206
      %v2208 = vsel %vm2039, %v1967, -inf
      %2209 = vmax.xlane.f32.xlu0 %v2208
      %v2210 = vpop.xlane.xlu0 %2209
      %v2211 = vsel %vm2039, %v1968, -inf
      %2212 = vmax.xlane.f32.xlu0 %v2211
      %v2213 = vpop.xlane.xlu0 %2212
      %v2214 = vsel %vm2039, %v1969, -inf
      %2215 = vmax.xlane.f32.xlu0 %v2214
      %v2216 = vpop.xlane.xlu0 %2215
      %v2217 = vsel %vm2039, %v1970, -inf
      %2218 = vmax.xlane.f32.xlu0 %v2217
      %v2219 = vpop.xlane.xlu0 %2218
      %v2220 = vsel %vm2039, %v1971, -inf
      %2221 = vmax.xlane.f32.xlu0 %v2220
      %v2222 = vpop.xlane.xlu0 %2221
      %v2223 = vsel %vm2039, %v1972, -inf
      %2224 = vmax.xlane.f32.xlu0 %v2223
      %v2225 = vpop.xlane.xlu0 %2224
      %v2226 = vsel %vm2039, %v1973, -inf
      %2227 = vmax.xlane.f32.xlu0 %v2226
      %v2228 = vpop.xlane.xlu0 %2227
      %v2229 = vsel %vm2039, %v1974, -inf
      %2230 = vmax.xlane.f32.xlu0 %v2229
      %v2231 = vpop.xlane.xlu0 %2230
      %v2232 = vmax.f32 %v1975, %v2042
      %v2233 = vmax.f32 %v1976, %v2045
      %v2234 = vmax.f32 %v1977, %v2048
      %v2235 = vmax.f32 %v1978, %v2051
      %v2236 = vmax.f32 %v1979, %v2054
      %v2237 = vmax.f32 %v1980, %v2057
      %v2238 = vmax.f32 %v1981, %v2060
      %v2239 = vmax.f32 %v1982, %v2063
      %v2240 = vmax.f32 %v1983, %v2066
      %v2241 = vmax.f32 %v1984, %v2069
      %v2242 = vmax.f32 %v1985, %v2072
      %v2243 = vmax.f32 %v1986, %v2075
      %v2244 = vmax.f32 %v1987, %v2078
      %v2245 = vmax.f32 %v1988, %v2081
      %v2246 = vmax.f32 %v1989, %v2084
      %v2247 = vmax.f32 %v1990, %v2087
      %v2248 = vmax.f32 %v1991, %v2090
      %v2249 = vmax.f32 %v1992, %v2093
      %v2250 = vmax.f32 %v1993, %v2096
      %v2251 = vmax.f32 %v1994, %v2099
      %v2252 = vmax.f32 %v1995, %v2102
      %v2253 = vmax.f32 %v1996, %v2105
      %v2254 = vmax.f32 %v1997, %v2108
      %v2255 = vmax.f32 %v1998, %v2111
      %v2256 = vmax.f32 %v1999, %v2114
      %v2257 = vmax.f32 %v2000, %v2117
      %v2258 = vmax.f32 %v2001, %v2120
      %v2259 = vmax.f32 %v2002, %v2123
      %v2260 = vmax.f32 %v2003, %v2126
      %v2261 = vmax.f32 %v2004, %v2129
      %v2262 = vmax.f32 %v2005, %v2132
      %v2263 = vmax.f32 %v2006, %v2135
      %v2264 = vmax.f32 %v2007, %v2138
      %v2265 = vmax.f32 %v2008, %v2141
      %v2266 = vmax.f32 %v2009, %v2144
      %v2267 = vmax.f32 %v2010, %v2147
      %v2268 = vmax.f32 %v2011, %v2150
      %v2269 = vmax.f32 %v2012, %v2153
      %v2270 = vmax.f32 %v2013, %v2156
      %v2271 = vmax.f32 %v2014, %v2159
      %v2272 = vmax.f32 %v2015, %v2162
      %v2273 = vmax.f32 %v2016, %v2165
      %v2274 = vmax.f32 %v2017, %v2168
      %v2275 = vmax.f32 %v2018, %v2171
      %v2276 = vmax.f32 %v2019, %v2174
      %v2277 = vmax.f32 %v2020, %v2177
      %v2278 = vmax.f32 %v2021, %v2180
      %v2279 = vmax.f32 %v2022, %v2183
      %v2280 = vmax.f32 %v2023, %v2186
      %v2281 = vmax.f32 %v2024, %v2189
      %v2282 = vmax.f32 %v2025, %v2192
      %v2283 = vmax.f32 %v2026, %v2195
      %v2284 = vmax.f32 %v2027, %v2198
      %v2285 = vmax.f32 %v2028, %v2201
      %v2286 = vmax.f32 %v2029, %v2204
      %v2287 = vmax.f32 %v2030, %v2207
      %v2288 = vmax.f32 %v2031, %v2210
      %v2289 = vmax.f32 %v2032, %v2213
      %v2290 = vmax.f32 %v2033, %v2216
      %v2291 = vmax.f32 %v2034, %v2219
      %v2292 = vmax.f32 %v2035, %v2222
      %v2293 = vmax.f32 %v2036, %v2225
      %v2294 = vmax.f32 %v2037, %v2228
      %v2295 = vmax.f32 %v2038, %v2231
      %vm2296 = vcmask 7168
      %2297 = vst.msk [vmem:[%s379] sm:$0xff] %vm2296, %v2232
      %2298 = vst.msk [vmem:[%s379 + $0x8] sm:$0xff] %vm2296, %v2233
      %2299 = vst.msk [vmem:[%s379 + $0x10] sm:$0xff] %vm2296, %v2234
      %2300 = vst.msk [vmem:[%s379 + $0x18] sm:$0xff] %vm2296, %v2235
      %2301 = vst.msk [vmem:[%s379 + $0x20] sm:$0xff] %vm2296, %v2236
      %2302 = vst.msk [vmem:[%s379 + $0x28] sm:$0xff] %vm2296, %v2237
      %2303 = vst.msk [vmem:[%s379 + $0x30] sm:$0xff] %vm2296, %v2238
      %2304 = vst.msk [vmem:[%s379 + $0x38] sm:$0xff] %vm2296, %v2239
      %2305 = vst.msk [vmem:[%s379 + $0x40] sm:$0xff] %vm2296, %v2240
      %2306 = vst.msk [vmem:[%s379 + $0x48] sm:$0xff] %vm2296, %v2241
      %2307 = vst.msk [vmem:[%s379 + $0x50] sm:$0xff] %vm2296, %v2242
      %2308 = vst.msk [vmem:[%s379 + $0x58] sm:$0xff] %vm2296, %v2243
      %2309 = vst.msk [vmem:[%s379 + $0x60] sm:$0xff] %vm2296, %v2244
      %2310 = vst.msk [vmem:[%s379 + $0x68] sm:$0xff] %vm2296, %v2245
      %2311 = vst.msk [vmem:[%s379 + $0x70] sm:$0xff] %vm2296, %v2246
      %2312 = vst.msk [vmem:[%s379 + $0x78] sm:$0xff] %vm2296, %v2247
      %2313 = vst.msk [vmem:[%s379 + $0x80] sm:$0xff] %vm2296, %v2248
      %2314 = vst.msk [vmem:[%s379 + $0x88] sm:$0xff] %vm2296, %v2249
      %2315 = vst.msk [vmem:[%s379 + $0x90] sm:$0xff] %vm2296, %v2250
      %2316 = vst.msk [vmem:[%s379 + $0x98] sm:$0xff] %vm2296, %v2251
      %2317 = vst.msk [vmem:[%s379 + $0xa0] sm:$0xff] %vm2296, %v2252
      %2318 = vst.msk [vmem:[%s379 + $0xa8] sm:$0xff] %vm2296, %v2253
      %2319 = vst.msk [vmem:[%s379 + $0xb0] sm:$0xff] %vm2296, %v2254
      %2320 = vst.msk [vmem:[%s379 + $0xb8] sm:$0xff] %vm2296, %v2255
      %2321 = vst.msk [vmem:[%s379 + $0xc0] sm:$0xff] %vm2296, %v2256
      %2322 = vst.msk [vmem:[%s379 + $0xc8] sm:$0xff] %vm2296, %v2257
      %2323 = vst.msk [vmem:[%s379 + $0xd0] sm:$0xff] %vm2296, %v2258
      %2324 = vst.msk [vmem:[%s379 + $0xd8] sm:$0xff] %vm2296, %v2259
      %2325 = vst.msk [vmem:[%s379 + $0xe0] sm:$0xff] %vm2296, %v2260
      %2326 = vst.msk [vmem:[%s379 + $0xe8] sm:$0xff] %vm2296, %v2261
      %2327 = vst.msk [vmem:[%s379 + $0xf0] sm:$0xff] %vm2296, %v2262
      %2328 = vst.msk [vmem:[%s379 + $0xf8] sm:$0xff] %vm2296, %v2263
      %2329 = vst.msk [vmem:[%s379 + $0x100] sm:$0xff] %vm2296, %v2264
      %2330 = vst.msk [vmem:[%s379 + $0x108] sm:$0xff] %vm2296, %v2265
      %2331 = vst.msk [vmem:[%s379 + $0x110] sm:$0xff] %vm2296, %v2266
      %2332 = vst.msk [vmem:[%s379 + $0x118] sm:$0xff] %vm2296, %v2267
      %2333 = vst.msk [vmem:[%s379 + $0x120] sm:$0xff] %vm2296, %v2268
      %2334 = vst.msk [vmem:[%s379 + $0x128] sm:$0xff] %vm2296, %v2269
      %2335 = vst.msk [vmem:[%s379 + $0x130] sm:$0xff] %vm2296, %v2270
      %2336 = vst.msk [vmem:[%s379 + $0x138] sm:$0xff] %vm2296, %v2271
      %2337 = vst.msk [vmem:[%s379 + $0x140] sm:$0xff] %vm2296, %v2272
      %2338 = vst.msk [vmem:[%s379 + $0x148] sm:$0xff] %vm2296, %v2273
      %2339 = vst.msk [vmem:[%s379 + $0x150] sm:$0xff] %vm2296, %v2274
      %2340 = vst.msk [vmem:[%s379 + $0x158] sm:$0xff] %vm2296, %v2275
      %2341 = vst.msk [vmem:[%s379 + $0x160] sm:$0xff] %vm2296, %v2276
      %2342 = vst.msk [vmem:[%s379 + $0x168] sm:$0xff] %vm2296, %v2277
      %2343 = vst.msk [vmem:[%s379 + $0x170] sm:$0xff] %vm2296, %v2278
      %2344 = vst.msk [vmem:[%s379 + $0x178] sm:$0xff] %vm2296, %v2279
      %2345 = vst.msk [vmem:[%s379 + $0x180] sm:$0xff] %vm2296, %v2280
      %2346 = vst.msk [vmem:[%s379 + $0x188] sm:$0xff] %vm2296, %v2281
      %2347 = vst.msk [vmem:[%s379 + $0x190] sm:$0xff] %vm2296, %v2282
      %2348 = vst.msk [vmem:[%s379 + $0x198] sm:$0xff] %vm2296, %v2283
      %2349 = vst.msk [vmem:[%s379 + $0x1a0] sm:$0xff] %vm2296, %v2284
      %2350 = vst.msk [vmem:[%s379 + $0x1a8] sm:$0xff] %vm2296, %v2285
      %2351 = vst.msk [vmem:[%s379 + $0x1b0] sm:$0xff] %vm2296, %v2286
      %2352 = vst.msk [vmem:[%s379 + $0x1b8] sm:$0xff] %vm2296, %v2287
      %2353 = vst.msk [vmem:[%s379 + $0x1c0] sm:$0xff] %vm2296, %v2288
      %2354 = vst.msk [vmem:[%s379 + $0x1c8] sm:$0xff] %vm2296, %v2289
      %2355 = vst.msk [vmem:[%s379 + $0x1d0] sm:$0xff] %vm2296, %v2290
      %2356 = vst.msk [vmem:[%s379 + $0x1d8] sm:$0xff] %vm2296, %v2291
      %2357 = vst.msk [vmem:[%s379 + $0x1e0] sm:$0xff] %vm2296, %v2292
      %2358 = vst.msk [vmem:[%s379 + $0x1e8] sm:$0xff] %vm2296, %v2293
      %2359 = vst.msk [vmem:[%s379 + $0x1f0] sm:$0xff] %vm2296, %v2294
      %2360 = vst.msk [vmem:[%s379 + $0x1f8] sm:$0xff] %vm2296, %v2295
      %s2361 = smul.u32 64, %s24
      %p2362 = scmp.lt.s32.totalorder %s23, 1
      %s2363 = scalar_select %p2362, %s23, 1
      %p2364 = scmp.lt.s32.totalorder %s2361, 127
      %s2365 = scalar_select %p2364, %s2361, 127
      %s2366 = smul.addr %s2363, 128
      %s2367 = sadd.s32 %s2365, %s2366
      %s2368 = smul.addr %s2367, 8
      %s2369 = scalar_lea.vmem %s7, %s2368
      // Predicated region
      $region53: #{local_feature2_forward.4} parent=47 // pred_check
        %p2370 = pneg %p226
      $region54: #{local_feature2_forward.4} parent=47 // pred_check_branch
        %2372 = sbr.rel (%p2370) target = $region56
      $region55: #{local_feature2_forward.4} parent=47 // pred_region
        %s2373 = smul.u32 64, %s24
      $region56: #{local_feature2_forward.4} parent=47 // pred_fallthru
        _
    $region48: #{local_feature2_forward.4} parent=5 // pred_fallthru
      _
    %p2374 = scmp.le.s32.totalorder 2, %s13
    // Predicated region
    $region57: #{local_feature2_forward.4} parent=5 // pred_check
      %p2375 = pneg %p2374
    $region58: #{local_feature2_forward.4} parent=5 // pred_check_branch
      %2377 = sbr.rel (%p2375) target = $region60
    $region59: #{local_feature2_forward.4} parent=5 // pred_region
      %s2378 = ssub.s32 %s13, 2
      // Predicated region
      $region61: #{local_feature2_forward.4} parent=59 // pred_check
        %p2379 = pneg %p232
      $region62: #{local_feature2_forward.4} parent=59 // pred_check_branch
        %2381 = sbr.rel (%p2379) target = $region64
      $region63: #{local_feature2_forward.4} parent=59 // pred_region
        %s2382 = smul.u32 64, %s27
        %p2383 = scmp.lt.s32.totalorder %s26, 1
        %s2384 = scalar_select %p2383, %s26, 1
        %p2385 = scmp.lt.s32.totalorder %s2382, 127
        %s2386 = scalar_select %p2385, %s2382, 127
        %s2387 = smul.addr %s2384, 128
        %s2388 = sadd.s32 %s2386, %s2387
        %s2389 = smul.addr %s2388, 8
        %s2390 = scalar_lea.vmem %s7, %s2389
      $region64: #{local_feature2_forward.4} parent=59 // pred_fallthru
        _
    $region60: #{local_feature2_forward.4} parent=5 // pred_fallthru
      _
  $region6: #{local_feature2_forward.4} parent=0 // loop_footer
    %s17 = sadd.s32 1, %s13
  $region7: #{local_feature2_forward.4} parent=0 // loop_footer_branch
    %12 = sbr.rel target = $region3
  $region8: #{local_feature2_forward.4} parent=0 // loop_exit
    _

// kernel: local_feature2_forward.5
$region0: #{local_feature2_forward.5}
  #allocation0 [shape = 'u32[]', space=smem, size = 0x4, offset = 0x4, fixed_abs, tag = 'smem constant byte address 0x4 - core index']
  #allocation1 [shape = 'u32[144,128]{1,0:T(1,128)}', space=vmem, size = 0x12000, scoped, tag = 'internal scratch']
  %s0 = inlined_call_operand.vmem [shape: bf16[2,1024], index: 0, kind: input, shape index: {}]
  %s1 = inlined_call_operand.vmem [shape: bf16[1024,512], index: 1, kind: input, shape index: {}]
  %s2 = inlined_call_operand.vmem [shape: f32[1,512], index: 2, kind: input, shape index: {}]
  %s3 = inlined_call_operand.vmem [shape: bf16[512,256], index: 3, kind: input, shape index: {}]
  %s4 = inlined_call_operand.vmem [shape: f32[1,256], index: 4, kind: input, shape index: {}]
  %s5 = inlined_call_operand.vmem [shape: f32[256,128], index: 5, kind: input, shape index: {}]
  %s6 = inlined_call_operand.vmem [shape: f32[1,128], index: 6, kind: input, shape index: {}]
  %s7 = inlined_call_operand.vmem [shape: f32[2,128], index: 7, kind: output, shape index: {}]
  %s8 = sld [smem:[#allocation0]]
  $region38: #{local_feature2_forward.5} parent=0
    _
  %s10 = ssub.s32 1, %s8
  %s11 = scalar_select 0, %s10, %s8
  // Predicated region
  $region2: #{local_feature2_forward.5} parent=0 // pred_check
    _
  $region3: #{local_feature2_forward.5} parent=0 // pred_check_branch
    %13 = sbr.rel (0) target = $region5
  $region4: #{local_feature2_forward.5} parent=0 // pred_region
    _
  $region5: #{local_feature2_forward.5} parent=0 // pred_fallthru
    _
  // Predicated region
  $region6: #{local_feature2_forward.5} parent=0 // pred_check
    _
  $region7: #{local_feature2_forward.5} parent=0 // pred_check_branch
    %15 = sbr.rel (0) target = $region9
  $region8: #{local_feature2_forward.5} parent=0 // pred_region
    _
  $region9: #{local_feature2_forward.5} parent=0 // pred_fallthru
    _
  // Predicated region
  $region10: #{local_feature2_forward.5} parent=0 // pred_check
    _
  $region11: #{local_feature2_forward.5} parent=0 // pred_check_branch
    %17 = sbr.rel (0) target = $region13
  $region12: #{local_feature2_forward.5} parent=0 // pred_region
    _
  $region13: #{local_feature2_forward.5} parent=0 // pred_fallthru
    _
  // Predicated region
  $region14: #{local_feature2_forward.5} parent=0 // pred_check
    _
  $region15: #{local_feature2_forward.5} parent=0 // pred_check_branch
    %19 = sbr.rel (0) target = $region17
  $region16: #{local_feature2_forward.5} parent=0 // pred_region
    _
  $region17: #{local_feature2_forward.5} parent=0 // pred_fallthru
    _
  // Predicated region
  $region18: #{local_feature2_forward.5} parent=0 // pred_check
    _
  $region19: #{local_feature2_forward.5} parent=0 // pred_check_branch
    %21 = sbr.rel (0) target = $region21
  $region20: #{local_feature2_forward.5} parent=0 // pred_region
    _
  $region21: #{local_feature2_forward.5} parent=0 // pred_fallthru
    _
  // Predicated region
  $region22: #{local_feature2_forward.5} parent=0 // pred_check
    _
  $region23: #{local_feature2_forward.5} parent=0 // pred_check_branch
    %23 = sbr.rel (0) target = $region25
  $region24: #{local_feature2_forward.5} parent=0 // pred_region
    _
  $region25: #{local_feature2_forward.5} parent=0 // pred_fallthru
    _
  // Predicated region
  $region26: #{local_feature2_forward.5} parent=0 // pred_check
    _
  $region27: #{local_feature2_forward.5} parent=0 // pred_check_branch
    %25 = sbr.rel (0) target = $region29
  $region28: #{local_feature2_forward.5} parent=0 // pred_region
    _
  $region29: #{local_feature2_forward.5} parent=0 // pred_fallthru
    _
  %v26 = vld [vmem:[%s0] sm:$0xff]
  %v27 = vld [vmem:[%s1] sm:$0xff]
  %v28 = vld [vmem:[%s1 + $0x8] sm:$0xff]
  %v29 = vld [vmem:[%s1 + $0x10] sm:$0xff]
  %v30 = vld [vmem:[%s1 + $0x18] sm:$0xff]
  %v31 = vld [vmem:[%s1 + $0x20] sm:$0xff]
  %v32 = vld [vmem:[%s1 + $0x28] sm:$0xff]
  %v33 = vld [vmem:[%s1 + $0x30] sm:$0xff]
  %v34 = vld [vmem:[%s1 + $0x38] sm:$0xff]
  %v35 = vld [vmem:[%s1 + $0x40] sm:$0xff]
  %v36 = vld [vmem:[%s1 + $0x48] sm:$0xff]
  %v37 = vld [vmem:[%s1 + $0x50] sm:$0xff]
  %v38 = vld [vmem:[%s1 + $0x58] sm:$0xff]
  %v39 = vld [vmem:[%s1 + $0x60] sm:$0xff]
  %v40 = vld [vmem:[%s1 + $0x68] sm:$0xff]
  %v41 = vld [vmem:[%s1 + $0x70] sm:$0xff]
  %v42 = vld [vmem:[%s1 + $0x78] sm:$0xff]
  %v43 = vld [vmem:[%s1 + $0x80] sm:$0xff]
  %v44 = vld [vmem:[%s1 + $0x88] sm:$0xff]
  %v45 = vld [vmem:[%s1 + $0x90] sm:$0xff]
  %v46 = vld [vmem:[%s1 + $0x98] sm:$0xff]
  %v47 = vld [vmem:[%s1 + $0xa0] sm:$0xff]
  %v48 = vld [vmem:[%s1 + $0xa8] sm:$0xff]
  %v49 = vld [vmem:[%s1 + $0xb0] sm:$0xff]
  %v50 = vld [vmem:[%s1 + $0xb8] sm:$0xff]
  %v51 = vld [vmem:[%s1 + $0xc0] sm:$0xff]
  %v52 = vld [vmem:[%s1 + $0xc8] sm:$0xff]
  %v53 = vld [vmem:[%s1 + $0xd0] sm:$0xff]
  %v54 = vld [vmem:[%s1 + $0xd8] sm:$0xff]
  %v55 = vld [vmem:[%s1 + $0xe0] sm:$0xff]
  %v56 = vld [vmem:[%s1 + $0xe8] sm:$0xff]
  %v57 = vld [vmem:[%s1 + $0xf0] sm:$0xff]
  %v58 = vld [vmem:[%s1 + $0xf8] sm:$0xff]
  %v59 = vld [vmem:[%s1 + $0x100] sm:$0xff]
  %v60 = vld [vmem:[%s1 + $0x108] sm:$0xff]
  %v61 = vld [vmem:[%s1 + $0x110] sm:$0xff]
  %v62 = vld [vmem:[%s1 + $0x118] sm:$0xff]
  %v63 = vld [vmem:[%s1 + $0x120] sm:$0xff]
  %v64 = vld [vmem:[%s1 + $0x128] sm:$0xff]
  %v65 = vld [vmem:[%s1 + $0x130] sm:$0xff]
  %v66 = vld [vmem:[%s1 + $0x138] sm:$0xff]
  %v67 = vld [vmem:[%s1 + $0x140] sm:$0xff]
  %v68 = vld [vmem:[%s1 + $0x148] sm:$0xff]
  %v69 = vld [vmem:[%s1 + $0x150] sm:$0xff]
  %v70 = vld [vmem:[%s1 + $0x158] sm:$0xff]
  %v71 = vld [vmem:[%s1 + $0x160] sm:$0xff]
  %v72 = vld [vmem:[%s1 + $0x168] sm:$0xff]
  %v73 = vld [vmem:[%s1 + $0x170] sm:$0xff]
  %v74 = vld [vmem:[%s1 + $0x178] sm:$0xff]
  %v75 = vld [vmem:[%s1 + $0x180] sm:$0xff]
  %v76 = vld [vmem:[%s1 + $0x188] sm:$0xff]
  %v77 = vld [vmem:[%s1 + $0x190] sm:$0xff]
  %v78 = vld [vmem:[%s1 + $0x198] sm:$0xff]
  %v79 = vld [vmem:[%s1 + $0x1a0] sm:$0xff]
  %v80 = vld [vmem:[%s1 + $0x1a8] sm:$0xff]
  %v81 = vld [vmem:[%s1 + $0x1b0] sm:$0xff]
  %v82 = vld [vmem:[%s1 + $0x1b8] sm:$0xff]
  %v83 = vld [vmem:[%s1 + $0x1c0] sm:$0xff]
  %v84 = vld [vmem:[%s1 + $0x1c8] sm:$0xff]
  %v85 = vld [vmem:[%s1 + $0x1d0] sm:$0xff]
  %v86 = vld [vmem:[%s1 + $0x1d8] sm:$0xff]
  %v87 = vld [vmem:[%s1 + $0x1e0] sm:$0xff]
  %v88 = vld [vmem:[%s1 + $0x1e8] sm:$0xff]
  %v89 = vld [vmem:[%s1 + $0x1f0] sm:$0xff]
  %v90 = vld [vmem:[%s1 + $0x1f8] sm:$0xff]
  %v91 = vld [vmem:[%s1 + $0x200] sm:$0xff]
  %v92 = vld [vmem:[%s1 + $0x208] sm:$0xff]
  %v93 = vld [vmem:[%s1 + $0x210] sm:$0xff]
  %v94 = vld [vmem:[%s1 + $0x218] sm:$0xff]
  %v95 = vld [vmem:[%s1 + $0x220] sm:$0xff]
  %v96 = vld [vmem:[%s1 + $0x228] sm:$0xff]
  %v97 = vld [vmem:[%s1 + $0x230] sm:$0xff]
  %v98 = vld [vmem:[%s1 + $0x238] sm:$0xff]
  %v99 = vld [vmem:[%s1 + $0x240] sm:$0xff]
  %v100 = vld [vmem:[%s1 + $0x248] sm:$0xff]
  %v101 = vld [vmem:[%s1 + $0x250] sm:$0xff]
  %v102 = vld [vmem:[%s1 + $0x258] sm:$0xff]
  %v103 = vld [vmem:[%s1 + $0x260] sm:$0xff]
  %v104 = vld [vmem:[%s1 + $0x268] sm:$0xff]
  %v105 = vld [vmem:[%s1 + $0x270] sm:$0xff]
  %v106 = vld [vmem:[%s1 + $0x278] sm:$0xff]
  %v107 = vld [vmem:[%s1 + $0x280] sm:$0xff]
  %v108 = vld [vmem:[%s1 + $0x288] sm:$0xff]
  %v109 = vld [vmem:[%s1 + $0x290] sm:$0xff]
  %v110 = vld [vmem:[%s1 + $0x298] sm:$0xff]
  %v111 = vld [vmem:[%s1 + $0x2a0] sm:$0xff]
  %v112 = vld [vmem:[%s1 + $0x2a8] sm:$0xff]
  %v113 = vld [vmem:[%s1 + $0x2b0] sm:$0xff]
  %v114 = vld [vmem:[%s1 + $0x2b8] sm:$0xff]
  %v115 = vld [vmem:[%s1 + $0x2c0] sm:$0xff]
  %v116 = vld [vmem:[%s1 + $0x2c8] sm:$0xff]
  %v117 = vld [vmem:[%s1 + $0x2d0] sm:$0xff]
  %v118 = vld [vmem:[%s1 + $0x2d8] sm:$0xff]
  %v119 = vld [vmem:[%s1 + $0x2e0] sm:$0xff]
  %v120 = vld [vmem:[%s1 + $0x2e8] sm:$0xff]
  %v121 = vld [vmem:[%s1 + $0x2f0] sm:$0xff]
  %v122 = vld [vmem:[%s1 + $0x2f8] sm:$0xff]
  %v123 = vld [vmem:[%s1 + $0x300] sm:$0xff]
  %v124 = vld [vmem:[%s1 + $0x308] sm:$0xff]
  %v125 = vld [vmem:[%s1 + $0x310] sm:$0xff]
  %v126 = vld [vmem:[%s1 + $0x318] sm:$0xff]
  %v127 = vld [vmem:[%s1 + $0x320] sm:$0xff]
  %v128 = vld [vmem:[%s1 + $0x328] sm:$0xff]
  %v129 = vld [vmem:[%s1 + $0x330] sm:$0xff]
  %v130 = vld [vmem:[%s1 + $0x338] sm:$0xff]
  %v131 = vld [vmem:[%s1 + $0x340] sm:$0xff]
  %v132 = vld [vmem:[%s1 + $0x348] sm:$0xff]
  %v133 = vld [vmem:[%s1 + $0x350] sm:$0xff]
  %v134 = vld [vmem:[%s1 + $0x358] sm:$0xff]
  %v135 = vld [vmem:[%s1 + $0x360] sm:$0xff]
  %v136 = vld [vmem:[%s1 + $0x368] sm:$0xff]
  %v137 = vld [vmem:[%s1 + $0x370] sm:$0xff]
  %v138 = vld [vmem:[%s1 + $0x378] sm:$0xff]
  %v139 = vld [vmem:[%s1 + $0x380] sm:$0xff]
  %v140 = vld [vmem:[%s1 + $0x388] sm:$0xff]
  %v141 = vld [vmem:[%s1 + $0x390] sm:$0xff]
  %v142 = vld [vmem:[%s1 + $0x398] sm:$0xff]
  %v143 = vld [vmem:[%s1 + $0x3a0] sm:$0xff]
  %v144 = vld [vmem:[%s1 + $0x3a8] sm:$0xff]
  %v145 = vld [vmem:[%s1 + $0x3b0] sm:$0xff]
  %v146 = vld [vmem:[%s1 + $0x3b8] sm:$0xff]
  %v147 = vld [vmem:[%s1 + $0x3c0] sm:$0xff]
  %v148 = vld [vmem:[%s1 + $0x3c8] sm:$0xff]
  %v149 = vld [vmem:[%s1 + $0x3d0] sm:$0xff]
  %v150 = vld [vmem:[%s1 + $0x3d8] sm:$0xff]
  %v151 = vld [vmem:[%s1 + $0x3e0] sm:$0xff]
  %v152 = vld [vmem:[%s1 + $0x3e8] sm:$0xff]
  %v153 = vld [vmem:[%s1 + $0x3f0] sm:$0xff]
  %v154 = vld [vmem:[%s1 + $0x3f8] sm:$0xff]
  %v155 = vld [vmem:[%s1 + $0x400] sm:$0xff]
  %v156 = vld [vmem:[%s1 + $0x408] sm:$0xff]
  %v157 = vld [vmem:[%s1 + $0x410] sm:$0xff]
  %v158 = vld [vmem:[%s1 + $0x418] sm:$0xff]
  %v159 = vld [vmem:[%s1 + $0x420] sm:$0xff]
  %v160 = vld [vmem:[%s1 + $0x428] sm:$0xff]
  %v161 = vld [vmem:[%s1 + $0x430] sm:$0xff]
  %v162 = vld [vmem:[%s1 + $0x438] sm:$0xff]
  %v163 = vld [vmem:[%s1 + $0x440] sm:$0xff]
  %v164 = vld [vmem:[%s1 + $0x448] sm:$0xff]
  %v165 = vld [vmem:[%s1 + $0x450] sm:$0xff]
  %v166 = vld [vmem:[%s1 + $0x458] sm:$0xff]
  %v167 = vld [vmem:[%s1 + $0x460] sm:$0xff]
  %v168 = vld [vmem:[%s1 + $0x468] sm:$0xff]
  %v169 = vld [vmem:[%s1 + $0x470] sm:$0xff]
  %v170 = vld [vmem:[%s1 + $0x478] sm:$0xff]
  %v171 = vld [vmem:[%s1 + $0x480] sm:$0xff]
  %v172 = vld [vmem:[%s1 + $0x488] sm:$0xff]
  %v173 = vld [vmem:[%s1 + $0x490] sm:$0xff]
  %v174 = vld [vmem:[%s1 + $0x498] sm:$0xff]
  %v175 = vld [vmem:[%s1 + $0x4a0] sm:$0xff]
  %v176 = vld [vmem:[%s1 + $0x4a8] sm:$0xff]
  %v177 = vld [vmem:[%s1 + $0x4b0] sm:$0xff]
  %v178 = vld [vmem:[%s1 + $0x4b8] sm:$0xff]
  %v179 = vld [vmem:[%s1 + $0x4c0] sm:$0xff]
  %v180 = vld [vmem:[%s1 + $0x4c8] sm:$0xff]
  %v181 = vld [vmem:[%s1 + $0x4d0] sm:$0xff]
  %v182 = vld [vmem:[%s1 + $0x4d8] sm:$0xff]
  %v183 = vld [vmem:[%s1 + $0x4e0] sm:$0xff]
  %v184 = vld [vmem:[%s1 + $0x4e8] sm:$0xff]
  %v185 = vld [vmem:[%s1 + $0x4f0] sm:$0xff]
  %v186 = vld [vmem:[%s1 + $0x4f8] sm:$0xff]
  %v187 = vld [vmem:[%s1 + $0x500] sm:$0xff]
  %v188 = vld [vmem:[%s1 + $0x508] sm:$0xff]
  %v189 = vld [vmem:[%s1 + $0x510] sm:$0xff]
  %v190 = vld [vmem:[%s1 + $0x518] sm:$0xff]
  %v191 = vld [vmem:[%s1 + $0x520] sm:$0xff]
  %v192 = vld [vmem:[%s1 + $0x528] sm:$0xff]
  %v193 = vld [vmem:[%s1 + $0x530] sm:$0xff]
  %v194 = vld [vmem:[%s1 + $0x538] sm:$0xff]
  %v195 = vld [vmem:[%s1 + $0x540] sm:$0xff]
  %v196 = vld [vmem:[%s1 + $0x548] sm:$0xff]
  %v197 = vld [vmem:[%s1 + $0x550] sm:$0xff]
  %v198 = vld [vmem:[%s1 + $0x558] sm:$0xff]
  %v199 = vld [vmem:[%s1 + $0x560] sm:$0xff]
  %v200 = vld [vmem:[%s1 + $0x568] sm:$0xff]
  %v201 = vld [vmem:[%s1 + $0x570] sm:$0xff]
  %v202 = vld [vmem:[%s1 + $0x578] sm:$0xff]
  %v203 = vld [vmem:[%s1 + $0x580] sm:$0xff]
  %v204 = vld [vmem:[%s1 + $0x588] sm:$0xff]
  %v205 = vld [vmem:[%s1 + $0x590] sm:$0xff]
  %v206 = vld [vmem:[%s1 + $0x598] sm:$0xff]
  %v207 = vld [vmem:[%s1 + $0x5a0] sm:$0xff]
  %v208 = vld [vmem:[%s1 + $0x5a8] sm:$0xff]
  %v209 = vld [vmem:[%s1 + $0x5b0] sm:$0xff]
  %v210 = vld [vmem:[%s1 + $0x5b8] sm:$0xff]
  %v211 = vld [vmem:[%s1 + $0x5c0] sm:$0xff]
  %v212 = vld [vmem:[%s1 + $0x5c8] sm:$0xff]
  %v213 = vld [vmem:[%s1 + $0x5d0] sm:$0xff]
  %v214 = vld [vmem:[%s1 + $0x5d8] sm:$0xff]
  %v215 = vld [vmem:[%s1 + $0x5e0] sm:$0xff]
  %v216 = vld [vmem:[%s1 + $0x5e8] sm:$0xff]
  %v217 = vld [vmem:[%s1 + $0x5f0] sm:$0xff]
  %v218 = vld [vmem:[%s1 + $0x5f8] sm:$0xff]
  %v219 = vld [vmem:[%s1 + $0x600] sm:$0xff]
  %v220 = vld [vmem:[%s1 + $0x608] sm:$0xff]
  %v221 = vld [vmem:[%s1 + $0x610] sm:$0xff]
  %v222 = vld [vmem:[%s1 + $0x618] sm:$0xff]
  %v223 = vld [vmem:[%s1 + $0x620] sm:$0xff]
  %v224 = vld [vmem:[%s1 + $0x628] sm:$0xff]
  %v225 = vld [vmem:[%s1 + $0x630] sm:$0xff]
  %v226 = vld [vmem:[%s1 + $0x638] sm:$0xff]
  %v227 = vld [vmem:[%s1 + $0x640] sm:$0xff]
  %v228 = vld [vmem:[%s1 + $0x648] sm:$0xff]
  %v229 = vld [vmem:[%s1 + $0x650] sm:$0xff]
  %v230 = vld [vmem:[%s1 + $0x658] sm:$0xff]
  %v231 = vld [vmem:[%s1 + $0x660] sm:$0xff]
  %v232 = vld [vmem:[%s1 + $0x668] sm:$0xff]
  %v233 = vld [vmem:[%s1 + $0x670] sm:$0xff]
  %v234 = vld [vmem:[%s1 + $0x678] sm:$0xff]
  %v235 = vld [vmem:[%s1 + $0x680] sm:$0xff]
  %v236 = vld [vmem:[%s1 + $0x688] sm:$0xff]
  %v237 = vld [vmem:[%s1 + $0x690] sm:$0xff]
  %v238 = vld [vmem:[%s1 + $0x698] sm:$0xff]
  %v239 = vld [vmem:[%s1 + $0x6a0] sm:$0xff]
  %v240 = vld [vmem:[%s1 + $0x6a8] sm:$0xff]
  %v241 = vld [vmem:[%s1 + $0x6b0] sm:$0xff]
  %v242 = vld [vmem:[%s1 + $0x6b8] sm:$0xff]
  %v243 = vld [vmem:[%s1 + $0x6c0] sm:$0xff]
  %v244 = vld [vmem:[%s1 + $0x6c8] sm:$0xff]
  %v245 = vld [vmem:[%s1 + $0x6d0] sm:$0xff]
  %v246 = vld [vmem:[%s1 + $0x6d8] sm:$0xff]
  %v247 = vld [vmem:[%s1 + $0x6e0] sm:$0xff]
  %v248 = vld [vmem:[%s1 + $0x6e8] sm:$0xff]
  %v249 = vld [vmem:[%s1 + $0x6f0] sm:$0xff]
  %v250 = vld [vmem:[%s1 + $0x6f8] sm:$0xff]
  %v251 = vld [vmem:[%s1 + $0x700] sm:$0xff]
  %v252 = vld [vmem:[%s1 + $0x708] sm:$0xff]
  %v253 = vld [vmem:[%s1 + $0x710] sm:$0xff]
  %v254 = vld [vmem:[%s1 + $0x718] sm:$0xff]
  %v255 = vld [vmem:[%s1 + $0x720] sm:$0xff]
  %v256 = vld [vmem:[%s1 + $0x728] sm:$0xff]
  %v257 = vld [vmem:[%s1 + $0x730] sm:$0xff]
  %v258 = vld [vmem:[%s1 + $0x738] sm:$0xff]
  %v259 = vld [vmem:[%s1 + $0x740] sm:$0xff]
  %v260 = vld [vmem:[%s1 + $0x748] sm:$0xff]
  %v261 = vld [vmem:[%s1 + $0x750] sm:$0xff]
  %v262 = vld [vmem:[%s1 + $0x758] sm:$0xff]
  %v263 = vld [vmem:[%s1 + $0x760] sm:$0xff]
  %v264 = vld [vmem:[%s1 + $0x768] sm:$0xff]
  %v265 = vld [vmem:[%s1 + $0x770] sm:$0xff]
  %v266 = vld [vmem:[%s1 + $0x778] sm:$0xff]
  %v267 = vld [vmem:[%s1 + $0x780] sm:$0xff]
  %v268 = vld [vmem:[%s1 + $0x788] sm:$0xff]
  %v269 = vld [vmem:[%s1 + $0x790] sm:$0xff]
  %v270 = vld [vmem:[%s1 + $0x798] sm:$0xff]
  %v271 = vld [vmem:[%s1 + $0x7a0] sm:$0xff]
  %v272 = vld [vmem:[%s1 + $0x7a8] sm:$0xff]
  %v273 = vld [vmem:[%s1 + $0x7b0] sm:$0xff]
  %v274 = vld [vmem:[%s1 + $0x7b8] sm:$0xff]
  %v275 = vld [vmem:[%s1 + $0x7c0] sm:$0xff]
  %v276 = vld [vmem:[%s1 + $0x7c8] sm:$0xff]
  %v277 = vld [vmem:[%s1 + $0x7d0] sm:$0xff]
  %v278 = vld [vmem:[%s1 + $0x7d8] sm:$0xff]
  %v279 = vld [vmem:[%s1 + $0x7e0] sm:$0xff]
  %v280 = vld [vmem:[%s1 + $0x7e8] sm:$0xff]
  %v281 = vld [vmem:[%s1 + $0x7f0] sm:$0xff]
  %v282 = vld [vmem:[%s1 + $0x7f8] sm:$0xff]
  %v283 = vld [vmem:[%s2] sm:$0xf]
  %v285 = vlaneseq
  %v286 = vshrl.u32 %v285, 7
  %v287 = vsub.s32 0, %v286
  %v288 = vrot.slane %v283, %v287
  %v289 = vlaneseq
  %v290 = vshrl.u32 %v289, 7
  %v291 = vsub.s32 1, %v290
  %v292 = vrot.slane %v283, %v291
  %v293 = vlaneseq
  %v294 = vshrl.u32 %v293, 7
  %v295 = vsub.s32 2, %v294
  %v296 = vrot.slane %v283, %v295
  %v297 = vlaneseq
  %v298 = vshrl.u32 %v297, 7
  %v299 = vsub.s32 3, %v298
  %v300 = vrot.slane %v283, %v299
  %v306 = vcombine.high %v26, %v26
  %v308 = vunpack.c.l.s4 1966171168
  %v309 = vunpack.c.0.s8 %v308
  %v310 = vlaneseq
  %v311 = vshrl.u32 %v310, 7
  %v312 = vsub.s32 %v309, %v311
  %v313 = vrot.slane %v26, %v312
  %v315 = vunpack.c.l.s4 1966171168
  %v316 = vunpack.c.0.s8 %v315
  %v317 = vlaneseq
  %v318 = vshrl.u32 %v317, 7
  %v319 = vsub.s32 %v316, %v318
  %v320 = vrot.slane %v306, %v319
  %v321 = vcombine.high %v313, %v313
  %v322 = vcombine.high %v320, %v320
  %v324 = vunpack.c.l.s4 1966171168
  %v325 = vunpack.c.0.s8 %v324
  %v326 = vlaneseq
  %v327 = vshrl.u32 %v326, 7
  %v328 = vsub.s32 %v325, %v327
  %v329 = vrot.slane %v313, %v328
  %v331 = vunpack.c.l.s4 1966171168
  %v332 = vunpack.c.0.s8 %v331
  %v333 = vlaneseq
  %v334 = vshrl.u32 %v333, 7
  %v335 = vsub.s32 %v332, %v334
  %v336 = vrot.slane %v320, %v335
  %v338 = vunpack.c.l.s4 1966171168
  %v339 = vunpack.c.0.s8 %v338
  %v340 = vlaneseq
  %v341 = vshrl.u32 %v340, 7
  %v342 = vsub.s32 %v339, %v341
  %v343 = vrot.slane %v321, %v342
  %v345 = vunpack.c.l.s4 1966171168
  %v346 = vunpack.c.0.s8 %v345
  %v347 = vlaneseq
  %v348 = vshrl.u32 %v347, 7
  %v349 = vsub.s32 %v346, %v348
  %v350 = vrot.slane %v322, %v349
  %v351 = vcombine.high %v329, %v329
  %v352 = vcombine.high %v336, %v336
  %v353 = vcombine.high %v343, %v343
  %v354 = vcombine.high %v350, %v350
  %v619 = vunpack.c.l.b16 %v27
  %v620 = vunpack.c.h.b16 %v27
  %v621 = vunpack.c.l.b16 %v28
  %v622 = vunpack.c.h.b16 %v28
  %v623 = vunpack.c.l.b16 %v29
  %v624 = vunpack.c.h.b16 %v29
  %v625 = vunpack.c.l.b16 %v30
  %v626 = vunpack.c.h.b16 %v30
  %v627 = vunpack.c.l.b16 %v31
  %v628 = vunpack.c.h.b16 %v31
  %v629 = vunpack.c.l.b16 %v32
  %v630 = vunpack.c.h.b16 %v32
  %v631 = vunpack.c.l.b16 %v33
  %v632 = vunpack.c.h.b16 %v33
  %v633 = vunpack.c.l.b16 %v34
  %v634 = vunpack.c.h.b16 %v34
  %v635 = vunpack.c.l.b16 %v35
  %v636 = vunpack.c.h.b16 %v35
  %v637 = vunpack.c.l.b16 %v36
  %v638 = vunpack.c.h.b16 %v36
  %v639 = vunpack.c.l.b16 %v37
  %v640 = vunpack.c.h.b16 %v37
  %v641 = vunpack.c.l.b16 %v38
  %v642 = vunpack.c.h.b16 %v38
  %v643 = vunpack.c.l.b16 %v39
  %v644 = vunpack.c.h.b16 %v39
  %v645 = vunpack.c.l.b16 %v40
  %v646 = vunpack.c.h.b16 %v40
  %v647 = vunpack.c.l.b16 %v41
  %v648 = vunpack.c.h.b16 %v41
  %v649 = vunpack.c.l.b16 %v42
  %v650 = vunpack.c.h.b16 %v42
  %v651 = vunpack.c.l.b16 %v43
  %v652 = vunpack.c.h.b16 %v43
  %v653 = vunpack.c.l.b16 %v44
  %v654 = vunpack.c.h.b16 %v44
  %v655 = vunpack.c.l.b16 %v45
  %v656 = vunpack.c.h.b16 %v45
  %v657 = vunpack.c.l.b16 %v46
  %v658 = vunpack.c.h.b16 %v46
  %v659 = vunpack.c.l.b16 %v47
  %v660 = vunpack.c.h.b16 %v47
  %v661 = vunpack.c.l.b16 %v48
  %v662 = vunpack.c.h.b16 %v48
  %v663 = vunpack.c.l.b16 %v49
  %v664 = vunpack.c.h.b16 %v49
  %v665 = vunpack.c.l.b16 %v50
  %v666 = vunpack.c.h.b16 %v50
  %v667 = vunpack.c.l.b16 %v51
  %v668 = vunpack.c.h.b16 %v51
  %v669 = vunpack.c.l.b16 %v52
  %v670 = vunpack.c.h.b16 %v52
  %v671 = vunpack.c.l.b16 %v53
  %v672 = vunpack.c.h.b16 %v53
  %v673 = vunpack.c.l.b16 %v54
  %v674 = vunpack.c.h.b16 %v54
  %v675 = vunpack.c.l.b16 %v55
  %v676 = vunpack.c.h.b16 %v55
  %v677 = vunpack.c.l.b16 %v56
  %v678 = vunpack.c.h.b16 %v56
  %v679 = vunpack.c.l.b16 %v57
  %v680 = vunpack.c.h.b16 %v57
  %v681 = vunpack.c.l.b16 %v58
  %v682 = vunpack.c.h.b16 %v58
  %v683 = vunpack.c.l.b16 %v59
  %v684 = vunpack.c.h.b16 %v59
  %v685 = vunpack.c.l.b16 %v60
  %v686 = vunpack.c.h.b16 %v60
  %v687 = vunpack.c.l.b16 %v61
  %v688 = vunpack.c.h.b16 %v61
  %v689 = vunpack.c.l.b16 %v62
  %v690 = vunpack.c.h.b16 %v62
  %v691 = vunpack.c.l.b16 %v63
  %v692 = vunpack.c.h.b16 %v63
  %v693 = vunpack.c.l.b16 %v64
  %v694 = vunpack.c.h.b16 %v64
  %v695 = vunpack.c.l.b16 %v65
  %v696 = vunpack.c.h.b16 %v65
  %v697 = vunpack.c.l.b16 %v66
  %v698 = vunpack.c.h.b16 %v66
  %v699 = vunpack.c.l.b16 %v67
  %v700 = vunpack.c.h.b16 %v67
  %v701 = vunpack.c.l.b16 %v68
  %v702 = vunpack.c.h.b16 %v68
  %v703 = vunpack.c.l.b16 %v69
  %v704 = vunpack.c.h.b16 %v69
  %v705 = vunpack.c.l.b16 %v70
  %v706 = vunpack.c.h.b16 %v70
  %v707 = vunpack.c.l.b16 %v71
  %v708 = vunpack.c.h.b16 %v71
  %v709 = vunpack.c.l.b16 %v72
  %v710 = vunpack.c.h.b16 %v72
  %v711 = vunpack.c.l.b16 %v73
  %v712 = vunpack.c.h.b16 %v73
  %v713 = vunpack.c.l.b16 %v74
  %v714 = vunpack.c.h.b16 %v74
  %v715 = vunpack.c.l.b16 %v75
  %v716 = vunpack.c.h.b16 %v75
  %v717 = vunpack.c.l.b16 %v76
  %v718 = vunpack.c.h.b16 %v76
  %v719 = vunpack.c.l.b16 %v77
  %v720 = vunpack.c.h.b16 %v77
  %v721 = vunpack.c.l.b16 %v78
  %v722 = vunpack.c.h.b16 %v78
  %v723 = vunpack.c.l.b16 %v79
  %v724 = vunpack.c.h.b16 %v79
  %v725 = vunpack.c.l.b16 %v80
  %v726 = vunpack.c.h.b16 %v80
  %v727 = vunpack.c.l.b16 %v81
  %v728 = vunpack.c.h.b16 %v81
  %v729 = vunpack.c.l.b16 %v82
  %v730 = vunpack.c.h.b16 %v82
  %v731 = vunpack.c.l.b16 %v83
  %v732 = vunpack.c.h.b16 %v83
  %v733 = vunpack.c.l.b16 %v84
  %v734 = vunpack.c.h.b16 %v84
  %v735 = vunpack.c.l.b16 %v85
  %v736 = vunpack.c.h.b16 %v85
  %v737 = vunpack.c.l.b16 %v86
  %v738 = vunpack.c.h.b16 %v86
  %v739 = vunpack.c.l.b16 %v87
  %v740 = vunpack.c.h.b16 %v87
  %v741 = vunpack.c.l.b16 %v88
  %v742 = vunpack.c.h.b16 %v88
  %v743 = vunpack.c.l.b16 %v89
  %v744 = vunpack.c.h.b16 %v89
  %v745 = vunpack.c.l.b16 %v90
  %v746 = vunpack.c.h.b16 %v90
  %v747 = vunpack.c.l.b16 %v91
  %v748 = vunpack.c.h.b16 %v91
  %v749 = vunpack.c.l.b16 %v92
  %v750 = vunpack.c.h.b16 %v92
  %v751 = vunpack.c.l.b16 %v93
  %v752 = vunpack.c.h.b16 %v93
  %v753 = vunpack.c.l.b16 %v94
  %v754 = vunpack.c.h.b16 %v94
  %v755 = vunpack.c.l.b16 %v95
  %v756 = vunpack.c.h.b16 %v95
  %v757 = vunpack.c.l.b16 %v96
  %v758 = vunpack.c.h.b16 %v96
  %v759 = vunpack.c.l.b16 %v97
  %v760 = vunpack.c.h.b16 %v97
  %v761 = vunpack.c.l.b16 %v98
  %v762 = vunpack.c.h.b16 %v98
  %v763 = vunpack.c.l.b16 %v99
  %v764 = vunpack.c.h.b16 %v99
  %v765 = vunpack.c.l.b16 %v100
  %v766 = vunpack.c.h.b16 %v100
  %v767 = vunpack.c.l.b16 %v101
  %v768 = vunpack.c.h.b16 %v101
  %v769 = vunpack.c.l.b16 %v102
  %v770 = vunpack.c.h.b16 %v102
  %v771 = vunpack.c.l.b16 %v103
  %v772 = vunpack.c.h.b16 %v103
  %v773 = vunpack.c.l.b16 %v104
  %v774 = vunpack.c.h.b16 %v104
  %v775 = vunpack.c.l.b16 %v105
  %v776 = vunpack.c.h.b16 %v105
  %v777 = vunpack.c.l.b16 %v106
  %v778 = vunpack.c.h.b16 %v106
  %v779 = vunpack.c.l.b16 %v107
  %v780 = vunpack.c.h.b16 %v107
  %v781 = vunpack.c.l.b16 %v108
  %v782 = vunpack.c.h.b16 %v108
  %v783 = vunpack.c.l.b16 %v109
  %v784 = vunpack.c.h.b16 %v109
  %v785 = vunpack.c.l.b16 %v110
  %v786 = vunpack.c.h.b16 %v110
  %v787 = vunpack.c.l.b16 %v111
  %v788 = vunpack.c.h.b16 %v111
  %v789 = vunpack.c.l.b16 %v112
  %v790 = vunpack.c.h.b16 %v112
  %v791 = vunpack.c.l.b16 %v113
  %v792 = vunpack.c.h.b16 %v113
  %v793 = vunpack.c.l.b16 %v114
  %v794 = vunpack.c.h.b16 %v114
  %v795 = vunpack.c.l.b16 %v115
  %v796 = vunpack.c.h.b16 %v115
  %v797 = vunpack.c.l.b16 %v116
  %v798 = vunpack.c.h.b16 %v116
  %v799 = vunpack.c.l.b16 %v117
  %v800 = vunpack.c.h.b16 %v117
  %v801 = vunpack.c.l.b16 %v118
  %v802 = vunpack.c.h.b16 %v118
  %v803 = vunpack.c.l.b16 %v119
  %v804 = vunpack.c.h.b16 %v119
  %v805 = vunpack.c.l.b16 %v120
  %v806 = vunpack.c.h.b16 %v120
  %v807 = vunpack.c.l.b16 %v121
  %v808 = vunpack.c.h.b16 %v121
  %v809 = vunpack.c.l.b16 %v122
  %v810 = vunpack.c.h.b16 %v122
  %v811 = vunpack.c.l.b16 %v123
  %v812 = vunpack.c.h.b16 %v123
  %v813 = vunpack.c.l.b16 %v124
  %v814 = vunpack.c.h.b16 %v124
  %v815 = vunpack.c.l.b16 %v125
  %v816 = vunpack.c.h.b16 %v125
  %v817 = vunpack.c.l.b16 %v126
  %v818 = vunpack.c.h.b16 %v126
  %v819 = vunpack.c.l.b16 %v127
  %v820 = vunpack.c.h.b16 %v127
  %v821 = vunpack.c.l.b16 %v128
  %v822 = vunpack.c.h.b16 %v128
  %v823 = vunpack.c.l.b16 %v129
  %v824 = vunpack.c.h.b16 %v129
  %v825 = vunpack.c.l.b16 %v130
  %v826 = vunpack.c.h.b16 %v130
  %v827 = vunpack.c.l.b16 %v131
  %v828 = vunpack.c.h.b16 %v131
  %v829 = vunpack.c.l.b16 %v132
  %v830 = vunpack.c.h.b16 %v132
  %v831 = vunpack.c.l.b16 %v133
  %v832 = vunpack.c.h.b16 %v133
  %v833 = vunpack.c.l.b16 %v134
  %v834 = vunpack.c.h.b16 %v134
  %v835 = vunpack.c.l.b16 %v135
  %v836 = vunpack.c.h.b16 %v135
  %v837 = vunpack.c.l.b16 %v136
  %v838 = vunpack.c.h.b16 %v136
  %v839 = vunpack.c.l.b16 %v137
  %v840 = vunpack.c.h.b16 %v137
  %v841 = vunpack.c.l.b16 %v138
  %v842 = vunpack.c.h.b16 %v138
  %v843 = vunpack.c.l.b16 %v139
  %v844 = vunpack.c.h.b16 %v139
  %v845 = vunpack.c.l.b16 %v140
  %v846 = vunpack.c.h.b16 %v140
  %v847 = vunpack.c.l.b16 %v141
  %v848 = vunpack.c.h.b16 %v141
  %v849 = vunpack.c.l.b16 %v142
  %v850 = vunpack.c.h.b16 %v142
  %v851 = vunpack.c.l.b16 %v143
  %v852 = vunpack.c.h.b16 %v143
  %v853 = vunpack.c.l.b16 %v144
  %v854 = vunpack.c.h.b16 %v144
  %v855 = vunpack.c.l.b16 %v145
  %v856 = vunpack.c.h.b16 %v145
  %v857 = vunpack.c.l.b16 %v146
  %v858 = vunpack.c.h.b16 %v146
  %v859 = vunpack.c.l.b16 %v147
  %v860 = vunpack.c.h.b16 %v147
  %v861 = vunpack.c.l.b16 %v148
  %v862 = vunpack.c.h.b16 %v148
  %v863 = vunpack.c.l.b16 %v149
  %v864 = vunpack.c.h.b16 %v149
  %v865 = vunpack.c.l.b16 %v150
  %v866 = vunpack.c.h.b16 %v150
  %v867 = vunpack.c.l.b16 %v151
  %v868 = vunpack.c.h.b16 %v151
  %v869 = vunpack.c.l.b16 %v152
  %v870 = vunpack.c.h.b16 %v152
  %v871 = vunpack.c.l.b16 %v153
  %v872 = vunpack.c.h.b16 %v153
  %v873 = vunpack.c.l.b16 %v154
  %v874 = vunpack.c.h.b16 %v154
  %v875 = vunpack.c.l.b16 %v155
  %v876 = vunpack.c.h.b16 %v155
  %v877 = vunpack.c.l.b16 %v156
  %v878 = vunpack.c.h.b16 %v156
  %v879 = vunpack.c.l.b16 %v157
  %v880 = vunpack.c.h.b16 %v157
  %v881 = vunpack.c.l.b16 %v158
  %v882 = vunpack.c.h.b16 %v158
  %v883 = vunpack.c.l.b16 %v159
  %v884 = vunpack.c.h.b16 %v159
  %v885 = vunpack.c.l.b16 %v160
  %v886 = vunpack.c.h.b16 %v160
  %v887 = vunpack.c.l.b16 %v161
  %v888 = vunpack.c.h.b16 %v161
  %v889 = vunpack.c.l.b16 %v162
  %v890 = vunpack.c.h.b16 %v162
  %v891 = vunpack.c.l.b16 %v163
  %v892 = vunpack.c.h.b16 %v163
  %v893 = vunpack.c.l.b16 %v164
  %v894 = vunpack.c.h.b16 %v164
  %v895 = vunpack.c.l.b16 %v165
  %v896 = vunpack.c.h.b16 %v165
  %v897 = vunpack.c.l.b16 %v166
  %v898 = vunpack.c.h.b16 %v166
  %v899 = vunpack.c.l.b16 %v167
  %v900 = vunpack.c.h.b16 %v167
  %v901 = vunpack.c.l.b16 %v168
  %v902 = vunpack.c.h.b16 %v168
  %v903 = vunpack.c.l.b16 %v169
  %v904 = vunpack.c.h.b16 %v169
  %v905 = vunpack.c.l.b16 %v170
  %v906 = vunpack.c.h.b16 %v170
  %v907 = vunpack.c.l.b16 %v171
  %v908 = vunpack.c.h.b16 %v171
  %v909 = vunpack.c.l.b16 %v172
  %v910 = vunpack.c.h.b16 %v172
  %v911 = vunpack.c.l.b16 %v173
  %v912 = vunpack.c.h.b16 %v173
  %v913 = vunpack.c.l.b16 %v174
  %v914 = vunpack.c.h.b16 %v174
  %v915 = vunpack.c.l.b16 %v175
  %v916 = vunpack.c.h.b16 %v175
  %v917 = vunpack.c.l.b16 %v176
  %v918 = vunpack.c.h.b16 %v176
  %v919 = vunpack.c.l.b16 %v177
  %v920 = vunpack.c.h.b16 %v177
  %v921 = vunpack.c.l.b16 %v178
  %v922 = vunpack.c.h.b16 %v178
  %v923 = vunpack.c.l.b16 %v179
  %v924 = vunpack.c.h.b16 %v179
  %v925 = vunpack.c.l.b16 %v180
  %v926 = vunpack.c.h.b16 %v180
  %v927 = vunpack.c.l.b16 %v181
  %v928 = vunpack.c.h.b16 %v181
  %v929 = vunpack.c.l.b16 %v182
  %v930 = vunpack.c.h.b16 %v182
  %v931 = vunpack.c.l.b16 %v183
  %v932 = vunpack.c.h.b16 %v183
  %v933 = vunpack.c.l.b16 %v184
  %v934 = vunpack.c.h.b16 %v184
  %v935 = vunpack.c.l.b16 %v185
  %v936 = vunpack.c.h.b16 %v185
  %v937 = vunpack.c.l.b16 %v186
  %v938 = vunpack.c.h.b16 %v186
  %v939 = vunpack.c.l.b16 %v187
  %v940 = vunpack.c.h.b16 %v187
  %v941 = vunpack.c.l.b16 %v188
  %v942 = vunpack.c.h.b16 %v188
  %v943 = vunpack.c.l.b16 %v189
  %v944 = vunpack.c.h.b16 %v189
  %v945 = vunpack.c.l.b16 %v190
  %v946 = vunpack.c.h.b16 %v190
  %v947 = vunpack.c.l.b16 %v191
  %v948 = vunpack.c.h.b16 %v191
  %v949 = vunpack.c.l.b16 %v192
  %v950 = vunpack.c.h.b16 %v192
  %v951 = vunpack.c.l.b16 %v193
  %v952 = vunpack.c.h.b16 %v193
  %v953 = vunpack.c.l.b16 %v194
  %v954 = vunpack.c.h.b16 %v194
  %v955 = vunpack.c.l.b16 %v195
  %v956 = vunpack.c.h.b16 %v195
  %v957 = vunpack.c.l.b16 %v196
  %v958 = vunpack.c.h.b16 %v196
  %v959 = vunpack.c.l.b16 %v197
  %v960 = vunpack.c.h.b16 %v197
  %v961 = vunpack.c.l.b16 %v198
  %v962 = vunpack.c.h.b16 %v198
  %v963 = vunpack.c.l.b16 %v199
  %v964 = vunpack.c.h.b16 %v199
  %v965 = vunpack.c.l.b16 %v200
  %v966 = vunpack.c.h.b16 %v200
  %v967 = vunpack.c.l.b16 %v201
  %v968 = vunpack.c.h.b16 %v201
  %v969 = vunpack.c.l.b16 %v202
  %v970 = vunpack.c.h.b16 %v202
  %v971 = vunpack.c.l.b16 %v203
  %v972 = vunpack.c.h.b16 %v203
  %v973 = vunpack.c.l.b16 %v204
  %v974 = vunpack.c.h.b16 %v204
  %v975 = vunpack.c.l.b16 %v205
  %v976 = vunpack.c.h.b16 %v205
  %v977 = vunpack.c.l.b16 %v206
  %v978 = vunpack.c.h.b16 %v206
  %v979 = vunpack.c.l.b16 %v207
  %v980 = vunpack.c.h.b16 %v207
  %v981 = vunpack.c.l.b16 %v208
  %v982 = vunpack.c.h.b16 %v208
  %v983 = vunpack.c.l.b16 %v209
  %v984 = vunpack.c.h.b16 %v209
  %v985 = vunpack.c.l.b16 %v210
  %v986 = vunpack.c.h.b16 %v210
  %v987 = vunpack.c.l.b16 %v211
  %v988 = vunpack.c.h.b16 %v211
  %v989 = vunpack.c.l.b16 %v212
  %v990 = vunpack.c.h.b16 %v212
  %v991 = vunpack.c.l.b16 %v213
  %v992 = vunpack.c.h.b16 %v213
  %v993 = vunpack.c.l.b16 %v214
  %v994 = vunpack.c.h.b16 %v214
  %v995 = vunpack.c.l.b16 %v215
  %v996 = vunpack.c.h.b16 %v215
  %v997 = vunpack.c.l.b16 %v216
  %v998 = vunpack.c.h.b16 %v216
  %v999 = vunpack.c.l.b16 %v217
  %v1000 = vunpack.c.h.b16 %v217
  %v1001 = vunpack.c.l.b16 %v218
  %v1002 = vunpack.c.h.b16 %v218
  %v1003 = vunpack.c.l.b16 %v219
  %v1004 = vunpack.c.h.b16 %v219
  %v1005 = vunpack.c.l.b16 %v220
  %v1006 = vunpack.c.h.b16 %v220
  %v1007 = vunpack.c.l.b16 %v221
  %v1008 = vunpack.c.h.b16 %v221
  %v1009 = vunpack.c.l.b16 %v222
  %v1010 = vunpack.c.h.b16 %v222
  %v1011 = vunpack.c.l.b16 %v223
  %v1012 = vunpack.c.h.b16 %v223
  %v1013 = vunpack.c.l.b16 %v224
  %v1014 = vunpack.c.h.b16 %v224
  %v1015 = vunpack.c.l.b16 %v225
  %v1016 = vunpack.c.h.b16 %v225
  %v1017 = vunpack.c.l.b16 %v226
  %v1018 = vunpack.c.h.b16 %v226
  %v1019 = vunpack.c.l.b16 %v227
  %v1020 = vunpack.c.h.b16 %v227
  %v1021 = vunpack.c.l.b16 %v228
  %v1022 = vunpack.c.h.b16 %v228
  %v1023 = vunpack.c.l.b16 %v229
  %v1024 = vunpack.c.h.b16 %v229
  %v1025 = vunpack.c.l.b16 %v230
  %v1026 = vunpack.c.h.b16 %v230
  %v1027 = vunpack.c.l.b16 %v231
  %v1028 = vunpack.c.h.b16 %v231
  %v1029 = vunpack.c.l.b16 %v232
  %v1030 = vunpack.c.h.b16 %v232
  %v1031 = vunpack.c.l.b16 %v233
  %v1032 = vunpack.c.h.b16 %v233
  %v1033 = vunpack.c.l.b16 %v234
  %v1034 = vunpack.c.h.b16 %v234
  %v1035 = vunpack.c.l.b16 %v235
  %v1036 = vunpack.c.h.b16 %v235
  %v1037 = vunpack.c.l.b16 %v236
  %v1038 = vunpack.c.h.b16 %v236
  %v1039 = vunpack.c.l.b16 %v237
  %v1040 = vunpack.c.h.b16 %v237
  %v1041 = vunpack.c.l.b16 %v238
  %v1042 = vunpack.c.h.b16 %v238
  %v1043 = vunpack.c.l.b16 %v239
  %v1044 = vunpack.c.h.b16 %v239
  %v1045 = vunpack.c.l.b16 %v240
  %v1046 = vunpack.c.h.b16 %v240
  %v1047 = vunpack.c.l.b16 %v241
  %v1048 = vunpack.c.h.b16 %v241
  %v1049 = vunpack.c.l.b16 %v242
  %v1050 = vunpack.c.h.b16 %v242
  %v1051 = vunpack.c.l.b16 %v243
  %v1052 = vunpack.c.h.b16 %v243
  %v1053 = vunpack.c.l.b16 %v244
  %v1054 = vunpack.c.h.b16 %v244
  %v1055 = vunpack.c.l.b16 %v245
  %v1056 = vunpack.c.h.b16 %v245
  %v1057 = vunpack.c.l.b16 %v246
  %v1058 = vunpack.c.h.b16 %v246
  %v1059 = vunpack.c.l.b16 %v247
  %v1060 = vunpack.c.h.b16 %v247
  %v1061 = vunpack.c.l.b16 %v248
  %v1062 = vunpack.c.h.b16 %v248
  %v1063 = vunpack.c.l.b16 %v249
  %v1064 = vunpack.c.h.b16 %v249
  %v1065 = vunpack.c.l.b16 %v250
  %v1066 = vunpack.c.h.b16 %v250
  %v1067 = vunpack.c.l.b16 %v251
  %v1068 = vunpack.c.h.b16 %v251
  %v1069 = vunpack.c.l.b16 %v252
  %v1070 = vunpack.c.h.b16 %v252
  %v1071 = vunpack.c.l.b16 %v253
  %v1072 = vunpack.c.h.b16 %v253
  %v1073 = vunpack.c.l.b16 %v254
  %v1074 = vunpack.c.h.b16 %v254
  %v1075 = vunpack.c.l.b16 %v255
  %v1076 = vunpack.c.h.b16 %v255
  %v1077 = vunpack.c.l.b16 %v256
  %v1078 = vunpack.c.h.b16 %v256
  %v1079 = vunpack.c.l.b16 %v257
  %v1080 = vunpack.c.h.b16 %v257
  %v1081 = vunpack.c.l.b16 %v258
  %v1082 = vunpack.c.h.b16 %v258
  %v1083 = vunpack.c.l.b16 %v259
  %v1084 = vunpack.c.h.b16 %v259
  %v1085 = vunpack.c.l.b16 %v260
  %v1086 = vunpack.c.h.b16 %v260
  %v1087 = vunpack.c.l.b16 %v261
  %v1088 = vunpack.c.h.b16 %v261
  %v1089 = vunpack.c.l.b16 %v262
  %v1090 = vunpack.c.h.b16 %v262
  %v1091 = vunpack.c.l.b16 %v263
  %v1092 = vunpack.c.h.b16 %v263
  %v1093 = vunpack.c.l.b16 %v264
  %v1094 = vunpack.c.h.b16 %v264
  %v1095 = vunpack.c.l.b16 %v265
  %v1096 = vunpack.c.h.b16 %v265
  %v1097 = vunpack.c.l.b16 %v266
  %v1098 = vunpack.c.h.b16 %v266
  %v1099 = vunpack.c.l.b16 %v267
  %v1100 = vunpack.c.h.b16 %v267
  %v1101 = vunpack.c.l.b16 %v268
  %v1102 = vunpack.c.h.b16 %v268
  %v1103 = vunpack.c.l.b16 %v269
  %v1104 = vunpack.c.h.b16 %v269
  %v1105 = vunpack.c.l.b16 %v270
  %v1106 = vunpack.c.h.b16 %v270
  %v1107 = vunpack.c.l.b16 %v271
  %v1108 = vunpack.c.h.b16 %v271
  %v1109 = vunpack.c.l.b16 %v272
  %v1110 = vunpack.c.h.b16 %v272
  %v1111 = vunpack.c.l.b16 %v273
  %v1112 = vunpack.c.h.b16 %v273
  %v1113 = vunpack.c.l.b16 %v274
  %v1114 = vunpack.c.h.b16 %v274
  %v1115 = vunpack.c.l.b16 %v275
  %v1116 = vunpack.c.h.b16 %v275
  %v1117 = vunpack.c.l.b16 %v276
  %v1118 = vunpack.c.h.b16 %v276
  %v1119 = vunpack.c.l.b16 %v277
  %v1120 = vunpack.c.h.b16 %v277
  %v1121 = vunpack.c.l.b16 %v278
  %v1122 = vunpack.c.h.b16 %v278
  %v1123 = vunpack.c.l.b16 %v279
  %v1124 = vunpack.c.h.b16 %v279
  %v1125 = vunpack.c.l.b16 %v280
  %v1126 = vunpack.c.h.b16 %v280
  %v1127 = vunpack.c.l.b16 %v281
  %v1128 = vunpack.c.h.b16 %v281
  %v1129 = vunpack.c.l.b16 %v282
  %v1130 = vunpack.c.h.b16 %v282
  %v1131 = vpack.c.b16 %v623, %v619
  %v1132 = vpack.c.b16 %v624, %v620
  %v1133 = vpack.c.b16 %v625, %v621
  %v1134 = vpack.c.b16 %v626, %v622
  %v1135 = vpack.c.b16 %v631, %v627
  %v1136 = vpack.c.b16 %v632, %v628
  %v1137 = vpack.c.b16 %v633, %v629
  %v1138 = vpack.c.b16 %v634, %v630
  %v1139 = vpack.c.b16 %v639, %v635
  %v1140 = vpack.c.b16 %v640, %v636
  %v1141 = vpack.c.b16 %v641, %v637
  %v1142 = vpack.c.b16 %v642, %v638
  %v1143 = vpack.c.b16 %v647, %v643
  %v1144 = vpack.c.b16 %v648, %v644
  %v1145 = vpack.c.b16 %v649, %v645
  %v1146 = vpack.c.b16 %v650, %v646
  %v1147 = vpack.c.b16 %v655, %v651
  %v1148 = vpack.c.b16 %v656, %v652
  %v1149 = vpack.c.b16 %v657, %v653
  %v1150 = vpack.c.b16 %v658, %v654
  %v1151 = vpack.c.b16 %v663, %v659
  %v1152 = vpack.c.b16 %v664, %v660
  %v1153 = vpack.c.b16 %v665, %v661
  %v1154 = vpack.c.b16 %v666, %v662
  %v1155 = vpack.c.b16 %v671, %v667
  %v1156 = vpack.c.b16 %v672, %v668
  %v1157 = vpack.c.b16 %v673, %v669
  %v1158 = vpack.c.b16 %v674, %v670
  %v1159 = vpack.c.b16 %v679, %v675
  %v1160 = vpack.c.b16 %v680, %v676
  %v1161 = vpack.c.b16 %v681, %v677
  %v1162 = vpack.c.b16 %v682, %v678
  %v1163 = vpack.c.b16 %v687, %v683
  %v1164 = vpack.c.b16 %v688, %v684
  %v1165 = vpack.c.b16 %v689, %v685
  %v1166 = vpack.c.b16 %v690, %v686
  %v1167 = vpack.c.b16 %v695, %v691
  %v1168 = vpack.c.b16 %v696, %v692
  %v1169 = vpack.c.b16 %v697, %v693
  %v1170 = vpack.c.b16 %v698, %v694
  %v1171 = vpack.c.b16 %v703, %v699
  %v1172 = vpack.c.b16 %v704, %v700
  %v1173 = vpack.c.b16 %v705, %v701
  %v1174 = vpack.c.b16 %v706, %v702
  %v1175 = vpack.c.b16 %v711, %v707
  %v1176 = vpack.c.b16 %v712, %v708
  %v1177 = vpack.c.b16 %v713, %v709
  %v1178 = vpack.c.b16 %v714, %v710
  %v1179 = vpack.c.b16 %v719, %v715
  %v1180 = vpack.c.b16 %v720, %v716
  %v1181 = vpack.c.b16 %v721, %v717
  %v1182 = vpack.c.b16 %v722, %v718
  %v1183 = vpack.c.b16 %v727, %v723
  %v1184 = vpack.c.b16 %v728, %v724
  %v1185 = vpack.c.b16 %v729, %v725
  %v1186 = vpack.c.b16 %v730, %v726
  %v1187 = vpack.c.b16 %v735, %v731
  %v1188 = vpack.c.b16 %v736, %v732
  %v1189 = vpack.c.b16 %v737, %v733
  %v1190 = vpack.c.b16 %v738, %v734
  %v1191 = vpack.c.b16 %v743, %v739
  %v1192 = vpack.c.b16 %v744, %v740
  %v1193 = vpack.c.b16 %v745, %v741
  %v1194 = vpack.c.b16 %v746, %v742
  %v1195 = vpack.c.b16 %v751, %v747
  %v1196 = vpack.c.b16 %v752, %v748
  %v1197 = vpack.c.b16 %v753, %v749
  %v1198 = vpack.c.b16 %v754, %v750
  %v1199 = vpack.c.b16 %v759, %v755
  %v1200 = vpack.c.b16 %v760, %v756
  %v1201 = vpack.c.b16 %v761, %v757
  %v1202 = vpack.c.b16 %v762, %v758
  %v1203 = vpack.c.b16 %v767, %v763
  %v1204 = vpack.c.b16 %v768, %v764
  %v1205 = vpack.c.b16 %v769, %v765
  %v1206 = vpack.c.b16 %v770, %v766
  %v1207 = vpack.c.b16 %v775, %v771
  %v1208 = vpack.c.b16 %v776, %v772
  %v1209 = vpack.c.b16 %v777, %v773
  %v1210 = vpack.c.b16 %v778, %v774
  %v1211 = vpack.c.b16 %v783, %v779
  %v1212 = vpack.c.b16 %v784, %v780
  %v1213 = vpack.c.b16 %v785, %v781
  %v1214 = vpack.c.b16 %v786, %v782
  %v1215 = vpack.c.b16 %v791, %v787
  %v1216 = vpack.c.b16 %v792, %v788
  %v1217 = vpack.c.b16 %v793, %v789
  %v1218 = vpack.c.b16 %v794, %v790
  %v1219 = vpack.c.b16 %v799, %v795
  %v1220 = vpack.c.b16 %v800, %v796
  %v1221 = vpack.c.b16 %v801, %v797
  %v1222 = vpack.c.b16 %v802, %v798
  %v1223 = vpack.c.b16 %v807, %v803
  %v1224 = vpack.c.b16 %v808, %v804
  %v1225 = vpack.c.b16 %v809, %v805
  %v1226 = vpack.c.b16 %v810, %v806
  %v1227 = vpack.c.b16 %v815, %v811
  %v1228 = vpack.c.b16 %v816, %v812
  %v1229 = vpack.c.b16 %v817, %v813
  %v1230 = vpack.c.b16 %v818, %v814
  %v1231 = vpack.c.b16 %v823, %v819
  %v1232 = vpack.c.b16 %v824, %v820
  %v1233 = vpack.c.b16 %v825, %v821
  %v1234 = vpack.c.b16 %v826, %v822
  %v1235 = vpack.c.b16 %v831, %v827
  %v1236 = vpack.c.b16 %v832, %v828
  %v1237 = vpack.c.b16 %v833, %v829
  %v1238 = vpack.c.b16 %v834, %v830
  %v1239 = vpack.c.b16 %v839, %v835
  %v1240 = vpack.c.b16 %v840, %v836
  %v1241 = vpack.c.b16 %v841, %v837
  %v1242 = vpack.c.b16 %v842, %v838
  %v1243 = vpack.c.b16 %v847, %v843
  %v1244 = vpack.c.b16 %v848, %v844
  %v1245 = vpack.c.b16 %v849, %v845
  %v1246 = vpack.c.b16 %v850, %v846
  %v1247 = vpack.c.b16 %v855, %v851
  %v1248 = vpack.c.b16 %v856, %v852
  %v1249 = vpack.c.b16 %v857, %v853
  %v1250 = vpack.c.b16 %v858, %v854
  %v1251 = vpack.c.b16 %v863, %v859
  %v1252 = vpack.c.b16 %v864, %v860
  %v1253 = vpack.c.b16 %v865, %v861
  %v1254 = vpack.c.b16 %v866, %v862
  %v1255 = vpack.c.b16 %v871, %v867
  %v1256 = vpack.c.b16 %v872, %v868
  %v1257 = vpack.c.b16 %v873, %v869
  %v1258 = vpack.c.b16 %v874, %v870
  %v1259 = vpack.c.b16 %v879, %v875
  %v1260 = vpack.c.b16 %v880, %v876
  %v1261 = vpack.c.b16 %v881, %v877
  %v1262 = vpack.c.b16 %v882, %v878
  %v1263 = vpack.c.b16 %v887, %v883
  %v1264 = vpack.c.b16 %v888, %v884
  %v1265 = vpack.c.b16 %v889, %v885
  %v1266 = vpack.c.b16 %v890, %v886
  %v1267 = vpack.c.b16 %v895, %v891
  %v1268 = vpack.c.b16 %v896, %v892
  %v1269 = vpack.c.b16 %v897, %v893
  %v1270 = vpack.c.b16 %v898, %v894
  %v1271 = vpack.c.b16 %v903, %v899
  %v1272 = vpack.c.b16 %v904, %v900
  %v1273 = vpack.c.b16 %v905, %v901
  %v1274 = vpack.c.b16 %v906, %v902
  %v1275 = vpack.c.b16 %v911, %v907
  %v1276 = vpack.c.b16 %v912, %v908
  %v1277 = vpack.c.b16 %v913, %v909
  %v1278 = vpack.c.b16 %v914, %v910
  %v1279 = vpack.c.b16 %v919, %v915
  %v1280 = vpack.c.b16 %v920, %v916
  %v1281 = vpack.c.b16 %v921, %v917
  %v1282 = vpack.c.b16 %v922, %v918
  %v1283 = vpack.c.b16 %v927, %v923
  %v1284 = vpack.c.b16 %v928, %v924
  %v1285 = vpack.c.b16 %v929, %v925
  %v1286 = vpack.c.b16 %v930, %v926
  %v1287 = vpack.c.b16 %v935, %v931
  %v1288 = vpack.c.b16 %v936, %v932
  %v1289 = vpack.c.b16 %v937, %v933
  %v1290 = vpack.c.b16 %v938, %v934
  %v1291 = vpack.c.b16 %v943, %v939
  %v1292 = vpack.c.b16 %v944, %v940
  %v1293 = vpack.c.b16 %v945, %v941
  %v1294 = vpack.c.b16 %v946, %v942
  %v1295 = vpack.c.b16 %v951, %v947
  %v1296 = vpack.c.b16 %v952, %v948
  %v1297 = vpack.c.b16 %v953, %v949
  %v1298 = vpack.c.b16 %v954, %v950
  %v1299 = vpack.c.b16 %v959, %v955
  %v1300 = vpack.c.b16 %v960, %v956
  %v1301 = vpack.c.b16 %v961, %v957
  %v1302 = vpack.c.b16 %v962, %v958
  %v1303 = vpack.c.b16 %v967, %v963
  %v1304 = vpack.c.b16 %v968, %v964
  %v1305 = vpack.c.b16 %v969, %v965
  %v1306 = vpack.c.b16 %v970, %v966
  %v1307 = vpack.c.b16 %v975, %v971
  %v1308 = vpack.c.b16 %v976, %v972
  %v1309 = vpack.c.b16 %v977, %v973
  %v1310 = vpack.c.b16 %v978, %v974
  %v1311 = vpack.c.b16 %v983, %v979
  %v1312 = vpack.c.b16 %v984, %v980
  %v1313 = vpack.c.b16 %v985, %v981
  %v1314 = vpack.c.b16 %v986, %v982
  %v1315 = vpack.c.b16 %v991, %v987
  %v1316 = vpack.c.b16 %v992, %v988
  %v1317 = vpack.c.b16 %v993, %v989
  %v1318 = vpack.c.b16 %v994, %v990
  %v1319 = vpack.c.b16 %v999, %v995
  %v1320 = vpack.c.b16 %v1000, %v996
  %v1321 = vpack.c.b16 %v1001, %v997
  %v1322 = vpack.c.b16 %v1002, %v998
  %v1323 = vpack.c.b16 %v1007, %v1003
  %v1324 = vpack.c.b16 %v1008, %v1004
  %v1325 = vpack.c.b16 %v1009, %v1005
  %v1326 = vpack.c.b16 %v1010, %v1006
  %v1327 = vpack.c.b16 %v1015, %v1011
  %v1328 = vpack.c.b16 %v1016, %v1012
  %v1329 = vpack.c.b16 %v1017, %v1013
  %v1330 = vpack.c.b16 %v1018, %v1014
  %v1331 = vpack.c.b16 %v1023, %v1019
  %v1332 = vpack.c.b16 %v1024, %v1020
  %v1333 = vpack.c.b16 %v1025, %v1021
  %v1334 = vpack.c.b16 %v1026, %v1022
  %v1335 = vpack.c.b16 %v1031, %v1027
  %v1336 = vpack.c.b16 %v1032, %v1028
  %v1337 = vpack.c.b16 %v1033, %v1029
  %v1338 = vpack.c.b16 %v1034, %v1030
  %v1339 = vpack.c.b16 %v1039, %v1035
  %v1340 = vpack.c.b16 %v1040, %v1036
  %v1341 = vpack.c.b16 %v1041, %v1037
  %v1342 = vpack.c.b16 %v1042, %v1038
  %v1343 = vpack.c.b16 %v1047, %v1043
  %v1344 = vpack.c.b16 %v1048, %v1044
  %v1345 = vpack.c.b16 %v1049, %v1045
  %v1346 = vpack.c.b16 %v1050, %v1046
  %v1347 = vpack.c.b16 %v1055, %v1051
  %v1348 = vpack.c.b16 %v1056, %v1052
  %v1349 = vpack.c.b16 %v1057, %v1053
  %v1350 = vpack.c.b16 %v1058, %v1054
  %v1351 = vpack.c.b16 %v1063, %v1059
  %v1352 = vpack.c.b16 %v1064, %v1060
  %v1353 = vpack.c.b16 %v1065, %v1061
  %v1354 = vpack.c.b16 %v1066, %v1062
  %v1355 = vpack.c.b16 %v1071, %v1067
  %v1356 = vpack.c.b16 %v1072, %v1068
  %v1357 = vpack.c.b16 %v1073, %v1069
  %v1358 = vpack.c.b16 %v1074, %v1070
  %v1359 = vpack.c.b16 %v1079, %v1075
  %v1360 = vpack.c.b16 %v1080, %v1076
  %v1361 = vpack.c.b16 %v1081, %v1077
  %v1362 = vpack.c.b16 %v1082, %v1078
  %v1363 = vpack.c.b16 %v1087, %v1083
  %v1364 = vpack.c.b16 %v1088, %v1084
  %v1365 = vpack.c.b16 %v1089, %v1085
  %v1366 = vpack.c.b16 %v1090, %v1086
  %v1367 = vpack.c.b16 %v1095, %v1091
  %v1368 = vpack.c.b16 %v1096, %v1092
  %v1369 = vpack.c.b16 %v1097, %v1093
  %v1370 = vpack.c.b16 %v1098, %v1094
  %v1371 = vpack.c.b16 %v1103, %v1099
  %v1372 = vpack.c.b16 %v1104, %v1100
  %v1373 = vpack.c.b16 %v1105, %v1101
  %v1374 = vpack.c.b16 %v1106, %v1102
  %v1375 = vpack.c.b16 %v1111, %v1107
  %v1376 = vpack.c.b16 %v1112, %v1108
  %v1377 = vpack.c.b16 %v1113, %v1109
  %v1378 = vpack.c.b16 %v1114, %v1110
  %v1379 = vpack.c.b16 %v1119, %v1115
  %v1380 = vpack.c.b16 %v1120, %v1116
  %v1381 = vpack.c.b16 %v1121, %v1117
  %v1382 = vpack.c.b16 %v1122, %v1118
  %v1383 = vpack.c.b16 %v1127, %v1123
  %v1384 = vpack.c.b16 %v1128, %v1124
  %v1385 = vpack.c.b16 %v1129, %v1125
  %v1386 = vpack.c.b16 %v1130, %v1126
  %1643 = vmatprep.subr.bf16.mxu0 %v1132
  %1644 = vmatpush1.bf16.msra.mxu0 %v1131
  %1645 = vmatprep.subr.bf16.mxu0 %v1136
  %1646 = vmatpush1.bf16.msra.mxu0 %v1135
  %1647 = vmatprep.subr.bf16.mxu0 %v1140
  %1648 = vmatpush1.bf16.msra.mxu0 %v1139
  %1649 = vmatprep.subr.bf16.mxu0 %v1144
  %1650 = vmatpush1.bf16.msra.mxu0 %v1143
  %1651 = vmatprep.subr.bf16.mxu0 %v1148
  %1652 = vmatpush1.bf16.msra.mxu0 %v1147
  %1653 = vmatprep.subr.bf16.mxu0 %v1152
  %1654 = vmatpush1.bf16.msra.mxu0 %v1151
  %1655 = vmatprep.subr.bf16.mxu0 %v1156
  %1656 = vmatpush1.bf16.msra.mxu0 %v1155
  %1657 = vmatprep.subr.bf16.mxu0 %v1160
  %1658 = vmatpush1.bf16.msra.mxu0 %v1159
  %1659 = vmatprep.subr.bf16.mxu0 %v1164
  %1660 = vmatpush1.bf16.msra.mxu0 %v1163
  %1661 = vmatprep.subr.bf16.mxu0 %v1168
  %1662 = vmatpush1.bf16.msra.mxu0 %v1167
  %1663 = vmatprep.subr.bf16.mxu0 %v1172
  %1664 = vmatpush1.bf16.msra.mxu0 %v1171
  %1665 = vmatprep.subr.bf16.mxu0 %v1176
  %1666 = vmatpush1.bf16.msra.mxu0 %v1175
  %1667 = vmatprep.subr.bf16.mxu0 %v1180
  %1668 = vmatpush1.bf16.msra.mxu0 %v1179
  %1669 = vmatprep.subr.bf16.mxu0 %v1184
  %1670 = vmatpush1.bf16.msra.mxu0 %v1183
  %1671 = vmatprep.subr.bf16.mxu0 %v1188
  %1672 = vmatpush1.bf16.msra.mxu0 %v1187
  %1673 = vmatprep.subr.bf16.mxu0 %v1192
  %1674 = vmatpush1.bf16.msra.mxu0 %v1191
  %1675 = vmatprep.mubr.bf16.mxu0 %v343
  %1676 = vmatmul.mubr.bf16.gmra.mrb[0].mxu0 %v329
  %v1677 = vpop.f32.mrb[0].mxu0
  %v1678 = vadd.f32 %v288, %v1677
  %v1679 = vpop.f32.mrb[0].mxu0
  %v1680 = vadd.f32 %v292, %v1679
  %v1681 = vpop.f32.mrb[0].mxu0
  %v1682 = vpop.f32.mrb[0].mxu0
  %1683 = vdwg.mxu0
  %1684 = vmatprep.subr.bf16.mxu0 %v1196
  %1685 = vmatpush1.bf16.msra.mxu0 %v1195
  %1686 = vmatprep.subr.bf16.mxu0 %v1200
  %1687 = vmatpush1.bf16.msra.mxu0 %v1199
  %1688 = vmatprep.subr.bf16.mxu0 %v1204
  %1689 = vmatpush1.bf16.msra.mxu0 %v1203
  %1690 = vmatprep.subr.bf16.mxu0 %v1208
  %1691 = vmatpush1.bf16.msra.mxu0 %v1207
  %1692 = vmatprep.subr.bf16.mxu0 %v1212
  %1693 = vmatpush1.bf16.msra.mxu0 %v1211
  %1694 = vmatprep.subr.bf16.mxu0 %v1216
  %1695 = vmatpush1.bf16.msra.mxu0 %v1215
  %1696 = vmatprep.subr.bf16.mxu0 %v1220
  %1697 = vmatpush1.bf16.msra.mxu0 %v1219
  %1698 = vmatprep.subr.bf16.mxu0 %v1224
  %1699 = vmatpush1.bf16.msra.mxu0 %v1223
  %1700 = vmatprep.subr.bf16.mxu0 %v1228
  %1701 = vmatpush1.bf16.msra.mxu0 %v1227
  %1702 = vmatprep.subr.bf16.mxu0 %v1232
  %1703 = vmatpush1.bf16.msra.mxu0 %v1231
  %1704 = vmatprep.subr.bf16.mxu0 %v1236
  %1705 = vmatpush1.bf16.msra.mxu0 %v1235
  %1706 = vmatprep.subr.bf16.mxu0 %v1240
  %1707 = vmatpush1.bf16.msra.mxu0 %v1239
  %1708 = vmatprep.subr.bf16.mxu0 %v1244
  %1709 = vmatpush1.bf16.msra.mxu0 %v1243
  %1710 = vmatprep.subr.bf16.mxu0 %v1248
  %1711 = vmatpush1.bf16.msra.mxu0 %v1247
  %1712 = vmatprep.subr.bf16.mxu0 %v1252
  %1713 = vmatpush1.bf16.msra.mxu0 %v1251
  %1714 = vmatprep.subr.bf16.mxu0 %v1256
  %1715 = vmatpush1.bf16.msra.mxu0 %v1255
  %1716 = vmatprep.mubr.bf16.mxu0 %v353
  %1717 = vmatmul.mubr.bf16.gmra.mrb[0].mxu0 %v351
  %v1718 = vpop.f32.mrb[0].mxu0
  %v1719 = vadd.f32 %v1678, %v1718
  %v1720 = vpop.f32.mrb[0].mxu0
  %v1721 = vadd.f32 %v1680, %v1720
  %v1722 = vpop.f32.mrb[0].mxu0
  %v1723 = vpop.f32.mrb[0].mxu0
  %1724 = vdwg.mxu0
  %1725 = vmatprep.subr.bf16.mxu0 %v1260
  %1726 = vmatpush1.bf16.msra.mxu0 %v1259
  %1727 = vmatprep.subr.bf16.mxu0 %v1264
  %1728 = vmatpush1.bf16.msra.mxu0 %v1263
  %1729 = vmatprep.subr.bf16.mxu0 %v1268
  %1730 = vmatpush1.bf16.msra.mxu0 %v1267
  %1731 = vmatprep.subr.bf16.mxu0 %v1272
  %1732 = vmatpush1.bf16.msra.mxu0 %v1271
  %1733 = vmatprep.subr.bf16.mxu0 %v1276
  %1734 = vmatpush1.bf16.msra.mxu0 %v1275
  %1735 = vmatprep.subr.bf16.mxu0 %v1280
  %1736 = vmatpush1.bf16.msra.mxu0 %v1279
  %1737 = vmatprep.subr.bf16.mxu0 %v1284
  %1738 = vmatpush1.bf16.msra.mxu0 %v1283
  %1739 = vmatprep.subr.bf16.mxu0 %v1288
  %1740 = vmatpush1.bf16.msra.mxu0 %v1287
  %1741 = vmatprep.subr.bf16.mxu0 %v1292
  %1742 = vmatpush1.bf16.msra.mxu0 %v1291
  %1743 = vmatprep.subr.bf16.mxu0 %v1296
  %1744 = vmatpush1.bf16.msra.mxu0 %v1295
  %1745 = vmatprep.subr.bf16.mxu0 %v1300
  %1746 = vmatpush1.bf16.msra.mxu0 %v1299
  %1747 = vmatprep.subr.bf16.mxu0 %v1304
  %1748 = vmatpush1.bf16.msra.mxu0 %v1303
  %1749 = vmatprep.subr.bf16.mxu0 %v1308
  %1750 = vmatpush1.bf16.msra.mxu0 %v1307
  %1751 = vmatprep.subr.bf16.mxu0 %v1312
  %1752 = vmatpush1.bf16.msra.mxu0 %v1311
  %1753 = vmatprep.subr.bf16.mxu0 %v1316
  %1754 = vmatpush1.bf16.msra.mxu0 %v1315
  %1755 = vmatprep.subr.bf16.mxu0 %v1320
  %1756 = vmatpush1.bf16.msra.mxu0 %v1319
  %1757 = vmatprep.mubr.bf16.mxu0 %v350
  %1758 = vmatmul.mubr.bf16.gmra.mrb[0].mxu0 %v336
  %v1759 = vpop.f32.mrb[0].mxu0
  %v1760 = vadd.f32 %v1719, %v1759
  %v1761 = vpop.f32.mrb[0].mxu0
  %v1762 = vadd.f32 %v1721, %v1761
  %v1763 = vpop.f32.mrb[0].mxu0
  %v1764 = vpop.f32.mrb[0].mxu0
  %1765 = vdwg.mxu0
  %1766 = vmatprep.subr.bf16.mxu0 %v1324
  %1767 = vmatpush1.bf16.msra.mxu0 %v1323
  %1768 = vmatprep.subr.bf16.mxu0 %v1328
  %1769 = vmatpush1.bf16.msra.mxu0 %v1327
  %1770 = vmatprep.subr.bf16.mxu0 %v1332
  %1771 = vmatpush1.bf16.msra.mxu0 %v1331
  %1772 = vmatprep.subr.bf16.mxu0 %v1336
  %1773 = vmatpush1.bf16.msra.mxu0 %v1335
  %1774 = vmatprep.subr.bf16.mxu0 %v1340
  %1775 = vmatpush1.bf16.msra.mxu0 %v1339
  %1776 = vmatprep.subr.bf16.mxu0 %v1344
  %1777 = vmatpush1.bf16.msra.mxu0 %v1343
  %1778 = vmatprep.subr.bf16.mxu0 %v1348
  %1779 = vmatpush1.bf16.msra.mxu0 %v1347
  %1780 = vmatprep.subr.bf16.mxu0 %v1352
  %1781 = vmatpush1.bf16.msra.mxu0 %v1351
  %1782 = vmatprep.subr.bf16.mxu0 %v1356
  %1783 = vmatpush1.bf16.msra.mxu0 %v1355
  %1784 = vmatprep.subr.bf16.mxu0 %v1360
  %1785 = vmatpush1.bf16.msra.mxu0 %v1359
  %1786 = vmatprep.subr.bf16.mxu0 %v1364
  %1787 = vmatpush1.bf16.msra.mxu0 %v1363
  %1788 = vmatprep.subr.bf16.mxu0 %v1368
  %1789 = vmatpush1.bf16.msra.mxu0 %v1367
  %1790 = vmatprep.subr.bf16.mxu0 %v1372
  %1791 = vmatpush1.bf16.msra.mxu0 %v1371
  %1792 = vmatprep.subr.bf16.mxu0 %v1376
  %1793 = vmatpush1.bf16.msra.mxu0 %v1375
  %1794 = vmatprep.subr.bf16.mxu0 %v1380
  %1795 = vmatpush1.bf16.msra.mxu0 %v1379
  %1796 = vmatprep.subr.bf16.mxu0 %v1384
  %1797 = vmatpush1.bf16.msra.mxu0 %v1383
  %1798 = vmatprep.mubr.bf16.mxu0 %v354
  %1799 = vmatmul.mubr.bf16.gmra.mrb[0].mxu0 %v352
  %v1800 = vpop.f32.mrb[0].mxu0
  %v1801 = vadd.f32 %v1760, %v1800
  %v1802 = vpop.f32.mrb[0].mxu0
  %v1803 = vadd.f32 %v1762, %v1802
  %v1804 = vpop.f32.mrb[0].mxu0
  %v1805 = vpop.f32.mrb[0].mxu0
  %1806 = vdwg.mxu0
  %1807 = vmatprep.subr.bf16.mxu0 %v1134
  %1808 = vmatpush1.bf16.msra.mxu0 %v1133
  %1809 = vmatprep.subr.bf16.mxu0 %v1138
  %1810 = vmatpush1.bf16.msra.mxu0 %v1137
  %1811 = vmatprep.subr.bf16.mxu0 %v1142
  %1812 = vmatpush1.bf16.msra.mxu0 %v1141
  %1813 = vmatprep.subr.bf16.mxu0 %v1146
  %1814 = vmatpush1.bf16.msra.mxu0 %v1145
  %1815 = vmatprep.subr.bf16.mxu0 %v1150
  %1816 = vmatpush1.bf16.msra.mxu0 %v1149
  %1817 = vmatprep.subr.bf16.mxu0 %v1154
  %1818 = vmatpush1.bf16.msra.mxu0 %v1153
  %1819 = vmatprep.subr.bf16.mxu0 %v1158
  %1820 = vmatpush1.bf16.msra.mxu0 %v1157
  %1821 = vmatprep.subr.bf16.mxu0 %v1162
  %1822 = vmatpush1.bf16.msra.mxu0 %v1161
  %1823 = vmatprep.subr.bf16.mxu0 %v1166
  %1824 = vmatpush1.bf16.msra.mxu0 %v1165
  %1825 = vmatprep.subr.bf16.mxu0 %v1170
  %1826 = vmatpush1.bf16.msra.mxu0 %v1169
  %1827 = vmatprep.subr.bf16.mxu0 %v1174
  %1828 = vmatpush1.bf16.msra.mxu0 %v1173
  %1829 = vmatprep.subr.bf16.mxu0 %v1178
  %1830 = vmatpush1.bf16.msra.mxu0 %v1177
  %1831 = vmatprep.subr.bf16.mxu0 %v1182
  %1832 = vmatpush1.bf16.msra.mxu0 %v1181
  %1833 = vmatprep.subr.bf16.mxu0 %v1186
  %1834 = vmatpush1.bf16.msra.mxu0 %v1185
  %1835 = vmatprep.subr.bf16.mxu0 %v1190
  %1836 = vmatpush1.bf16.msra.mxu0 %v1189
  %1837 = vmatprep.subr.bf16.mxu0 %v1194
  %1838 = vmatpush1.bf16.msra.mxu0 %v1193
  %1839 = vmatprep.mubr.bf16.mxu0 %v343
  %1840 = vmatmul.mubr.bf16.gmra.mrb[0].mxu0 %v329
  %v1841 = vpop.f32.mrb[0].mxu0
  %v1842 = vadd.f32 %v296, %v1841
  %v1843 = vpop.f32.mrb[0].mxu0
  %v1844 = vadd.f32 %v300, %v1843
  %v1845 = vpop.f32.mrb[0].mxu0
  %v1846 = vpop.f32.mrb[0].mxu0
  %1847 = vdwg.mxu0
  %1848 = vmatprep.subr.bf16.mxu0 %v1198
  %1849 = vmatpush1.bf16.msra.mxu0 %v1197
  %1850 = vmatprep.subr.bf16.mxu0 %v1202
  %1851 = vmatpush1.bf16.msra.mxu0 %v1201
  %1852 = vmatprep.subr.bf16.mxu0 %v1206
  %1853 = vmatpush1.bf16.msra.mxu0 %v1205
  %1854 = vmatprep.subr.bf16.mxu0 %v1210
  %1855 = vmatpush1.bf16.msra.mxu0 %v1209
  %1856 = vmatprep.subr.bf16.mxu0 %v1214
  %1857 = vmatpush1.bf16.msra.mxu0 %v1213
  %1858 = vmatprep.subr.bf16.mxu0 %v1218
  %1859 = vmatpush1.bf16.msra.mxu0 %v1217
  %1860 = vmatprep.subr.bf16.mxu0 %v1222
  %1861 = vmatpush1.bf16.msra.mxu0 %v1221
  %1862 = vmatprep.subr.bf16.mxu0 %v1226
  %1863 = vmatpush1.bf16.msra.mxu0 %v1225
  %1864 = vmatprep.subr.bf16.mxu0 %v1230
  %1865 = vmatpush1.bf16.msra.mxu0 %v1229
  %1866 = vmatprep.subr.bf16.mxu0 %v1234
  %1867 = vmatpush1.bf16.msra.mxu0 %v1233
  %1868 = vmatprep.subr.bf16.mxu0 %v1238
  %1869 = vmatpush1.bf16.msra.mxu0 %v1237
  %1870 = vmatprep.subr.bf16.mxu0 %v1242
  %1871 = vmatpush1.bf16.msra.mxu0 %v1241
  %1872 = vmatprep.subr.bf16.mxu0 %v1246
  %1873 = vmatpush1.bf16.msra.mxu0 %v1245
  %1874 = vmatprep.subr.bf16.mxu0 %v1250
  %1875 = vmatpush1.bf16.msra.mxu0 %v1249
  %1876 = vmatprep.subr.bf16.mxu0 %v1254
  %1877 = vmatpush1.bf16.msra.mxu0 %v1253
  %1878 = vmatprep.subr.bf16.mxu0 %v1258
  %1879 = vmatpush1.bf16.msra.mxu0 %v1257
  %1880 = vmatprep.mubr.bf16.mxu0 %v353
  %1881 = vmatmul.mubr.bf16.gmra.mrb[0].mxu0 %v351
  %v1882 = vpop.f32.mrb[0].mxu0
  %v1883 = vadd.f32 %v1842, %v1882
  %v1884 = vpop.f32.mrb[0].mxu0
  %v1885 = vadd.f32 %v1844, %v1884
  %v1886 = vpop.f32.mrb[0].mxu0
  %v1887 = vpop.f32.mrb[0].mxu0
  %1888 = vdwg.mxu0
  %1889 = vmatprep.subr.bf16.mxu0 %v1262
  %1890 = vmatpush1.bf16.msra.mxu0 %v1261
  %1891 = vmatprep.subr.bf16.mxu0 %v1266
  %1892 = vmatpush1.bf16.msra.mxu0 %v1265
  %1893 = vmatprep.subr.bf16.mxu0 %v1270
  %1894 = vmatpush1.bf16.msra.mxu0 %v1269
  %1895 = vmatprep.subr.bf16.mxu0 %v1274
  %1896 = vmatpush1.bf16.msra.mxu0 %v1273
  %1897 = vmatprep.subr.bf16.mxu0 %v1278
  %1898 = vmatpush1.bf16.msra.mxu0 %v1277
  %1899 = vmatprep.subr.bf16.mxu0 %v1282
  %1900 = vmatpush1.bf16.msra.mxu0 %v1281
  %1901 = vmatprep.subr.bf16.mxu0 %v1286
  %1902 = vmatpush1.bf16.msra.mxu0 %v1285
  %1903 = vmatprep.subr.bf16.mxu0 %v1290
  %1904 = vmatpush1.bf16.msra.mxu0 %v1289
  %1905 = vmatprep.subr.bf16.mxu0 %v1294
  %1906 = vmatpush1.bf16.msra.mxu0 %v1293
  %1907 = vmatprep.subr.bf16.mxu0 %v1298
  %1908 = vmatpush1.bf16.msra.mxu0 %v1297
  %1909 = vmatprep.subr.bf16.mxu0 %v1302
  %1910 = vmatpush1.bf16.msra.mxu0 %v1301
  %1911 = vmatprep.subr.bf16.mxu0 %v1306
  %1912 = vmatpush1.bf16.msra.mxu0 %v1305
  %1913 = vmatprep.subr.bf16.mxu0 %v1310
  %1914 = vmatpush1.bf16.msra.mxu0 %v1309
  %1915 = vmatprep.subr.bf16.mxu0 %v1314
  %1916 = vmatpush1.bf16.msra.mxu0 %v1313
  %1917 = vmatprep.subr.bf16.mxu0 %v1318
  %1918 = vmatpush1.bf16.msra.mxu0 %v1317
  %1919 = vmatprep.subr.bf16.mxu0 %v1322
  %1920 = vmatpush1.bf16.msra.mxu0 %v1321
  %1921 = vmatprep.mubr.bf16.mxu0 %v350
  %1922 = vmatmul.mubr.bf16.gmra.mrb[0].mxu0 %v336
  %v1923 = vpop.f32.mrb[0].mxu0
  %v1924 = vadd.f32 %v1883, %v1923
  %v1925 = vpop.f32.mrb[0].mxu0
  %v1926 = vadd.f32 %v1885, %v1925
  %v1927 = vpop.f32.mrb[0].mxu0
  %v1928 = vpop.f32.mrb[0].mxu0
  %1929 = vdwg.mxu0
  %1930 = vmatprep.subr.bf16.mxu0 %v1326
  %1931 = vmatpush1.bf16.msra.mxu0 %v1325
  %1932 = vmatprep.subr.bf16.mxu0 %v1330
  %1933 = vmatpush1.bf16.msra.mxu0 %v1329
  %1934 = vmatprep.subr.bf16.mxu0 %v1334
  %1935 = vmatpush1.bf16.msra.mxu0 %v1333
  %1936 = vmatprep.subr.bf16.mxu0 %v1338
  %1937 = vmatpush1.bf16.msra.mxu0 %v1337
  %1938 = vmatprep.subr.bf16.mxu0 %v1342
  %1939 = vmatpush1.bf16.msra.mxu0 %v1341
  %1940 = vmatprep.subr.bf16.mxu0 %v1346
  %1941 = vmatpush1.bf16.msra.mxu0 %v1345
  %1942 = vmatprep.subr.bf16.mxu0 %v1350
  %1943 = vmatpush1.bf16.msra.mxu0 %v1349
  %1944 = vmatprep.subr.bf16.mxu0 %v1354
  %1945 = vmatpush1.bf16.msra.mxu0 %v1353
  %1946 = vmatprep.subr.bf16.mxu0 %v1358
  %1947 = vmatpush1.bf16.msra.mxu0 %v1357
  %1948 = vmatprep.subr.bf16.mxu0 %v1362
  %1949 = vmatpush1.bf16.msra.mxu0 %v1361
  %1950 = vmatprep.subr.bf16.mxu0 %v1366
  %1951 = vmatpush1.bf16.msra.mxu0 %v1365
  %1952 = vmatprep.subr.bf16.mxu0 %v1370
  %1953 = vmatpush1.bf16.msra.mxu0 %v1369
  %1954 = vmatprep.subr.bf16.mxu0 %v1374
  %1955 = vmatpush1.bf16.msra.mxu0 %v1373
  %1956 = vmatprep.subr.bf16.mxu0 %v1378
  %1957 = vmatpush1.bf16.msra.mxu0 %v1377
  %1958 = vmatprep.subr.bf16.mxu0 %v1382
  %1959 = vmatpush1.bf16.msra.mxu0 %v1381
  %1960 = vmatprep.subr.bf16.mxu0 %v1386
  %1961 = vmatpush1.bf16.msra.mxu0 %v1385
  %1962 = vmatprep.mubr.bf16.mxu0 %v354
  %1963 = vmatmul.mubr.bf16.gmra.mrb[0].mxu0 %v352
  %v1964 = vpop.f32.mrb[0].mxu0
  %v1965 = vadd.f32 %v1924, %v1964
  %v1966 = vpop.f32.mrb[0].mxu0
  %v1967 = vadd.f32 %v1926, %v1966
  %v1968 = vpop.f32.mrb[0].mxu0
  %v1969 = vpop.f32.mrb[0].mxu0
  %1970 = vdwg.mxu0
  %v1971 = vmax.f32 %v1801, 0.0
  %v1972 = vmax.f32 %v1803, 0.0
  %v1973 = vmax.f32 %v1965, 0.0
  %v1974 = vmax.f32 %v1967, 0.0
  %v1975 = vpack.c.bf16 %v1971, %v1971
  %v1976 = vpack.c.bf16 %v1972, %v1972
  %v1977 = vpack.c.bf16 %v1973, %v1973
  %v1978 = vpack.c.bf16 %v1974, %v1974
  %v1979 = vld [vmem:[%s3] sm:$0xff]
  %v1980 = vld [vmem:[%s3 + $0x8] sm:$0xff]
  %v1981 = vld [vmem:[%s3 + $0x10] sm:$0xff]
  %v1982 = vld [vmem:[%s3 + $0x18] sm:$0xff]
  %v1983 = vld [vmem:[%s3 + $0x20] sm:$0xff]
  %v1984 = vld [vmem:[%s3 + $0x28] sm:$0xff]
  %v1985 = vld [vmem:[%s3 + $0x30] sm:$0xff]
  %v1986 = vld [vmem:[%s3 + $0x38] sm:$0xff]
  %v1987 = vld [vmem:[%s3 + $0x40] sm:$0xff]
  %v1988 = vld [vmem:[%s3 + $0x48] sm:$0xff]
  %v1989 = vld [vmem:[%s3 + $0x50] sm:$0xff]
  %v1990 = vld [vmem:[%s3 + $0x58] sm:$0xff]
  %v1991 = vld [vmem:[%s3 + $0x60] sm:$0xff]
  %v1992 = vld [vmem:[%s3 + $0x68] sm:$0xff]
  %v1993 = vld [vmem:[%s3 + $0x70] sm:$0xff]
  %v1994 = vld [vmem:[%s3 + $0x78] sm:$0xff]
  %v1995 = vld [vmem:[%s3 + $0x80] sm:$0xff]
  %v1996 = vld [vmem:[%s3 + $0x88] sm:$0xff]
  %v1997 = vld [vmem:[%s3 + $0x90] sm:$0xff]
  %v1998 = vld [vmem:[%s3 + $0x98] sm:$0xff]
  %v1999 = vld [vmem:[%s3 + $0xa0] sm:$0xff]
  %v2000 = vld [vmem:[%s3 + $0xa8] sm:$0xff]
  %v2001 = vld [vmem:[%s3 + $0xb0] sm:$0xff]
  %v2002 = vld [vmem:[%s3 + $0xb8] sm:$0xff]
  %v2003 = vld [vmem:[%s3 + $0xc0] sm:$0xff]
  %v2004 = vld [vmem:[%s3 + $0xc8] sm:$0xff]
  %v2005 = vld [vmem:[%s3 + $0xd0] sm:$0xff]
  %v2006 = vld [vmem:[%s3 + $0xd8] sm:$0xff]
  %v2007 = vld [vmem:[%s3 + $0xe0] sm:$0xff]
  %v2008 = vld [vmem:[%s3 + $0xe8] sm:$0xff]
  %v2009 = vld [vmem:[%s3 + $0xf0] sm:$0xff]
  %v2010 = vld [vmem:[%s3 + $0xf8] sm:$0xff]
  %v2011 = vld [vmem:[%s3 + $0x100] sm:$0xff]
  %v2012 = vld [vmem:[%s3 + $0x108] sm:$0xff]
  %v2013 = vld [vmem:[%s3 + $0x110] sm:$0xff]
  %v2014 = vld [vmem:[%s3 + $0x118] sm:$0xff]
  %v2015 = vld [vmem:[%s3 + $0x120] sm:$0xff]
  %v2016 = vld [vmem:[%s3 + $0x128] sm:$0xff]
  %v2017 = vld [vmem:[%s3 + $0x130] sm:$0xff]
  %v2018 = vld [vmem:[%s3 + $0x138] sm:$0xff]
  %v2019 = vld [vmem:[%s3 + $0x140] sm:$0xff]
  %v2020 = vld [vmem:[%s3 + $0x148] sm:$0xff]
  %v2021 = vld [vmem:[%s3 + $0x150] sm:$0xff]
  %v2022 = vld [vmem:[%s3 + $0x158] sm:$0xff]
  %v2023 = vld [vmem:[%s3 + $0x160] sm:$0xff]
  %v2024 = vld [vmem:[%s3 + $0x168] sm:$0xff]
  %v2025 = vld [vmem:[%s3 + $0x170] sm:$0xff]
  %v2026 = vld [vmem:[%s3 + $0x178] sm:$0xff]
  %v2027 = vld [vmem:[%s3 + $0x180] sm:$0xff]
  %v2028 = vld [vmem:[%s3 + $0x188] sm:$0xff]
  %v2029 = vld [vmem:[%s3 + $0x190] sm:$0xff]
  %v2030 = vld [vmem:[%s3 + $0x198] sm:$0xff]
  %v2031 = vld [vmem:[%s3 + $0x1a0] sm:$0xff]
  %v2032 = vld [vmem:[%s3 + $0x1a8] sm:$0xff]
  %v2033 = vld [vmem:[%s3 + $0x1b0] sm:$0xff]
  %v2034 = vld [vmem:[%s3 + $0x1b8] sm:$0xff]
  %v2035 = vld [vmem:[%s3 + $0x1c0] sm:$0xff]
  %v2036 = vld [vmem:[%s3 + $0x1c8] sm:$0xff]
  %v2037 = vld [vmem:[%s3 + $0x1d0] sm:$0xff]
  %v2038 = vld [vmem:[%s3 + $0x1d8] sm:$0xff]
  %v2039 = vld [vmem:[%s3 + $0x1e0] sm:$0xff]
  %v2040 = vld [vmem:[%s3 + $0x1e8] sm:$0xff]
  %v2041 = vld [vmem:[%s3 + $0x1f0] sm:$0xff]
  %v2042 = vld [vmem:[%s3 + $0x1f8] sm:$0xff]
  %v2043 = vld [vmem:[%s4] sm:$0x3]
  %v2045 = vlaneseq
  %v2046 = vshrl.u32 %v2045, 7
  %v2047 = vsub.s32 0, %v2046
  %v2048 = vrot.slane %v2043, %v2047
  %v2049 = vlaneseq
  %v2050 = vshrl.u32 %v2049, 7
  %v2051 = vsub.s32 1, %v2050
  %v2052 = vrot.slane %v2043, %v2051
  %v2119 = vunpack.c.l.b16 %v1979
  %v2120 = vunpack.c.h.b16 %v1979
  %v2121 = vunpack.c.l.b16 %v1980
  %v2122 = vunpack.c.h.b16 %v1980
  %v2123 = vunpack.c.l.b16 %v1981
  %v2124 = vunpack.c.h.b16 %v1981
  %v2125 = vunpack.c.l.b16 %v1982
  %v2126 = vunpack.c.h.b16 %v1982
  %v2127 = vunpack.c.l.b16 %v1983
  %v2128 = vunpack.c.h.b16 %v1983
  %v2129 = vunpack.c.l.b16 %v1984
  %v2130 = vunpack.c.h.b16 %v1984
  %v2131 = vunpack.c.l.b16 %v1985
  %v2132 = vunpack.c.h.b16 %v1985
  %v2133 = vunpack.c.l.b16 %v1986
  %v2134 = vunpack.c.h.b16 %v1986
  %v2135 = vunpack.c.l.b16 %v1987
  %v2136 = vunpack.c.h.b16 %v1987
  %v2137 = vunpack.c.l.b16 %v1988
  %v2138 = vunpack.c.h.b16 %v1988
  %v2139 = vunpack.c.l.b16 %v1989
  %v2140 = vunpack.c.h.b16 %v1989
  %v2141 = vunpack.c.l.b16 %v1990
  %v2142 = vunpack.c.h.b16 %v1990
  %v2143 = vunpack.c.l.b16 %v1991
  %v2144 = vunpack.c.h.b16 %v1991
  %v2145 = vunpack.c.l.b16 %v1992
  %v2146 = vunpack.c.h.b16 %v1992
  %v2147 = vunpack.c.l.b16 %v1993
  %v2148 = vunpack.c.h.b16 %v1993
  %v2149 = vunpack.c.l.b16 %v1994
  %v2150 = vunpack.c.h.b16 %v1994
  %v2151 = vunpack.c.l.b16 %v1995
  %v2152 = vunpack.c.h.b16 %v1995
  %v2153 = vunpack.c.l.b16 %v1996
  %v2154 = vunpack.c.h.b16 %v1996
  %v2155 = vunpack.c.l.b16 %v1997
  %v2156 = vunpack.c.h.b16 %v1997
  %v2157 = vunpack.c.l.b16 %v1998
  %v2158 = vunpack.c.h.b16 %v1998
  %v2159 = vunpack.c.l.b16 %v1999
  %v2160 = vunpack.c.h.b16 %v1999
  %v2161 = vunpack.c.l.b16 %v2000
  %v2162 = vunpack.c.h.b16 %v2000
  %v2163 = vunpack.c.l.b16 %v2001
  %v2164 = vunpack.c.h.b16 %v2001
  %v2165 = vunpack.c.l.b16 %v2002
  %v2166 = vunpack.c.h.b16 %v2002
  %v2167 = vunpack.c.l.b16 %v2003
  %v2168 = vunpack.c.h.b16 %v2003
  %v2169 = vunpack.c.l.b16 %v2004
  %v2170 = vunpack.c.h.b16 %v2004
  %v2171 = vunpack.c.l.b16 %v2005
  %v2172 = vunpack.c.h.b16 %v2005
  %v2173 = vunpack.c.l.b16 %v2006
  %v2174 = vunpack.c.h.b16 %v2006
  %v2175 = vunpack.c.l.b16 %v2007
  %v2176 = vunpack.c.h.b16 %v2007
  %v2177 = vunpack.c.l.b16 %v2008
  %v2178 = vunpack.c.h.b16 %v2008
  %v2179 = vunpack.c.l.b16 %v2009
  %v2180 = vunpack.c.h.b16 %v2009
  %v2181 = vunpack.c.l.b16 %v2010
  %v2182 = vunpack.c.h.b16 %v2010
  %v2183 = vunpack.c.l.b16 %v2011
  %v2184 = vunpack.c.h.b16 %v2011
  %v2185 = vunpack.c.l.b16 %v2012
  %v2186 = vunpack.c.h.b16 %v2012
  %v2187 = vunpack.c.l.b16 %v2013
  %v2188 = vunpack.c.h.b16 %v2013
  %v2189 = vunpack.c.l.b16 %v2014
  %v2190 = vunpack.c.h.b16 %v2014
  %v2191 = vunpack.c.l.b16 %v2015
  %v2192 = vunpack.c.h.b16 %v2015
  %v2193 = vunpack.c.l.b16 %v2016
  %v2194 = vunpack.c.h.b16 %v2016
  %v2195 = vunpack.c.l.b16 %v2017
  %v2196 = vunpack.c.h.b16 %v2017
  %v2197 = vunpack.c.l.b16 %v2018
  %v2198 = vunpack.c.h.b16 %v2018
  %v2199 = vunpack.c.l.b16 %v2019
  %v2200 = vunpack.c.h.b16 %v2019
  %v2201 = vunpack.c.l.b16 %v2020
  %v2202 = vunpack.c.h.b16 %v2020
  %v2203 = vunpack.c.l.b16 %v2021
  %v2204 = vunpack.c.h.b16 %v2021
  %v2205 = vunpack.c.l.b16 %v2022
  %v2206 = vunpack.c.h.b16 %v2022
  %v2207 = vunpack.c.l.b16 %v2023
  %v2208 = vunpack.c.h.b16 %v2023
  %v2209 = vunpack.c.l.b16 %v2024
  %v2210 = vunpack.c.h.b16 %v2024
  %v2211 = vunpack.c.l.b16 %v2025
  %v2212 = vunpack.c.h.b16 %v2025
  %v2213 = vunpack.c.l.b16 %v2026
  %v2214 = vunpack.c.h.b16 %v2026
  %v2215 = vunpack.c.l.b16 %v2027
  %v2216 = vunpack.c.h.b16 %v2027
  %v2217 = vunpack.c.l.b16 %v2028
  %v2218 = vunpack.c.h.b16 %v2028
  %v2219 = vunpack.c.l.b16 %v2029
  %v2220 = vunpack.c.h.b16 %v2029
  %v2221 = vunpack.c.l.b16 %v2030
  %v2222 = vunpack.c.h.b16 %v2030
  %v2223 = vunpack.c.l.b16 %v2031
  %v2224 = vunpack.c.h.b16 %v2031
  %v2225 = vunpack.c.l.b16 %v2032
  %v2226 = vunpack.c.h.b16 %v2032
  %v2227 = vunpack.c.l.b16 %v2033
  %v2228 = vunpack.c.h.b16 %v2033
  %v2229 = vunpack.c.l.b16 %v2034
  %v2230 = vunpack.c.h.b16 %v2034
  %v2231 = vunpack.c.l.b16 %v2035
  %v2232 = vunpack.c.h.b16 %v2035
  %v2233 = vunpack.c.l.b16 %v2036
  %v2234 = vunpack.c.h.b16 %v2036
  %v2235 = vunpack.c.l.b16 %v2037
  %v2236 = vunpack.c.h.b16 %v2037
  %v2237 = vunpack.c.l.b16 %v2038
  %v2238 = vunpack.c.h.b16 %v2038
  %v2239 = vunpack.c.l.b16 %v2039
  %v2240 = vunpack.c.h.b16 %v2039
  %v2241 = vunpack.c.l.b16 %v2040
  %v2242 = vunpack.c.h.b16 %v2040
  %v2243 = vunpack.c.l.b16 %v2041
  %v2244 = vunpack.c.h.b16 %v2041
  %v2245 = vunpack.c.l.b16 %v2042
  %v2246 = vunpack.c.h.b16 %v2042
  %v2247 = vpack.c.b16 %v2121, %v2119
  %v2248 = vpack.c.b16 %v2122, %v2120
  %v2249 = vpack.c.b16 %v2125, %v2123
  %v2250 = vpack.c.b16 %v2126, %v2124
  %v2251 = vpack.c.b16 %v2129, %v2127
  %v2252 = vpack.c.b16 %v2130, %v2128
  %v2253 = vpack.c.b16 %v2133, %v2131
  %v2254 = vpack.c.b16 %v2134, %v2132
  %v2255 = vpack.c.b16 %v2137, %v2135
  %v2256 = vpack.c.b16 %v2138, %v2136
  %v2257 = vpack.c.b16 %v2141, %v2139
  %v2258 = vpack.c.b16 %v2142, %v2140
  %v2259 = vpack.c.b16 %v2145, %v2143
  %v2260 = vpack.c.b16 %v2146, %v2144
  %v2261 = vpack.c.b16 %v2149, %v2147
  %v2262 = vpack.c.b16 %v2150, %v2148
  %v2263 = vpack.c.b16 %v2153, %v2151
  %v2264 = vpack.c.b16 %v2154, %v2152
  %v2265 = vpack.c.b16 %v2157, %v2155
  %v2266 = vpack.c.b16 %v2158, %v2156
  %v2267 = vpack.c.b16 %v2161, %v2159
  %v2268 = vpack.c.b16 %v2162, %v2160
  %v2269 = vpack.c.b16 %v2165, %v2163
  %v2270 = vpack.c.b16 %v2166, %v2164
  %v2271 = vpack.c.b16 %v2169, %v2167
  %v2272 = vpack.c.b16 %v2170, %v2168
  %v2273 = vpack.c.b16 %v2173, %v2171
  %v2274 = vpack.c.b16 %v2174, %v2172
  %v2275 = vpack.c.b16 %v2177, %v2175
  %v2276 = vpack.c.b16 %v2178, %v2176
  %v2277 = vpack.c.b16 %v2181, %v2179
  %v2278 = vpack.c.b16 %v2182, %v2180
  %v2279 = vpack.c.b16 %v2185, %v2183
  %v2280 = vpack.c.b16 %v2186, %v2184
  %v2281 = vpack.c.b16 %v2189, %v2187
  %v2282 = vpack.c.b16 %v2190, %v2188
  %v2283 = vpack.c.b16 %v2193, %v2191
  %v2284 = vpack.c.b16 %v2194, %v2192
  %v2285 = vpack.c.b16 %v2197, %v2195
  %v2286 = vpack.c.b16 %v2198, %v2196
  %v2287 = vpack.c.b16 %v2201, %v2199
  %v2288 = vpack.c.b16 %v2202, %v2200
  %v2289 = vpack.c.b16 %v2205, %v2203
  %v2290 = vpack.c.b16 %v2206, %v2204
  %v2291 = vpack.c.b16 %v2209, %v2207
  %v2292 = vpack.c.b16 %v2210, %v2208
  %v2293 = vpack.c.b16 %v2213, %v2211
  %v2294 = vpack.c.b16 %v2214, %v2212
  %v2295 = vpack.c.b16 %v2217, %v2215
  %v2296 = vpack.c.b16 %v2218, %v2216
  %v2297 = vpack.c.b16 %v2221, %v2219
  %v2298 = vpack.c.b16 %v2222, %v2220
  %v2299 = vpack.c.b16 %v2225, %v2223
  %v2300 = vpack.c.b16 %v2226, %v2224
  %v2301 = vpack.c.b16 %v2229, %v2227
  %v2302 = vpack.c.b16 %v2230, %v2228
  %v2303 = vpack.c.b16 %v2233, %v2231
  %v2304 = vpack.c.b16 %v2234, %v2232
  %v2305 = vpack.c.b16 %v2237, %v2235
  %v2306 = vpack.c.b16 %v2238, %v2236
  %v2307 = vpack.c.b16 %v2241, %v2239
  %v2308 = vpack.c.b16 %v2242, %v2240
  %v2309 = vpack.c.b16 %v2245, %v2243
  %v2310 = vpack.c.b16 %v2246, %v2244
  %2375 = vmatprep.subr.bf16.mxu0 %v2248
  %2376 = vmatpush1.bf16.msra.mxu0 %v2247
  %2377 = vmatprep.subr.bf16.mxu0 %v2250
  %2378 = vmatpush1.bf16.msra.mxu0 %v2249
  %2379 = vmatprep.subr.bf16.mxu0 %v2252
  %2380 = vmatpush1.bf16.msra.mxu0 %v2251
  %2381 = vmatprep.subr.bf16.mxu0 %v2254
  %2382 = vmatpush1.bf16.msra.mxu0 %v2253
  %2383 = vmatprep.subr.bf16.mxu0 %v2256
  %2384 = vmatpush1.bf16.msra.mxu0 %v2255
  %2385 = vmatprep.subr.bf16.mxu0 %v2258
  %2386 = vmatpush1.bf16.msra.mxu0 %v2257
  %2387 = vmatprep.subr.bf16.mxu0 %v2260
  %2388 = vmatpush1.bf16.msra.mxu0 %v2259
  %2389 = vmatprep.subr.bf16.mxu0 %v2262
  %2390 = vmatpush1.bf16.msra.mxu0 %v2261
  %2391 = vmatprep.subr.bf16.mxu0 %v2264
  %2392 = vmatpush1.bf16.msra.mxu0 %v2263
  %2393 = vmatprep.subr.bf16.mxu0 %v2266
  %2394 = vmatpush1.bf16.msra.mxu0 %v2265
  %2395 = vmatprep.subr.bf16.mxu0 %v2268
  %2396 = vmatpush1.bf16.msra.mxu0 %v2267
  %2397 = vmatprep.subr.bf16.mxu0 %v2270
  %2398 = vmatpush1.bf16.msra.mxu0 %v2269
  %2399 = vmatprep.subr.bf16.mxu0 %v2272
  %2400 = vmatpush1.bf16.msra.mxu0 %v2271
  %2401 = vmatprep.subr.bf16.mxu0 %v2274
  %2402 = vmatpush1.bf16.msra.mxu0 %v2273
  %2403 = vmatprep.subr.bf16.mxu0 %v2276
  %2404 = vmatpush1.bf16.msra.mxu0 %v2275
  %2405 = vmatprep.subr.bf16.mxu0 %v2278
  %2406 = vmatpush1.bf16.msra.mxu0 %v2277
  %2407 = vmatprep.mubr.bf16.mxu0 %v1976
  %2408 = vmatmul.mubr.bf16.gmra.mrb[0].mxu0 %v1975
  %v2409 = vpop.f32.mrb[0].mxu0
  %v2410 = vadd.f32 %v2048, %v2409
  %v2411 = vpop.f32.mrb[0].mxu0
  %v2412 = vadd.f32 %v2052, %v2411
  %v2413 = vpop.f32.mrb[0].mxu0
  %v2414 = vpop.f32.mrb[0].mxu0
  %2415 = vdwg.mxu0
  %2416 = vmatprep.subr.bf16.mxu0 %v2280
  %2417 = vmatpush1.bf16.msra.mxu0 %v2279
  %2418 = vmatprep.subr.bf16.mxu0 %v2282
  %2419 = vmatpush1.bf16.msra.mxu0 %v2281
  %2420 = vmatprep.subr.bf16.mxu0 %v2284
  %2421 = vmatpush1.bf16.msra.mxu0 %v2283
  %2422 = vmatprep.subr.bf16.mxu0 %v2286
  %2423 = vmatpush1.bf16.msra.mxu0 %v2285
  %2424 = vmatprep.subr.bf16.mxu0 %v2288
  %2425 = vmatpush1.bf16.msra.mxu0 %v2287
  %2426 = vmatprep.subr.bf16.mxu0 %v2290
  %2427 = vmatpush1.bf16.msra.mxu0 %v2289
  %2428 = vmatprep.subr.bf16.mxu0 %v2292
  %2429 = vmatpush1.bf16.msra.mxu0 %v2291
  %2430 = vmatprep.subr.bf16.mxu0 %v2294
  %2431 = vmatpush1.bf16.msra.mxu0 %v2293
  %2432 = vmatprep.subr.bf16.mxu0 %v2296
  %2433 = vmatpush1.bf16.msra.mxu0 %v2295
  %2434 = vmatprep.subr.bf16.mxu0 %v2298
  %2435 = vmatpush1.bf16.msra.mxu0 %v2297
  %2436 = vmatprep.subr.bf16.mxu0 %v2300
  %2437 = vmatpush1.bf16.msra.mxu0 %v2299
  %2438 = vmatprep.subr.bf16.mxu0 %v2302
  %2439 = vmatpush1.bf16.msra.mxu0 %v2301
  %2440 = vmatprep.subr.bf16.mxu0 %v2304
  %2441 = vmatpush1.bf16.msra.mxu0 %v2303
  %2442 = vmatprep.subr.bf16.mxu0 %v2306
  %2443 = vmatpush1.bf16.msra.mxu0 %v2305
  %2444 = vmatprep.subr.bf16.mxu0 %v2308
  %2445 = vmatpush1.bf16.msra.mxu0 %v2307
  %2446 = vmatprep.subr.bf16.mxu0 %v2310
  %2447 = vmatpush1.bf16.msra.mxu0 %v2309
  %2448 = vmatprep.mubr.bf16.mxu0 %v1978
  %2449 = vmatmul.mubr.bf16.gmra.mrb[0].mxu0 %v1977
  %v2450 = vpop.f32.mrb[0].mxu0
  %v2451 = vadd.f32 %v2410, %v2450
  %v2452 = vpop.f32.mrb[0].mxu0
  %v2453 = vadd.f32 %v2412, %v2452
  %v2454 = vpop.f32.mrb[0].mxu0
  %v2455 = vpop.f32.mrb[0].mxu0
  %2456 = vdwg.mxu0
  %v2457 = vmax.f32 %v2451, 0.0
  %v2458 = vmax.f32 %v2453, 0.0
  %v2459 = vld [vmem:[%s5] sm:$0xff]
  %v2460 = vld [vmem:[%s5 + $0x8] sm:$0xff]
  %v2461 = vld [vmem:[%s5 + $0x10] sm:$0xff]
  %v2462 = vld [vmem:[%s5 + $0x18] sm:$0xff]
  %v2463 = vld [vmem:[%s5 + $0x20] sm:$0xff]
  %v2464 = vld [vmem:[%s5 + $0x28] sm:$0xff]
  %v2465 = vld [vmem:[%s5 + $0x30] sm:$0xff]
  %v2466 = vld [vmem:[%s5 + $0x38] sm:$0xff]
  %v2467 = vld [vmem:[%s5 + $0x40] sm:$0xff]
  %v2468 = vld [vmem:[%s5 + $0x48] sm:$0xff]
  %v2469 = vld [vmem:[%s5 + $0x50] sm:$0xff]
  %v2470 = vld [vmem:[%s5 + $0x58] sm:$0xff]
  %v2471 = vld [vmem:[%s5 + $0x60] sm:$0xff]
  %v2472 = vld [vmem:[%s5 + $0x68] sm:$0xff]
  %v2473 = vld [vmem:[%s5 + $0x70] sm:$0xff]
  %v2474 = vld [vmem:[%s5 + $0x78] sm:$0xff]
  %v2475 = vld [vmem:[%s5 + $0x80] sm:$0xff]
  %v2476 = vld [vmem:[%s5 + $0x88] sm:$0xff]
  %v2477 = vld [vmem:[%s5 + $0x90] sm:$0xff]
  %v2478 = vld [vmem:[%s5 + $0x98] sm:$0xff]
  %v2479 = vld [vmem:[%s5 + $0xa0] sm:$0xff]
  %v2480 = vld [vmem:[%s5 + $0xa8] sm:$0xff]
  %v2481 = vld [vmem:[%s5 + $0xb0] sm:$0xff]
  %v2482 = vld [vmem:[%s5 + $0xb8] sm:$0xff]
  %v2483 = vld [vmem:[%s5 + $0xc0] sm:$0xff]
  %v2484 = vld [vmem:[%s5 + $0xc8] sm:$0xff]
  %v2485 = vld [vmem:[%s5 + $0xd0] sm:$0xff]
  %v2486 = vld [vmem:[%s5 + $0xd8] sm:$0xff]
  %v2487 = vld [vmem:[%s5 + $0xe0] sm:$0xff]
  %v2488 = vld [vmem:[%s5 + $0xe8] sm:$0xff]
  %v2489 = vld [vmem:[%s5 + $0xf0] sm:$0xff]
  %v2490 = vld [vmem:[%s5 + $0xf8] sm:$0xff]
  %v2491 = vld [vmem:[%s6] sm:$0x1]
  %v2493 = vlaneseq
  %v2494 = vshrl.u32 %v2493, 7
  %v2495 = vsub.s32 0, %v2494
  %v2496 = vrot.slane %v2491, %v2495
  %2498 = vmatprep.subr.mxu0 0.0
  %2499 = vmatpush1.msra.mxu0 %v2459
  %2500 = vmatprep.subr.mxu0 0.0
  %2501 = vmatpush1.msra.mxu0 %v2460
  %2502 = vmatprep.subr.mxu0 0.0
  %2503 = vmatpush1.msra.mxu0 %v2461
  %2504 = vmatprep.subr.mxu0 0.0
  %2505 = vmatpush1.msra.mxu0 %v2462
  %2506 = vmatprep.subr.mxu0 0.0
  %2507 = vmatpush1.msra.mxu0 %v2463
  %2508 = vmatprep.subr.mxu0 0.0
  %2509 = vmatpush1.msra.mxu0 %v2464
  %2510 = vmatprep.subr.mxu0 0.0
  %2511 = vmatpush1.msra.mxu0 %v2465
  %2512 = vmatprep.subr.mxu0 0.0
  %2513 = vmatpush1.msra.mxu0 %v2466
  %2514 = vmatprep.subr.mxu0 0.0
  %2515 = vmatpush1.msra.mxu0 %v2467
  %2516 = vmatprep.subr.mxu0 0.0
  %2517 = vmatpush1.msra.mxu0 %v2468
  %2518 = vmatprep.subr.mxu0 0.0
  %2519 = vmatpush1.msra.mxu0 %v2469
  %2520 = vmatprep.subr.mxu0 0.0
  %2521 = vmatpush1.msra.mxu0 %v2470
  %2522 = vmatprep.subr.mxu0 0.0
  %2523 = vmatpush1.msra.mxu0 %v2471
  %2524 = vmatprep.subr.mxu0 0.0
  %2525 = vmatpush1.msra.mxu0 %v2472
  %2526 = vmatprep.subr.mxu0 0.0
  %2527 = vmatpush1.msra.mxu0 %v2473
  %2528 = vmatprep.subr.mxu0 0.0
  %2529 = vmatpush1.msra.mxu0 %v2474
  %2530 = vmatprep.subr.mxu0 0.0
  %2531 = vmatpush1.msra.mxu0 %v2475
  %2532 = vmatprep.subr.mxu0 0.0
  %2533 = vmatpush1.msra.mxu0 %v2476
  %2534 = vmatprep.subr.mxu0 0.0
  %2535 = vmatpush1.msra.mxu0 %v2477
  %2536 = vmatprep.subr.mxu0 0.0
  %2537 = vmatpush1.msra.mxu0 %v2478
  %2538 = vmatprep.subr.mxu0 0.0
  %2539 = vmatpush1.msra.mxu0 %v2479
  %2540 = vmatprep.subr.mxu0 0.0
  %2541 = vmatpush1.msra.mxu0 %v2480
  %2542 = vmatprep.subr.mxu0 0.0
  %2543 = vmatpush1.msra.mxu0 %v2481
  %2544 = vmatprep.subr.mxu0 0.0
  %2545 = vmatpush1.msra.mxu0 %v2482
  %2546 = vmatprep.subr.mxu0 0.0
  %2547 = vmatpush1.msra.mxu0 %v2483
  %2548 = vmatprep.subr.mxu0 0.0
  %2549 = vmatpush1.msra.mxu0 %v2484
  %2550 = vmatprep.subr.mxu0 0.0
  %2551 = vmatpush1.msra.mxu0 %v2485
  %2552 = vmatprep.subr.mxu0 0.0
  %2553 = vmatpush1.msra.mxu0 %v2486
  %2554 = vmatprep.subr.mxu0 0.0
  %2555 = vmatpush1.msra.mxu0 %v2487
  %2556 = vmatprep.subr.mxu0 0.0
  %2557 = vmatpush1.msra.mxu0 %v2488
  %2558 = vmatprep.subr.mxu0 0.0
  %2559 = vmatpush1.msra.mxu0 %v2489
  %2560 = vmatprep.subr.mxu0 0.0
  %2561 = vmatpush1.msra.mxu0 %v2490
  %2562 = vmatprep.mubr.f32.mxu0 %v2458
  %2563 = vmatmul.mubr.f32.gmra.mrb[0].mxu0 %v2457
  %v2564 = vpop.f32.mrb[0].mxu0
  %v2565 = vadd.f32 %v2496, %v2564
  %v2566 = vpop.f32.mrb[0].mxu0
  %2567 = vdwg.mxu0
  %2568 = vst [vmem:[%s7] sm:$0x3] %v2565
  // Predicated region
  $region30: #{local_feature2_forward.5} parent=0 // pred_check
    _
  $region31: #{local_feature2_forward.5} parent=0 // pred_check_branch
    %2570 = sbr.rel (0) target = $region33
  $region32: #{local_feature2_forward.5} parent=0 // pred_region
    _
  $region33: #{local_feature2_forward.5} parent=0 // pred_fallthru
    _
  // Predicated region
  $region34: #{local_feature2_forward.5} parent=0 // pred_check
    _
  $region35: #{local_feature2_forward.5} parent=0 // pred_check_branch
    %2572 = sbr.rel (0) target = $region37
  $region36: #{local_feature2_forward.5} parent=0 // pred_region
    _
  $region37: #{local_feature2_forward.5} parent=0 // pred_fallthru
    _

// kernel: local_feature2_forward.6
$region0: #{local_feature2_forward.6}
  #allocation0 [shape = 'u32[]', space=smem, size = 0x4, offset = 0x4, fixed_abs, tag = 'smem constant byte address 0x4 - core index']
  #allocation1 [shape = 'u32[144,128]{1,0:T(1,128)}', space=vmem, size = 0x12000, scoped, tag = 'internal scratch']
  %s0 = inlined_call_operand.vmem [shape: f32[2,3,16], index: 0, kind: input, shape index: {}]
  %s1 = inlined_call_operand.vmem [shape: f32[2,64,3], index: 1, kind: input, shape index: {}]
  %s2 = inlined_call_operand.vmem [shape: f32[64,1], index: 2, kind: input, shape index: {}]
  %s3 = inlined_call_operand.vmem [shape: bf16[128,64], index: 3, kind: input, shape index: {}]
  %s4 = inlined_call_operand.vmem [shape: f32[128,1], index: 4, kind: input, shape index: {}]
  %s5 = inlined_call_operand.vmem [shape: bf16[1024,128], index: 5, kind: input, shape index: {}]
  %s6 = inlined_call_operand.vmem [shape: f32[1024,1], index: 6, kind: input, shape index: {}]
  %s7 = inlined_call_operand.vmem [shape: f32[2,1024,1], index: 7, kind: output, shape index: {}]
  %s8 = sld [smem:[#allocation0]]
  $region65: #{local_feature2_forward.6} parent=0
    _
  %s10 = ssub.s32 1, %s8
  %s11 = scalar_select 0, %s10, %s8
  loop: start=0, step=1, limit=6
  $region2: #{local_feature2_forward.6} parent=0 // loop_pre_header
    _
  $region3: #{local_feature2_forward.6} parent=0 // loop_header
    %s13 = sphi 0, %s17
    %p14 = scmp.ge.s32.totalorder %s13, 6
    %s20 = sphi 0, %s39
    %s21 = sphi 0, %s35
    %s22 = sphi 0, %s31
    %s23 = sphi 0, %s20
    %s24 = sphi 0, %s21
    %s25 = sphi 0, %s22
    %s26 = sphi 0, %s23
    %s27 = sphi 0, %s24
    %s28 = sphi 0, %s25
    %s44 = sphi 0, %s46
    %s47 = sphi 0, %s44
    %s48 = sphi 0, %s47
    %s64 = sphi 0, %s48
    %s70 = sphi 0, %s72
    %s73 = sphi 0, %s70
    %s74 = sphi 0, %s73
    %s90 = sphi 0, %s74
    %s94 = sphi 0, %s94
    %s96 = sphi 0, %s94
    %s97 = sphi 0, %s96
    %s111 = sphi 0, %s97
    %s115 = sphi 0, %s115
    %s117 = sphi 0, %s115
    %s118 = sphi 0, %s117
    %s132 = sphi 0, %s118
    %s136 = sphi 0, %s136
    %s138 = sphi 0, %s136
    %s139 = sphi 0, %s138
    %s153 = sphi 0, %s139
    %s159 = sphi 0, %s161
    %s162 = sphi 0, %s159
    %s163 = sphi 0, %s162
    %s179 = sphi 0, %s163
    %s185 = sphi 0, %s187
    %s188 = sphi 0, %s185
    %s189 = sphi 0, %s188
    %s205 = sphi 0, %s189
    %s213 = sphi 0, %s215
    %s216 = sphi 0, %s213
    %s217 = sphi 0, %s216
    %s233 = sphi 0, %s217
  $region4: #{local_feature2_forward.6} parent=0 // loop_header_branch
    %16 = sbr.rel (%p14) target = $region8
  $region5: #{local_feature2_forward.6} parent=0 // loop_body
    %s18 = ssub.s32 %s13, 1
    %s19 = ssub.s32 %s13, 2
    %s29 = sadd.s32 1, %s22
    %p30 = scmp.ge.s32.totalorder %s29, 1
    %s31 = scalar_select %p30, 0, %s29
    %s32 = sadd.s32 1, %s21
    %s33 = scalar_select %p30, %s32, %s21
    %p34 = scmp.ge.s32.totalorder %s33, 2
    %s35 = scalar_select %p34, 0, %s33
    %s36 = sadd.s32 1, %s20
    %s37 = scalar_select %p34, %s36, %s20
    %p38 = scmp.ge.s32.totalorder %s37, 2
    %s39 = scalar_select %p38, 0, %s37
    %s40 = ssub.s32 %s20, %s39
    %s41 = ssub.s32 %s22, %s31
    %s42 = sor.u32 %s40, %s41
    %p43 = scmp.eq.s32.totalorder %s42, 0
    %s45 = sadd.s32 %s44, 1
    %s46 = scalar_select %p43, %s44, %s45
    %p49 = pneg %p43
    %p50 = scmp.eq.s32.totalorder %s13, 3
    %p51 = por %p49, %p50
    %p52 = scmp.ne.s32.totalorder %s44, %s47
    %p53 = scmp.eq.s32.totalorder %s13, 0
    %p54 = por %p52, %p53
    %p55 = scmp.ne.s32.totalorder %s44, %s47
    %p56 = scmp.eq.s32.totalorder %s18, 3
    %p57 = por %p55, %p56
    %p58 = scmp.ne.s32.totalorder %s47, %s48
    %p59 = scmp.eq.s32.totalorder %s18, 0
    %p60 = por %p58, %p59
    %p61 = scmp.ne.s32.totalorder %s47, %s48
    %p62 = scmp.eq.s32.totalorder %s19, 3
    %p63 = por %p61, %p62
    %p65 = scmp.ne.s32.totalorder %s48, %s64
    %p66 = scmp.eq.s32.totalorder %s19, 0
    %p67 = por %p65, %p66
    %s68 = ssub.s32 %s20, %s39
    %p69 = scmp.eq.s32.totalorder %s68, 0
    %s71 = sadd.s32 %s70, 1
    %s72 = scalar_select %p69, %s70, %s71
    %p75 = pneg %p69
    %p76 = scmp.eq.s32.totalorder %s13, 3
    %p77 = por %p75, %p76
    %p78 = scmp.ne.s32.totalorder %s70, %s73
    %p79 = scmp.eq.s32.totalorder %s13, 0
    %p80 = por %p78, %p79
    %p81 = scmp.ne.s32.totalorder %s70, %s73
    %p82 = scmp.eq.s32.totalorder %s18, 3
    %p83 = por %p81, %p82
    %p84 = scmp.ne.s32.totalorder %s73, %s74
    %p85 = scmp.eq.s32.totalorder %s18, 0
    %p86 = por %p84, %p85
    %p87 = scmp.ne.s32.totalorder %s73, %s74
    %p88 = scmp.eq.s32.totalorder %s19, 3
    %p89 = por %p87, %p88
    %p91 = scmp.ne.s32.totalorder %s74, %s90
    %p92 = scmp.eq.s32.totalorder %s19, 0
    %p93 = por %p91, %p92
    %s95 = sadd.s32 %s94, 1
    %p98 = scmp.eq.s32.totalorder %s13, 3
    %p99 = scmp.ne.s32.totalorder %s94, %s96
    %p100 = scmp.eq.s32.totalorder %s13, 0
    %p101 = por %p99, %p100
    %p102 = scmp.ne.s32.totalorder %s94, %s96
    %p103 = scmp.eq.s32.totalorder %s18, 3
    %p104 = por %p102, %p103
    %p105 = scmp.ne.s32.totalorder %s96, %s97
    %p106 = scmp.eq.s32.totalorder %s18, 0
    %p107 = por %p105, %p106
    %p108 = scmp.ne.s32.totalorder %s96, %s97
    %p109 = scmp.eq.s32.totalorder %s19, 3
    %p110 = por %p108, %p109
    %p112 = scmp.ne.s32.totalorder %s97, %s111
    %p113 = scmp.eq.s32.totalorder %s19, 0
    %p114 = por %p112, %p113
    %s116 = sadd.s32 %s115, 1
    %p119 = scmp.eq.s32.totalorder %s13, 3
    %p120 = scmp.ne.s32.totalorder %s115, %s117
    %p121 = scmp.eq.s32.totalorder %s13, 0
    %p122 = por %p120, %p121
    %p123 = scmp.ne.s32.totalorder %s115, %s117
    %p124 = scmp.eq.s32.totalorder %s18, 3
    %p125 = por %p123, %p124
    %p126 = scmp.ne.s32.totalorder %s117, %s118
    %p127 = scmp.eq.s32.totalorder %s18, 0
    %p128 = por %p126, %p127
    %p129 = scmp.ne.s32.totalorder %s117, %s118
    %p130 = scmp.eq.s32.totalorder %s19, 3
    %p131 = por %p129, %p130
    %p133 = scmp.ne.s32.totalorder %s118, %s132
    %p134 = scmp.eq.s32.totalorder %s19, 0
    %p135 = por %p133, %p134
    %s137 = sadd.s32 %s136, 1
    %p140 = scmp.eq.s32.totalorder %s13, 3
    %p141 = scmp.ne.s32.totalorder %s136, %s138
    %p142 = scmp.eq.s32.totalorder %s13, 0
    %p143 = por %p141, %p142
    %p144 = scmp.ne.s32.totalorder %s136, %s138
    %p145 = scmp.eq.s32.totalorder %s18, 3
    %p146 = por %p144, %p145
    %p147 = scmp.ne.s32.totalorder %s138, %s139
    %p148 = scmp.eq.s32.totalorder %s18, 0
    %p149 = por %p147, %p148
    %p150 = scmp.ne.s32.totalorder %s138, %s139
    %p151 = scmp.eq.s32.totalorder %s19, 3
    %p152 = por %p150, %p151
    %p154 = scmp.ne.s32.totalorder %s139, %s153
    %p155 = scmp.eq.s32.totalorder %s19, 0
    %p156 = por %p154, %p155
    %s157 = ssub.s32 %s21, %s35
    %p158 = scmp.eq.s32.totalorder %s157, 0
    %s160 = sadd.s32 %s159, 1
    %s161 = scalar_select %p158, %s159, %s160
    %p164 = pneg %p158
    %p165 = scmp.eq.s32.totalorder %s13, 3
    %p166 = por %p164, %p165
    %p167 = scmp.ne.s32.totalorder %s159, %s162
    %p168 = scmp.eq.s32.totalorder %s13, 0
    %p169 = por %p167, %p168
    %p170 = scmp.ne.s32.totalorder %s159, %s162
    %p171 = scmp.eq.s32.totalorder %s18, 3
    %p172 = por %p170, %p171
    %p173 = scmp.ne.s32.totalorder %s162, %s163
    %p174 = scmp.eq.s32.totalorder %s18, 0
    %p175 = por %p173, %p174
    %p176 = scmp.ne.s32.totalorder %s162, %s163
    %p177 = scmp.eq.s32.totalorder %s19, 3
    %p178 = por %p176, %p177
    %p180 = scmp.ne.s32.totalorder %s163, %s179
    %p181 = scmp.eq.s32.totalorder %s19, 0
    %p182 = por %p180, %p181
    %s183 = ssub.s32 %s21, %s35
    %p184 = scmp.eq.s32.totalorder %s183, 0
    %s186 = sadd.s32 %s185, 1
    %s187 = scalar_select %p184, %s185, %s186
    %p190 = pneg %p184
    %p191 = scmp.eq.s32.totalorder %s13, 3
    %p192 = por %p190, %p191
    %p193 = scmp.ne.s32.totalorder %s185, %s188
    %p194 = scmp.eq.s32.totalorder %s13, 0
    %p195 = por %p193, %p194
    %p196 = scmp.ne.s32.totalorder %s185, %s188
    %p197 = scmp.eq.s32.totalorder %s18, 3
    %p198 = por %p196, %p197
    %p199 = scmp.ne.s32.totalorder %s188, %s189
    %p200 = scmp.eq.s32.totalorder %s18, 0
    %p201 = por %p199, %p200
    %p202 = scmp.ne.s32.totalorder %s188, %s189
    %p203 = scmp.eq.s32.totalorder %s19, 3
    %p204 = por %p202, %p203
    %p206 = scmp.ne.s32.totalorder %s189, %s205
    %p207 = scmp.eq.s32.totalorder %s19, 0
    %p208 = por %p206, %p207
    %s209 = ssub.s32 %s20, %s39
    %s210 = ssub.s32 %s21, %s35
    %s211 = sor.u32 %s209, %s210
    %p212 = scmp.eq.s32.totalorder %s211, 0
    %s214 = sadd.s32 %s213, 1
    %s215 = scalar_select %p212, %s213, %s214
    %p218 = pneg %p212
    %p219 = scmp.eq.s32.totalorder %s13, 3
    %p220 = por %p218, %p219
    %p221 = scmp.ne.s32.totalorder %s213, %s216
    %p222 = scmp.eq.s32.totalorder %s13, 0
    %p223 = por %p221, %p222
    %p224 = scmp.ne.s32.totalorder %s213, %s216
    %p225 = scmp.eq.s32.totalorder %s18, 3
    %p226 = por %p224, %p225
    %p227 = scmp.ne.s32.totalorder %s216, %s217
    %p228 = scmp.eq.s32.totalorder %s18, 0
    %p229 = por %p227, %p228
    %p230 = scmp.ne.s32.totalorder %s216, %s217
    %p231 = scmp.eq.s32.totalorder %s19, 3
    %p232 = por %p230, %p231
    %p234 = scmp.ne.s32.totalorder %s217, %s233
    %p235 = scmp.eq.s32.totalorder %s19, 0
    %p236 = por %p234, %p235
    %p237 = scmp.le.s32.totalorder 1, %s13
    %p238 = scmp.lt.s32.totalorder %s13, 5
    %p239 = pnand %p237, %p238
    %p240 = pneg %p239
    // Predicated region
    $region9: #{local_feature2_forward.6} parent=5 // pred_check
      _
    $region10: #{local_feature2_forward.6} parent=5 // pred_check_branch
      %242 = sbr.rel (%p239) target = $region12
    $region11: #{local_feature2_forward.6} parent=5 // pred_region
      %s243 = ssub.s32 %s13, 1
      // Predicated region
      $region13: #{local_feature2_forward.6} parent=11 // pred_check
        %p244 = pneg %p107
      $region14: #{local_feature2_forward.6} parent=11 // pred_check_branch
        %246 = sbr.rel (%p244) target = $region16
      $region15: #{local_feature2_forward.6} parent=11 // pred_region
        _
      $region16: #{local_feature2_forward.6} parent=11 // pred_fallthru
        _
      // Predicated region
      $region17: #{local_feature2_forward.6} parent=11 // pred_check
        %p247 = pneg %p128
      $region18: #{local_feature2_forward.6} parent=11 // pred_check_branch
        %249 = sbr.rel (%p247) target = $region20
      $region19: #{local_feature2_forward.6} parent=11 // pred_region
        _
      $region20: #{local_feature2_forward.6} parent=11 // pred_fallthru
        _
      // Predicated region
      $region21: #{local_feature2_forward.6} parent=11 // pred_check
        %p250 = pneg %p149
      $region22: #{local_feature2_forward.6} parent=11 // pred_check_branch
        %252 = sbr.rel (%p250) target = $region24
      $region23: #{local_feature2_forward.6} parent=11 // pred_region
        _
      $region24: #{local_feature2_forward.6} parent=11 // pred_fallthru
        _
    $region12: #{local_feature2_forward.6} parent=5 // pred_fallthru
      _
    %p253 = scmp.lt.s32.totalorder %s13, 4
    // Predicated region
    $region25: #{local_feature2_forward.6} parent=5 // pred_check
      %p254 = pneg %p253
    $region26: #{local_feature2_forward.6} parent=5 // pred_check_branch
      %256 = sbr.rel (%p254) target = $region28
    $region27: #{local_feature2_forward.6} parent=5 // pred_region
      // Predicated region
      $region29: #{local_feature2_forward.6} parent=27 // pred_check
        %p257 = pneg %p54
      $region30: #{local_feature2_forward.6} parent=27 // pred_check_branch
        %259 = sbr.rel (%p257) target = $region32
      $region31: #{local_feature2_forward.6} parent=27 // pred_region
        %p260 = scmp.lt.s32.totalorder %s20, 1
        %s261 = scalar_select %p260, %s20, 1
        %p262 = scmp.lt.s32.totalorder %s22, 0
        %s263 = scalar_select %p262, %s22, 0
        %s264 = sadd.s32 %s263, %s261
        %s265 = smul.addr %s264, 4
        %s266 = scalar_lea.vmem %s0, %s265
      $region32: #{local_feature2_forward.6} parent=27 // pred_fallthru
        _
      // Predicated region
      $region33: #{local_feature2_forward.6} parent=27 // pred_check
        %p267 = pneg %p80
      $region34: #{local_feature2_forward.6} parent=27 // pred_check_branch
        %269 = sbr.rel (%p267) target = $region36
      $region35: #{local_feature2_forward.6} parent=27 // pred_region
        %p270 = scmp.lt.s32.totalorder %s20, 1
        %s271 = scalar_select %p270, %s20, 1
        %s272 = smul.addr %s271, 8
        %s273 = smul.addr %s272, 8
        %s274 = scalar_lea.vmem %s1, %s273
      $region36: #{local_feature2_forward.6} parent=27 // pred_fallthru
        _
      // Predicated region
      $region37: #{local_feature2_forward.6} parent=27 // pred_check
        %p275 = pneg %p169
      $region38: #{local_feature2_forward.6} parent=27 // pred_check_branch
        %277 = sbr.rel (%p275) target = $region40
      $region39: #{local_feature2_forward.6} parent=27 // pred_region
        %s278 = smul.u32 64, %s21
        %p279 = scmp.lt.s32.totalorder %s278, 127
        %s280 = scalar_select %p279, %s278, 127
        %s281 = smul.addr %s280, 4
        %s282 = scalar_lea.vmem %s5, %s281
        %s283 = smul.u32 64, %s21
      $region40: #{local_feature2_forward.6} parent=27 // pred_fallthru
        _
      // Predicated region
      $region41: #{local_feature2_forward.6} parent=27 // pred_check
        %p284 = pneg %p195
      $region42: #{local_feature2_forward.6} parent=27 // pred_check_branch
        %286 = sbr.rel (%p284) target = $region44
      $region43: #{local_feature2_forward.6} parent=27 // pred_region
        %s287 = smul.u32 64, %s21
        %p288 = scmp.lt.s32.totalorder %s287, 127
        %s289 = scalar_select %p288, %s287, 127
        %s290 = smul.addr %s289, 8
        %s291 = scalar_lea.vmem %s6, %s290
        %s292 = smul.u32 64, %s21
      $region44: #{local_feature2_forward.6} parent=27 // pred_fallthru
        _
    $region28: #{local_feature2_forward.6} parent=5 // pred_fallthru
      _
    %p293 = scmp.le.s32.totalorder 1, %s13
    %p294 = scmp.lt.s32.totalorder %s13, 5
    %p295 = pnand %p293, %p294
    %p296 = pneg %p295
    // Predicated region
    $region45: #{local_feature2_forward.6} parent=5 // pred_check
      _
    $region46: #{local_feature2_forward.6} parent=5 // pred_check_branch
      %298 = sbr.rel (%p295) target = $region48
    $region47: #{local_feature2_forward.6} parent=5 // pred_region
      %s299 = ssub.s32 %s13, 1
      %p300 = scmp.lt.s32.totalorder %s23, 1
      %s301 = scalar_select %p300, %s23, 1
      %p302 = scmp.lt.s32.totalorder %s25, 0
      %s303 = scalar_select %p302, %s25, 0
      %s304 = sadd.s32 %s303, %s301
      %s305 = smul.addr %s304, 4
      %s306 = scalar_lea.vmem %s0, %s305
      %p307 = pneg %p60
      %p308 = pneg %p57
      %p309 = scmp.lt.s32.totalorder %s23, 1
      %s310 = scalar_select %p309, %s23, 1
      %s311 = smul.addr %s310, 8
      %s312 = smul.addr %s311, 8
      %s313 = scalar_lea.vmem %s1, %s312
      %p314 = pneg %p86
      %p315 = pneg %p83
      %p316 = pneg %p107
      %p317 = pneg %p104
      %p318 = pneg %p128
      %p319 = pneg %p125
      %p320 = pneg %p149
      %p321 = pneg %p146
      %s322 = smul.u32 64, %s24
      %p323 = scmp.lt.s32.totalorder %s322, 127
      %s324 = scalar_select %p323, %s322, 127
      %s325 = smul.addr %s324, 4
      %s326 = scalar_lea.vmem %s5, %s325
      %p327 = pneg %p175
      %p328 = pneg %p172
      %s329 = smul.u32 64, %s24
      %p330 = scmp.lt.s32.totalorder %s329, 127
      %s331 = scalar_select %p330, %s329, 127
      %s332 = smul.addr %s331, 8
      %s333 = scalar_lea.vmem %s6, %s332
      %p334 = pneg %p201
      %p335 = pneg %p198
      %p336 = pneg %p229
      %p337 = pneg %p226
      %s338 = smul.u32 64, %s24
      %p339 = scmp.lt.s32.totalorder %s23, 1
      %s340 = scalar_select %p339, %s23, 1
      %p341 = scmp.lt.s32.totalorder %s338, 127
      %s342 = scalar_select %p341, %s338, 127
      %s343 = smul.addr %s340, 128
      %s344 = sadd.s32 %s342, %s343
      %s345 = smul.addr %s344, 8
      %s346 = scalar_lea.vmem %s7, %s345
      %p347 = scmp.lt.s32.totalorder %s23, 1
      %s348 = scalar_select %p347, %s23, 1
      %p349 = scmp.lt.s32.totalorder %s25, 0
      %s350 = scalar_select %p349, %s25, 0
      %s351 = sadd.s32 %s350, %s348
      %s352 = smul.addr %s351, 4
      %s353 = scalar_lea.vmem %s0, %s352
      %p354 = scmp.lt.s32.totalorder %s23, 1
      %s355 = scalar_select %p354, %s23, 1
      %s356 = smul.addr %s355, 8
      %s357 = smul.addr %s356, 8
      %s358 = scalar_lea.vmem %s1, %s357
      %s359 = smul.u32 64, %s24
      %p360 = scmp.lt.s32.totalorder %s359, 127
      %s361 = scalar_select %p360, %s359, 127
      %s362 = smul.addr %s361, 4
      %s363 = scalar_lea.vmem %s5, %s362
      %s364 = smul.u32 64, %s24
      %s365 = smul.u32 64, %s24
      %p366 = scmp.lt.s32.totalorder %s365, 127
      %s367 = scalar_select %p366, %s365, 127
      %s368 = smul.addr %s367, 8
      %s369 = scalar_lea.vmem %s6, %s368
      %s370 = smul.u32 64, %s24
      %s371 = smul.u32 64, %s24
      %p372 = scmp.lt.s32.totalorder %s23, 1
      %s373 = scalar_select %p372, %s23, 1
      %p374 = scmp.lt.s32.totalorder %s371, 127
      %s375 = scalar_select %p374, %s371, 127
      %s376 = smul.addr %s373, 128
      %s377 = sadd.s32 %s375, %s376
      %s378 = smul.addr %s377, 8
      %s379 = scalar_lea.vmem %s7, %s378
      %s380 = smul.u32 64, %s24
      %p382 = scmp.eq.s32.totalorder %s25, 0
      // Predicated region
      $region49: #{local_feature2_forward.6} parent=47 // pred_check
        %p383 = pneg %p382
      $region50: #{local_feature2_forward.6} parent=47 // pred_check_branch
        %385 = sbr.rel (%p383) target = $region52
      $region51: #{local_feature2_forward.6} parent=47 // pred_region
        %vm386 = vcmask 7168
        %387 = vst.msk [vmem:[%s379] sm:$0xff] %vm386, -inf
        %388 = vst.msk [vmem:[%s379 + $0x8] sm:$0xff] %vm386, -inf
        %389 = vst.msk [vmem:[%s379 + $0x10] sm:$0xff] %vm386, -inf
        %390 = vst.msk [vmem:[%s379 + $0x18] sm:$0xff] %vm386, -inf
        %391 = vst.msk [vmem:[%s379 + $0x20] sm:$0xff] %vm386, -inf
        %392 = vst.msk [vmem:[%s379 + $0x28] sm:$0xff] %vm386, -inf
        %393 = vst.msk [vmem:[%s379 + $0x30] sm:$0xff] %vm386, -inf
        %394 = vst.msk [vmem:[%s379 + $0x38] sm:$0xff] %vm386, -inf
        %395 = vst.msk [vmem:[%s379 + $0x40] sm:$0xff] %vm386, -inf
        %396 = vst.msk [vmem:[%s379 + $0x48] sm:$0xff] %vm386, -inf
        %397 = vst.msk [vmem:[%s379 + $0x50] sm:$0xff] %vm386, -inf
        %398 = vst.msk [vmem:[%s379 + $0x58] sm:$0xff] %vm386, -inf
        %399 = vst.msk [vmem:[%s379 + $0x60] sm:$0xff] %vm386, -inf
        %400 = vst.msk [vmem:[%s379 + $0x68] sm:$0xff] %vm386, -inf
        %401 = vst.msk [vmem:[%s379 + $0x70] sm:$0xff] %vm386, -inf
        %402 = vst.msk [vmem:[%s379 + $0x78] sm:$0xff] %vm386, -inf
        %403 = vst.msk [vmem:[%s379 + $0x80] sm:$0xff] %vm386, -inf
        %404 = vst.msk [vmem:[%s379 + $0x88] sm:$0xff] %vm386, -inf
        %405 = vst.msk [vmem:[%s379 + $0x90] sm:$0xff] %vm386, -inf
        %406 = vst.msk [vmem:[%s379 + $0x98] sm:$0xff] %vm386, -inf
        %407 = vst.msk [vmem:[%s379 + $0xa0] sm:$0xff] %vm386, -inf
        %408 = vst.msk [vmem:[%s379 + $0xa8] sm:$0xff] %vm386, -inf
        %409 = vst.msk [vmem:[%s379 + $0xb0] sm:$0xff] %vm386, -inf
        %410 = vst.msk [vmem:[%s379 + $0xb8] sm:$0xff] %vm386, -inf
        %411 = vst.msk [vmem:[%s379 + $0xc0] sm:$0xff] %vm386, -inf
        %412 = vst.msk [vmem:[%s379 + $0xc8] sm:$0xff] %vm386, -inf
        %413 = vst.msk [vmem:[%s379 + $0xd0] sm:$0xff] %vm386, -inf
        %414 = vst.msk [vmem:[%s379 + $0xd8] sm:$0xff] %vm386, -inf
        %415 = vst.msk [vmem:[%s379 + $0xe0] sm:$0xff] %vm386, -inf
        %416 = vst.msk [vmem:[%s379 + $0xe8] sm:$0xff] %vm386, -inf
        %417 = vst.msk [vmem:[%s379 + $0xf0] sm:$0xff] %vm386, -inf
        %418 = vst.msk [vmem:[%s379 + $0xf8] sm:$0xff] %vm386, -inf
        %419 = vst.msk [vmem:[%s379 + $0x100] sm:$0xff] %vm386, -inf
        %420 = vst.msk [vmem:[%s379 + $0x108] sm:$0xff] %vm386, -inf
        %421 = vst.msk [vmem:[%s379 + $0x110] sm:$0xff] %vm386, -inf
        %422 = vst.msk [vmem:[%s379 + $0x118] sm:$0xff] %vm386, -inf
        %423 = vst.msk [vmem:[%s379 + $0x120] sm:$0xff] %vm386, -inf
        %424 = vst.msk [vmem:[%s379 + $0x128] sm:$0xff] %vm386, -inf
        %425 = vst.msk [vmem:[%s379 + $0x130] sm:$0xff] %vm386, -inf
        %426 = vst.msk [vmem:[%s379 + $0x138] sm:$0xff] %vm386, -inf
        %427 = vst.msk [vmem:[%s379 + $0x140] sm:$0xff] %vm386, -inf
        %428 = vst.msk [vmem:[%s379 + $0x148] sm:$0xff] %vm386, -inf
        %429 = vst.msk [vmem:[%s379 + $0x150] sm:$0xff] %vm386, -inf
        %430 = vst.msk [vmem:[%s379 + $0x158] sm:$0xff] %vm386, -inf
        %431 = vst.msk [vmem:[%s379 + $0x160] sm:$0xff] %vm386, -inf
        %432 = vst.msk [vmem:[%s379 + $0x168] sm:$0xff] %vm386, -inf
        %433 = vst.msk [vmem:[%s379 + $0x170] sm:$0xff] %vm386, -inf
        %434 = vst.msk [vmem:[%s379 + $0x178] sm:$0xff] %vm386, -inf
        %435 = vst.msk [vmem:[%s379 + $0x180] sm:$0xff] %vm386, -inf
        %436 = vst.msk [vmem:[%s379 + $0x188] sm:$0xff] %vm386, -inf
        %437 = vst.msk [vmem:[%s379 + $0x190] sm:$0xff] %vm386, -inf
        %438 = vst.msk [vmem:[%s379 + $0x198] sm:$0xff] %vm386, -inf
        %439 = vst.msk [vmem:[%s379 + $0x1a0] sm:$0xff] %vm386, -inf
        %440 = vst.msk [vmem:[%s379 + $0x1a8] sm:$0xff] %vm386, -inf
        %441 = vst.msk [vmem:[%s379 + $0x1b0] sm:$0xff] %vm386, -inf
        %442 = vst.msk [vmem:[%s379 + $0x1b8] sm:$0xff] %vm386, -inf
        %443 = vst.msk [vmem:[%s379 + $0x1c0] sm:$0xff] %vm386, -inf
        %444 = vst.msk [vmem:[%s379 + $0x1c8] sm:$0xff] %vm386, -inf
        %445 = vst.msk [vmem:[%s379 + $0x1d0] sm:$0xff] %vm386, -inf
        %446 = vst.msk [vmem:[%s379 + $0x1d8] sm:$0xff] %vm386, -inf
        %447 = vst.msk [vmem:[%s379 + $0x1e0] sm:$0xff] %vm386, -inf
        %448 = vst.msk [vmem:[%s379 + $0x1e8] sm:$0xff] %vm386, -inf
        %449 = vst.msk [vmem:[%s379 + $0x1f0] sm:$0xff] %vm386, -inf
        %450 = vst.msk [vmem:[%s379 + $0x1f8] sm:$0xff] %vm386, -inf
      $region52: #{local_feature2_forward.6} parent=47 // pred_fallthru
        _
      %v451 = vld [vmem:[%s353] sm:$0x7]
      %v452 = vld [vmem:[%s358] sm:$0xff]
      %v453 = vld [vmem:[%s358 + $0x8] sm:$0xff]
      %v454 = vld [vmem:[%s358 + $0x10] sm:$0xff]
      %v455 = vld [vmem:[%s358 + $0x18] sm:$0xff]
      %v456 = vld [vmem:[%s358 + $0x20] sm:$0xff]
      %v457 = vld [vmem:[%s358 + $0x28] sm:$0xff]
      %v458 = vld [vmem:[%s358 + $0x30] sm:$0xff]
      %v459 = vld [vmem:[%s358 + $0x38] sm:$0xff]
      %461 = vset.pattern.permute.xlu0 0
      %462 = vperm.xlu0 %461, %v452
      %v463 = vpop.permute.xlu0 %462
      %466 = vset.pattern.permute.xlu0 0
      %467 = vperm.xlu0 %466, %v453
      %v468 = vpop.permute.xlu0 %467
      %471 = vset.pattern.permute.xlu0 0
      %472 = vperm.xlu0 %471, %v454
      %v473 = vpop.permute.xlu0 %472
      %476 = vset.pattern.permute.xlu0 0
      %477 = vperm.xlu0 %476, %v455
      %v478 = vpop.permute.xlu0 %477
      %481 = vset.pattern.permute.xlu0 0
      %482 = vperm.xlu0 %481, %v456
      %v483 = vpop.permute.xlu0 %482
      %486 = vset.pattern.permute.xlu0 0
      %487 = vperm.xlu0 %486, %v457
      %v488 = vpop.permute.xlu0 %487
      %491 = vset.pattern.permute.xlu0 0
      %492 = vperm.xlu0 %491, %v458
      %v493 = vpop.permute.xlu0 %492
      %496 = vset.pattern.permute.xlu0 0
      %497 = vperm.xlu0 %496, %v459
      %v498 = vpop.permute.xlu0 %497
      %v500 = vlaneseq
      %v501 = vshrl.u32 %v500, 7
      %v502 = vsub.s32 0, %v501
      %v503 = vrot.slane %v451, %v502
      %v504 = vmul.f32 %v463, %v503
      %v505 = vmul.f32 %v468, %v503
      %v506 = vmul.f32 %v473, %v503
      %v507 = vmul.f32 %v478, %v503
      %v508 = vmul.f32 %v483, %v503
      %v509 = vmul.f32 %v488, %v503
      %v510 = vmul.f32 %v493, %v503
      %v511 = vmul.f32 %v498, %v503
      %512 = vset.pattern.permute.xlu0 1
      %513 = vperm.xlu0 %512, %v452
      %v514 = vpop.permute.xlu0 %513
      %516 = vset.pattern.permute.xlu0 1
      %517 = vperm.xlu0 %516, %v453
      %v518 = vpop.permute.xlu0 %517
      %520 = vset.pattern.permute.xlu0 1
      %521 = vperm.xlu0 %520, %v454
      %v522 = vpop.permute.xlu0 %521
      %524 = vset.pattern.permute.xlu0 1
      %525 = vperm.xlu0 %524, %v455
      %v526 = vpop.permute.xlu0 %525
      %528 = vset.pattern.permute.xlu0 1
      %529 = vperm.xlu0 %528, %v456
      %v530 = vpop.permute.xlu0 %529
      %532 = vset.pattern.permute.xlu0 1
      %533 = vperm.xlu0 %532, %v457
      %v534 = vpop.permute.xlu0 %533
      %536 = vset.pattern.permute.xlu0 1
      %537 = vperm.xlu0 %536, %v458
      %v538 = vpop.permute.xlu0 %537
      %540 = vset.pattern.permute.xlu0 1
      %541 = vperm.xlu0 %540, %v459
      %v542 = vpop.permute.xlu0 %541
      %v544 = vlaneseq
      %v545 = vshrl.u32 %v544, 7
      %v546 = vsub.s32 1, %v545
      %v547 = vrot.slane %v451, %v546
      %v548 = vmul.f32 %v514, %v547
      %v549 = vmul.f32 %v518, %v547
      %v550 = vmul.f32 %v522, %v547
      %v551 = vmul.f32 %v526, %v547
      %v552 = vmul.f32 %v530, %v547
      %v553 = vmul.f32 %v534, %v547
      %v554 = vmul.f32 %v538, %v547
      %v555 = vmul.f32 %v542, %v547
      %v556 = vadd.f32 %v504, %v548
      %v557 = vadd.f32 %v505, %v549
      %v558 = vadd.f32 %v506, %v550
      %v559 = vadd.f32 %v507, %v551
      %v560 = vadd.f32 %v508, %v552
      %v561 = vadd.f32 %v509, %v553
      %v562 = vadd.f32 %v510, %v554
      %v563 = vadd.f32 %v511, %v555
      %564 = vset.pattern.permute.xlu0 2
      %565 = vperm.xlu0 %564, %v452
      %v566 = vpop.permute.xlu0 %565
      %568 = vset.pattern.permute.xlu0 2
      %569 = vperm.xlu0 %568, %v453
      %v570 = vpop.permute.xlu0 %569
      %572 = vset.pattern.permute.xlu0 2
      %573 = vperm.xlu0 %572, %v454
      %v574 = vpop.permute.xlu0 %573
      %576 = vset.pattern.permute.xlu0 2
      %577 = vperm.xlu0 %576, %v455
      %v578 = vpop.permute.xlu0 %577
      %580 = vset.pattern.permute.xlu0 2
      %581 = vperm.xlu0 %580, %v456
      %v582 = vpop.permute.xlu0 %581
      %584 = vset.pattern.permute.xlu0 2
      %585 = vperm.xlu0 %584, %v457
      %v586 = vpop.permute.xlu0 %585
      %588 = vset.pattern.permute.xlu0 2
      %589 = vperm.xlu0 %588, %v458
      %v590 = vpop.permute.xlu0 %589
      %592 = vset.pattern.permute.xlu0 2
      %593 = vperm.xlu0 %592, %v459
      %v594 = vpop.permute.xlu0 %593
      %v596 = vlaneseq
      %v597 = vshrl.u32 %v596, 7
      %v598 = vsub.s32 2, %v597
      %v599 = vrot.slane %v451, %v598
      %v600 = vmul.f32 %v566, %v599
      %v601 = vmul.f32 %v570, %v599
      %v602 = vmul.f32 %v574, %v599
      %v603 = vmul.f32 %v578, %v599
      %v604 = vmul.f32 %v582, %v599
      %v605 = vmul.f32 %v586, %v599
      %v606 = vmul.f32 %v590, %v599
      %v607 = vmul.f32 %v594, %v599
      %v608 = vadd.f32 %v556, %v600
      %v609 = vadd.f32 %v557, %v601
      %v610 = vadd.f32 %v558, %v602
      %v611 = vadd.f32 %v559, %v603
      %v612 = vadd.f32 %v560, %v604
      %v613 = vadd.f32 %v561, %v605
      %v614 = vadd.f32 %v562, %v606
      %v615 = vadd.f32 %v563, %v607
      %v616 = vld [vmem:[%s2] sm:$0xff]
      %v617 = vld [vmem:[%s2 + $0x8] sm:$0xff]
      %v618 = vld [vmem:[%s2 + $0x10] sm:$0xff]
      %v619 = vld [vmem:[%s2 + $0x18] sm:$0xff]
      %v620 = vld [vmem:[%s2 + $0x20] sm:$0xff]
      %v621 = vld [vmem:[%s2 + $0x28] sm:$0xff]
      %v622 = vld [vmem:[%s2 + $0x30] sm:$0xff]
      %v623 = vld [vmem:[%s2 + $0x38] sm:$0xff]
      %625 = vset.pattern.permute.xlu0 0
      %626 = vperm.xlu0 %625, %v616
      %v627 = vpop.permute.xlu0 %626
      %630 = vset.pattern.permute.xlu0 0
      %631 = vperm.xlu0 %630, %v617
      %v632 = vpop.permute.xlu0 %631
      %635 = vset.pattern.permute.xlu0 0
      %636 = vperm.xlu0 %635, %v618
      %v637 = vpop.permute.xlu0 %636
      %640 = vset.pattern.permute.xlu0 0
      %641 = vperm.xlu0 %640, %v619
      %v642 = vpop.permute.xlu0 %641
      %645 = vset.pattern.permute.xlu0 0
      %646 = vperm.xlu0 %645, %v620
      %v647 = vpop.permute.xlu0 %646
      %650 = vset.pattern.permute.xlu0 0
      %651 = vperm.xlu0 %650, %v621
      %v652 = vpop.permute.xlu0 %651
      %655 = vset.pattern.permute.xlu0 0
      %656 = vperm.xlu0 %655, %v622
      %v657 = vpop.permute.xlu0 %656
      %660 = vset.pattern.permute.xlu0 0
      %661 = vperm.xlu0 %660, %v623
      %v662 = vpop.permute.xlu0 %661
      %v664 = vadd.f32 %v608, %v627
      %v665 = vadd.f32 %v609, %v632
      %v666 = vadd.f32 %v610, %v637
      %v667 = vadd.f32 %v611, %v642
      %v668 = vadd.f32 %v612, %v647
      %v669 = vadd.f32 %v613, %v652
      %v670 = vadd.f32 %v614, %v657
      %v671 = vadd.f32 %v615, %v662
      %v672 = vmax.f32 %v664, 0.0
      %v673 = vmax.f32 %v665, 0.0
      %v674 = vmax.f32 %v666, 0.0
      %v675 = vmax.f32 %v667, 0.0
      %v676 = vmax.f32 %v668, 0.0
      %v677 = vmax.f32 %v669, 0.0
      %v678 = vmax.f32 %v670, 0.0
      %v679 = vmax.f32 %v671, 0.0
      %v680 = vld [vmem:[%s3] sm:$0xf]
      %v681 = vld [vmem:[%s3 + $0x4] sm:$0xf]
      %v682 = vld [vmem:[%s3 + $0x8] sm:$0xf]
      %v683 = vld [vmem:[%s3 + $0xc] sm:$0xf]
      %v684 = vld [vmem:[%s3 + $0x10] sm:$0xf]
      %v685 = vld [vmem:[%s3 + $0x14] sm:$0xf]
      %v686 = vld [vmem:[%s3 + $0x18] sm:$0xf]
      %v687 = vld [vmem:[%s3 + $0x1c] sm:$0xf]
      %v688 = vld [vmem:[%s3 + $0x20] sm:$0xf]
      %v689 = vld [vmem:[%s3 + $0x24] sm:$0xf]
      %v690 = vld [vmem:[%s3 + $0x28] sm:$0xf]
      %v691 = vld [vmem:[%s3 + $0x2c] sm:$0xf]
      %v692 = vld [vmem:[%s3 + $0x30] sm:$0xf]
      %v693 = vld [vmem:[%s3 + $0x34] sm:$0xf]
      %v694 = vld [vmem:[%s3 + $0x38] sm:$0xf]
      %v695 = vld [vmem:[%s3 + $0x3c] sm:$0xf]
      %v696 = vpack.c.bf16 %v673, %v672
      %v697 = vpack.c.bf16 %v675, %v674
      %v698 = vpack.c.bf16 %v677, %v676
      %v699 = vpack.c.bf16 %v679, %v678
      %v700 = vld [vmem:[%s4] sm:$0xff]
      %v701 = vld [vmem:[%s4 + $0x8] sm:$0xff]
      %v702 = vld [vmem:[%s4 + $0x10] sm:$0xff]
      %v703 = vld [vmem:[%s4 + $0x18] sm:$0xff]
      %v704 = vld [vmem:[%s4 + $0x20] sm:$0xff]
      %v705 = vld [vmem:[%s4 + $0x28] sm:$0xff]
      %v706 = vld [vmem:[%s4 + $0x30] sm:$0xff]
      %v707 = vld [vmem:[%s4 + $0x38] sm:$0xff]
      %v708 = vld [vmem:[%s4 + $0x40] sm:$0xff]
      %v709 = vld [vmem:[%s4 + $0x48] sm:$0xff]
      %v710 = vld [vmem:[%s4 + $0x50] sm:$0xff]
      %v711 = vld [vmem:[%s4 + $0x58] sm:$0xff]
      %v712 = vld [vmem:[%s4 + $0x60] sm:$0xff]
      %v713 = vld [vmem:[%s4 + $0x68] sm:$0xff]
      %v714 = vld [vmem:[%s4 + $0x70] sm:$0xff]
      %v715 = vld [vmem:[%s4 + $0x78] sm:$0xff]
      %717 = vset.pattern.permute.xlu0 0
      %718 = vperm.xlu0 %717, %v700
      %v719 = vpop.permute.xlu0 %718
      %722 = vset.pattern.permute.xlu0 0
      %723 = vperm.xlu0 %722, %v701
      %v724 = vpop.permute.xlu0 %723
      %727 = vset.pattern.permute.xlu0 0
      %728 = vperm.xlu0 %727, %v702
      %v729 = vpop.permute.xlu0 %728
      %732 = vset.pattern.permute.xlu0 0
      %733 = vperm.xlu0 %732, %v703
      %v734 = vpop.permute.xlu0 %733
      %737 = vset.pattern.permute.xlu0 0
      %738 = vperm.xlu0 %737, %v704
      %v739 = vpop.permute.xlu0 %738
      %742 = vset.pattern.permute.xlu0 0
      %743 = vperm.xlu0 %742, %v705
      %v744 = vpop.permute.xlu0 %743
      %747 = vset.pattern.permute.xlu0 0
      %748 = vperm.xlu0 %747, %v706
      %v749 = vpop.permute.xlu0 %748
      %752 = vset.pattern.permute.xlu0 0
      %753 = vperm.xlu0 %752, %v707
      %v754 = vpop.permute.xlu0 %753
      %757 = vset.pattern.permute.xlu0 0
      %758 = vperm.xlu0 %757, %v708
      %v759 = vpop.permute.xlu0 %758
      %762 = vset.pattern.permute.xlu0 0
      %763 = vperm.xlu0 %762, %v709
      %v764 = vpop.permute.xlu0 %763
      %767 = vset.pattern.permute.xlu0 0
      %768 = vperm.xlu0 %767, %v710
      %v769 = vpop.permute.xlu0 %768
      %772 = vset.pattern.permute.xlu0 0
      %773 = vperm.xlu0 %772, %v711
      %v774 = vpop.permute.xlu0 %773
      %777 = vset.pattern.permute.xlu0 0
      %778 = vperm.xlu0 %777, %v712
      %v779 = vpop.permute.xlu0 %778
      %782 = vset.pattern.permute.xlu0 0
      %783 = vperm.xlu0 %782, %v713
      %v784 = vpop.permute.xlu0 %783
      %787 = vset.pattern.permute.xlu0 0
      %788 = vperm.xlu0 %787, %v714
      %v789 = vpop.permute.xlu0 %788
      %792 = vset.pattern.permute.xlu0 0
      %793 = vperm.xlu0 %792, %v715
      %v794 = vpop.permute.xlu0 %793
      %v812 = vunpack.c.l.b16 %v680
      %v813 = vunpack.c.l.b16 %v681
      %v814 = vunpack.c.l.b16 %v682
      %v815 = vunpack.c.l.b16 %v683
      %v816 = vunpack.c.l.b16 %v684
      %v817 = vunpack.c.l.b16 %v685
      %v818 = vunpack.c.l.b16 %v686
      %v819 = vunpack.c.l.b16 %v687
      %v820 = vunpack.c.l.b16 %v688
      %v821 = vunpack.c.l.b16 %v689
      %v822 = vunpack.c.l.b16 %v690
      %v823 = vunpack.c.l.b16 %v691
      %v824 = vunpack.c.l.b16 %v692
      %v825 = vunpack.c.l.b16 %v693
      %v826 = vunpack.c.l.b16 %v694
      %v827 = vunpack.c.l.b16 %v695
      %v828 = vpack.c.b16 %v813, %v812
      %v829 = vpack.c.b16 %v815, %v814
      %v830 = vpack.c.b16 %v817, %v816
      %v831 = vpack.c.b16 %v819, %v818
      %v832 = vpack.c.b16 %v821, %v820
      %v833 = vpack.c.b16 %v823, %v822
      %v834 = vpack.c.b16 %v825, %v824
      %v835 = vpack.c.b16 %v827, %v826
      %vm836 = vcmask 523264
      %v838 = vsel %vm836, %v828, 0
      %v841 = vsel %vm836, %v829, 0
      %v844 = vsel %vm836, %v830, 0
      %v847 = vsel %vm836, %v831, 0
      %v850 = vsel %vm836, %v832, 0
      %v853 = vsel %vm836, %v833, 0
      %v856 = vsel %vm836, %v834, 0
      %v859 = vsel %vm836, %v835, 0
      %861 = vmatprep.subr.bf16.mxu0 0
      %862 = vmatpush1.bf16.msra.mxu0 %v696
      %863 = vmatprep.subr.bf16.mxu0 0
      %864 = vmatpush1.bf16.msra.mxu0 %v697
      %865 = vmatprep.subr.bf16.mxu0 0
      %866 = vmatpush1.bf16.msra.mxu0 %v698
      %867 = vmatprep.subr.bf16.mxu0 0
      %868 = vmatpush1.bf16.msra.mxu0 %v699
      %869 = vmatprep.subr.bf16.mxu0 0
      %870 = vmatpush1.bf16.msra.mxu0 0
      %871 = vmatprep.subr.bf16.mxu0 0
      %872 = vmatpush1.bf16.msra.mxu0 0
      %873 = vmatprep.subr.bf16.mxu0 0
      %874 = vmatpush1.bf16.msra.mxu0 0
      %875 = vmatprep.subr.bf16.mxu0 0
      %876 = vmatpush1.bf16.msra.mxu0 0
      %877 = vmatprep.subr.bf16.mxu0 0
      %878 = vmatpush1.bf16.msra.mxu0 0
      %879 = vmatprep.subr.bf16.mxu0 0
      %880 = vmatpush1.bf16.msra.mxu0 0
      %881 = vmatprep.subr.bf16.mxu0 0
      %882 = vmatpush1.bf16.msra.mxu0 0
      %883 = vmatprep.subr.bf16.mxu0 0
      %884 = vmatpush1.bf16.msra.mxu0 0
      %885 = vmatprep.subr.bf16.mxu0 0
      %886 = vmatpush1.bf16.msra.mxu0 0
      %887 = vmatprep.subr.bf16.mxu0 0
      %888 = vmatpush1.bf16.msra.mxu0 0
      %889 = vmatprep.subr.bf16.mxu0 0
      %890 = vmatpush1.bf16.msra.mxu0 0
      %891 = vmatprep.subr.bf16.mxu0 0
      %892 = vmatpush1.bf16.msra.mxu0 0
      %893 = vmatprep.mubr.bf16.mxu0 0
      %894 = vmatmul.mubr.bf16.gmra.mrb[0].mxu0 %v838
      %v895 = vpop.f32.mrb[0].mxu0
      %v896 = vadd.f32 %v719, %v895
      %v897 = vpop.f32.mrb[0].mxu0
      %v898 = vpop.f32.mrb[0].mxu0
      %v899 = vadd.f32 %v724, %v898
      %v900 = vpop.f32.mrb[0].mxu0
      %901 = vmatprep.mubr.bf16.mxu0 0
      %902 = vmatmul.mubr.bf16.gmra.mrb[0].mxu0 %v841
      %v903 = vpop.f32.mrb[0].mxu0
      %v904 = vadd.f32 %v729, %v903
      %v905 = vpop.f32.mrb[0].mxu0
      %v906 = vpop.f32.mrb[0].mxu0
      %v907 = vadd.f32 %v734, %v906
      %v908 = vpop.f32.mrb[0].mxu0
      %909 = vmatprep.mubr.bf16.mxu0 0
      %910 = vmatmul.mubr.bf16.gmra.mrb[0].mxu0 %v844
      %v911 = vpop.f32.mrb[0].mxu0
      %v912 = vadd.f32 %v739, %v911
      %v913 = vpop.f32.mrb[0].mxu0
      %v914 = vpop.f32.mrb[0].mxu0
      %v915 = vadd.f32 %v744, %v914
      %v916 = vpop.f32.mrb[0].mxu0
      %917 = vmatprep.mubr.bf16.mxu0 0
      %918 = vmatmul.mubr.bf16.gmra.mrb[0].mxu0 %v847
      %v919 = vpop.f32.mrb[0].mxu0
      %v920 = vadd.f32 %v749, %v919
      %v921 = vpop.f32.mrb[0].mxu0
      %v922 = vpop.f32.mrb[0].mxu0
      %v923 = vadd.f32 %v754, %v922
      %v924 = vpop.f32.mrb[0].mxu0
      %925 = vmatprep.mubr.bf16.mxu0 0
      %926 = vmatmul.mubr.bf16.gmra.mrb[0].mxu0 %v850
      %v927 = vpop.f32.mrb[0].mxu0
      %v928 = vadd.f32 %v759, %v927
      %v929 = vpop.f32.mrb[0].mxu0
      %v930 = vpop.f32.mrb[0].mxu0
      %v931 = vadd.f32 %v764, %v930
      %v932 = vpop.f32.mrb[0].mxu0
      %933 = vmatprep.mubr.bf16.mxu0 0
      %934 = vmatmul.mubr.bf16.gmra.mrb[0].mxu0 %v853
      %v935 = vpop.f32.mrb[0].mxu0
      %v936 = vadd.f32 %v769, %v935
      %v937 = vpop.f32.mrb[0].mxu0
      %v938 = vpop.f32.mrb[0].mxu0
      %v939 = vadd.f32 %v774, %v938
      %v940 = vpop.f32.mrb[0].mxu0
      %941 = vmatprep.mubr.bf16.mxu0 0
      %942 = vmatmul.mubr.bf16.gmra.mrb[0].mxu0 %v856
      %v943 = vpop.f32.mrb[0].mxu0
      %v944 = vadd.f32 %v779, %v943
      %v945 = vpop.f32.mrb[0].mxu0
      %v946 = vpop.f32.mrb[0].mxu0
      %v947 = vadd.f32 %v784, %v946
      %v948 = vpop.f32.mrb[0].mxu0
      %949 = vmatprep.mubr.bf16.mxu0 0
      %950 = vmatmul.mubr.bf16.gmra.mrb[0].mxu0 %v859
      %v951 = vpop.f32.mrb[0].mxu0
      %v952 = vadd.f32 %v789, %v951
      %v953 = vpop.f32.mrb[0].mxu0
      %v954 = vpop.f32.mrb[0].mxu0
      %v955 = vadd.f32 %v794, %v954
      %v956 = vpop.f32.mrb[0].mxu0
      %957 = vdwg.mxu0
      %v958 = vmax.f32 %v896, 0.0
      %v959 = vmax.f32 %v899, 0.0
      %v960 = vmax.f32 %v904, 0.0
      %v961 = vmax.f32 %v907, 0.0
      %v962 = vmax.f32 %v912, 0.0
      %v963 = vmax.f32 %v915, 0.0
      %v964 = vmax.f32 %v920, 0.0
      %v965 = vmax.f32 %v923, 0.0
      %v966 = vmax.f32 %v928, 0.0
      %v967 = vmax.f32 %v931, 0.0
      %v968 = vmax.f32 %v936, 0.0
      %v969 = vmax.f32 %v939, 0.0
      %v970 = vmax.f32 %v944, 0.0
      %v971 = vmax.f32 %v947, 0.0
      %v972 = vmax.f32 %v952, 0.0
      %v973 = vmax.f32 %v955, 0.0
      %v974 = vld [vmem:[%s363] sm:$0xf]
      %v975 = vld [vmem:[%s363 + $0x4] sm:$0xf]
      %v976 = vld [vmem:[%s363 + $0x8] sm:$0xf]
      %v977 = vld [vmem:[%s363 + $0xc] sm:$0xf]
      %v978 = vld [vmem:[%s363 + $0x10] sm:$0xf]
      %v979 = vld [vmem:[%s363 + $0x14] sm:$0xf]
      %v980 = vld [vmem:[%s363 + $0x18] sm:$0xf]
      %v981 = vld [vmem:[%s363 + $0x1c] sm:$0xf]
      %v982 = vld [vmem:[%s363 + $0x20] sm:$0xf]
      %v983 = vld [vmem:[%s363 + $0x24] sm:$0xf]
      %v984 = vld [vmem:[%s363 + $0x28] sm:$0xf]
      %v985 = vld [vmem:[%s363 + $0x2c] sm:$0xf]
      %v986 = vld [vmem:[%s363 + $0x30] sm:$0xf]
      %v987 = vld [vmem:[%s363 + $0x34] sm:$0xf]
      %v988 = vld [vmem:[%s363 + $0x38] sm:$0xf]
      %v989 = vld [vmem:[%s363 + $0x3c] sm:$0xf]
      %v990 = vld [vmem:[%s363 + $0x40] sm:$0xf]
      %v991 = vld [vmem:[%s363 + $0x44] sm:$0xf]
      %v992 = vld [vmem:[%s363 + $0x48] sm:$0xf]
      %v993 = vld [vmem:[%s363 + $0x4c] sm:$0xf]
      %v994 = vld [vmem:[%s363 + $0x50] sm:$0xf]
      %v995 = vld [vmem:[%s363 + $0x54] sm:$0xf]
      %v996 = vld [vmem:[%s363 + $0x58] sm:$0xf]
      %v997 = vld [vmem:[%s363 + $0x5c] sm:$0xf]
      %v998 = vld [vmem:[%s363 + $0x60] sm:$0xf]
      %v999 = vld [vmem:[%s363 + $0x64] sm:$0xf]
      %v1000 = vld [vmem:[%s363 + $0x68] sm:$0xf]
      %v1001 = vld [vmem:[%s363 + $0x6c] sm:$0xf]
      %v1002 = vld [vmem:[%s363 + $0x70] sm:$0xf]
      %v1003 = vld [vmem:[%s363 + $0x74] sm:$0xf]
      %v1004 = vld [vmem:[%s363 + $0x78] sm:$0xf]
      %v1005 = vld [vmem:[%s363 + $0x7c] sm:$0xf]
      %v1006 = vld [vmem:[%s363 + $0x80] sm:$0xf]
      %v1007 = vld [vmem:[%s363 + $0x84] sm:$0xf]
      %v1008 = vld [vmem:[%s363 + $0x88] sm:$0xf]
      %v1009 = vld [vmem:[%s363 + $0x8c] sm:$0xf]
      %v1010 = vld [vmem:[%s363 + $0x90] sm:$0xf]
      %v1011 = vld [vmem:[%s363 + $0x94] sm:$0xf]
      %v1012 = vld [vmem:[%s363 + $0x98] sm:$0xf]
      %v1013 = vld [vmem:[%s363 + $0x9c] sm:$0xf]
      %v1014 = vld [vmem:[%s363 + $0xa0] sm:$0xf]
      %v1015 = vld [vmem:[%s363 + $0xa4] sm:$0xf]
      %v1016 = vld [vmem:[%s363 + $0xa8] sm:$0xf]
      %v1017 = vld [vmem:[%s363 + $0xac] sm:$0xf]
      %v1018 = vld [vmem:[%s363 + $0xb0] sm:$0xf]
      %v1019 = vld [vmem:[%s363 + $0xb4] sm:$0xf]
      %v1020 = vld [vmem:[%s363 + $0xb8] sm:$0xf]
      %v1021 = vld [vmem:[%s363 + $0xbc] sm:$0xf]
      %v1022 = vld [vmem:[%s363 + $0xc0] sm:$0xf]
      %v1023 = vld [vmem:[%s363 + $0xc4] sm:$0xf]
      %v1024 = vld [vmem:[%s363 + $0xc8] sm:$0xf]
      %v1025 = vld [vmem:[%s363 + $0xcc] sm:$0xf]
      %v1026 = vld [vmem:[%s363 + $0xd0] sm:$0xf]
      %v1027 = vld [vmem:[%s363 + $0xd4] sm:$0xf]
      %v1028 = vld [vmem:[%s363 + $0xd8] sm:$0xf]
      %v1029 = vld [vmem:[%s363 + $0xdc] sm:$0xf]
      %v1030 = vld [vmem:[%s363 + $0xe0] sm:$0xf]
      %v1031 = vld [vmem:[%s363 + $0xe4] sm:$0xf]
      %v1032 = vld [vmem:[%s363 + $0xe8] sm:$0xf]
      %v1033 = vld [vmem:[%s363 + $0xec] sm:$0xf]
      %v1034 = vld [vmem:[%s363 + $0xf0] sm:$0xf]
      %v1035 = vld [vmem:[%s363 + $0xf4] sm:$0xf]
      %v1036 = vld [vmem:[%s363 + $0xf8] sm:$0xf]
      %v1037 = vld [vmem:[%s363 + $0xfc] sm:$0xf]
      %v1038 = vpack.c.bf16 %v959, %v958
      %v1039 = vpack.c.bf16 %v961, %v960
      %v1040 = vpack.c.bf16 %v963, %v962
      %v1041 = vpack.c.bf16 %v965, %v964
      %v1042 = vpack.c.bf16 %v967, %v966
      %v1043 = vpack.c.bf16 %v969, %v968
      %v1044 = vpack.c.bf16 %v971, %v970
      %v1045 = vpack.c.bf16 %v973, %v972
      %v1046 = vld [vmem:[%s369] sm:$0xff]
      %v1047 = vld [vmem:[%s369 + $0x8] sm:$0xff]
      %v1048 = vld [vmem:[%s369 + $0x10] sm:$0xff]
      %v1049 = vld [vmem:[%s369 + $0x18] sm:$0xff]
      %v1050 = vld [vmem:[%s369 + $0x20] sm:$0xff]
      %v1051 = vld [vmem:[%s369 + $0x28] sm:$0xff]
      %v1052 = vld [vmem:[%s369 + $0x30] sm:$0xff]
      %v1053 = vld [vmem:[%s369 + $0x38] sm:$0xff]
      %v1054 = vld [vmem:[%s369 + $0x40] sm:$0xff]
      %v1055 = vld [vmem:[%s369 + $0x48] sm:$0xff]
      %v1056 = vld [vmem:[%s369 + $0x50] sm:$0xff]
      %v1057 = vld [vmem:[%s369 + $0x58] sm:$0xff]
      %v1058 = vld [vmem:[%s369 + $0x60] sm:$0xff]
      %v1059 = vld [vmem:[%s369 + $0x68] sm:$0xff]
      %v1060 = vld [vmem:[%s369 + $0x70] sm:$0xff]
      %v1061 = vld [vmem:[%s369 + $0x78] sm:$0xff]
      %v1062 = vld [vmem:[%s369 + $0x80] sm:$0xff]
      %v1063 = vld [vmem:[%s369 + $0x88] sm:$0xff]
      %v1064 = vld [vmem:[%s369 + $0x90] sm:$0xff]
      %v1065 = vld [vmem:[%s369 + $0x98] sm:$0xff]
      %v1066 = vld [vmem:[%s369 + $0xa0] sm:$0xff]
      %v1067 = vld [vmem:[%s369 + $0xa8] sm:$0xff]
      %v1068 = vld [vmem:[%s369 + $0xb0] sm:$0xff]
      %v1069 = vld [vmem:[%s369 + $0xb8] sm:$0xff]
      %v1070 = vld [vmem:[%s369 + $0xc0] sm:$0xff]
      %v1071 = vld [vmem:[%s369 + $0xc8] sm:$0xff]
      %v1072 = vld [vmem:[%s369 + $0xd0] sm:$0xff]
      %v1073 = vld [vmem:[%s369 + $0xd8] sm:$0xff]
      %v1074 = vld [vmem:[%s369 + $0xe0] sm:$0xff]
      %v1075 = vld [vmem:[%s369 + $0xe8] sm:$0xff]
      %v1076 = vld [vmem:[%s369 + $0xf0] sm:$0xff]
      %v1077 = vld [vmem:[%s369 + $0xf8] sm:$0xff]
      %v1078 = vld [vmem:[%s369 + $0x100] sm:$0xff]
      %v1079 = vld [vmem:[%s369 + $0x108] sm:$0xff]
      %v1080 = vld [vmem:[%s369 + $0x110] sm:$0xff]
      %v1081 = vld [vmem:[%s369 + $0x118] sm:$0xff]
      %v1082 = vld [vmem:[%s369 + $0x120] sm:$0xff]
      %v1083 = vld [vmem:[%s369 + $0x128] sm:$0xff]
      %v1084 = vld [vmem:[%s369 + $0x130] sm:$0xff]
      %v1085 = vld [vmem:[%s369 + $0x138] sm:$0xff]
      %v1086 = vld [vmem:[%s369 + $0x140] sm:$0xff]
      %v1087 = vld [vmem:[%s369 + $0x148] sm:$0xff]
      %v1088 = vld [vmem:[%s369 + $0x150] sm:$0xff]
      %v1089 = vld [vmem:[%s369 + $0x158] sm:$0xff]
      %v1090 = vld [vmem:[%s369 + $0x160] sm:$0xff]
      %v1091 = vld [vmem:[%s369 + $0x168] sm:$0xff]
      %v1092 = vld [vmem:[%s369 + $0x170] sm:$0xff]
      %v1093 = vld [vmem:[%s369 + $0x178] sm:$0xff]
      %v1094 = vld [vmem:[%s369 + $0x180] sm:$0xff]
      %v1095 = vld [vmem:[%s369 + $0x188] sm:$0xff]
      %v1096 = vld [vmem:[%s369 + $0x190] sm:$0xff]
      %v1097 = vld [vmem:[%s369 + $0x198] sm:$0xff]
      %v1098 = vld [vmem:[%s369 + $0x1a0] sm:$0xff]
      %v1099 = vld [vmem:[%s369 + $0x1a8] sm:$0xff]
      %v1100 = vld [vmem:[%s369 + $0x1b0] sm:$0xff]
      %v1101 = vld [vmem:[%s369 + $0x1b8] sm:$0xff]
      %v1102 = vld [vmem:[%s369 + $0x1c0] sm:$0xff]
      %v1103 = vld [vmem:[%s369 + $0x1c8] sm:$0xff]
      %v1104 = vld [vmem:[%s369 + $0x1d0] sm:$0xff]
      %v1105 = vld [vmem:[%s369 + $0x1d8] sm:$0xff]
      %v1106 = vld [vmem:[%s369 + $0x1e0] sm:$0xff]
      %v1107 = vld [vmem:[%s369 + $0x1e8] sm:$0xff]
      %v1108 = vld [vmem:[%s369 + $0x1f0] sm:$0xff]
      %v1109 = vld [vmem:[%s369 + $0x1f8] sm:$0xff]
      %1111 = vset.pattern.permute.xlu0 0
      %1112 = vperm.xlu0 %1111, %v1046
      %v1113 = vpop.permute.xlu0 %1112
      %1116 = vset.pattern.permute.xlu0 0
      %1117 = vperm.xlu0 %1116, %v1047
      %v1118 = vpop.permute.xlu0 %1117
      %1121 = vset.pattern.permute.xlu0 0
      %1122 = vperm.xlu0 %1121, %v1048
      %v1123 = vpop.permute.xlu0 %1122
      %1126 = vset.pattern.permute.xlu0 0
      %1127 = vperm.xlu0 %1126, %v1049
      %v1128 = vpop.permute.xlu0 %1127
      %1131 = vset.pattern.permute.xlu0 0
      %1132 = vperm.xlu0 %1131, %v1050
      %v1133 = vpop.permute.xlu0 %1132
      %1136 = vset.pattern.permute.xlu0 0
      %1137 = vperm.xlu0 %1136, %v1051
      %v1138 = vpop.permute.xlu0 %1137
      %1141 = vset.pattern.permute.xlu0 0
      %1142 = vperm.xlu0 %1141, %v1052
      %v1143 = vpop.permute.xlu0 %1142
      %1146 = vset.pattern.permute.xlu0 0
      %1147 = vperm.xlu0 %1146, %v1053
      %v1148 = vpop.permute.xlu0 %1147
      %1151 = vset.pattern.permute.xlu0 0
      %1152 = vperm.xlu0 %1151, %v1054
      %v1153 = vpop.permute.xlu0 %1152
      %1156 = vset.pattern.permute.xlu0 0
      %1157 = vperm.xlu0 %1156, %v1055
      %v1158 = vpop.permute.xlu0 %1157
      %1161 = vset.pattern.permute.xlu0 0
      %1162 = vperm.xlu0 %1161, %v1056
      %v1163 = vpop.permute.xlu0 %1162
      %1166 = vset.pattern.permute.xlu0 0
      %1167 = vperm.xlu0 %1166, %v1057
      %v1168 = vpop.permute.xlu0 %1167
      %1171 = vset.pattern.permute.xlu0 0
      %1172 = vperm.xlu0 %1171, %v1058
      %v1173 = vpop.permute.xlu0 %1172
      %1176 = vset.pattern.permute.xlu0 0
      %1177 = vperm.xlu0 %1176, %v1059
      %v1178 = vpop.permute.xlu0 %1177
      %1181 = vset.pattern.permute.xlu0 0
      %1182 = vperm.xlu0 %1181, %v1060
      %v1183 = vpop.permute.xlu0 %1182
      %1186 = vset.pattern.permute.xlu0 0
      %1187 = vperm.xlu0 %1186, %v1061
      %v1188 = vpop.permute.xlu0 %1187
      %1191 = vset.pattern.permute.xlu0 0
      %1192 = vperm.xlu0 %1191, %v1062
      %v1193 = vpop.permute.xlu0 %1192
      %1196 = vset.pattern.permute.xlu0 0
      %1197 = vperm.xlu0 %1196, %v1063
      %v1198 = vpop.permute.xlu0 %1197
      %1201 = vset.pattern.permute.xlu0 0
      %1202 = vperm.xlu0 %1201, %v1064
      %v1203 = vpop.permute.xlu0 %1202
      %1206 = vset.pattern.permute.xlu0 0
      %1207 = vperm.xlu0 %1206, %v1065
      %v1208 = vpop.permute.xlu0 %1207
      %1211 = vset.pattern.permute.xlu0 0
      %1212 = vperm.xlu0 %1211, %v1066
      %v1213 = vpop.permute.xlu0 %1212
      %1216 = vset.pattern.permute.xlu0 0
      %1217 = vperm.xlu0 %1216, %v1067
      %v1218 = vpop.permute.xlu0 %1217
      %1221 = vset.pattern.permute.xlu0 0
      %1222 = vperm.xlu0 %1221, %v1068
      %v1223 = vpop.permute.xlu0 %1222
      %1226 = vset.pattern.permute.xlu0 0
      %1227 = vperm.xlu0 %1226, %v1069
      %v1228 = vpop.permute.xlu0 %1227
      %1231 = vset.pattern.permute.xlu0 0
      %1232 = vperm.xlu0 %1231, %v1070
      %v1233 = vpop.permute.xlu0 %1232
      %1236 = vset.pattern.permute.xlu0 0
      %1237 = vperm.xlu0 %1236, %v1071
      %v1238 = vpop.permute.xlu0 %1237
      %1241 = vset.pattern.permute.xlu0 0
      %1242 = vperm.xlu0 %1241, %v1072
      %v1243 = vpop.permute.xlu0 %1242
      %1246 = vset.pattern.permute.xlu0 0
      %1247 = vperm.xlu0 %1246, %v1073
      %v1248 = vpop.permute.xlu0 %1247
      %1251 = vset.pattern.permute.xlu0 0
      %1252 = vperm.xlu0 %1251, %v1074
      %v1253 = vpop.permute.xlu0 %1252
      %1256 = vset.pattern.permute.xlu0 0
      %1257 = vperm.xlu0 %1256, %v1075
      %v1258 = vpop.permute.xlu0 %1257
      %1261 = vset.pattern.permute.xlu0 0
      %1262 = vperm.xlu0 %1261, %v1076
      %v1263 = vpop.permute.xlu0 %1262
      %1266 = vset.pattern.permute.xlu0 0
      %1267 = vperm.xlu0 %1266, %v1077
      %v1268 = vpop.permute.xlu0 %1267
      %1271 = vset.pattern.permute.xlu0 0
      %1272 = vperm.xlu0 %1271, %v1078
      %v1273 = vpop.permute.xlu0 %1272
      %1276 = vset.pattern.permute.xlu0 0
      %1277 = vperm.xlu0 %1276, %v1079
      %v1278 = vpop.permute.xlu0 %1277
      %1281 = vset.pattern.permute.xlu0 0
      %1282 = vperm.xlu0 %1281, %v1080
      %v1283 = vpop.permute.xlu0 %1282
      %1286 = vset.pattern.permute.xlu0 0
      %1287 = vperm.xlu0 %1286, %v1081
      %v1288 = vpop.permute.xlu0 %1287
      %1291 = vset.pattern.permute.xlu0 0
      %1292 = vperm.xlu0 %1291, %v1082
      %v1293 = vpop.permute.xlu0 %1292
      %1296 = vset.pattern.permute.xlu0 0
      %1297 = vperm.xlu0 %1296, %v1083
      %v1298 = vpop.permute.xlu0 %1297
      %1301 = vset.pattern.permute.xlu0 0
      %1302 = vperm.xlu0 %1301, %v1084
      %v1303 = vpop.permute.xlu0 %1302
      %1306 = vset.pattern.permute.xlu0 0
      %1307 = vperm.xlu0 %1306, %v1085
      %v1308 = vpop.permute.xlu0 %1307
      %1311 = vset.pattern.permute.xlu0 0
      %1312 = vperm.xlu0 %1311, %v1086
      %v1313 = vpop.permute.xlu0 %1312
      %1316 = vset.pattern.permute.xlu0 0
      %1317 = vperm.xlu0 %1316, %v1087
      %v1318 = vpop.permute.xlu0 %1317
      %1321 = vset.pattern.permute.xlu0 0
      %1322 = vperm.xlu0 %1321, %v1088
      %v1323 = vpop.permute.xlu0 %1322
      %1326 = vset.pattern.permute.xlu0 0
      %1327 = vperm.xlu0 %1326, %v1089
      %v1328 = vpop.permute.xlu0 %1327
      %1331 = vset.pattern.permute.xlu0 0
      %1332 = vperm.xlu0 %1331, %v1090
      %v1333 = vpop.permute.xlu0 %1332
      %1336 = vset.pattern.permute.xlu0 0
      %1337 = vperm.xlu0 %1336, %v1091
      %v1338 = vpop.permute.xlu0 %1337
      %1341 = vset.pattern.permute.xlu0 0
      %1342 = vperm.xlu0 %1341, %v1092
      %v1343 = vpop.permute.xlu0 %1342
      %1346 = vset.pattern.permute.xlu0 0
      %1347 = vperm.xlu0 %1346, %v1093
      %v1348 = vpop.permute.xlu0 %1347
      %1351 = vset.pattern.permute.xlu0 0
      %1352 = vperm.xlu0 %1351, %v1094
      %v1353 = vpop.permute.xlu0 %1352
      %1356 = vset.pattern.permute.xlu0 0
      %1357 = vperm.xlu0 %1356, %v1095
      %v1358 = vpop.permute.xlu0 %1357
      %1361 = vset.pattern.permute.xlu0 0
      %1362 = vperm.xlu0 %1361, %v1096
      %v1363 = vpop.permute.xlu0 %1362
      %1366 = vset.pattern.permute.xlu0 0
      %1367 = vperm.xlu0 %1366, %v1097
      %v1368 = vpop.permute.xlu0 %1367
      %1371 = vset.pattern.permute.xlu0 0
      %1372 = vperm.xlu0 %1371, %v1098
      %v1373 = vpop.permute.xlu0 %1372
      %1376 = vset.pattern.permute.xlu0 0
      %1377 = vperm.xlu0 %1376, %v1099
      %v1378 = vpop.permute.xlu0 %1377
      %1381 = vset.pattern.permute.xlu0 0
      %1382 = vperm.xlu0 %1381, %v1100
      %v1383 = vpop.permute.xlu0 %1382
      %1386 = vset.pattern.permute.xlu0 0
      %1387 = vperm.xlu0 %1386, %v1101
      %v1388 = vpop.permute.xlu0 %1387
      %1391 = vset.pattern.permute.xlu0 0
      %1392 = vperm.xlu0 %1391, %v1102
      %v1393 = vpop.permute.xlu0 %1392
      %1396 = vset.pattern.permute.xlu0 0
      %1397 = vperm.xlu0 %1396, %v1103
      %v1398 = vpop.permute.xlu0 %1397
      %1401 = vset.pattern.permute.xlu0 0
      %1402 = vperm.xlu0 %1401, %v1104
      %v1403 = vpop.permute.xlu0 %1402
      %1406 = vset.pattern.permute.xlu0 0
      %1407 = vperm.xlu0 %1406, %v1105
      %v1408 = vpop.permute.xlu0 %1407
      %1411 = vset.pattern.permute.xlu0 0
      %1412 = vperm.xlu0 %1411, %v1106
      %v1413 = vpop.permute.xlu0 %1412
      %1416 = vset.pattern.permute.xlu0 0
      %1417 = vperm.xlu0 %1416, %v1107
      %v1418 = vpop.permute.xlu0 %1417
      %1421 = vset.pattern.permute.xlu0 0
      %1422 = vperm.xlu0 %1421, %v1108
      %v1423 = vpop.permute.xlu0 %1422
      %1426 = vset.pattern.permute.xlu0 0
      %1427 = vperm.xlu0 %1426, %v1109
      %v1428 = vpop.permute.xlu0 %1427
      %v1494 = vunpack.c.l.b16 %v974
      %v1495 = vunpack.c.l.b16 %v975
      %v1496 = vunpack.c.l.b16 %v976
      %v1497 = vunpack.c.l.b16 %v977
      %v1498 = vunpack.c.l.b16 %v978
      %v1499 = vunpack.c.l.b16 %v979
      %v1500 = vunpack.c.l.b16 %v980
      %v1501 = vunpack.c.l.b16 %v981
      %v1502 = vunpack.c.l.b16 %v982
      %v1503 = vunpack.c.l.b16 %v983
      %v1504 = vunpack.c.l.b16 %v984
      %v1505 = vunpack.c.l.b16 %v985
      %v1506 = vunpack.c.l.b16 %v986
      %v1507 = vunpack.c.l.b16 %v987
      %v1508 = vunpack.c.l.b16 %v988
      %v1509 = vunpack.c.l.b16 %v989
      %v1510 = vunpack.c.l.b16 %v990
      %v1511 = vunpack.c.l.b16 %v991
      %v1512 = vunpack.c.l.b16 %v992
      %v1513 = vunpack.c.l.b16 %v993
      %v1514 = vunpack.c.l.b16 %v994
      %v1515 = vunpack.c.l.b16 %v995
      %v1516 = vunpack.c.l.b16 %v996
      %v1517 = vunpack.c.l.b16 %v997
      %v1518 = vunpack.c.l.b16 %v998
      %v1519 = vunpack.c.l.b16 %v999
      %v1520 = vunpack.c.l.b16 %v1000
      %v1521 = vunpack.c.l.b16 %v1001
      %v1522 = vunpack.c.l.b16 %v1002
      %v1523 = vunpack.c.l.b16 %v1003
      %v1524 = vunpack.c.l.b16 %v1004
      %v1525 = vunpack.c.l.b16 %v1005
      %v1526 = vunpack.c.l.b16 %v1006
      %v1527 = vunpack.c.l.b16 %v1007
      %v1528 = vunpack.c.l.b16 %v1008
      %v1529 = vunpack.c.l.b16 %v1009
      %v1530 = vunpack.c.l.b16 %v1010
      %v1531 = vunpack.c.l.b16 %v1011
      %v1532 = vunpack.c.l.b16 %v1012
      %v1533 = vunpack.c.l.b16 %v1013
      %v1534 = vunpack.c.l.b16 %v1014
      %v1535 = vunpack.c.l.b16 %v1015
      %v1536 = vunpack.c.l.b16 %v1016
      %v1537 = vunpack.c.l.b16 %v1017
      %v1538 = vunpack.c.l.b16 %v1018
      %v1539 = vunpack.c.l.b16 %v1019
      %v1540 = vunpack.c.l.b16 %v1020
      %v1541 = vunpack.c.l.b16 %v1021
      %v1542 = vunpack.c.l.b16 %v1022
      %v1543 = vunpack.c.l.b16 %v1023
      %v1544 = vunpack.c.l.b16 %v1024
      %v1545 = vunpack.c.l.b16 %v1025
      %v1546 = vunpack.c.l.b16 %v1026
      %v1547 = vunpack.c.l.b16 %v1027
      %v1548 = vunpack.c.l.b16 %v1028
      %v1549 = vunpack.c.l.b16 %v1029
      %v1550 = vunpack.c.l.b16 %v1030
      %v1551 = vunpack.c.l.b16 %v1031
      %v1552 = vunpack.c.l.b16 %v1032
      %v1553 = vunpack.c.l.b16 %v1033
      %v1554 = vunpack.c.l.b16 %v1034
      %v1555 = vunpack.c.l.b16 %v1035
      %v1556 = vunpack.c.l.b16 %v1036
      %v1557 = vunpack.c.l.b16 %v1037
      %v1558 = vpack.c.b16 %v1495, %v1494
      %v1559 = vpack.c.b16 %v1497, %v1496
      %v1560 = vpack.c.b16 %v1499, %v1498
      %v1561 = vpack.c.b16 %v1501, %v1500
      %v1562 = vpack.c.b16 %v1503, %v1502
      %v1563 = vpack.c.b16 %v1505, %v1504
      %v1564 = vpack.c.b16 %v1507, %v1506
      %v1565 = vpack.c.b16 %v1509, %v1508
      %v1566 = vpack.c.b16 %v1511, %v1510
      %v1567 = vpack.c.b16 %v1513, %v1512
      %v1568 = vpack.c.b16 %v1515, %v1514
      %v1569 = vpack.c.b16 %v1517, %v1516
      %v1570 = vpack.c.b16 %v1519, %v1518
      %v1571 = vpack.c.b16 %v1521, %v1520
      %v1572 = vpack.c.b16 %v1523, %v1522
      %v1573 = vpack.c.b16 %v1525, %v1524
      %v1574 = vpack.c.b16 %v1527, %v1526
      %v1575 = vpack.c.b16 %v1529, %v1528
      %v1576 = vpack.c.b16 %v1531, %v1530
      %v1577 = vpack.c.b16 %v1533, %v1532
      %v1578 = vpack.c.b16 %v1535, %v1534
      %v1579 = vpack.c.b16 %v1537, %v1536
      %v1580 = vpack.c.b16 %v1539, %v1538
      %v1581 = vpack.c.b16 %v1541, %v1540
      %v1582 = vpack.c.b16 %v1543, %v1542
      %v1583 = vpack.c.b16 %v1545, %v1544
      %v1584 = vpack.c.b16 %v1547, %v1546
      %v1585 = vpack.c.b16 %v1549, %v1548
      %v1586 = vpack.c.b16 %v1551, %v1550
      %v1587 = vpack.c.b16 %v1553, %v1552
      %v1588 = vpack.c.b16 %v1555, %v1554
      %v1589 = vpack.c.b16 %v1557, %v1556
      %1622 = vmatprep.subr.bf16.mxu0 0
      %1623 = vmatpush1.bf16.msra.mxu0 %v1038
      %1624 = vmatprep.subr.bf16.mxu0 0
      %1625 = vmatpush1.bf16.msra.mxu0 %v1039
      %1626 = vmatprep.subr.bf16.mxu0 0
      %1627 = vmatpush1.bf16.msra.mxu0 %v1040
      %1628 = vmatprep.subr.bf16.mxu0 0
      %1629 = vmatpush1.bf16.msra.mxu0 %v1041
      %1630 = vmatprep.subr.bf16.mxu0 0
      %1631 = vmatpush1.bf16.msra.mxu0 %v1042
      %1632 = vmatprep.subr.bf16.mxu0 0
      %1633 = vmatpush1.bf16.msra.mxu0 %v1043
      %1634 = vmatprep.subr.bf16.mxu0 0
      %1635 = vmatpush1.bf16.msra.mxu0 %v1044
      %1636 = vmatprep.subr.bf16.mxu0 0
      %1637 = vmatpush1.bf16.msra.mxu0 %v1045
      %1638 = vmatprep.subr.bf16.mxu0 0
      %1639 = vmatpush1.bf16.msra.mxu0 0
      %1640 = vmatprep.subr.bf16.mxu0 0
      %1641 = vmatpush1.bf16.msra.mxu0 0
      %1642 = vmatprep.subr.bf16.mxu0 0
      %1643 = vmatpush1.bf16.msra.mxu0 0
      %1644 = vmatprep.subr.bf16.mxu0 0
      %1645 = vmatpush1.bf16.msra.mxu0 0
      %1646 = vmatprep.subr.bf16.mxu0 0
      %1647 = vmatpush1.bf16.msra.mxu0 0
      %1648 = vmatprep.subr.bf16.mxu0 0
      %1649 = vmatpush1.bf16.msra.mxu0 0
      %1650 = vmatprep.subr.bf16.mxu0 0
      %1651 = vmatpush1.bf16.msra.mxu0 0
      %1652 = vmatprep.subr.bf16.mxu0 0
      %1653 = vmatpush1.bf16.msra.mxu0 0
      %1654 = vmatprep.mubr.bf16.mxu0 0
      %1655 = vmatmul.mubr.bf16.gmra.mrb[0].mxu0 %v1558
      %v1656 = vpop.f32.mrb[0].mxu0
      %v1657 = vadd.f32 %v1113, %v1656
      %v1658 = vpop.f32.mrb[0].mxu0
      %v1659 = vpop.f32.mrb[0].mxu0
      %v1660 = vadd.f32 %v1118, %v1659
      %v1661 = vpop.f32.mrb[0].mxu0
      %1662 = vmatprep.mubr.bf16.mxu0 0
      %1663 = vmatmul.mubr.bf16.gmra.mrb[0].mxu0 %v1559
      %v1664 = vpop.f32.mrb[0].mxu0
      %v1665 = vadd.f32 %v1123, %v1664
      %v1666 = vpop.f32.mrb[0].mxu0
      %v1667 = vpop.f32.mrb[0].mxu0
      %v1668 = vadd.f32 %v1128, %v1667
      %v1669 = vpop.f32.mrb[0].mxu0
      %1670 = vmatprep.mubr.bf16.mxu0 0
      %1671 = vmatmul.mubr.bf16.gmra.mrb[0].mxu0 %v1560
      %v1672 = vpop.f32.mrb[0].mxu0
      %v1673 = vadd.f32 %v1133, %v1672
      %v1674 = vpop.f32.mrb[0].mxu0
      %v1675 = vpop.f32.mrb[0].mxu0
      %v1676 = vadd.f32 %v1138, %v1675
      %v1677 = vpop.f32.mrb[0].mxu0
      %1678 = vmatprep.mubr.bf16.mxu0 0
      %1679 = vmatmul.mubr.bf16.gmra.mrb[0].mxu0 %v1561
      %v1680 = vpop.f32.mrb[0].mxu0
      %v1681 = vadd.f32 %v1143, %v1680
      %v1682 = vpop.f32.mrb[0].mxu0
      %v1683 = vpop.f32.mrb[0].mxu0
      %v1684 = vadd.f32 %v1148, %v1683
      %v1685 = vpop.f32.mrb[0].mxu0
      %1686 = vmatprep.mubr.bf16.mxu0 0
      %1687 = vmatmul.mubr.bf16.gmra.mrb[0].mxu0 %v1562
      %v1688 = vpop.f32.mrb[0].mxu0
      %v1689 = vadd.f32 %v1153, %v1688
      %v1690 = vpop.f32.mrb[0].mxu0
      %v1691 = vpop.f32.mrb[0].mxu0
      %v1692 = vadd.f32 %v1158, %v1691
      %v1693 = vpop.f32.mrb[0].mxu0
      %1694 = vmatprep.mubr.bf16.mxu0 0
      %1695 = vmatmul.mubr.bf16.gmra.mrb[0].mxu0 %v1563
      %v1696 = vpop.f32.mrb[0].mxu0
      %v1697 = vadd.f32 %v1163, %v1696
      %v1698 = vpop.f32.mrb[0].mxu0
      %v1699 = vpop.f32.mrb[0].mxu0
      %v1700 = vadd.f32 %v1168, %v1699
      %v1701 = vpop.f32.mrb[0].mxu0
      %1702 = vmatprep.mubr.bf16.mxu0 0
      %1703 = vmatmul.mubr.bf16.gmra.mrb[0].mxu0 %v1564
      %v1704 = vpop.f32.mrb[0].mxu0
      %v1705 = vadd.f32 %v1173, %v1704
      %v1706 = vpop.f32.mrb[0].mxu0
      %v1707 = vpop.f32.mrb[0].mxu0
      %v1708 = vadd.f32 %v1178, %v1707
      %v1709 = vpop.f32.mrb[0].mxu0
      %1710 = vmatprep.mubr.bf16.mxu0 0
      %1711 = vmatmul.mubr.bf16.gmra.mrb[0].mxu0 %v1565
      %v1712 = vpop.f32.mrb[0].mxu0
      %v1713 = vadd.f32 %v1183, %v1712
      %v1714 = vpop.f32.mrb[0].mxu0
      %v1715 = vpop.f32.mrb[0].mxu0
      %v1716 = vadd.f32 %v1188, %v1715
      %v1717 = vpop.f32.mrb[0].mxu0
      %1718 = vmatprep.mubr.bf16.mxu0 0
      %1719 = vmatmul.mubr.bf16.gmra.mrb[0].mxu0 %v1566
      %v1720 = vpop.f32.mrb[0].mxu0
      %v1721 = vadd.f32 %v1193, %v1720
      %v1722 = vpop.f32.mrb[0].mxu0
      %v1723 = vpop.f32.mrb[0].mxu0
      %v1724 = vadd.f32 %v1198, %v1723
      %v1725 = vpop.f32.mrb[0].mxu0
      %1726 = vmatprep.mubr.bf16.mxu0 0
      %1727 = vmatmul.mubr.bf16.gmra.mrb[0].mxu0 %v1567
      %v1728 = vpop.f32.mrb[0].mxu0
      %v1729 = vadd.f32 %v1203, %v1728
      %v1730 = vpop.f32.mrb[0].mxu0
      %v1731 = vpop.f32.mrb[0].mxu0
      %v1732 = vadd.f32 %v1208, %v1731
      %v1733 = vpop.f32.mrb[0].mxu0
      %1734 = vmatprep.mubr.bf16.mxu0 0
      %1735 = vmatmul.mubr.bf16.gmra.mrb[0].mxu0 %v1568
      %v1736 = vpop.f32.mrb[0].mxu0
      %v1737 = vadd.f32 %v1213, %v1736
      %v1738 = vpop.f32.mrb[0].mxu0
      %v1739 = vpop.f32.mrb[0].mxu0
      %v1740 = vadd.f32 %v1218, %v1739
      %v1741 = vpop.f32.mrb[0].mxu0
      %1742 = vmatprep.mubr.bf16.mxu0 0
      %1743 = vmatmul.mubr.bf16.gmra.mrb[0].mxu0 %v1569
      %v1744 = vpop.f32.mrb[0].mxu0
      %v1745 = vadd.f32 %v1223, %v1744
      %v1746 = vpop.f32.mrb[0].mxu0
      %v1747 = vpop.f32.mrb[0].mxu0
      %v1748 = vadd.f32 %v1228, %v1747
      %v1749 = vpop.f32.mrb[0].mxu0
      %1750 = vmatprep.mubr.bf16.mxu0 0
      %1751 = vmatmul.mubr.bf16.gmra.mrb[0].mxu0 %v1570
      %v1752 = vpop.f32.mrb[0].mxu0
      %v1753 = vadd.f32 %v1233, %v1752
      %v1754 = vpop.f32.mrb[0].mxu0
      %v1755 = vpop.f32.mrb[0].mxu0
      %v1756 = vadd.f32 %v1238, %v1755
      %v1757 = vpop.f32.mrb[0].mxu0
      %1758 = vmatprep.mubr.bf16.mxu0 0
      %1759 = vmatmul.mubr.bf16.gmra.mrb[0].mxu0 %v1571
      %v1760 = vpop.f32.mrb[0].mxu0
      %v1761 = vadd.f32 %v1243, %v1760
      %v1762 = vpop.f32.mrb[0].mxu0
      %v1763 = vpop.f32.mrb[0].mxu0
      %v1764 = vadd.f32 %v1248, %v1763
      %v1765 = vpop.f32.mrb[0].mxu0
      %1766 = vmatprep.mubr.bf16.mxu0 0
      %1767 = vmatmul.mubr.bf16.gmra.mrb[0].mxu0 %v1572
      %v1768 = vpop.f32.mrb[0].mxu0
      %v1769 = vadd.f32 %v1253, %v1768
      %v1770 = vpop.f32.mrb[0].mxu0
      %v1771 = vpop.f32.mrb[0].mxu0
      %v1772 = vadd.f32 %v1258, %v1771
      %v1773 = vpop.f32.mrb[0].mxu0
      %1774 = vmatprep.mubr.bf16.mxu0 0
      %1775 = vmatmul.mubr.bf16.gmra.mrb[0].mxu0 %v1573
      %v1776 = vpop.f32.mrb[0].mxu0
      %v1777 = vadd.f32 %v1263, %v1776
      %v1778 = vpop.f32.mrb[0].mxu0
      %v1779 = vpop.f32.mrb[0].mxu0
      %v1780 = vadd.f32 %v1268, %v1779
      %v1781 = vpop.f32.mrb[0].mxu0
      %1782 = vmatprep.mubr.bf16.mxu0 0
      %1783 = vmatmul.mubr.bf16.gmra.mrb[0].mxu0 %v1574
      %v1784 = vpop.f32.mrb[0].mxu0
      %v1785 = vadd.f32 %v1273, %v1784
      %v1786 = vpop.f32.mrb[0].mxu0
      %v1787 = vpop.f32.mrb[0].mxu0
      %v1788 = vadd.f32 %v1278, %v1787
      %v1789 = vpop.f32.mrb[0].mxu0
      %1790 = vmatprep.mubr.bf16.mxu0 0
      %1791 = vmatmul.mubr.bf16.gmra.mrb[0].mxu0 %v1575
      %v1792 = vpop.f32.mrb[0].mxu0
      %v1793 = vadd.f32 %v1283, %v1792
      %v1794 = vpop.f32.mrb[0].mxu0
      %v1795 = vpop.f32.mrb[0].mxu0
      %v1796 = vadd.f32 %v1288, %v1795
      %v1797 = vpop.f32.mrb[0].mxu0
      %1798 = vmatprep.mubr.bf16.mxu0 0
      %1799 = vmatmul.mubr.bf16.gmra.mrb[0].mxu0 %v1576
      %v1800 = vpop.f32.mrb[0].mxu0
      %v1801 = vadd.f32 %v1293, %v1800
      %v1802 = vpop.f32.mrb[0].mxu0
      %v1803 = vpop.f32.mrb[0].mxu0
      %v1804 = vadd.f32 %v1298, %v1803
      %v1805 = vpop.f32.mrb[0].mxu0
      %1806 = vmatprep.mubr.bf16.mxu0 0
      %1807 = vmatmul.mubr.bf16.gmra.mrb[0].mxu0 %v1577
      %v1808 = vpop.f32.mrb[0].mxu0
      %v1809 = vadd.f32 %v1303, %v1808
      %v1810 = vpop.f32.mrb[0].mxu0
      %v1811 = vpop.f32.mrb[0].mxu0
      %v1812 = vadd.f32 %v1308, %v1811
      %v1813 = vpop.f32.mrb[0].mxu0
      %1814 = vmatprep.mubr.bf16.mxu0 0
      %1815 = vmatmul.mubr.bf16.gmra.mrb[0].mxu0 %v1578
      %v1816 = vpop.f32.mrb[0].mxu0
      %v1817 = vadd.f32 %v1313, %v1816
      %v1818 = vpop.f32.mrb[0].mxu0
      %v1819 = vpop.f32.mrb[0].mxu0
      %v1820 = vadd.f32 %v1318, %v1819
      %v1821 = vpop.f32.mrb[0].mxu0
      %1822 = vmatprep.mubr.bf16.mxu0 0
      %1823 = vmatmul.mubr.bf16.gmra.mrb[0].mxu0 %v1579
      %v1824 = vpop.f32.mrb[0].mxu0
      %v1825 = vadd.f32 %v1323, %v1824
      %v1826 = vpop.f32.mrb[0].mxu0
      %v1827 = vpop.f32.mrb[0].mxu0
      %v1828 = vadd.f32 %v1328, %v1827
      %v1829 = vpop.f32.mrb[0].mxu0
      %1830 = vmatprep.mubr.bf16.mxu0 0
      %1831 = vmatmul.mubr.bf16.gmra.mrb[0].mxu0 %v1580
      %v1832 = vpop.f32.mrb[0].mxu0
      %v1833 = vadd.f32 %v1333, %v1832
      %v1834 = vpop.f32.mrb[0].mxu0
      %v1835 = vpop.f32.mrb[0].mxu0
      %v1836 = vadd.f32 %v1338, %v1835
      %v1837 = vpop.f32.mrb[0].mxu0
      %1838 = vmatprep.mubr.bf16.mxu0 0
      %1839 = vmatmul.mubr.bf16.gmra.mrb[0].mxu0 %v1581
      %v1840 = vpop.f32.mrb[0].mxu0
      %v1841 = vadd.f32 %v1343, %v1840
      %v1842 = vpop.f32.mrb[0].mxu0
      %v1843 = vpop.f32.mrb[0].mxu0
      %v1844 = vadd.f32 %v1348, %v1843
      %v1845 = vpop.f32.mrb[0].mxu0
      %1846 = vmatprep.mubr.bf16.mxu0 0
      %1847 = vmatmul.mubr.bf16.gmra.mrb[0].mxu0 %v1582
      %v1848 = vpop.f32.mrb[0].mxu0
      %v1849 = vadd.f32 %v1353, %v1848
      %v1850 = vpop.f32.mrb[0].mxu0
      %v1851 = vpop.f32.mrb[0].mxu0
      %v1852 = vadd.f32 %v1358, %v1851
      %v1853 = vpop.f32.mrb[0].mxu0
      %1854 = vmatprep.mubr.bf16.mxu0 0
      %1855 = vmatmul.mubr.bf16.gmra.mrb[0].mxu0 %v1583
      %v1856 = vpop.f32.mrb[0].mxu0
      %v1857 = vadd.f32 %v1363, %v1856
      %v1858 = vpop.f32.mrb[0].mxu0
      %v1859 = vpop.f32.mrb[0].mxu0
      %v1860 = vadd.f32 %v1368, %v1859
      %v1861 = vpop.f32.mrb[0].mxu0
      %1862 = vmatprep.mubr.bf16.mxu0 0
      %1863 = vmatmul.mubr.bf16.gmra.mrb[0].mxu0 %v1584
      %v1864 = vpop.f32.mrb[0].mxu0
      %v1865 = vadd.f32 %v1373, %v1864
      %v1866 = vpop.f32.mrb[0].mxu0
      %v1867 = vpop.f32.mrb[0].mxu0
      %v1868 = vadd.f32 %v1378, %v1867
      %v1869 = vpop.f32.mrb[0].mxu0
      %1870 = vmatprep.mubr.bf16.mxu0 0
      %1871 = vmatmul.mubr.bf16.gmra.mrb[0].mxu0 %v1585
      %v1872 = vpop.f32.mrb[0].mxu0
      %v1873 = vadd.f32 %v1383, %v1872
      %v1874 = vpop.f32.mrb[0].mxu0
      %v1875 = vpop.f32.mrb[0].mxu0
      %v1876 = vadd.f32 %v1388, %v1875
      %v1877 = vpop.f32.mrb[0].mxu0
      %1878 = vmatprep.mubr.bf16.mxu0 0
      %1879 = vmatmul.mubr.bf16.gmra.mrb[0].mxu0 %v1586
      %v1880 = vpop.f32.mrb[0].mxu0
      %v1881 = vadd.f32 %v1393, %v1880
      %v1882 = vpop.f32.mrb[0].mxu0
      %v1883 = vpop.f32.mrb[0].mxu0
      %v1884 = vadd.f32 %v1398, %v1883
      %v1885 = vpop.f32.mrb[0].mxu0
      %1886 = vmatprep.mubr.bf16.mxu0 0
      %1887 = vmatmul.mubr.bf16.gmra.mrb[0].mxu0 %v1587
      %v1888 = vpop.f32.mrb[0].mxu0
      %v1889 = vadd.f32 %v1403, %v1888
      %v1890 = vpop.f32.mrb[0].mxu0
      %v1891 = vpop.f32.mrb[0].mxu0
      %v1892 = vadd.f32 %v1408, %v1891
      %v1893 = vpop.f32.mrb[0].mxu0
      %1894 = vmatprep.mubr.bf16.mxu0 0
      %1895 = vmatmul.mubr.bf16.gmra.mrb[0].mxu0 %v1588
      %v1896 = vpop.f32.mrb[0].mxu0
      %v1897 = vadd.f32 %v1413, %v1896
      %v1898 = vpop.f32.mrb[0].mxu0
      %v1899 = vpop.f32.mrb[0].mxu0
      %v1900 = vadd.f32 %v1418, %v1899
      %v1901 = vpop.f32.mrb[0].mxu0
      %1902 = vmatprep.mubr.bf16.mxu0 0
      %1903 = vmatmul.mubr.bf16.gmra.mrb[0].mxu0 %v1589
      %v1904 = vpop.f32.mrb[0].mxu0
      %v1905 = vadd.f32 %v1423, %v1904
      %v1906 = vpop.f32.mrb[0].mxu0
      %v1907 = vpop.f32.mrb[0].mxu0
      %v1908 = vadd.f32 %v1428, %v1907
      %v1909 = vpop.f32.mrb[0].mxu0
      %1910 = vdwg.mxu0
      %v1911 = vld [vmem:[%s379] sm:$0xff]
      %v1912 = vld [vmem:[%s379 + $0x8] sm:$0xff]
      %v1913 = vld [vmem:[%s379 + $0x10] sm:$0xff]
      %v1914 = vld [vmem:[%s379 + $0x18] sm:$0xff]
      %v1915 = vld [vmem:[%s379 + $0x20] sm:$0xff]
      %v1916 = vld [vmem:[%s379 + $0x28] sm:$0xff]
      %v1917 = vld [vmem:[%s379 + $0x30] sm:$0xff]
      %v1918 = vld [vmem:[%s379 + $0x38] sm:$0xff]
      %v1919 = vld [vmem:[%s379 + $0x40] sm:$0xff]
      %v1920 = vld [vmem:[%s379 + $0x48] sm:$0xff]
      %v1921 = vld [vmem:[%s379 + $0x50] sm:$0xff]
      %v1922 = vld [vmem:[%s379 + $0x58] sm:$0xff]
      %v1923 = vld [vmem:[%s379 + $0x60] sm:$0xff]
      %v1924 = vld [vmem:[%s379 + $0x68] sm:$0xff]
      %v1925 = vld [vmem:[%s379 + $0x70] sm:$0xff]
      %v1926 = vld [vmem:[%s379 + $0x78] sm:$0xff]
      %v1927 = vld [vmem:[%s379 + $0x80] sm:$0xff]
      %v1928 = vld [vmem:[%s379 + $0x88] sm:$0xff]
      %v1929 = vld [vmem:[%s379 + $0x90] sm:$0xff]
      %v1930 = vld [vmem:[%s379 + $0x98] sm:$0xff]
      %v1931 = vld [vmem:[%s379 + $0xa0] sm:$0xff]
      %v1932 = vld [vmem:[%s379 + $0xa8] sm:$0xff]
      %v1933 = vld [vmem:[%s379 + $0xb0] sm:$0xff]
      %v1934 = vld [vmem:[%s379 + $0xb8] sm:$0xff]
      %v1935 = vld [vmem:[%s379 + $0xc0] sm:$0xff]
      %v1936 = vld [vmem:[%s379 + $0xc8] sm:$0xff]
      %v1937 = vld [vmem:[%s379 + $0xd0] sm:$0xff]
      %v1938 = vld [vmem:[%s379 + $0xd8] sm:$0xff]
      %v1939 = vld [vmem:[%s379 + $0xe0] sm:$0xff]
      %v1940 = vld [vmem:[%s379 + $0xe8] sm:$0xff]
      %v1941 = vld [vmem:[%s379 + $0xf0] sm:$0xff]
      %v1942 = vld [vmem:[%s379 + $0xf8] sm:$0xff]
      %v1943 = vld [vmem:[%s379 + $0x100] sm:$0xff]
      %v1944 = vld [vmem:[%s379 + $0x108] sm:$0xff]
      %v1945 = vld [vmem:[%s379 + $0x110] sm:$0xff]
      %v1946 = vld [vmem:[%s379 + $0x118] sm:$0xff]
      %v1947 = vld [vmem:[%s379 + $0x120] sm:$0xff]
      %v1948 = vld [vmem:[%s379 + $0x128] sm:$0xff]
      %v1949 = vld [vmem:[%s379 + $0x130] sm:$0xff]
      %v1950 = vld [vmem:[%s379 + $0x138] sm:$0xff]
      %v1951 = vld [vmem:[%s379 + $0x140] sm:$0xff]
      %v1952 = vld [vmem:[%s379 + $0x148] sm:$0xff]
      %v1953 = vld [vmem:[%s379 + $0x150] sm:$0xff]
      %v1954 = vld [vmem:[%s379 + $0x158] sm:$0xff]
      %v1955 = vld [vmem:[%s379 + $0x160] sm:$0xff]
      %v1956 = vld [vmem:[%s379 + $0x168] sm:$0xff]
      %v1957 = vld [vmem:[%s379 + $0x170] sm:$0xff]
      %v1958 = vld [vmem:[%s379 + $0x178] sm:$0xff]
      %v1959 = vld [vmem:[%s379 + $0x180] sm:$0xff]
      %v1960 = vld [vmem:[%s379 + $0x188] sm:$0xff]
      %v1961 = vld [vmem:[%s379 + $0x190] sm:$0xff]
      %v1962 = vld [vmem:[%s379 + $0x198] sm:$0xff]
      %v1963 = vld [vmem:[%s379 + $0x1a0] sm:$0xff]
      %v1964 = vld [vmem:[%s379 + $0x1a8] sm:$0xff]
      %v1965 = vld [vmem:[%s379 + $0x1b0] sm:$0xff]
      %v1966 = vld [vmem:[%s379 + $0x1b8] sm:$0xff]
      %v1967 = vld [vmem:[%s379 + $0x1c0] sm:$0xff]
      %v1968 = vld [vmem:[%s379 + $0x1c8] sm:$0xff]
      %v1969 = vld [vmem:[%s379 + $0x1d0] sm:$0xff]
      %v1970 = vld [vmem:[%s379 + $0x1d8] sm:$0xff]
      %v1971 = vld [vmem:[%s379 + $0x1e0] sm:$0xff]
      %v1972 = vld [vmem:[%s379 + $0x1e8] sm:$0xff]
      %v1973 = vld [vmem:[%s379 + $0x1f0] sm:$0xff]
      %v1974 = vld [vmem:[%s379 + $0x1f8] sm:$0xff]
      %vm1975 = vcmask 130048
      %v1976 = vsel %vm1975, %v1657, -inf
      %1977 = vmax.xlane.f32.xlu0 %v1976
      %v1978 = vpop.xlane.xlu0 %1977
      %v1979 = vsel %vm1975, %v1660, -inf
      %1980 = vmax.xlane.f32.xlu0 %v1979
      %v1981 = vpop.xlane.xlu0 %1980
      %v1982 = vsel %vm1975, %v1665, -inf
      %1983 = vmax.xlane.f32.xlu0 %v1982
      %v1984 = vpop.xlane.xlu0 %1983
      %v1985 = vsel %vm1975, %v1668, -inf
      %1986 = vmax.xlane.f32.xlu0 %v1985
      %v1987 = vpop.xlane.xlu0 %1986
      %v1988 = vsel %vm1975, %v1673, -inf
      %1989 = vmax.xlane.f32.xlu0 %v1988
      %v1990 = vpop.xlane.xlu0 %1989
      %v1991 = vsel %vm1975, %v1676, -inf
      %1992 = vmax.xlane.f32.xlu0 %v1991
      %v1993 = vpop.xlane.xlu0 %1992
      %v1994 = vsel %vm1975, %v1681, -inf
      %1995 = vmax.xlane.f32.xlu0 %v1994
      %v1996 = vpop.xlane.xlu0 %1995
      %v1997 = vsel %vm1975, %v1684, -inf
      %1998 = vmax.xlane.f32.xlu0 %v1997
      %v1999 = vpop.xlane.xlu0 %1998
      %v2000 = vsel %vm1975, %v1689, -inf
      %2001 = vmax.xlane.f32.xlu0 %v2000
      %v2002 = vpop.xlane.xlu0 %2001
      %v2003 = vsel %vm1975, %v1692, -inf
      %2004 = vmax.xlane.f32.xlu0 %v2003
      %v2005 = vpop.xlane.xlu0 %2004
      %v2006 = vsel %vm1975, %v1697, -inf
      %2007 = vmax.xlane.f32.xlu0 %v2006
      %v2008 = vpop.xlane.xlu0 %2007
      %v2009 = vsel %vm1975, %v1700, -inf
      %2010 = vmax.xlane.f32.xlu0 %v2009
      %v2011 = vpop.xlane.xlu0 %2010
      %v2012 = vsel %vm1975, %v1705, -inf
      %2013 = vmax.xlane.f32.xlu0 %v2012
      %v2014 = vpop.xlane.xlu0 %2013
      %v2015 = vsel %vm1975, %v1708, -inf
      %2016 = vmax.xlane.f32.xlu0 %v2015
      %v2017 = vpop.xlane.xlu0 %2016
      %v2018 = vsel %vm1975, %v1713, -inf
      %2019 = vmax.xlane.f32.xlu0 %v2018
      %v2020 = vpop.xlane.xlu0 %2019
      %v2021 = vsel %vm1975, %v1716, -inf
      %2022 = vmax.xlane.f32.xlu0 %v2021
      %v2023 = vpop.xlane.xlu0 %2022
      %v2024 = vsel %vm1975, %v1721, -inf
      %2025 = vmax.xlane.f32.xlu0 %v2024
      %v2026 = vpop.xlane.xlu0 %2025
      %v2027 = vsel %vm1975, %v1724, -inf
      %2028 = vmax.xlane.f32.xlu0 %v2027
      %v2029 = vpop.xlane.xlu0 %2028
      %v2030 = vsel %vm1975, %v1729, -inf
      %2031 = vmax.xlane.f32.xlu0 %v2030
      %v2032 = vpop.xlane.xlu0 %2031
      %v2033 = vsel %vm1975, %v1732, -inf
      %2034 = vmax.xlane.f32.xlu0 %v2033
      %v2035 = vpop.xlane.xlu0 %2034
      %v2036 = vsel %vm1975, %v1737, -inf
      %2037 = vmax.xlane.f32.xlu0 %v2036
      %v2038 = vpop.xlane.xlu0 %2037
      %v2039 = vsel %vm1975, %v1740, -inf
      %2040 = vmax.xlane.f32.xlu0 %v2039
      %v2041 = vpop.xlane.xlu0 %2040
      %v2042 = vsel %vm1975, %v1745, -inf
      %2043 = vmax.xlane.f32.xlu0 %v2042
      %v2044 = vpop.xlane.xlu0 %2043
      %v2045 = vsel %vm1975, %v1748, -inf
      %2046 = vmax.xlane.f32.xlu0 %v2045
      %v2047 = vpop.xlane.xlu0 %2046
      %v2048 = vsel %vm1975, %v1753, -inf
      %2049 = vmax.xlane.f32.xlu0 %v2048
      %v2050 = vpop.xlane.xlu0 %2049
      %v2051 = vsel %vm1975, %v1756, -inf
      %2052 = vmax.xlane.f32.xlu0 %v2051
      %v2053 = vpop.xlane.xlu0 %2052
      %v2054 = vsel %vm1975, %v1761, -inf
      %2055 = vmax.xlane.f32.xlu0 %v2054
      %v2056 = vpop.xlane.xlu0 %2055
      %v2057 = vsel %vm1975, %v1764, -inf
      %2058 = vmax.xlane.f32.xlu0 %v2057
      %v2059 = vpop.xlane.xlu0 %2058
      %v2060 = vsel %vm1975, %v1769, -inf
      %2061 = vmax.xlane.f32.xlu0 %v2060
      %v2062 = vpop.xlane.xlu0 %2061
      %v2063 = vsel %vm1975, %v1772, -inf
      %2064 = vmax.xlane.f32.xlu0 %v2063
      %v2065 = vpop.xlane.xlu0 %2064
      %v2066 = vsel %vm1975, %v1777, -inf
      %2067 = vmax.xlane.f32.xlu0 %v2066
      %v2068 = vpop.xlane.xlu0 %2067
      %v2069 = vsel %vm1975, %v1780, -inf
      %2070 = vmax.xlane.f32.xlu0 %v2069
      %v2071 = vpop.xlane.xlu0 %2070
      %v2072 = vsel %vm1975, %v1785, -inf
      %2073 = vmax.xlane.f32.xlu0 %v2072
      %v2074 = vpop.xlane.xlu0 %2073
      %v2075 = vsel %vm1975, %v1788, -inf
      %2076 = vmax.xlane.f32.xlu0 %v2075
      %v2077 = vpop.xlane.xlu0 %2076
      %v2078 = vsel %vm1975, %v1793, -inf
      %2079 = vmax.xlane.f32.xlu0 %v2078
      %v2080 = vpop.xlane.xlu0 %2079
      %v2081 = vsel %vm1975, %v1796, -inf
      %2082 = vmax.xlane.f32.xlu0 %v2081
      %v2083 = vpop.xlane.xlu0 %2082
      %v2084 = vsel %vm1975, %v1801, -inf
      %2085 = vmax.xlane.f32.xlu0 %v2084
      %v2086 = vpop.xlane.xlu0 %2085
      %v2087 = vsel %vm1975, %v1804, -inf
      %2088 = vmax.xlane.f32.xlu0 %v2087
      %v2089 = vpop.xlane.xlu0 %2088
      %v2090 = vsel %vm1975, %v1809, -inf
      %2091 = vmax.xlane.f32.xlu0 %v2090
      %v2092 = vpop.xlane.xlu0 %2091
      %v2093 = vsel %vm1975, %v1812, -inf
      %2094 = vmax.xlane.f32.xlu0 %v2093
      %v2095 = vpop.xlane.xlu0 %2094
      %v2096 = vsel %vm1975, %v1817, -inf
      %2097 = vmax.xlane.f32.xlu0 %v2096
      %v2098 = vpop.xlane.xlu0 %2097
      %v2099 = vsel %vm1975, %v1820, -inf
      %2100 = vmax.xlane.f32.xlu0 %v2099
      %v2101 = vpop.xlane.xlu0 %2100
      %v2102 = vsel %vm1975, %v1825, -inf
      %2103 = vmax.xlane.f32.xlu0 %v2102
      %v2104 = vpop.xlane.xlu0 %2103
      %v2105 = vsel %vm1975, %v1828, -inf
      %2106 = vmax.xlane.f32.xlu0 %v2105
      %v2107 = vpop.xlane.xlu0 %2106
      %v2108 = vsel %vm1975, %v1833, -inf
      %2109 = vmax.xlane.f32.xlu0 %v2108
      %v2110 = vpop.xlane.xlu0 %2109
      %v2111 = vsel %vm1975, %v1836, -inf
      %2112 = vmax.xlane.f32.xlu0 %v2111
      %v2113 = vpop.xlane.xlu0 %2112
      %v2114 = vsel %vm1975, %v1841, -inf
      %2115 = vmax.xlane.f32.xlu0 %v2114
      %v2116 = vpop.xlane.xlu0 %2115
      %v2117 = vsel %vm1975, %v1844, -inf
      %2118 = vmax.xlane.f32.xlu0 %v2117
      %v2119 = vpop.xlane.xlu0 %2118
      %v2120 = vsel %vm1975, %v1849, -inf
      %2121 = vmax.xlane.f32.xlu0 %v2120
      %v2122 = vpop.xlane.xlu0 %2121
      %v2123 = vsel %vm1975, %v1852, -inf
      %2124 = vmax.xlane.f32.xlu0 %v2123
      %v2125 = vpop.xlane.xlu0 %2124
      %v2126 = vsel %vm1975, %v1857, -inf
      %2127 = vmax.xlane.f32.xlu0 %v2126
      %v2128 = vpop.xlane.xlu0 %2127
      %v2129 = vsel %vm1975, %v1860, -inf
      %2130 = vmax.xlane.f32.xlu0 %v2129
      %v2131 = vpop.xlane.xlu0 %2130
      %v2132 = vsel %vm1975, %v1865, -inf
      %2133 = vmax.xlane.f32.xlu0 %v2132
      %v2134 = vpop.xlane.xlu0 %2133
      %v2135 = vsel %vm1975, %v1868, -inf
      %2136 = vmax.xlane.f32.xlu0 %v2135
      %v2137 = vpop.xlane.xlu0 %2136
      %v2138 = vsel %vm1975, %v1873, -inf
      %2139 = vmax.xlane.f32.xlu0 %v2138
      %v2140 = vpop.xlane.xlu0 %2139
      %v2141 = vsel %vm1975, %v1876, -inf
      %2142 = vmax.xlane.f32.xlu0 %v2141
      %v2143 = vpop.xlane.xlu0 %2142
      %v2144 = vsel %vm1975, %v1881, -inf
      %2145 = vmax.xlane.f32.xlu0 %v2144
      %v2146 = vpop.xlane.xlu0 %2145
      %v2147 = vsel %vm1975, %v1884, -inf
      %2148 = vmax.xlane.f32.xlu0 %v2147
      %v2149 = vpop.xlane.xlu0 %2148
      %v2150 = vsel %vm1975, %v1889, -inf
      %2151 = vmax.xlane.f32.xlu0 %v2150
      %v2152 = vpop.xlane.xlu0 %2151
      %v2153 = vsel %vm1975, %v1892, -inf
      %2154 = vmax.xlane.f32.xlu0 %v2153
      %v2155 = vpop.xlane.xlu0 %2154
      %v2156 = vsel %vm1975, %v1897, -inf
      %2157 = vmax.xlane.f32.xlu0 %v2156
      %v2158 = vpop.xlane.xlu0 %2157
      %v2159 = vsel %vm1975, %v1900, -inf
      %2160 = vmax.xlane.f32.xlu0 %v2159
      %v2161 = vpop.xlane.xlu0 %2160
      %v2162 = vsel %vm1975, %v1905, -inf
      %2163 = vmax.xlane.f32.xlu0 %v2162
      %v2164 = vpop.xlane.xlu0 %2163
      %v2165 = vsel %vm1975, %v1908, -inf
      %2166 = vmax.xlane.f32.xlu0 %v2165
      %v2167 = vpop.xlane.xlu0 %2166
      %v2168 = vmax.f32 %v1911, %v1978
      %v2169 = vmax.f32 %v1912, %v1981
      %v2170 = vmax.f32 %v1913, %v1984
      %v2171 = vmax.f32 %v1914, %v1987
      %v2172 = vmax.f32 %v1915, %v1990
      %v2173 = vmax.f32 %v1916, %v1993
      %v2174 = vmax.f32 %v1917, %v1996
      %v2175 = vmax.f32 %v1918, %v1999
      %v2176 = vmax.f32 %v1919, %v2002
      %v2177 = vmax.f32 %v1920, %v2005
      %v2178 = vmax.f32 %v1921, %v2008
      %v2179 = vmax.f32 %v1922, %v2011
      %v2180 = vmax.f32 %v1923, %v2014
      %v2181 = vmax.f32 %v1924, %v2017
      %v2182 = vmax.f32 %v1925, %v2020
      %v2183 = vmax.f32 %v1926, %v2023
      %v2184 = vmax.f32 %v1927, %v2026
      %v2185 = vmax.f32 %v1928, %v2029
      %v2186 = vmax.f32 %v1929, %v2032
      %v2187 = vmax.f32 %v1930, %v2035
      %v2188 = vmax.f32 %v1931, %v2038
      %v2189 = vmax.f32 %v1932, %v2041
      %v2190 = vmax.f32 %v1933, %v2044
      %v2191 = vmax.f32 %v1934, %v2047
      %v2192 = vmax.f32 %v1935, %v2050
      %v2193 = vmax.f32 %v1936, %v2053
      %v2194 = vmax.f32 %v1937, %v2056
      %v2195 = vmax.f32 %v1938, %v2059
      %v2196 = vmax.f32 %v1939, %v2062
      %v2197 = vmax.f32 %v1940, %v2065
      %v2198 = vmax.f32 %v1941, %v2068
      %v2199 = vmax.f32 %v1942, %v2071
      %v2200 = vmax.f32 %v1943, %v2074
      %v2201 = vmax.f32 %v1944, %v2077
      %v2202 = vmax.f32 %v1945, %v2080
      %v2203 = vmax.f32 %v1946, %v2083
      %v2204 = vmax.f32 %v1947, %v2086
      %v2205 = vmax.f32 %v1948, %v2089
      %v2206 = vmax.f32 %v1949, %v2092
      %v2207 = vmax.f32 %v1950, %v2095
      %v2208 = vmax.f32 %v1951, %v2098
      %v2209 = vmax.f32 %v1952, %v2101
      %v2210 = vmax.f32 %v1953, %v2104
      %v2211 = vmax.f32 %v1954, %v2107
      %v2212 = vmax.f32 %v1955, %v2110
      %v2213 = vmax.f32 %v1956, %v2113
      %v2214 = vmax.f32 %v1957, %v2116
      %v2215 = vmax.f32 %v1958, %v2119
      %v2216 = vmax.f32 %v1959, %v2122
      %v2217 = vmax.f32 %v1960, %v2125
      %v2218 = vmax.f32 %v1961, %v2128
      %v2219 = vmax.f32 %v1962, %v2131
      %v2220 = vmax.f32 %v1963, %v2134
      %v2221 = vmax.f32 %v1964, %v2137
      %v2222 = vmax.f32 %v1965, %v2140
      %v2223 = vmax.f32 %v1966, %v2143
      %v2224 = vmax.f32 %v1967, %v2146
      %v2225 = vmax.f32 %v1968, %v2149
      %v2226 = vmax.f32 %v1969, %v2152
      %v2227 = vmax.f32 %v1970, %v2155
      %v2228 = vmax.f32 %v1971, %v2158
      %v2229 = vmax.f32 %v1972, %v2161
      %v2230 = vmax.f32 %v1973, %v2164
      %v2231 = vmax.f32 %v1974, %v2167
      %vm2232 = vcmask 7168
      %2233 = vst.msk [vmem:[%s379] sm:$0xff] %vm2232, %v2168
      %2234 = vst.msk [vmem:[%s379 + $0x8] sm:$0xff] %vm2232, %v2169
      %2235 = vst.msk [vmem:[%s379 + $0x10] sm:$0xff] %vm2232, %v2170
      %2236 = vst.msk [vmem:[%s379 + $0x18] sm:$0xff] %vm2232, %v2171
      %2237 = vst.msk [vmem:[%s379 + $0x20] sm:$0xff] %vm2232, %v2172
      %2238 = vst.msk [vmem:[%s379 + $0x28] sm:$0xff] %vm2232, %v2173
      %2239 = vst.msk [vmem:[%s379 + $0x30] sm:$0xff] %vm2232, %v2174
      %2240 = vst.msk [vmem:[%s379 + $0x38] sm:$0xff] %vm2232, %v2175
      %2241 = vst.msk [vmem:[%s379 + $0x40] sm:$0xff] %vm2232, %v2176
      %2242 = vst.msk [vmem:[%s379 + $0x48] sm:$0xff] %vm2232, %v2177
      %2243 = vst.msk [vmem:[%s379 + $0x50] sm:$0xff] %vm2232, %v2178
      %2244 = vst.msk [vmem:[%s379 + $0x58] sm:$0xff] %vm2232, %v2179
      %2245 = vst.msk [vmem:[%s379 + $0x60] sm:$0xff] %vm2232, %v2180
      %2246 = vst.msk [vmem:[%s379 + $0x68] sm:$0xff] %vm2232, %v2181
      %2247 = vst.msk [vmem:[%s379 + $0x70] sm:$0xff] %vm2232, %v2182
      %2248 = vst.msk [vmem:[%s379 + $0x78] sm:$0xff] %vm2232, %v2183
      %2249 = vst.msk [vmem:[%s379 + $0x80] sm:$0xff] %vm2232, %v2184
      %2250 = vst.msk [vmem:[%s379 + $0x88] sm:$0xff] %vm2232, %v2185
      %2251 = vst.msk [vmem:[%s379 + $0x90] sm:$0xff] %vm2232, %v2186
      %2252 = vst.msk [vmem:[%s379 + $0x98] sm:$0xff] %vm2232, %v2187
      %2253 = vst.msk [vmem:[%s379 + $0xa0] sm:$0xff] %vm2232, %v2188
      %2254 = vst.msk [vmem:[%s379 + $0xa8] sm:$0xff] %vm2232, %v2189
      %2255 = vst.msk [vmem:[%s379 + $0xb0] sm:$0xff] %vm2232, %v2190
      %2256 = vst.msk [vmem:[%s379 + $0xb8] sm:$0xff] %vm2232, %v2191
      %2257 = vst.msk [vmem:[%s379 + $0xc0] sm:$0xff] %vm2232, %v2192
      %2258 = vst.msk [vmem:[%s379 + $0xc8] sm:$0xff] %vm2232, %v2193
      %2259 = vst.msk [vmem:[%s379 + $0xd0] sm:$0xff] %vm2232, %v2194
      %2260 = vst.msk [vmem:[%s379 + $0xd8] sm:$0xff] %vm2232, %v2195
      %2261 = vst.msk [vmem:[%s379 + $0xe0] sm:$0xff] %vm2232, %v2196
      %2262 = vst.msk [vmem:[%s379 + $0xe8] sm:$0xff] %vm2232, %v2197
      %2263 = vst.msk [vmem:[%s379 + $0xf0] sm:$0xff] %vm2232, %v2198
      %2264 = vst.msk [vmem:[%s379 + $0xf8] sm:$0xff] %vm2232, %v2199
      %2265 = vst.msk [vmem:[%s379 + $0x100] sm:$0xff] %vm2232, %v2200
      %2266 = vst.msk [vmem:[%s379 + $0x108] sm:$0xff] %vm2232, %v2201
      %2267 = vst.msk [vmem:[%s379 + $0x110] sm:$0xff] %vm2232, %v2202
      %2268 = vst.msk [vmem:[%s379 + $0x118] sm:$0xff] %vm2232, %v2203
      %2269 = vst.msk [vmem:[%s379 + $0x120] sm:$0xff] %vm2232, %v2204
      %2270 = vst.msk [vmem:[%s379 + $0x128] sm:$0xff] %vm2232, %v2205
      %2271 = vst.msk [vmem:[%s379 + $0x130] sm:$0xff] %vm2232, %v2206
      %2272 = vst.msk [vmem:[%s379 + $0x138] sm:$0xff] %vm2232, %v2207
      %2273 = vst.msk [vmem:[%s379 + $0x140] sm:$0xff] %vm2232, %v2208
      %2274 = vst.msk [vmem:[%s379 + $0x148] sm:$0xff] %vm2232, %v2209
      %2275 = vst.msk [vmem:[%s379 + $0x150] sm:$0xff] %vm2232, %v2210
      %2276 = vst.msk [vmem:[%s379 + $0x158] sm:$0xff] %vm2232, %v2211
      %2277 = vst.msk [vmem:[%s379 + $0x160] sm:$0xff] %vm2232, %v2212
      %2278 = vst.msk [vmem:[%s379 + $0x168] sm:$0xff] %vm2232, %v2213
      %2279 = vst.msk [vmem:[%s379 + $0x170] sm:$0xff] %vm2232, %v2214
      %2280 = vst.msk [vmem:[%s379 + $0x178] sm:$0xff] %vm2232, %v2215
      %2281 = vst.msk [vmem:[%s379 + $0x180] sm:$0xff] %vm2232, %v2216
      %2282 = vst.msk [vmem:[%s379 + $0x188] sm:$0xff] %vm2232, %v2217
      %2283 = vst.msk [vmem:[%s379 + $0x190] sm:$0xff] %vm2232, %v2218
      %2284 = vst.msk [vmem:[%s379 + $0x198] sm:$0xff] %vm2232, %v2219
      %2285 = vst.msk [vmem:[%s379 + $0x1a0] sm:$0xff] %vm2232, %v2220
      %2286 = vst.msk [vmem:[%s379 + $0x1a8] sm:$0xff] %vm2232, %v2221
      %2287 = vst.msk [vmem:[%s379 + $0x1b0] sm:$0xff] %vm2232, %v2222
      %2288 = vst.msk [vmem:[%s379 + $0x1b8] sm:$0xff] %vm2232, %v2223
      %2289 = vst.msk [vmem:[%s379 + $0x1c0] sm:$0xff] %vm2232, %v2224
      %2290 = vst.msk [vmem:[%s379 + $0x1c8] sm:$0xff] %vm2232, %v2225
      %2291 = vst.msk [vmem:[%s379 + $0x1d0] sm:$0xff] %vm2232, %v2226
      %2292 = vst.msk [vmem:[%s379 + $0x1d8] sm:$0xff] %vm2232, %v2227
      %2293 = vst.msk [vmem:[%s379 + $0x1e0] sm:$0xff] %vm2232, %v2228
      %2294 = vst.msk [vmem:[%s379 + $0x1e8] sm:$0xff] %vm2232, %v2229
      %2295 = vst.msk [vmem:[%s379 + $0x1f0] sm:$0xff] %vm2232, %v2230
      %2296 = vst.msk [vmem:[%s379 + $0x1f8] sm:$0xff] %vm2232, %v2231
      %s2297 = smul.u32 64, %s24
      %p2298 = scmp.lt.s32.totalorder %s23, 1
      %s2299 = scalar_select %p2298, %s23, 1
      %p2300 = scmp.lt.s32.totalorder %s2297, 127
      %s2301 = scalar_select %p2300, %s2297, 127
      %s2302 = smul.addr %s2299, 128
      %s2303 = sadd.s32 %s2301, %s2302
      %s2304 = smul.addr %s2303, 8
      %s2305 = scalar_lea.vmem %s7, %s2304
      // Predicated region
      $region53: #{local_feature2_forward.6} parent=47 // pred_check
        %p2306 = pneg %p226
      $region54: #{local_feature2_forward.6} parent=47 // pred_check_branch
        %2308 = sbr.rel (%p2306) target = $region56
      $region55: #{local_feature2_forward.6} parent=47 // pred_region
        %s2309 = smul.u32 64, %s24
      $region56: #{local_feature2_forward.6} parent=47 // pred_fallthru
        _
    $region48: #{local_feature2_forward.6} parent=5 // pred_fallthru
      _
    %p2310 = scmp.le.s32.totalorder 2, %s13
    // Predicated region
    $region57: #{local_feature2_forward.6} parent=5 // pred_check
      %p2311 = pneg %p2310
    $region58: #{local_feature2_forward.6} parent=5 // pred_check_branch
      %2313 = sbr.rel (%p2311) target = $region60
    $region59: #{local_feature2_forward.6} parent=5 // pred_region
      %s2314 = ssub.s32 %s13, 2
      // Predicated region
      $region61: #{local_feature2_forward.6} parent=59 // pred_check
        %p2315 = pneg %p232
      $region62: #{local_feature2_forward.6} parent=59 // pred_check_branch
        %2317 = sbr.rel (%p2315) target = $region64
      $region63: #{local_feature2_forward.6} parent=59 // pred_region
        %s2318 = smul.u32 64, %s27
        %p2319 = scmp.lt.s32.totalorder %s26, 1
        %s2320 = scalar_select %p2319, %s26, 1
        %p2321 = scmp.lt.s32.totalorder %s2318, 127
        %s2322 = scalar_select %p2321, %s2318, 127
        %s2323 = smul.addr %s2320, 128
        %s2324 = sadd.s32 %s2322, %s2323
        %s2325 = smul.addr %s2324, 8
        %s2326 = scalar_lea.vmem %s7, %s2325
      $region64: #{local_feature2_forward.6} parent=59 // pred_fallthru
        _
    $region60: #{local_feature2_forward.6} parent=5 // pred_fallthru
      _
  $region6: #{local_feature2_forward.6} parent=0 // loop_footer
    %s17 = sadd.s32 1, %s13
  $region7: #{local_feature2_forward.6} parent=0 // loop_footer_branch
    %12 = sbr.rel target = $region3
  $region8: #{local_feature2_forward.6} parent=0 // loop_exit
    _

// kernel: local_feature2_forward.7
$region0: #{local_feature2_forward.7}
  #allocation0 [shape = 'u32[]', space=smem, size = 0x4, offset = 0x4, fixed_abs, tag = 'smem constant byte address 0x4 - core index']
  #allocation1 [shape = 'u32[144,128]{1,0:T(1,128)}', space=vmem, size = 0x12000, scoped, tag = 'internal scratch']
  %s0 = inlined_call_operand.vmem [shape: bf16[2,1024], index: 0, kind: input, shape index: {}]
  %s1 = inlined_call_operand.vmem [shape: bf16[1024,512], index: 1, kind: input, shape index: {}]
  %s2 = inlined_call_operand.vmem [shape: f32[1,512], index: 2, kind: input, shape index: {}]
  %s3 = inlined_call_operand.vmem [shape: bf16[512,256], index: 3, kind: input, shape index: {}]
  %s4 = inlined_call_operand.vmem [shape: f32[1,256], index: 4, kind: input, shape index: {}]
  %s5 = inlined_call_operand.vmem [shape: f32[256,128], index: 5, kind: input, shape index: {}]
  %s6 = inlined_call_operand.vmem [shape: f32[1,128], index: 6, kind: input, shape index: {}]
  %s7 = inlined_call_operand.hbm [shape: f32[2,128], index: 7, kind: output, shape index: {}]
  %s8 = sld [smem:[#allocation0]]
  $region38: #{local_feature2_forward.7} parent=0
    _
  %s10 = ssub.s32 1, %s8
  %s11 = scalar_select 0, %s10, %s8
  $region1: #{local_feature2_forward.7} parent=0
    #allocation2 [shape = 'u8[1024]{0}', space=vmem, size = 0x400, scoped, tag = 'output window, operand 0, single buffered']
    #allocation3 [shape = 's32[1]{0}', space=sflag, size = 0x4, scoped, tag = 'scoped memory for local_feature2_forward.7']
    %12 = vsyncpa [#allocation3], 0
    // Predicated region
    $region2: #{local_feature2_forward.7} parent=1 // pred_check
      _
    $region3: #{local_feature2_forward.7} parent=1 // pred_check_branch
      %14 = sbr.rel (0) target = $region5
    $region4: #{local_feature2_forward.7} parent=1 // pred_region
      _
    $region5: #{local_feature2_forward.7} parent=1 // pred_fallthru
      _
    // Predicated region
    $region6: #{local_feature2_forward.7} parent=1 // pred_check
      _
    $region7: #{local_feature2_forward.7} parent=1 // pred_check_branch
      %16 = sbr.rel (0) target = $region9
    $region8: #{local_feature2_forward.7} parent=1 // pred_region
      _
    $region9: #{local_feature2_forward.7} parent=1 // pred_fallthru
      _
    // Predicated region
    $region10: #{local_feature2_forward.7} parent=1 // pred_check
      _
    $region11: #{local_feature2_forward.7} parent=1 // pred_check_branch
      %18 = sbr.rel (0) target = $region13
    $region12: #{local_feature2_forward.7} parent=1 // pred_region
      _
    $region13: #{local_feature2_forward.7} parent=1 // pred_fallthru
      _
    // Predicated region
    $region14: #{local_feature2_forward.7} parent=1 // pred_check
      _
    $region15: #{local_feature2_forward.7} parent=1 // pred_check_branch
      %20 = sbr.rel (0) target = $region17
    $region16: #{local_feature2_forward.7} parent=1 // pred_region
      _
    $region17: #{local_feature2_forward.7} parent=1 // pred_fallthru
      _
    // Predicated region
    $region18: #{local_feature2_forward.7} parent=1 // pred_check
      _
    $region19: #{local_feature2_forward.7} parent=1 // pred_check_branch
      %22 = sbr.rel (0) target = $region21
    $region20: #{local_feature2_forward.7} parent=1 // pred_region
      _
    $region21: #{local_feature2_forward.7} parent=1 // pred_fallthru
      _
    // Predicated region
    $region22: #{local_feature2_forward.7} parent=1 // pred_check
      _
    $region23: #{local_feature2_forward.7} parent=1 // pred_check_branch
      %24 = sbr.rel (0) target = $region25
    $region24: #{local_feature2_forward.7} parent=1 // pred_region
      _
    $region25: #{local_feature2_forward.7} parent=1 // pred_fallthru
      _
    // Predicated region
    $region26: #{local_feature2_forward.7} parent=1 // pred_check
      _
    $region27: #{local_feature2_forward.7} parent=1 // pred_check_branch
      %26 = sbr.rel (0) target = $region29
    $region28: #{local_feature2_forward.7} parent=1 // pred_region
      _
    $region29: #{local_feature2_forward.7} parent=1 // pred_fallthru
      _
    %v27 = vld [vmem:[%s0] sm:$0xff]
    %v28 = vld [vmem:[%s1] sm:$0xff]
    %v29 = vld [vmem:[%s1 + $0x8] sm:$0xff]
    %v30 = vld [vmem:[%s1 + $0x10] sm:$0xff]
    %v31 = vld [vmem:[%s1 + $0x18] sm:$0xff]
    %v32 = vld [vmem:[%s1 + $0x20] sm:$0xff]
    %v33 = vld [vmem:[%s1 + $0x28] sm:$0xff]
    %v34 = vld [vmem:[%s1 + $0x30] sm:$0xff]
    %v35 = vld [vmem:[%s1 + $0x38] sm:$0xff]
    %v36 = vld [vmem:[%s1 + $0x40] sm:$0xff]
    %v37 = vld [vmem:[%s1 + $0x48] sm:$0xff]
    %v38 = vld [vmem:[%s1 + $0x50] sm:$0xff]
    %v39 = vld [vmem:[%s1 + $0x58] sm:$0xff]
    %v40 = vld [vmem:[%s1 + $0x60] sm:$0xff]
    %v41 = vld [vmem:[%s1 + $0x68] sm:$0xff]
    %v42 = vld [vmem:[%s1 + $0x70] sm:$0xff]
    %v43 = vld [vmem:[%s1 + $0x78] sm:$0xff]
    %v44 = vld [vmem:[%s1 + $0x80] sm:$0xff]
    %v45 = vld [vmem:[%s1 + $0x88] sm:$0xff]
    %v46 = vld [vmem:[%s1 + $0x90] sm:$0xff]
    %v47 = vld [vmem:[%s1 + $0x98] sm:$0xff]
    %v48 = vld [vmem:[%s1 + $0xa0] sm:$0xff]
    %v49 = vld [vmem:[%s1 + $0xa8] sm:$0xff]
    %v50 = vld [vmem:[%s1 + $0xb0] sm:$0xff]
    %v51 = vld [vmem:[%s1 + $0xb8] sm:$0xff]
    %v52 = vld [vmem:[%s1 + $0xc0] sm:$0xff]
    %v53 = vld [vmem:[%s1 + $0xc8] sm:$0xff]
    %v54 = vld [vmem:[%s1 + $0xd0] sm:$0xff]
    %v55 = vld [vmem:[%s1 + $0xd8] sm:$0xff]
    %v56 = vld [vmem:[%s1 + $0xe0] sm:$0xff]
    %v57 = vld [vmem:[%s1 + $0xe8] sm:$0xff]
    %v58 = vld [vmem:[%s1 + $0xf0] sm:$0xff]
    %v59 = vld [vmem:[%s1 + $0xf8] sm:$0xff]
    %v60 = vld [vmem:[%s1 + $0x100] sm:$0xff]
    %v61 = vld [vmem:[%s1 + $0x108] sm:$0xff]
    %v62 = vld [vmem:[%s1 + $0x110] sm:$0xff]
    %v63 = vld [vmem:[%s1 + $0x118] sm:$0xff]
    %v64 = vld [vmem:[%s1 + $0x120] sm:$0xff]
    %v65 = vld [vmem:[%s1 + $0x128] sm:$0xff]
    %v66 = vld [vmem:[%s1 + $0x130] sm:$0xff]
    %v67 = vld [vmem:[%s1 + $0x138] sm:$0xff]
    %v68 = vld [vmem:[%s1 + $0x140] sm:$0xff]
    %v69 = vld [vmem:[%s1 + $0x148] sm:$0xff]
    %v70 = vld [vmem:[%s1 + $0x150] sm:$0xff]
    %v71 = vld [vmem:[%s1 + $0x158] sm:$0xff]
    %v72 = vld [vmem:[%s1 + $0x160] sm:$0xff]
    %v73 = vld [vmem:[%s1 + $0x168] sm:$0xff]
    %v74 = vld [vmem:[%s1 + $0x170] sm:$0xff]
    %v75 = vld [vmem:[%s1 + $0x178] sm:$0xff]
    %v76 = vld [vmem:[%s1 + $0x180] sm:$0xff]
    %v77 = vld [vmem:[%s1 + $0x188] sm:$0xff]
    %v78 = vld [vmem:[%s1 + $0x190] sm:$0xff]
    %v79 = vld [vmem:[%s1 + $0x198] sm:$0xff]
    %v80 = vld [vmem:[%s1 + $0x1a0] sm:$0xff]
    %v81 = vld [vmem:[%s1 + $0x1a8] sm:$0xff]
    %v82 = vld [vmem:[%s1 + $0x1b0] sm:$0xff]
    %v83 = vld [vmem:[%s1 + $0x1b8] sm:$0xff]
    %v84 = vld [vmem:[%s1 + $0x1c0] sm:$0xff]
    %v85 = vld [vmem:[%s1 + $0x1c8] sm:$0xff]
    %v86 = vld [vmem:[%s1 + $0x1d0] sm:$0xff]
    %v87 = vld [vmem:[%s1 + $0x1d8] sm:$0xff]
    %v88 = vld [vmem:[%s1 + $0x1e0] sm:$0xff]
    %v89 = vld [vmem:[%s1 + $0x1e8] sm:$0xff]
    %v90 = vld [vmem:[%s1 + $0x1f0] sm:$0xff]
    %v91 = vld [vmem:[%s1 + $0x1f8] sm:$0xff]
    %v92 = vld [vmem:[%s1 + $0x200] sm:$0xff]
    %v93 = vld [vmem:[%s1 + $0x208] sm:$0xff]
    %v94 = vld [vmem:[%s1 + $0x210] sm:$0xff]
    %v95 = vld [vmem:[%s1 + $0x218] sm:$0xff]
    %v96 = vld [vmem:[%s1 + $0x220] sm:$0xff]
    %v97 = vld [vmem:[%s1 + $0x228] sm:$0xff]
    %v98 = vld [vmem:[%s1 + $0x230] sm:$0xff]
    %v99 = vld [vmem:[%s1 + $0x238] sm:$0xff]
    %v100 = vld [vmem:[%s1 + $0x240] sm:$0xff]
    %v101 = vld [vmem:[%s1 + $0x248] sm:$0xff]
    %v102 = vld [vmem:[%s1 + $0x250] sm:$0xff]
    %v103 = vld [vmem:[%s1 + $0x258] sm:$0xff]
    %v104 = vld [vmem:[%s1 + $0x260] sm:$0xff]
    %v105 = vld [vmem:[%s1 + $0x268] sm:$0xff]
    %v106 = vld [vmem:[%s1 + $0x270] sm:$0xff]
    %v107 = vld [vmem:[%s1 + $0x278] sm:$0xff]
    %v108 = vld [vmem:[%s1 + $0x280] sm:$0xff]
    %v109 = vld [vmem:[%s1 + $0x288] sm:$0xff]
    %v110 = vld [vmem:[%s1 + $0x290] sm:$0xff]
    %v111 = vld [vmem:[%s1 + $0x298] sm:$0xff]
    %v112 = vld [vmem:[%s1 + $0x2a0] sm:$0xff]
    %v113 = vld [vmem:[%s1 + $0x2a8] sm:$0xff]
    %v114 = vld [vmem:[%s1 + $0x2b0] sm:$0xff]
    %v115 = vld [vmem:[%s1 + $0x2b8] sm:$0xff]
    %v116 = vld [vmem:[%s1 + $0x2c0] sm:$0xff]
    %v117 = vld [vmem:[%s1 + $0x2c8] sm:$0xff]
    %v118 = vld [vmem:[%s1 + $0x2d0] sm:$0xff]
    %v119 = vld [vmem:[%s1 + $0x2d8] sm:$0xff]
    %v120 = vld [vmem:[%s1 + $0x2e0] sm:$0xff]
    %v121 = vld [vmem:[%s1 + $0x2e8] sm:$0xff]
    %v122 = vld [vmem:[%s1 + $0x2f0] sm:$0xff]
    %v123 = vld [vmem:[%s1 + $0x2f8] sm:$0xff]
    %v124 = vld [vmem:[%s1 + $0x300] sm:$0xff]
    %v125 = vld [vmem:[%s1 + $0x308] sm:$0xff]
    %v126 = vld [vmem:[%s1 + $0x310] sm:$0xff]
    %v127 = vld [vmem:[%s1 + $0x318] sm:$0xff]
    %v128 = vld [vmem:[%s1 + $0x320] sm:$0xff]
    %v129 = vld [vmem:[%s1 + $0x328] sm:$0xff]
    %v130 = vld [vmem:[%s1 + $0x330] sm:$0xff]
    %v131 = vld [vmem:[%s1 + $0x338] sm:$0xff]
    %v132 = vld [vmem:[%s1 + $0x340] sm:$0xff]
    %v133 = vld [vmem:[%s1 + $0x348] sm:$0xff]
    %v134 = vld [vmem:[%s1 + $0x350] sm:$0xff]
    %v135 = vld [vmem:[%s1 + $0x358] sm:$0xff]
    %v136 = vld [vmem:[%s1 + $0x360] sm:$0xff]
    %v137 = vld [vmem:[%s1 + $0x368] sm:$0xff]
    %v138 = vld [vmem:[%s1 + $0x370] sm:$0xff]
    %v139 = vld [vmem:[%s1 + $0x378] sm:$0xff]
    %v140 = vld [vmem:[%s1 + $0x380] sm:$0xff]
    %v141 = vld [vmem:[%s1 + $0x388] sm:$0xff]
    %v142 = vld [vmem:[%s1 + $0x390] sm:$0xff]
    %v143 = vld [vmem:[%s1 + $0x398] sm:$0xff]
    %v144 = vld [vmem:[%s1 + $0x3a0] sm:$0xff]
    %v145 = vld [vmem:[%s1 + $0x3a8] sm:$0xff]
    %v146 = vld [vmem:[%s1 + $0x3b0] sm:$0xff]
    %v147 = vld [vmem:[%s1 + $0x3b8] sm:$0xff]
    %v148 = vld [vmem:[%s1 + $0x3c0] sm:$0xff]
    %v149 = vld [vmem:[%s1 + $0x3c8] sm:$0xff]
    %v150 = vld [vmem:[%s1 + $0x3d0] sm:$0xff]
    %v151 = vld [vmem:[%s1 + $0x3d8] sm:$0xff]
    %v152 = vld [vmem:[%s1 + $0x3e0] sm:$0xff]
    %v153 = vld [vmem:[%s1 + $0x3e8] sm:$0xff]
    %v154 = vld [vmem:[%s1 + $0x3f0] sm:$0xff]
    %v155 = vld [vmem:[%s1 + $0x3f8] sm:$0xff]
    %v156 = vld [vmem:[%s1 + $0x400] sm:$0xff]
    %v157 = vld [vmem:[%s1 + $0x408] sm:$0xff]
    %v158 = vld [vmem:[%s1 + $0x410] sm:$0xff]
    %v159 = vld [vmem:[%s1 + $0x418] sm:$0xff]
    %v160 = vld [vmem:[%s1 + $0x420] sm:$0xff]
    %v161 = vld [vmem:[%s1 + $0x428] sm:$0xff]
    %v162 = vld [vmem:[%s1 + $0x430] sm:$0xff]
    %v163 = vld [vmem:[%s1 + $0x438] sm:$0xff]
    %v164 = vld [vmem:[%s1 + $0x440] sm:$0xff]
    %v165 = vld [vmem:[%s1 + $0x448] sm:$0xff]
    %v166 = vld [vmem:[%s1 + $0x450] sm:$0xff]
    %v167 = vld [vmem:[%s1 + $0x458] sm:$0xff]
    %v168 = vld [vmem:[%s1 + $0x460] sm:$0xff]
    %v169 = vld [vmem:[%s1 + $0x468] sm:$0xff]
    %v170 = vld [vmem:[%s1 + $0x470] sm:$0xff]
    %v171 = vld [vmem:[%s1 + $0x478] sm:$0xff]
    %v172 = vld [vmem:[%s1 + $0x480] sm:$0xff]
    %v173 = vld [vmem:[%s1 + $0x488] sm:$0xff]
    %v174 = vld [vmem:[%s1 + $0x490] sm:$0xff]
    %v175 = vld [vmem:[%s1 + $0x498] sm:$0xff]
    %v176 = vld [vmem:[%s1 + $0x4a0] sm:$0xff]
    %v177 = vld [vmem:[%s1 + $0x4a8] sm:$0xff]
    %v178 = vld [vmem:[%s1 + $0x4b0] sm:$0xff]
    %v179 = vld [vmem:[%s1 + $0x4b8] sm:$0xff]
    %v180 = vld [vmem:[%s1 + $0x4c0] sm:$0xff]
    %v181 = vld [vmem:[%s1 + $0x4c8] sm:$0xff]
    %v182 = vld [vmem:[%s1 + $0x4d0] sm:$0xff]
    %v183 = vld [vmem:[%s1 + $0x4d8] sm:$0xff]
    %v184 = vld [vmem:[%s1 + $0x4e0] sm:$0xff]
    %v185 = vld [vmem:[%s1 + $0x4e8] sm:$0xff]
    %v186 = vld [vmem:[%s1 + $0x4f0] sm:$0xff]
    %v187 = vld [vmem:[%s1 + $0x4f8] sm:$0xff]
    %v188 = vld [vmem:[%s1 + $0x500] sm:$0xff]
    %v189 = vld [vmem:[%s1 + $0x508] sm:$0xff]
    %v190 = vld [vmem:[%s1 + $0x510] sm:$0xff]
    %v191 = vld [vmem:[%s1 + $0x518] sm:$0xff]
    %v192 = vld [vmem:[%s1 + $0x520] sm:$0xff]
    %v193 = vld [vmem:[%s1 + $0x528] sm:$0xff]
    %v194 = vld [vmem:[%s1 + $0x530] sm:$0xff]
    %v195 = vld [vmem:[%s1 + $0x538] sm:$0xff]
    %v196 = vld [vmem:[%s1 + $0x540] sm:$0xff]
    %v197 = vld [vmem:[%s1 + $0x548] sm:$0xff]
    %v198 = vld [vmem:[%s1 + $0x550] sm:$0xff]
    %v199 = vld [vmem:[%s1 + $0x558] sm:$0xff]
    %v200 = vld [vmem:[%s1 + $0x560] sm:$0xff]
    %v201 = vld [vmem:[%s1 + $0x568] sm:$0xff]
    %v202 = vld [vmem:[%s1 + $0x570] sm:$0xff]
    %v203 = vld [vmem:[%s1 + $0x578] sm:$0xff]
    %v204 = vld [vmem:[%s1 + $0x580] sm:$0xff]
    %v205 = vld [vmem:[%s1 + $0x588] sm:$0xff]
    %v206 = vld [vmem:[%s1 + $0x590] sm:$0xff]
    %v207 = vld [vmem:[%s1 + $0x598] sm:$0xff]
    %v208 = vld [vmem:[%s1 + $0x5a0] sm:$0xff]
    %v209 = vld [vmem:[%s1 + $0x5a8] sm:$0xff]
    %v210 = vld [vmem:[%s1 + $0x5b0] sm:$0xff]
    %v211 = vld [vmem:[%s1 + $0x5b8] sm:$0xff]
    %v212 = vld [vmem:[%s1 + $0x5c0] sm:$0xff]
    %v213 = vld [vmem:[%s1 + $0x5c8] sm:$0xff]
    %v214 = vld [vmem:[%s1 + $0x5d0] sm:$0xff]
    %v215 = vld [vmem:[%s1 + $0x5d8] sm:$0xff]
    %v216 = vld [vmem:[%s1 + $0x5e0] sm:$0xff]
    %v217 = vld [vmem:[%s1 + $0x5e8] sm:$0xff]
    %v218 = vld [vmem:[%s1 + $0x5f0] sm:$0xff]
    %v219 = vld [vmem:[%s1 + $0x5f8] sm:$0xff]
    %v220 = vld [vmem:[%s1 + $0x600] sm:$0xff]
    %v221 = vld [vmem:[%s1 + $0x608] sm:$0xff]
    %v222 = vld [vmem:[%s1 + $0x610] sm:$0xff]
    %v223 = vld [vmem:[%s1 + $0x618] sm:$0xff]
    %v224 = vld [vmem:[%s1 + $0x620] sm:$0xff]
    %v225 = vld [vmem:[%s1 + $0x628] sm:$0xff]
    %v226 = vld [vmem:[%s1 + $0x630] sm:$0xff]
    %v227 = vld [vmem:[%s1 + $0x638] sm:$0xff]
    %v228 = vld [vmem:[%s1 + $0x640] sm:$0xff]
    %v229 = vld [vmem:[%s1 + $0x648] sm:$0xff]
    %v230 = vld [vmem:[%s1 + $0x650] sm:$0xff]
    %v231 = vld [vmem:[%s1 + $0x658] sm:$0xff]
    %v232 = vld [vmem:[%s1 + $0x660] sm:$0xff]
    %v233 = vld [vmem:[%s1 + $0x668] sm:$0xff]
    %v234 = vld [vmem:[%s1 + $0x670] sm:$0xff]
    %v235 = vld [vmem:[%s1 + $0x678] sm:$0xff]
    %v236 = vld [vmem:[%s1 + $0x680] sm:$0xff]
    %v237 = vld [vmem:[%s1 + $0x688] sm:$0xff]
    %v238 = vld [vmem:[%s1 + $0x690] sm:$0xff]
    %v239 = vld [vmem:[%s1 + $0x698] sm:$0xff]
    %v240 = vld [vmem:[%s1 + $0x6a0] sm:$0xff]
    %v241 = vld [vmem:[%s1 + $0x6a8] sm:$0xff]
    %v242 = vld [vmem:[%s1 + $0x6b0] sm:$0xff]
    %v243 = vld [vmem:[%s1 + $0x6b8] sm:$0xff]
    %v244 = vld [vmem:[%s1 + $0x6c0] sm:$0xff]
    %v245 = vld [vmem:[%s1 + $0x6c8] sm:$0xff]
    %v246 = vld [vmem:[%s1 + $0x6d0] sm:$0xff]
    %v247 = vld [vmem:[%s1 + $0x6d8] sm:$0xff]
    %v248 = vld [vmem:[%s1 + $0x6e0] sm:$0xff]
    %v249 = vld [vmem:[%s1 + $0x6e8] sm:$0xff]
    %v250 = vld [vmem:[%s1 + $0x6f0] sm:$0xff]
    %v251 = vld [vmem:[%s1 + $0x6f8] sm:$0xff]
    %v252 = vld [vmem:[%s1 + $0x700] sm:$0xff]
    %v253 = vld [vmem:[%s1 + $0x708] sm:$0xff]
    %v254 = vld [vmem:[%s1 + $0x710] sm:$0xff]
    %v255 = vld [vmem:[%s1 + $0x718] sm:$0xff]
    %v256 = vld [vmem:[%s1 + $0x720] sm:$0xff]
    %v257 = vld [vmem:[%s1 + $0x728] sm:$0xff]
    %v258 = vld [vmem:[%s1 + $0x730] sm:$0xff]
    %v259 = vld [vmem:[%s1 + $0x738] sm:$0xff]
    %v260 = vld [vmem:[%s1 + $0x740] sm:$0xff]
    %v261 = vld [vmem:[%s1 + $0x748] sm:$0xff]
    %v262 = vld [vmem:[%s1 + $0x750] sm:$0xff]
    %v263 = vld [vmem:[%s1 + $0x758] sm:$0xff]
    %v264 = vld [vmem:[%s1 + $0x760] sm:$0xff]
    %v265 = vld [vmem:[%s1 + $0x768] sm:$0xff]
    %v266 = vld [vmem:[%s1 + $0x770] sm:$0xff]
    %v267 = vld [vmem:[%s1 + $0x778] sm:$0xff]
    %v268 = vld [vmem:[%s1 + $0x780] sm:$0xff]
    %v269 = vld [vmem:[%s1 + $0x788] sm:$0xff]
    %v270 = vld [vmem:[%s1 + $0x790] sm:$0xff]
    %v271 = vld [vmem:[%s1 + $0x798] sm:$0xff]
    %v272 = vld [vmem:[%s1 + $0x7a0] sm:$0xff]
    %v273 = vld [vmem:[%s1 + $0x7a8] sm:$0xff]
    %v274 = vld [vmem:[%s1 + $0x7b0] sm:$0xff]
    %v275 = vld [vmem:[%s1 + $0x7b8] sm:$0xff]
    %v276 = vld [vmem:[%s1 + $0x7c0] sm:$0xff]
    %v277 = vld [vmem:[%s1 + $0x7c8] sm:$0xff]
    %v278 = vld [vmem:[%s1 + $0x7d0] sm:$0xff]
    %v279 = vld [vmem:[%s1 + $0x7d8] sm:$0xff]
    %v280 = vld [vmem:[%s1 + $0x7e0] sm:$0xff]
    %v281 = vld [vmem:[%s1 + $0x7e8] sm:$0xff]
    %v282 = vld [vmem:[%s1 + $0x7f0] sm:$0xff]
    %v283 = vld [vmem:[%s1 + $0x7f8] sm:$0xff]
    %v284 = vld [vmem:[%s2] sm:$0xf]
    %v286 = vlaneseq
    %v287 = vshrl.u32 %v286, 7
    %v288 = vsub.s32 0, %v287
    %v289 = vrot.slane %v284, %v288
    %v290 = vlaneseq
    %v291 = vshrl.u32 %v290, 7
    %v292 = vsub.s32 1, %v291
    %v293 = vrot.slane %v284, %v292
    %v294 = vlaneseq
    %v295 = vshrl.u32 %v294, 7
    %v296 = vsub.s32 2, %v295
    %v297 = vrot.slane %v284, %v296
    %v298 = vlaneseq
    %v299 = vshrl.u32 %v298, 7
    %v300 = vsub.s32 3, %v299
    %v301 = vrot.slane %v284, %v300
    %v307 = vcombine.high %v27, %v27
    %v309 = vunpack.c.l.s4 1966171168
    %v310 = vunpack.c.0.s8 %v309
    %v311 = vlaneseq
    %v312 = vshrl.u32 %v311, 7
    %v313 = vsub.s32 %v310, %v312
    %v314 = vrot.slane %v27, %v313
    %v316 = vunpack.c.l.s4 1966171168
    %v317 = vunpack.c.0.s8 %v316
    %v318 = vlaneseq
    %v319 = vshrl.u32 %v318, 7
    %v320 = vsub.s32 %v317, %v319
    %v321 = vrot.slane %v307, %v320
    %v322 = vcombine.high %v314, %v314
    %v323 = vcombine.high %v321, %v321
    %v325 = vunpack.c.l.s4 1966171168
    %v326 = vunpack.c.0.s8 %v325
    %v327 = vlaneseq
    %v328 = vshrl.u32 %v327, 7
    %v329 = vsub.s32 %v326, %v328
    %v330 = vrot.slane %v314, %v329
    %v332 = vunpack.c.l.s4 1966171168
    %v333 = vunpack.c.0.s8 %v332
    %v334 = vlaneseq
    %v335 = vshrl.u32 %v334, 7
    %v336 = vsub.s32 %v333, %v335
    %v337 = vrot.slane %v321, %v336
    %v339 = vunpack.c.l.s4 1966171168
    %v340 = vunpack.c.0.s8 %v339
    %v341 = vlaneseq
    %v342 = vshrl.u32 %v341, 7
    %v343 = vsub.s32 %v340, %v342
    %v344 = vrot.slane %v322, %v343
    %v346 = vunpack.c.l.s4 1966171168
    %v347 = vunpack.c.0.s8 %v346
    %v348 = vlaneseq
    %v349 = vshrl.u32 %v348, 7
    %v350 = vsub.s32 %v347, %v349
    %v351 = vrot.slane %v323, %v350
    %v352 = vcombine.high %v330, %v330
    %v353 = vcombine.high %v337, %v337
    %v354 = vcombine.high %v344, %v344
    %v355 = vcombine.high %v351, %v351
    %v620 = vunpack.c.l.b16 %v28
    %v621 = vunpack.c.h.b16 %v28
    %v622 = vunpack.c.l.b16 %v29
    %v623 = vunpack.c.h.b16 %v29
    %v624 = vunpack.c.l.b16 %v30
    %v625 = vunpack.c.h.b16 %v30
    %v626 = vunpack.c.l.b16 %v31
    %v627 = vunpack.c.h.b16 %v31
    %v628 = vunpack.c.l.b16 %v32
    %v629 = vunpack.c.h.b16 %v32
    %v630 = vunpack.c.l.b16 %v33
    %v631 = vunpack.c.h.b16 %v33
    %v632 = vunpack.c.l.b16 %v34
    %v633 = vunpack.c.h.b16 %v34
    %v634 = vunpack.c.l.b16 %v35
    %v635 = vunpack.c.h.b16 %v35
    %v636 = vunpack.c.l.b16 %v36
    %v637 = vunpack.c.h.b16 %v36
    %v638 = vunpack.c.l.b16 %v37
    %v639 = vunpack.c.h.b16 %v37
    %v640 = vunpack.c.l.b16 %v38
    %v641 = vunpack.c.h.b16 %v38
    %v642 = vunpack.c.l.b16 %v39
    %v643 = vunpack.c.h.b16 %v39
    %v644 = vunpack.c.l.b16 %v40
    %v645 = vunpack.c.h.b16 %v40
    %v646 = vunpack.c.l.b16 %v41
    %v647 = vunpack.c.h.b16 %v41
    %v648 = vunpack.c.l.b16 %v42
    %v649 = vunpack.c.h.b16 %v42
    %v650 = vunpack.c.l.b16 %v43
    %v651 = vunpack.c.h.b16 %v43
    %v652 = vunpack.c.l.b16 %v44
    %v653 = vunpack.c.h.b16 %v44
    %v654 = vunpack.c.l.b16 %v45
    %v655 = vunpack.c.h.b16 %v45
    %v656 = vunpack.c.l.b16 %v46
    %v657 = vunpack.c.h.b16 %v46
    %v658 = vunpack.c.l.b16 %v47
    %v659 = vunpack.c.h.b16 %v47
    %v660 = vunpack.c.l.b16 %v48
    %v661 = vunpack.c.h.b16 %v48
    %v662 = vunpack.c.l.b16 %v49
    %v663 = vunpack.c.h.b16 %v49
    %v664 = vunpack.c.l.b16 %v50
    %v665 = vunpack.c.h.b16 %v50
    %v666 = vunpack.c.l.b16 %v51
    %v667 = vunpack.c.h.b16 %v51
    %v668 = vunpack.c.l.b16 %v52
    %v669 = vunpack.c.h.b16 %v52
    %v670 = vunpack.c.l.b16 %v53
    %v671 = vunpack.c.h.b16 %v53
    %v672 = vunpack.c.l.b16 %v54
    %v673 = vunpack.c.h.b16 %v54
    %v674 = vunpack.c.l.b16 %v55
    %v675 = vunpack.c.h.b16 %v55
    %v676 = vunpack.c.l.b16 %v56
    %v677 = vunpack.c.h.b16 %v56
    %v678 = vunpack.c.l.b16 %v57
    %v679 = vunpack.c.h.b16 %v57
    %v680 = vunpack.c.l.b16 %v58
    %v681 = vunpack.c.h.b16 %v58
    %v682 = vunpack.c.l.b16 %v59
    %v683 = vunpack.c.h.b16 %v59
    %v684 = vunpack.c.l.b16 %v60
    %v685 = vunpack.c.h.b16 %v60
    %v686 = vunpack.c.l.b16 %v61
    %v687 = vunpack.c.h.b16 %v61
    %v688 = vunpack.c.l.b16 %v62
    %v689 = vunpack.c.h.b16 %v62
    %v690 = vunpack.c.l.b16 %v63
    %v691 = vunpack.c.h.b16 %v63
    %v692 = vunpack.c.l.b16 %v64
    %v693 = vunpack.c.h.b16 %v64
    %v694 = vunpack.c.l.b16 %v65
    %v695 = vunpack.c.h.b16 %v65
    %v696 = vunpack.c.l.b16 %v66
    %v697 = vunpack.c.h.b16 %v66
    %v698 = vunpack.c.l.b16 %v67
    %v699 = vunpack.c.h.b16 %v67
    %v700 = vunpack.c.l.b16 %v68
    %v701 = vunpack.c.h.b16 %v68
    %v702 = vunpack.c.l.b16 %v69
    %v703 = vunpack.c.h.b16 %v69
    %v704 = vunpack.c.l.b16 %v70
    %v705 = vunpack.c.h.b16 %v70
    %v706 = vunpack.c.l.b16 %v71
    %v707 = vunpack.c.h.b16 %v71
    %v708 = vunpack.c.l.b16 %v72
    %v709 = vunpack.c.h.b16 %v72
    %v710 = vunpack.c.l.b16 %v73
    %v711 = vunpack.c.h.b16 %v73
    %v712 = vunpack.c.l.b16 %v74
    %v713 = vunpack.c.h.b16 %v74
    %v714 = vunpack.c.l.b16 %v75
    %v715 = vunpack.c.h.b16 %v75
    %v716 = vunpack.c.l.b16 %v76
    %v717 = vunpack.c.h.b16 %v76
    %v718 = vunpack.c.l.b16 %v77
    %v719 = vunpack.c.h.b16 %v77
    %v720 = vunpack.c.l.b16 %v78
    %v721 = vunpack.c.h.b16 %v78
    %v722 = vunpack.c.l.b16 %v79
    %v723 = vunpack.c.h.b16 %v79
    %v724 = vunpack.c.l.b16 %v80
    %v725 = vunpack.c.h.b16 %v80
    %v726 = vunpack.c.l.b16 %v81
    %v727 = vunpack.c.h.b16 %v81
    %v728 = vunpack.c.l.b16 %v82
    %v729 = vunpack.c.h.b16 %v82
    %v730 = vunpack.c.l.b16 %v83
    %v731 = vunpack.c.h.b16 %v83
    %v732 = vunpack.c.l.b16 %v84
    %v733 = vunpack.c.h.b16 %v84
    %v734 = vunpack.c.l.b16 %v85
    %v735 = vunpack.c.h.b16 %v85
    %v736 = vunpack.c.l.b16 %v86
    %v737 = vunpack.c.h.b16 %v86
    %v738 = vunpack.c.l.b16 %v87
    %v739 = vunpack.c.h.b16 %v87
    %v740 = vunpack.c.l.b16 %v88
    %v741 = vunpack.c.h.b16 %v88
    %v742 = vunpack.c.l.b16 %v89
    %v743 = vunpack.c.h.b16 %v89
    %v744 = vunpack.c.l.b16 %v90
    %v745 = vunpack.c.h.b16 %v90
    %v746 = vunpack.c.l.b16 %v91
    %v747 = vunpack.c.h.b16 %v91
    %v748 = vunpack.c.l.b16 %v92
    %v749 = vunpack.c.h.b16 %v92
    %v750 = vunpack.c.l.b16 %v93
    %v751 = vunpack.c.h.b16 %v93
    %v752 = vunpack.c.l.b16 %v94
    %v753 = vunpack.c.h.b16 %v94
    %v754 = vunpack.c.l.b16 %v95
    %v755 = vunpack.c.h.b16 %v95
    %v756 = vunpack.c.l.b16 %v96
    %v757 = vunpack.c.h.b16 %v96
    %v758 = vunpack.c.l.b16 %v97
    %v759 = vunpack.c.h.b16 %v97
    %v760 = vunpack.c.l.b16 %v98
    %v761 = vunpack.c.h.b16 %v98
    %v762 = vunpack.c.l.b16 %v99
    %v763 = vunpack.c.h.b16 %v99
    %v764 = vunpack.c.l.b16 %v100
    %v765 = vunpack.c.h.b16 %v100
    %v766 = vunpack.c.l.b16 %v101
    %v767 = vunpack.c.h.b16 %v101
    %v768 = vunpack.c.l.b16 %v102
    %v769 = vunpack.c.h.b16 %v102
    %v770 = vunpack.c.l.b16 %v103
    %v771 = vunpack.c.h.b16 %v103
    %v772 = vunpack.c.l.b16 %v104
    %v773 = vunpack.c.h.b16 %v104
    %v774 = vunpack.c.l.b16 %v105
    %v775 = vunpack.c.h.b16 %v105
    %v776 = vunpack.c.l.b16 %v106
    %v777 = vunpack.c.h.b16 %v106
    %v778 = vunpack.c.l.b16 %v107
    %v779 = vunpack.c.h.b16 %v107
    %v780 = vunpack.c.l.b16 %v108
    %v781 = vunpack.c.h.b16 %v108
    %v782 = vunpack.c.l.b16 %v109
    %v783 = vunpack.c.h.b16 %v109
    %v784 = vunpack.c.l.b16 %v110
    %v785 = vunpack.c.h.b16 %v110
    %v786 = vunpack.c.l.b16 %v111
    %v787 = vunpack.c.h.b16 %v111
    %v788 = vunpack.c.l.b16 %v112
    %v789 = vunpack.c.h.b16 %v112
    %v790 = vunpack.c.l.b16 %v113
    %v791 = vunpack.c.h.b16 %v113
    %v792 = vunpack.c.l.b16 %v114
    %v793 = vunpack.c.h.b16 %v114
    %v794 = vunpack.c.l.b16 %v115
    %v795 = vunpack.c.h.b16 %v115
    %v796 = vunpack.c.l.b16 %v116
    %v797 = vunpack.c.h.b16 %v116
    %v798 = vunpack.c.l.b16 %v117
    %v799 = vunpack.c.h.b16 %v117
    %v800 = vunpack.c.l.b16 %v118
    %v801 = vunpack.c.h.b16 %v118
    %v802 = vunpack.c.l.b16 %v119
    %v803 = vunpack.c.h.b16 %v119
    %v804 = vunpack.c.l.b16 %v120
    %v805 = vunpack.c.h.b16 %v120
    %v806 = vunpack.c.l.b16 %v121
    %v807 = vunpack.c.h.b16 %v121
    %v808 = vunpack.c.l.b16 %v122
    %v809 = vunpack.c.h.b16 %v122
    %v810 = vunpack.c.l.b16 %v123
    %v811 = vunpack.c.h.b16 %v123
    %v812 = vunpack.c.l.b16 %v124
    %v813 = vunpack.c.h.b16 %v124
    %v814 = vunpack.c.l.b16 %v125
    %v815 = vunpack.c.h.b16 %v125
    %v816 = vunpack.c.l.b16 %v126
    %v817 = vunpack.c.h.b16 %v126
    %v818 = vunpack.c.l.b16 %v127
    %v819 = vunpack.c.h.b16 %v127
    %v820 = vunpack.c.l.b16 %v128
    %v821 = vunpack.c.h.b16 %v128
    %v822 = vunpack.c.l.b16 %v129
    %v823 = vunpack.c.h.b16 %v129
    %v824 = vunpack.c.l.b16 %v130
    %v825 = vunpack.c.h.b16 %v130
    %v826 = vunpack.c.l.b16 %v131
    %v827 = vunpack.c.h.b16 %v131
    %v828 = vunpack.c.l.b16 %v132
    %v829 = vunpack.c.h.b16 %v132
    %v830 = vunpack.c.l.b16 %v133
    %v831 = vunpack.c.h.b16 %v133
    %v832 = vunpack.c.l.b16 %v134
    %v833 = vunpack.c.h.b16 %v134
    %v834 = vunpack.c.l.b16 %v135
    %v835 = vunpack.c.h.b16 %v135
    %v836 = vunpack.c.l.b16 %v136
    %v837 = vunpack.c.h.b16 %v136
    %v838 = vunpack.c.l.b16 %v137
    %v839 = vunpack.c.h.b16 %v137
    %v840 = vunpack.c.l.b16 %v138
    %v841 = vunpack.c.h.b16 %v138
    %v842 = vunpack.c.l.b16 %v139
    %v843 = vunpack.c.h.b16 %v139
    %v844 = vunpack.c.l.b16 %v140
    %v845 = vunpack.c.h.b16 %v140
    %v846 = vunpack.c.l.b16 %v141
    %v847 = vunpack.c.h.b16 %v141
    %v848 = vunpack.c.l.b16 %v142
    %v849 = vunpack.c.h.b16 %v142
    %v850 = vunpack.c.l.b16 %v143
    %v851 = vunpack.c.h.b16 %v143
    %v852 = vunpack.c.l.b16 %v144
    %v853 = vunpack.c.h.b16 %v144
    %v854 = vunpack.c.l.b16 %v145
    %v855 = vunpack.c.h.b16 %v145
    %v856 = vunpack.c.l.b16 %v146
    %v857 = vunpack.c.h.b16 %v146
    %v858 = vunpack.c.l.b16 %v147
    %v859 = vunpack.c.h.b16 %v147
    %v860 = vunpack.c.l.b16 %v148
    %v861 = vunpack.c.h.b16 %v148
    %v862 = vunpack.c.l.b16 %v149
    %v863 = vunpack.c.h.b16 %v149
    %v864 = vunpack.c.l.b16 %v150
    %v865 = vunpack.c.h.b16 %v150
    %v866 = vunpack.c.l.b16 %v151
    %v867 = vunpack.c.h.b16 %v151
    %v868 = vunpack.c.l.b16 %v152
    %v869 = vunpack.c.h.b16 %v152
    %v870 = vunpack.c.l.b16 %v153
    %v871 = vunpack.c.h.b16 %v153
    %v872 = vunpack.c.l.b16 %v154
    %v873 = vunpack.c.h.b16 %v154
    %v874 = vunpack.c.l.b16 %v155
    %v875 = vunpack.c.h.b16 %v155
    %v876 = vunpack.c.l.b16 %v156
    %v877 = vunpack.c.h.b16 %v156
    %v878 = vunpack.c.l.b16 %v157
    %v879 = vunpack.c.h.b16 %v157
    %v880 = vunpack.c.l.b16 %v158
    %v881 = vunpack.c.h.b16 %v158
    %v882 = vunpack.c.l.b16 %v159
    %v883 = vunpack.c.h.b16 %v159
    %v884 = vunpack.c.l.b16 %v160
    %v885 = vunpack.c.h.b16 %v160
    %v886 = vunpack.c.l.b16 %v161
    %v887 = vunpack.c.h.b16 %v161
    %v888 = vunpack.c.l.b16 %v162
    %v889 = vunpack.c.h.b16 %v162
    %v890 = vunpack.c.l.b16 %v163
    %v891 = vunpack.c.h.b16 %v163
    %v892 = vunpack.c.l.b16 %v164
    %v893 = vunpack.c.h.b16 %v164
    %v894 = vunpack.c.l.b16 %v165
    %v895 = vunpack.c.h.b16 %v165
    %v896 = vunpack.c.l.b16 %v166
    %v897 = vunpack.c.h.b16 %v166
    %v898 = vunpack.c.l.b16 %v167
    %v899 = vunpack.c.h.b16 %v167
    %v900 = vunpack.c.l.b16 %v168
    %v901 = vunpack.c.h.b16 %v168
    %v902 = vunpack.c.l.b16 %v169
    %v903 = vunpack.c.h.b16 %v169
    %v904 = vunpack.c.l.b16 %v170
    %v905 = vunpack.c.h.b16 %v170
    %v906 = vunpack.c.l.b16 %v171
    %v907 = vunpack.c.h.b16 %v171
    %v908 = vunpack.c.l.b16 %v172
    %v909 = vunpack.c.h.b16 %v172
    %v910 = vunpack.c.l.b16 %v173
    %v911 = vunpack.c.h.b16 %v173
    %v912 = vunpack.c.l.b16 %v174
    %v913 = vunpack.c.h.b16 %v174
    %v914 = vunpack.c.l.b16 %v175
    %v915 = vunpack.c.h.b16 %v175
    %v916 = vunpack.c.l.b16 %v176
    %v917 = vunpack.c.h.b16 %v176
    %v918 = vunpack.c.l.b16 %v177
    %v919 = vunpack.c.h.b16 %v177
    %v920 = vunpack.c.l.b16 %v178
    %v921 = vunpack.c.h.b16 %v178
    %v922 = vunpack.c.l.b16 %v179
    %v923 = vunpack.c.h.b16 %v179
    %v924 = vunpack.c.l.b16 %v180
    %v925 = vunpack.c.h.b16 %v180
    %v926 = vunpack.c.l.b16 %v181
    %v927 = vunpack.c.h.b16 %v181
    %v928 = vunpack.c.l.b16 %v182
    %v929 = vunpack.c.h.b16 %v182
    %v930 = vunpack.c.l.b16 %v183
    %v931 = vunpack.c.h.b16 %v183
    %v932 = vunpack.c.l.b16 %v184
    %v933 = vunpack.c.h.b16 %v184
    %v934 = vunpack.c.l.b16 %v185
    %v935 = vunpack.c.h.b16 %v185
    %v936 = vunpack.c.l.b16 %v186
    %v937 = vunpack.c.h.b16 %v186
    %v938 = vunpack.c.l.b16 %v187
    %v939 = vunpack.c.h.b16 %v187
    %v940 = vunpack.c.l.b16 %v188
    %v941 = vunpack.c.h.b16 %v188
    %v942 = vunpack.c.l.b16 %v189
    %v943 = vunpack.c.h.b16 %v189
    %v944 = vunpack.c.l.b16 %v190
    %v945 = vunpack.c.h.b16 %v190
    %v946 = vunpack.c.l.b16 %v191
    %v947 = vunpack.c.h.b16 %v191
    %v948 = vunpack.c.l.b16 %v192
    %v949 = vunpack.c.h.b16 %v192
    %v950 = vunpack.c.l.b16 %v193
    %v951 = vunpack.c.h.b16 %v193
    %v952 = vunpack.c.l.b16 %v194
    %v953 = vunpack.c.h.b16 %v194
    %v954 = vunpack.c.l.b16 %v195
    %v955 = vunpack.c.h.b16 %v195
    %v956 = vunpack.c.l.b16 %v196
    %v957 = vunpack.c.h.b16 %v196
    %v958 = vunpack.c.l.b16 %v197
    %v959 = vunpack.c.h.b16 %v197
    %v960 = vunpack.c.l.b16 %v198
    %v961 = vunpack.c.h.b16 %v198
    %v962 = vunpack.c.l.b16 %v199
    %v963 = vunpack.c.h.b16 %v199
    %v964 = vunpack.c.l.b16 %v200
    %v965 = vunpack.c.h.b16 %v200
    %v966 = vunpack.c.l.b16 %v201
    %v967 = vunpack.c.h.b16 %v201
    %v968 = vunpack.c.l.b16 %v202
    %v969 = vunpack.c.h.b16 %v202
    %v970 = vunpack.c.l.b16 %v203
    %v971 = vunpack.c.h.b16 %v203
    %v972 = vunpack.c.l.b16 %v204
    %v973 = vunpack.c.h.b16 %v204
    %v974 = vunpack.c.l.b16 %v205
    %v975 = vunpack.c.h.b16 %v205
    %v976 = vunpack.c.l.b16 %v206
    %v977 = vunpack.c.h.b16 %v206
    %v978 = vunpack.c.l.b16 %v207
    %v979 = vunpack.c.h.b16 %v207
    %v980 = vunpack.c.l.b16 %v208
    %v981 = vunpack.c.h.b16 %v208
    %v982 = vunpack.c.l.b16 %v209
    %v983 = vunpack.c.h.b16 %v209
    %v984 = vunpack.c.l.b16 %v210
    %v985 = vunpack.c.h.b16 %v210
    %v986 = vunpack.c.l.b16 %v211
    %v987 = vunpack.c.h.b16 %v211
    %v988 = vunpack.c.l.b16 %v212
    %v989 = vunpack.c.h.b16 %v212
    %v990 = vunpack.c.l.b16 %v213
    %v991 = vunpack.c.h.b16 %v213
    %v992 = vunpack.c.l.b16 %v214
    %v993 = vunpack.c.h.b16 %v214
    %v994 = vunpack.c.l.b16 %v215
    %v995 = vunpack.c.h.b16 %v215
    %v996 = vunpack.c.l.b16 %v216
    %v997 = vunpack.c.h.b16 %v216
    %v998 = vunpack.c.l.b16 %v217
    %v999 = vunpack.c.h.b16 %v217
    %v1000 = vunpack.c.l.b16 %v218
    %v1001 = vunpack.c.h.b16 %v218
    %v1002 = vunpack.c.l.b16 %v219
    %v1003 = vunpack.c.h.b16 %v219
    %v1004 = vunpack.c.l.b16 %v220
    %v1005 = vunpack.c.h.b16 %v220
    %v1006 = vunpack.c.l.b16 %v221
    %v1007 = vunpack.c.h.b16 %v221
    %v1008 = vunpack.c.l.b16 %v222
    %v1009 = vunpack.c.h.b16 %v222
    %v1010 = vunpack.c.l.b16 %v223
    %v1011 = vunpack.c.h.b16 %v223
    %v1012 = vunpack.c.l.b16 %v224
    %v1013 = vunpack.c.h.b16 %v224
    %v1014 = vunpack.c.l.b16 %v225
    %v1015 = vunpack.c.h.b16 %v225
    %v1016 = vunpack.c.l.b16 %v226
    %v1017 = vunpack.c.h.b16 %v226
    %v1018 = vunpack.c.l.b16 %v227
    %v1019 = vunpack.c.h.b16 %v227
    %v1020 = vunpack.c.l.b16 %v228
    %v1021 = vunpack.c.h.b16 %v228
    %v1022 = vunpack.c.l.b16 %v229
    %v1023 = vunpack.c.h.b16 %v229
    %v1024 = vunpack.c.l.b16 %v230
    %v1025 = vunpack.c.h.b16 %v230
    %v1026 = vunpack.c.l.b16 %v231
    %v1027 = vunpack.c.h.b16 %v231
    %v1028 = vunpack.c.l.b16 %v232
    %v1029 = vunpack.c.h.b16 %v232
    %v1030 = vunpack.c.l.b16 %v233
    %v1031 = vunpack.c.h.b16 %v233
    %v1032 = vunpack.c.l.b16 %v234
    %v1033 = vunpack.c.h.b16 %v234
    %v1034 = vunpack.c.l.b16 %v235
    %v1035 = vunpack.c.h.b16 %v235
    %v1036 = vunpack.c.l.b16 %v236
    %v1037 = vunpack.c.h.b16 %v236
    %v1038 = vunpack.c.l.b16 %v237
    %v1039 = vunpack.c.h.b16 %v237
    %v1040 = vunpack.c.l.b16 %v238
    %v1041 = vunpack.c.h.b16 %v238
    %v1042 = vunpack.c.l.b16 %v239
    %v1043 = vunpack.c.h.b16 %v239
    %v1044 = vunpack.c.l.b16 %v240
    %v1045 = vunpack.c.h.b16 %v240
    %v1046 = vunpack.c.l.b16 %v241
    %v1047 = vunpack.c.h.b16 %v241
    %v1048 = vunpack.c.l.b16 %v242
    %v1049 = vunpack.c.h.b16 %v242
    %v1050 = vunpack.c.l.b16 %v243
    %v1051 = vunpack.c.h.b16 %v243
    %v1052 = vunpack.c.l.b16 %v244
    %v1053 = vunpack.c.h.b16 %v244
    %v1054 = vunpack.c.l.b16 %v245
    %v1055 = vunpack.c.h.b16 %v245
    %v1056 = vunpack.c.l.b16 %v246
    %v1057 = vunpack.c.h.b16 %v246
    %v1058 = vunpack.c.l.b16 %v247
    %v1059 = vunpack.c.h.b16 %v247
    %v1060 = vunpack.c.l.b16 %v248
    %v1061 = vunpack.c.h.b16 %v248
    %v1062 = vunpack.c.l.b16 %v249
    %v1063 = vunpack.c.h.b16 %v249
    %v1064 = vunpack.c.l.b16 %v250
    %v1065 = vunpack.c.h.b16 %v250
    %v1066 = vunpack.c.l.b16 %v251
    %v1067 = vunpack.c.h.b16 %v251
    %v1068 = vunpack.c.l.b16 %v252
    %v1069 = vunpack.c.h.b16 %v252
    %v1070 = vunpack.c.l.b16 %v253
    %v1071 = vunpack.c.h.b16 %v253
    %v1072 = vunpack.c.l.b16 %v254
    %v1073 = vunpack.c.h.b16 %v254
    %v1074 = vunpack.c.l.b16 %v255
    %v1075 = vunpack.c.h.b16 %v255
    %v1076 = vunpack.c.l.b16 %v256
    %v1077 = vunpack.c.h.b16 %v256
    %v1078 = vunpack.c.l.b16 %v257
    %v1079 = vunpack.c.h.b16 %v257
    %v1080 = vunpack.c.l.b16 %v258
    %v1081 = vunpack.c.h.b16 %v258
    %v1082 = vunpack.c.l.b16 %v259
    %v1083 = vunpack.c.h.b16 %v259
    %v1084 = vunpack.c.l.b16 %v260
    %v1085 = vunpack.c.h.b16 %v260
    %v1086 = vunpack.c.l.b16 %v261
    %v1087 = vunpack.c.h.b16 %v261
    %v1088 = vunpack.c.l.b16 %v262
    %v1089 = vunpack.c.h.b16 %v262
    %v1090 = vunpack.c.l.b16 %v263
    %v1091 = vunpack.c.h.b16 %v263
    %v1092 = vunpack.c.l.b16 %v264
    %v1093 = vunpack.c.h.b16 %v264
    %v1094 = vunpack.c.l.b16 %v265
    %v1095 = vunpack.c.h.b16 %v265
    %v1096 = vunpack.c.l.b16 %v266
    %v1097 = vunpack.c.h.b16 %v266
    %v1098 = vunpack.c.l.b16 %v267
    %v1099 = vunpack.c.h.b16 %v267
    %v1100 = vunpack.c.l.b16 %v268
    %v1101 = vunpack.c.h.b16 %v268
    %v1102 = vunpack.c.l.b16 %v269
    %v1103 = vunpack.c.h.b16 %v269
    %v1104 = vunpack.c.l.b16 %v270
    %v1105 = vunpack.c.h.b16 %v270
    %v1106 = vunpack.c.l.b16 %v271
    %v1107 = vunpack.c.h.b16 %v271
    %v1108 = vunpack.c.l.b16 %v272
    %v1109 = vunpack.c.h.b16 %v272
    %v1110 = vunpack.c.l.b16 %v273
    %v1111 = vunpack.c.h.b16 %v273
    %v1112 = vunpack.c.l.b16 %v274
    %v1113 = vunpack.c.h.b16 %v274
    %v1114 = vunpack.c.l.b16 %v275
    %v1115 = vunpack.c.h.b16 %v275
    %v1116 = vunpack.c.l.b16 %v276
    %v1117 = vunpack.c.h.b16 %v276
    %v1118 = vunpack.c.l.b16 %v277
    %v1119 = vunpack.c.h.b16 %v277
    %v1120 = vunpack.c.l.b16 %v278
    %v1121 = vunpack.c.h.b16 %v278
    %v1122 = vunpack.c.l.b16 %v279
    %v1123 = vunpack.c.h.b16 %v279
    %v1124 = vunpack.c.l.b16 %v280
    %v1125 = vunpack.c.h.b16 %v280
    %v1126 = vunpack.c.l.b16 %v281
    %v1127 = vunpack.c.h.b16 %v281
    %v1128 = vunpack.c.l.b16 %v282
    %v1129 = vunpack.c.h.b16 %v282
    %v1130 = vunpack.c.l.b16 %v283
    %v1131 = vunpack.c.h.b16 %v283
    %v1132 = vpack.c.b16 %v624, %v620
    %v1133 = vpack.c.b16 %v625, %v621
    %v1134 = vpack.c.b16 %v626, %v622
    %v1135 = vpack.c.b16 %v627, %v623
    %v1136 = vpack.c.b16 %v632, %v628
    %v1137 = vpack.c.b16 %v633, %v629
    %v1138 = vpack.c.b16 %v634, %v630
    %v1139 = vpack.c.b16 %v635, %v631
    %v1140 = vpack.c.b16 %v640, %v636
    %v1141 = vpack.c.b16 %v641, %v637
    %v1142 = vpack.c.b16 %v642, %v638
    %v1143 = vpack.c.b16 %v643, %v639
    %v1144 = vpack.c.b16 %v648, %v644
    %v1145 = vpack.c.b16 %v649, %v645
    %v1146 = vpack.c.b16 %v650, %v646
    %v1147 = vpack.c.b16 %v651, %v647
    %v1148 = vpack.c.b16 %v656, %v652
    %v1149 = vpack.c.b16 %v657, %v653
    %v1150 = vpack.c.b16 %v658, %v654
    %v1151 = vpack.c.b16 %v659, %v655
    %v1152 = vpack.c.b16 %v664, %v660
    %v1153 = vpack.c.b16 %v665, %v661
    %v1154 = vpack.c.b16 %v666, %v662
    %v1155 = vpack.c.b16 %v667, %v663
    %v1156 = vpack.c.b16 %v672, %v668
    %v1157 = vpack.c.b16 %v673, %v669
    %v1158 = vpack.c.b16 %v674, %v670
    %v1159 = vpack.c.b16 %v675, %v671
    %v1160 = vpack.c.b16 %v680, %v676
    %v1161 = vpack.c.b16 %v681, %v677
    %v1162 = vpack.c.b16 %v682, %v678
    %v1163 = vpack.c.b16 %v683, %v679
    %v1164 = vpack.c.b16 %v688, %v684
    %v1165 = vpack.c.b16 %v689, %v685
    %v1166 = vpack.c.b16 %v690, %v686
    %v1167 = vpack.c.b16 %v691, %v687
    %v1168 = vpack.c.b16 %v696, %v692
    %v1169 = vpack.c.b16 %v697, %v693
    %v1170 = vpack.c.b16 %v698, %v694
    %v1171 = vpack.c.b16 %v699, %v695
    %v1172 = vpack.c.b16 %v704, %v700
    %v1173 = vpack.c.b16 %v705, %v701
    %v1174 = vpack.c.b16 %v706, %v702
    %v1175 = vpack.c.b16 %v707, %v703
    %v1176 = vpack.c.b16 %v712, %v708
    %v1177 = vpack.c.b16 %v713, %v709
    %v1178 = vpack.c.b16 %v714, %v710
    %v1179 = vpack.c.b16 %v715, %v711
    %v1180 = vpack.c.b16 %v720, %v716
    %v1181 = vpack.c.b16 %v721, %v717
    %v1182 = vpack.c.b16 %v722, %v718
    %v1183 = vpack.c.b16 %v723, %v719
    %v1184 = vpack.c.b16 %v728, %v724
    %v1185 = vpack.c.b16 %v729, %v725
    %v1186 = vpack.c.b16 %v730, %v726
    %v1187 = vpack.c.b16 %v731, %v727
    %v1188 = vpack.c.b16 %v736, %v732
    %v1189 = vpack.c.b16 %v737, %v733
    %v1190 = vpack.c.b16 %v738, %v734
    %v1191 = vpack.c.b16 %v739, %v735
    %v1192 = vpack.c.b16 %v744, %v740
    %v1193 = vpack.c.b16 %v745, %v741
    %v1194 = vpack.c.b16 %v746, %v742
    %v1195 = vpack.c.b16 %v747, %v743
    %v1196 = vpack.c.b16 %v752, %v748
    %v1197 = vpack.c.b16 %v753, %v749
    %v1198 = vpack.c.b16 %v754, %v750
    %v1199 = vpack.c.b16 %v755, %v751
    %v1200 = vpack.c.b16 %v760, %v756
    %v1201 = vpack.c.b16 %v761, %v757
    %v1202 = vpack.c.b16 %v762, %v758
    %v1203 = vpack.c.b16 %v763, %v759
    %v1204 = vpack.c.b16 %v768, %v764
    %v1205 = vpack.c.b16 %v769, %v765
    %v1206 = vpack.c.b16 %v770, %v766
    %v1207 = vpack.c.b16 %v771, %v767
    %v1208 = vpack.c.b16 %v776, %v772
    %v1209 = vpack.c.b16 %v777, %v773
    %v1210 = vpack.c.b16 %v778, %v774
    %v1211 = vpack.c.b16 %v779, %v775
    %v1212 = vpack.c.b16 %v784, %v780
    %v1213 = vpack.c.b16 %v785, %v781
    %v1214 = vpack.c.b16 %v786, %v782
    %v1215 = vpack.c.b16 %v787, %v783
    %v1216 = vpack.c.b16 %v792, %v788
    %v1217 = vpack.c.b16 %v793, %v789
    %v1218 = vpack.c.b16 %v794, %v790
    %v1219 = vpack.c.b16 %v795, %v791
    %v1220 = vpack.c.b16 %v800, %v796
    %v1221 = vpack.c.b16 %v801, %v797
    %v1222 = vpack.c.b16 %v802, %v798
    %v1223 = vpack.c.b16 %v803, %v799
    %v1224 = vpack.c.b16 %v808, %v804
    %v1225 = vpack.c.b16 %v809, %v805
    %v1226 = vpack.c.b16 %v810, %v806
    %v1227 = vpack.c.b16 %v811, %v807
    %v1228 = vpack.c.b16 %v816, %v812
    %v1229 = vpack.c.b16 %v817, %v813
    %v1230 = vpack.c.b16 %v818, %v814
    %v1231 = vpack.c.b16 %v819, %v815
    %v1232 = vpack.c.b16 %v824, %v820
    %v1233 = vpack.c.b16 %v825, %v821
    %v1234 = vpack.c.b16 %v826, %v822
    %v1235 = vpack.c.b16 %v827, %v823
    %v1236 = vpack.c.b16 %v832, %v828
    %v1237 = vpack.c.b16 %v833, %v829
    %v1238 = vpack.c.b16 %v834, %v830
    %v1239 = vpack.c.b16 %v835, %v831
    %v1240 = vpack.c.b16 %v840, %v836
    %v1241 = vpack.c.b16 %v841, %v837
    %v1242 = vpack.c.b16 %v842, %v838
    %v1243 = vpack.c.b16 %v843, %v839
    %v1244 = vpack.c.b16 %v848, %v844
    %v1245 = vpack.c.b16 %v849, %v845
    %v1246 = vpack.c.b16 %v850, %v846
    %v1247 = vpack.c.b16 %v851, %v847
    %v1248 = vpack.c.b16 %v856, %v852
    %v1249 = vpack.c.b16 %v857, %v853
    %v1250 = vpack.c.b16 %v858, %v854
    %v1251 = vpack.c.b16 %v859, %v855
    %v1252 = vpack.c.b16 %v864, %v860
    %v1253 = vpack.c.b16 %v865, %v861
    %v1254 = vpack.c.b16 %v866, %v862
    %v1255 = vpack.c.b16 %v867, %v863
    %v1256 = vpack.c.b16 %v872, %v868
    %v1257 = vpack.c.b16 %v873, %v869
    %v1258 = vpack.c.b16 %v874, %v870
    %v1259 = vpack.c.b16 %v875, %v871
    %v1260 = vpack.c.b16 %v880, %v876
    %v1261 = vpack.c.b16 %v881, %v877
    %v1262 = vpack.c.b16 %v882, %v878
    %v1263 = vpack.c.b16 %v883, %v879
    %v1264 = vpack.c.b16 %v888, %v884
    %v1265 = vpack.c.b16 %v889, %v885
    %v1266 = vpack.c.b16 %v890, %v886
    %v1267 = vpack.c.b16 %v891, %v887
    %v1268 = vpack.c.b16 %v896, %v892
    %v1269 = vpack.c.b16 %v897, %v893
    %v1270 = vpack.c.b16 %v898, %v894
    %v1271 = vpack.c.b16 %v899, %v895
    %v1272 = vpack.c.b16 %v904, %v900
    %v1273 = vpack.c.b16 %v905, %v901
    %v1274 = vpack.c.b16 %v906, %v902
    %v1275 = vpack.c.b16 %v907, %v903
    %v1276 = vpack.c.b16 %v912, %v908
    %v1277 = vpack.c.b16 %v913, %v909
    %v1278 = vpack.c.b16 %v914, %v910
    %v1279 = vpack.c.b16 %v915, %v911
    %v1280 = vpack.c.b16 %v920, %v916
    %v1281 = vpack.c.b16 %v921, %v917
    %v1282 = vpack.c.b16 %v922, %v918
    %v1283 = vpack.c.b16 %v923, %v919
    %v1284 = vpack.c.b16 %v928, %v924
    %v1285 = vpack.c.b16 %v929, %v925
    %v1286 = vpack.c.b16 %v930, %v926
    %v1287 = vpack.c.b16 %v931, %v927
    %v1288 = vpack.c.b16 %v936, %v932
    %v1289 = vpack.c.b16 %v937, %v933
    %v1290 = vpack.c.b16 %v938, %v934
    %v1291 = vpack.c.b16 %v939, %v935
    %v1292 = vpack.c.b16 %v944, %v940
    %v1293 = vpack.c.b16 %v945, %v941
    %v1294 = vpack.c.b16 %v946, %v942
    %v1295 = vpack.c.b16 %v947, %v943
    %v1296 = vpack.c.b16 %v952, %v948
    %v1297 = vpack.c.b16 %v953, %v949
    %v1298 = vpack.c.b16 %v954, %v950
    %v1299 = vpack.c.b16 %v955, %v951
    %v1300 = vpack.c.b16 %v960, %v956
    %v1301 = vpack.c.b16 %v961, %v957
    %v1302 = vpack.c.b16 %v962, %v958
    %v1303 = vpack.c.b16 %v963, %v959
    %v1304 = vpack.c.b16 %v968, %v964
    %v1305 = vpack.c.b16 %v969, %v965
    %v1306 = vpack.c.b16 %v970, %v966
    %v1307 = vpack.c.b16 %v971, %v967
    %v1308 = vpack.c.b16 %v976, %v972
    %v1309 = vpack.c.b16 %v977, %v973
    %v1310 = vpack.c.b16 %v978, %v974
    %v1311 = vpack.c.b16 %v979, %v975
    %v1312 = vpack.c.b16 %v984, %v980
    %v1313 = vpack.c.b16 %v985, %v981
    %v1314 = vpack.c.b16 %v986, %v982
    %v1315 = vpack.c.b16 %v987, %v983
    %v1316 = vpack.c.b16 %v992, %v988
    %v1317 = vpack.c.b16 %v993, %v989
    %v1318 = vpack.c.b16 %v994, %v990
    %v1319 = vpack.c.b16 %v995, %v991
    %v1320 = vpack.c.b16 %v1000, %v996
    %v1321 = vpack.c.b16 %v1001, %v997
    %v1322 = vpack.c.b16 %v1002, %v998
    %v1323 = vpack.c.b16 %v1003, %v999
    %v1324 = vpack.c.b16 %v1008, %v1004
    %v1325 = vpack.c.b16 %v1009, %v1005
    %v1326 = vpack.c.b16 %v1010, %v1006
    %v1327 = vpack.c.b16 %v1011, %v1007
    %v1328 = vpack.c.b16 %v1016, %v1012
    %v1329 = vpack.c.b16 %v1017, %v1013
    %v1330 = vpack.c.b16 %v1018, %v1014
    %v1331 = vpack.c.b16 %v1019, %v1015
    %v1332 = vpack.c.b16 %v1024, %v1020
    %v1333 = vpack.c.b16 %v1025, %v1021
    %v1334 = vpack.c.b16 %v1026, %v1022
    %v1335 = vpack.c.b16 %v1027, %v1023
    %v1336 = vpack.c.b16 %v1032, %v1028
    %v1337 = vpack.c.b16 %v1033, %v1029
    %v1338 = vpack.c.b16 %v1034, %v1030
    %v1339 = vpack.c.b16 %v1035, %v1031
    %v1340 = vpack.c.b16 %v1040, %v1036
    %v1341 = vpack.c.b16 %v1041, %v1037
    %v1342 = vpack.c.b16 %v1042, %v1038
    %v1343 = vpack.c.b16 %v1043, %v1039
    %v1344 = vpack.c.b16 %v1048, %v1044
    %v1345 = vpack.c.b16 %v1049, %v1045
    %v1346 = vpack.c.b16 %v1050, %v1046
    %v1347 = vpack.c.b16 %v1051, %v1047
    %v1348 = vpack.c.b16 %v1056, %v1052
    %v1349 = vpack.c.b16 %v1057, %v1053
    %v1350 = vpack.c.b16 %v1058, %v1054
    %v1351 = vpack.c.b16 %v1059, %v1055
    %v1352 = vpack.c.b16 %v1064, %v1060
    %v1353 = vpack.c.b16 %v1065, %v1061
    %v1354 = vpack.c.b16 %v1066, %v1062
    %v1355 = vpack.c.b16 %v1067, %v1063
    %v1356 = vpack.c.b16 %v1072, %v1068
    %v1357 = vpack.c.b16 %v1073, %v1069
    %v1358 = vpack.c.b16 %v1074, %v1070
    %v1359 = vpack.c.b16 %v1075, %v1071
    %v1360 = vpack.c.b16 %v1080, %v1076
    %v1361 = vpack.c.b16 %v1081, %v1077
    %v1362 = vpack.c.b16 %v1082, %v1078
    %v1363 = vpack.c.b16 %v1083, %v1079
    %v1364 = vpack.c.b16 %v1088, %v1084
    %v1365 = vpack.c.b16 %v1089, %v1085
    %v1366 = vpack.c.b16 %v1090, %v1086
    %v1367 = vpack.c.b16 %v1091, %v1087
    %v1368 = vpack.c.b16 %v1096, %v1092
    %v1369 = vpack.c.b16 %v1097, %v1093
    %v1370 = vpack.c.b16 %v1098, %v1094
    %v1371 = vpack.c.b16 %v1099, %v1095
    %v1372 = vpack.c.b16 %v1104, %v1100
    %v1373 = vpack.c.b16 %v1105, %v1101
    %v1374 = vpack.c.b16 %v1106, %v1102
    %v1375 = vpack.c.b16 %v1107, %v1103
    %v1376 = vpack.c.b16 %v1112, %v1108
    %v1377 = vpack.c.b16 %v1113, %v1109
    %v1378 = vpack.c.b16 %v1114, %v1110
    %v1379 = vpack.c.b16 %v1115, %v1111
    %v1380 = vpack.c.b16 %v1120, %v1116
    %v1381 = vpack.c.b16 %v1121, %v1117
    %v1382 = vpack.c.b16 %v1122, %v1118
    %v1383 = vpack.c.b16 %v1123, %v1119
    %v1384 = vpack.c.b16 %v1128, %v1124
    %v1385 = vpack.c.b16 %v1129, %v1125
    %v1386 = vpack.c.b16 %v1130, %v1126
    %v1387 = vpack.c.b16 %v1131, %v1127
    %1644 = vmatprep.subr.bf16.mxu0 %v1133
    %1645 = vmatpush1.bf16.msra.mxu0 %v1132
    %1646 = vmatprep.subr.bf16.mxu0 %v1137
    %1647 = vmatpush1.bf16.msra.mxu0 %v1136
    %1648 = vmatprep.subr.bf16.mxu0 %v1141
    %1649 = vmatpush1.bf16.msra.mxu0 %v1140
    %1650 = vmatprep.subr.bf16.mxu0 %v1145
    %1651 = vmatpush1.bf16.msra.mxu0 %v1144
    %1652 = vmatprep.subr.bf16.mxu0 %v1149
    %1653 = vmatpush1.bf16.msra.mxu0 %v1148
    %1654 = vmatprep.subr.bf16.mxu0 %v1153
    %1655 = vmatpush1.bf16.msra.mxu0 %v1152
    %1656 = vmatprep.subr.bf16.mxu0 %v1157
    %1657 = vmatpush1.bf16.msra.mxu0 %v1156
    %1658 = vmatprep.subr.bf16.mxu0 %v1161
    %1659 = vmatpush1.bf16.msra.mxu0 %v1160
    %1660 = vmatprep.subr.bf16.mxu0 %v1165
    %1661 = vmatpush1.bf16.msra.mxu0 %v1164
    %1662 = vmatprep.subr.bf16.mxu0 %v1169
    %1663 = vmatpush1.bf16.msra.mxu0 %v1168
    %1664 = vmatprep.subr.bf16.mxu0 %v1173
    %1665 = vmatpush1.bf16.msra.mxu0 %v1172
    %1666 = vmatprep.subr.bf16.mxu0 %v1177
    %1667 = vmatpush1.bf16.msra.mxu0 %v1176
    %1668 = vmatprep.subr.bf16.mxu0 %v1181
    %1669 = vmatpush1.bf16.msra.mxu0 %v1180
    %1670 = vmatprep.subr.bf16.mxu0 %v1185
    %1671 = vmatpush1.bf16.msra.mxu0 %v1184
    %1672 = vmatprep.subr.bf16.mxu0 %v1189
    %1673 = vmatpush1.bf16.msra.mxu0 %v1188
    %1674 = vmatprep.subr.bf16.mxu0 %v1193
    %1675 = vmatpush1.bf16.msra.mxu0 %v1192
    %1676 = vmatprep.mubr.bf16.mxu0 %v344
    %1677 = vmatmul.mubr.bf16.gmra.mrb[0].mxu0 %v330
    %v1678 = vpop.f32.mrb[0].mxu0
    %v1679 = vadd.f32 %v289, %v1678
    %v1680 = vpop.f32.mrb[0].mxu0
    %v1681 = vadd.f32 %v293, %v1680
    %v1682 = vpop.f32.mrb[0].mxu0
    %v1683 = vpop.f32.mrb[0].mxu0
    %1684 = vdwg.mxu0
    %1685 = vmatprep.subr.bf16.mxu0 %v1197
    %1686 = vmatpush1.bf16.msra.mxu0 %v1196
    %1687 = vmatprep.subr.bf16.mxu0 %v1201
    %1688 = vmatpush1.bf16.msra.mxu0 %v1200
    %1689 = vmatprep.subr.bf16.mxu0 %v1205
    %1690 = vmatpush1.bf16.msra.mxu0 %v1204
    %1691 = vmatprep.subr.bf16.mxu0 %v1209
    %1692 = vmatpush1.bf16.msra.mxu0 %v1208
    %1693 = vmatprep.subr.bf16.mxu0 %v1213
    %1694 = vmatpush1.bf16.msra.mxu0 %v1212
    %1695 = vmatprep.subr.bf16.mxu0 %v1217
    %1696 = vmatpush1.bf16.msra.mxu0 %v1216
    %1697 = vmatprep.subr.bf16.mxu0 %v1221
    %1698 = vmatpush1.bf16.msra.mxu0 %v1220
    %1699 = vmatprep.subr.bf16.mxu0 %v1225
    %1700 = vmatpush1.bf16.msra.mxu0 %v1224
    %1701 = vmatprep.subr.bf16.mxu0 %v1229
    %1702 = vmatpush1.bf16.msra.mxu0 %v1228
    %1703 = vmatprep.subr.bf16.mxu0 %v1233
    %1704 = vmatpush1.bf16.msra.mxu0 %v1232
    %1705 = vmatprep.subr.bf16.mxu0 %v1237
    %1706 = vmatpush1.bf16.msra.mxu0 %v1236
    %1707 = vmatprep.subr.bf16.mxu0 %v1241
    %1708 = vmatpush1.bf16.msra.mxu0 %v1240
    %1709 = vmatprep.subr.bf16.mxu0 %v1245
    %1710 = vmatpush1.bf16.msra.mxu0 %v1244
    %1711 = vmatprep.subr.bf16.mxu0 %v1249
    %1712 = vmatpush1.bf16.msra.mxu0 %v1248
    %1713 = vmatprep.subr.bf16.mxu0 %v1253
    %1714 = vmatpush1.bf16.msra.mxu0 %v1252
    %1715 = vmatprep.subr.bf16.mxu0 %v1257
    %1716 = vmatpush1.bf16.msra.mxu0 %v1256
    %1717 = vmatprep.mubr.bf16.mxu0 %v354
    %1718 = vmatmul.mubr.bf16.gmra.mrb[0].mxu0 %v352
    %v1719 = vpop.f32.mrb[0].mxu0
    %v1720 = vadd.f32 %v1679, %v1719
    %v1721 = vpop.f32.mrb[0].mxu0
    %v1722 = vadd.f32 %v1681, %v1721
    %v1723 = vpop.f32.mrb[0].mxu0
    %v1724 = vpop.f32.mrb[0].mxu0
    %1725 = vdwg.mxu0
    %1726 = vmatprep.subr.bf16.mxu0 %v1261
    %1727 = vmatpush1.bf16.msra.mxu0 %v1260
    %1728 = vmatprep.subr.bf16.mxu0 %v1265
    %1729 = vmatpush1.bf16.msra.mxu0 %v1264
    %1730 = vmatprep.subr.bf16.mxu0 %v1269
    %1731 = vmatpush1.bf16.msra.mxu0 %v1268
    %1732 = vmatprep.subr.bf16.mxu0 %v1273
    %1733 = vmatpush1.bf16.msra.mxu0 %v1272
    %1734 = vmatprep.subr.bf16.mxu0 %v1277
    %1735 = vmatpush1.bf16.msra.mxu0 %v1276
    %1736 = vmatprep.subr.bf16.mxu0 %v1281
    %1737 = vmatpush1.bf16.msra.mxu0 %v1280
    %1738 = vmatprep.subr.bf16.mxu0 %v1285
    %1739 = vmatpush1.bf16.msra.mxu0 %v1284
    %1740 = vmatprep.subr.bf16.mxu0 %v1289
    %1741 = vmatpush1.bf16.msra.mxu0 %v1288
    %1742 = vmatprep.subr.bf16.mxu0 %v1293
    %1743 = vmatpush1.bf16.msra.mxu0 %v1292
    %1744 = vmatprep.subr.bf16.mxu0 %v1297
    %1745 = vmatpush1.bf16.msra.mxu0 %v1296
    %1746 = vmatprep.subr.bf16.mxu0 %v1301
    %1747 = vmatpush1.bf16.msra.mxu0 %v1300
    %1748 = vmatprep.subr.bf16.mxu0 %v1305
    %1749 = vmatpush1.bf16.msra.mxu0 %v1304
    %1750 = vmatprep.subr.bf16.mxu0 %v1309
    %1751 = vmatpush1.bf16.msra.mxu0 %v1308
    %1752 = vmatprep.subr.bf16.mxu0 %v1313
    %1753 = vmatpush1.bf16.msra.mxu0 %v1312
    %1754 = vmatprep.subr.bf16.mxu0 %v1317
    %1755 = vmatpush1.bf16.msra.mxu0 %v1316
    %1756 = vmatprep.subr.bf16.mxu0 %v1321
    %1757 = vmatpush1.bf16.msra.mxu0 %v1320
    %1758 = vmatprep.mubr.bf16.mxu0 %v351
    %1759 = vmatmul.mubr.bf16.gmra.mrb[0].mxu0 %v337
    %v1760 = vpop.f32.mrb[0].mxu0
    %v1761 = vadd.f32 %v1720, %v1760
    %v1762 = vpop.f32.mrb[0].mxu0
    %v1763 = vadd.f32 %v1722, %v1762
    %v1764 = vpop.f32.mrb[0].mxu0
    %v1765 = vpop.f32.mrb[0].mxu0
    %1766 = vdwg.mxu0
    %1767 = vmatprep.subr.bf16.mxu0 %v1325
    %1768 = vmatpush1.bf16.msra.mxu0 %v1324
    %1769 = vmatprep.subr.bf16.mxu0 %v1329
    %1770 = vmatpush1.bf16.msra.mxu0 %v1328
    %1771 = vmatprep.subr.bf16.mxu0 %v1333
    %1772 = vmatpush1.bf16.msra.mxu0 %v1332
    %1773 = vmatprep.subr.bf16.mxu0 %v1337
    %1774 = vmatpush1.bf16.msra.mxu0 %v1336
    %1775 = vmatprep.subr.bf16.mxu0 %v1341
    %1776 = vmatpush1.bf16.msra.mxu0 %v1340
    %1777 = vmatprep.subr.bf16.mxu0 %v1345
    %1778 = vmatpush1.bf16.msra.mxu0 %v1344
    %1779 = vmatprep.subr.bf16.mxu0 %v1349
    %1780 = vmatpush1.bf16.msra.mxu0 %v1348
    %1781 = vmatprep.subr.bf16.mxu0 %v1353
    %1782 = vmatpush1.bf16.msra.mxu0 %v1352
    %1783 = vmatprep.subr.bf16.mxu0 %v1357
    %1784 = vmatpush1.bf16.msra.mxu0 %v1356
    %1785 = vmatprep.subr.bf16.mxu0 %v1361
    %1786 = vmatpush1.bf16.msra.mxu0 %v1360
    %1787 = vmatprep.subr.bf16.mxu0 %v1365
    %1788 = vmatpush1.bf16.msra.mxu0 %v1364
    %1789 = vmatprep.subr.bf16.mxu0 %v1369
    %1790 = vmatpush1.bf16.msra.mxu0 %v1368
    %1791 = vmatprep.subr.bf16.mxu0 %v1373
    %1792 = vmatpush1.bf16.msra.mxu0 %v1372
    %1793 = vmatprep.subr.bf16.mxu0 %v1377
    %1794 = vmatpush1.bf16.msra.mxu0 %v1376
    %1795 = vmatprep.subr.bf16.mxu0 %v1381
    %1796 = vmatpush1.bf16.msra.mxu0 %v1380
    %1797 = vmatprep.subr.bf16.mxu0 %v1385
    %1798 = vmatpush1.bf16.msra.mxu0 %v1384
    %1799 = vmatprep.mubr.bf16.mxu0 %v355
    %1800 = vmatmul.mubr.bf16.gmra.mrb[0].mxu0 %v353
    %v1801 = vpop.f32.mrb[0].mxu0
    %v1802 = vadd.f32 %v1761, %v1801
    %v1803 = vpop.f32.mrb[0].mxu0
    %v1804 = vadd.f32 %v1763, %v1803
    %v1805 = vpop.f32.mrb[0].mxu0
    %v1806 = vpop.f32.mrb[0].mxu0
    %1807 = vdwg.mxu0
    %1808 = vmatprep.subr.bf16.mxu0 %v1135
    %1809 = vmatpush1.bf16.msra.mxu0 %v1134
    %1810 = vmatprep.subr.bf16.mxu0 %v1139
    %1811 = vmatpush1.bf16.msra.mxu0 %v1138
    %1812 = vmatprep.subr.bf16.mxu0 %v1143
    %1813 = vmatpush1.bf16.msra.mxu0 %v1142
    %1814 = vmatprep.subr.bf16.mxu0 %v1147
    %1815 = vmatpush1.bf16.msra.mxu0 %v1146
    %1816 = vmatprep.subr.bf16.mxu0 %v1151
    %1817 = vmatpush1.bf16.msra.mxu0 %v1150
    %1818 = vmatprep.subr.bf16.mxu0 %v1155
    %1819 = vmatpush1.bf16.msra.mxu0 %v1154
    %1820 = vmatprep.subr.bf16.mxu0 %v1159
    %1821 = vmatpush1.bf16.msra.mxu0 %v1158
    %1822 = vmatprep.subr.bf16.mxu0 %v1163
    %1823 = vmatpush1.bf16.msra.mxu0 %v1162
    %1824 = vmatprep.subr.bf16.mxu0 %v1167
    %1825 = vmatpush1.bf16.msra.mxu0 %v1166
    %1826 = vmatprep.subr.bf16.mxu0 %v1171
    %1827 = vmatpush1.bf16.msra.mxu0 %v1170
    %1828 = vmatprep.subr.bf16.mxu0 %v1175
    %1829 = vmatpush1.bf16.msra.mxu0 %v1174
    %1830 = vmatprep.subr.bf16.mxu0 %v1179
    %1831 = vmatpush1.bf16.msra.mxu0 %v1178
    %1832 = vmatprep.subr.bf16.mxu0 %v1183
    %1833 = vmatpush1.bf16.msra.mxu0 %v1182
    %1834 = vmatprep.subr.bf16.mxu0 %v1187
    %1835 = vmatpush1.bf16.msra.mxu0 %v1186
    %1836 = vmatprep.subr.bf16.mxu0 %v1191
    %1837 = vmatpush1.bf16.msra.mxu0 %v1190
    %1838 = vmatprep.subr.bf16.mxu0 %v1195
    %1839 = vmatpush1.bf16.msra.mxu0 %v1194
    %1840 = vmatprep.mubr.bf16.mxu0 %v344
    %1841 = vmatmul.mubr.bf16.gmra.mrb[0].mxu0 %v330
    %v1842 = vpop.f32.mrb[0].mxu0
    %v1843 = vadd.f32 %v297, %v1842
    %v1844 = vpop.f32.mrb[0].mxu0
    %v1845 = vadd.f32 %v301, %v1844
    %v1846 = vpop.f32.mrb[0].mxu0
    %v1847 = vpop.f32.mrb[0].mxu0
    %1848 = vdwg.mxu0
    %1849 = vmatprep.subr.bf16.mxu0 %v1199
    %1850 = vmatpush1.bf16.msra.mxu0 %v1198
    %1851 = vmatprep.subr.bf16.mxu0 %v1203
    %1852 = vmatpush1.bf16.msra.mxu0 %v1202
    %1853 = vmatprep.subr.bf16.mxu0 %v1207
    %1854 = vmatpush1.bf16.msra.mxu0 %v1206
    %1855 = vmatprep.subr.bf16.mxu0 %v1211
    %1856 = vmatpush1.bf16.msra.mxu0 %v1210
    %1857 = vmatprep.subr.bf16.mxu0 %v1215
    %1858 = vmatpush1.bf16.msra.mxu0 %v1214
    %1859 = vmatprep.subr.bf16.mxu0 %v1219
    %1860 = vmatpush1.bf16.msra.mxu0 %v1218
    %1861 = vmatprep.subr.bf16.mxu0 %v1223
    %1862 = vmatpush1.bf16.msra.mxu0 %v1222
    %1863 = vmatprep.subr.bf16.mxu0 %v1227
    %1864 = vmatpush1.bf16.msra.mxu0 %v1226
    %1865 = vmatprep.subr.bf16.mxu0 %v1231
    %1866 = vmatpush1.bf16.msra.mxu0 %v1230
    %1867 = vmatprep.subr.bf16.mxu0 %v1235
    %1868 = vmatpush1.bf16.msra.mxu0 %v1234
    %1869 = vmatprep.subr.bf16.mxu0 %v1239
    %1870 = vmatpush1.bf16.msra.mxu0 %v1238
    %1871 = vmatprep.subr.bf16.mxu0 %v1243
    %1872 = vmatpush1.bf16.msra.mxu0 %v1242
    %1873 = vmatprep.subr.bf16.mxu0 %v1247
    %1874 = vmatpush1.bf16.msra.mxu0 %v1246
    %1875 = vmatprep.subr.bf16.mxu0 %v1251
    %1876 = vmatpush1.bf16.msra.mxu0 %v1250
    %1877 = vmatprep.subr.bf16.mxu0 %v1255
    %1878 = vmatpush1.bf16.msra.mxu0 %v1254
    %1879 = vmatprep.subr.bf16.mxu0 %v1259
    %1880 = vmatpush1.bf16.msra.mxu0 %v1258
    %1881 = vmatprep.mubr.bf16.mxu0 %v354
    %1882 = vmatmul.mubr.bf16.gmra.mrb[0].mxu0 %v352
    %v1883 = vpop.f32.mrb[0].mxu0
    %v1884 = vadd.f32 %v1843, %v1883
    %v1885 = vpop.f32.mrb[0].mxu0
    %v1886 = vadd.f32 %v1845, %v1885
    %v1887 = vpop.f32.mrb[0].mxu0
    %v1888 = vpop.f32.mrb[0].mxu0
    %1889 = vdwg.mxu0
    %1890 = vmatprep.subr.bf16.mxu0 %v1263
    %1891 = vmatpush1.bf16.msra.mxu0 %v1262
    %1892 = vmatprep.subr.bf16.mxu0 %v1267
    %1893 = vmatpush1.bf16.msra.mxu0 %v1266
    %1894 = vmatprep.subr.bf16.mxu0 %v1271
    %1895 = vmatpush1.bf16.msra.mxu0 %v1270
    %1896 = vmatprep.subr.bf16.mxu0 %v1275
    %1897 = vmatpush1.bf16.msra.mxu0 %v1274
    %1898 = vmatprep.subr.bf16.mxu0 %v1279
    %1899 = vmatpush1.bf16.msra.mxu0 %v1278
    %1900 = vmatprep.subr.bf16.mxu0 %v1283
    %1901 = vmatpush1.bf16.msra.mxu0 %v1282
    %1902 = vmatprep.subr.bf16.mxu0 %v1287
    %1903 = vmatpush1.bf16.msra.mxu0 %v1286
    %1904 = vmatprep.subr.bf16.mxu0 %v1291
    %1905 = vmatpush1.bf16.msra.mxu0 %v1290
    %1906 = vmatprep.subr.bf16.mxu0 %v1295
    %1907 = vmatpush1.bf16.msra.mxu0 %v1294
    %1908 = vmatprep.subr.bf16.mxu0 %v1299
    %1909 = vmatpush1.bf16.msra.mxu0 %v1298
    %1910 = vmatprep.subr.bf16.mxu0 %v1303
    %1911 = vmatpush1.bf16.msra.mxu0 %v1302
    %1912 = vmatprep.subr.bf16.mxu0 %v1307
    %1913 = vmatpush1.bf16.msra.mxu0 %v1306
    %1914 = vmatprep.subr.bf16.mxu0 %v1311
    %1915 = vmatpush1.bf16.msra.mxu0 %v1310
    %1916 = vmatprep.subr.bf16.mxu0 %v1315
    %1917 = vmatpush1.bf16.msra.mxu0 %v1314
    %1918 = vmatprep.subr.bf16.mxu0 %v1319
    %1919 = vmatpush1.bf16.msra.mxu0 %v1318
    %1920 = vmatprep.subr.bf16.mxu0 %v1323
    %1921 = vmatpush1.bf16.msra.mxu0 %v1322
    %1922 = vmatprep.mubr.bf16.mxu0 %v351
    %1923 = vmatmul.mubr.bf16.gmra.mrb[0].mxu0 %v337
    %v1924 = vpop.f32.mrb[0].mxu0
    %v1925 = vadd.f32 %v1884, %v1924
    %v1926 = vpop.f32.mrb[0].mxu0
    %v1927 = vadd.f32 %v1886, %v1926
    %v1928 = vpop.f32.mrb[0].mxu0
    %v1929 = vpop.f32.mrb[0].mxu0
    %1930 = vdwg.mxu0
    %1931 = vmatprep.subr.bf16.mxu0 %v1327
    %1932 = vmatpush1.bf16.msra.mxu0 %v1326
    %1933 = vmatprep.subr.bf16.mxu0 %v1331
    %1934 = vmatpush1.bf16.msra.mxu0 %v1330
    %1935 = vmatprep.subr.bf16.mxu0 %v1335
    %1936 = vmatpush1.bf16.msra.mxu0 %v1334
    %1937 = vmatprep.subr.bf16.mxu0 %v1339
    %1938 = vmatpush1.bf16.msra.mxu0 %v1338
    %1939 = vmatprep.subr.bf16.mxu0 %v1343
    %1940 = vmatpush1.bf16.msra.mxu0 %v1342
    %1941 = vmatprep.subr.bf16.mxu0 %v1347
    %1942 = vmatpush1.bf16.msra.mxu0 %v1346
    %1943 = vmatprep.subr.bf16.mxu0 %v1351
    %1944 = vmatpush1.bf16.msra.mxu0 %v1350
    %1945 = vmatprep.subr.bf16.mxu0 %v1355
    %1946 = vmatpush1.bf16.msra.mxu0 %v1354
    %1947 = vmatprep.subr.bf16.mxu0 %v1359
    %1948 = vmatpush1.bf16.msra.mxu0 %v1358
    %1949 = vmatprep.subr.bf16.mxu0 %v1363
    %1950 = vmatpush1.bf16.msra.mxu0 %v1362
    %1951 = vmatprep.subr.bf16.mxu0 %v1367
    %1952 = vmatpush1.bf16.msra.mxu0 %v1366
    %1953 = vmatprep.subr.bf16.mxu0 %v1371
    %1954 = vmatpush1.bf16.msra.mxu0 %v1370
    %1955 = vmatprep.subr.bf16.mxu0 %v1375
    %1956 = vmatpush1.bf16.msra.mxu0 %v1374
    %1957 = vmatprep.subr.bf16.mxu0 %v1379
    %1958 = vmatpush1.bf16.msra.mxu0 %v1378
    %1959 = vmatprep.subr.bf16.mxu0 %v1383
    %1960 = vmatpush1.bf16.msra.mxu0 %v1382
    %1961 = vmatprep.subr.bf16.mxu0 %v1387
    %1962 = vmatpush1.bf16.msra.mxu0 %v1386
    %1963 = vmatprep.mubr.bf16.mxu0 %v355
    %1964 = vmatmul.mubr.bf16.gmra.mrb[0].mxu0 %v353
    %v1965 = vpop.f32.mrb[0].mxu0
    %v1966 = vadd.f32 %v1925, %v1965
    %v1967 = vpop.f32.mrb[0].mxu0
    %v1968 = vadd.f32 %v1927, %v1967
    %v1969 = vpop.f32.mrb[0].mxu0
    %v1970 = vpop.f32.mrb[0].mxu0
    %1971 = vdwg.mxu0
    %v1972 = vmax.f32 %v1802, 0.0
    %v1973 = vmax.f32 %v1804, 0.0
    %v1974 = vmax.f32 %v1966, 0.0
    %v1975 = vmax.f32 %v1968, 0.0
    %v1976 = vpack.c.bf16 %v1972, %v1972
    %v1977 = vpack.c.bf16 %v1973, %v1973
    %v1978 = vpack.c.bf16 %v1974, %v1974
    %v1979 = vpack.c.bf16 %v1975, %v1975
    %v1980 = vld [vmem:[%s3] sm:$0xff]
    %v1981 = vld [vmem:[%s3 + $0x8] sm:$0xff]
    %v1982 = vld [vmem:[%s3 + $0x10] sm:$0xff]
    %v1983 = vld [vmem:[%s3 + $0x18] sm:$0xff]
    %v1984 = vld [vmem:[%s3 + $0x20] sm:$0xff]
    %v1985 = vld [vmem:[%s3 + $0x28] sm:$0xff]
    %v1986 = vld [vmem:[%s3 + $0x30] sm:$0xff]
    %v1987 = vld [vmem:[%s3 + $0x38] sm:$0xff]
    %v1988 = vld [vmem:[%s3 + $0x40] sm:$0xff]
    %v1989 = vld [vmem:[%s3 + $0x48] sm:$0xff]
    %v1990 = vld [vmem:[%s3 + $0x50] sm:$0xff]
    %v1991 = vld [vmem:[%s3 + $0x58] sm:$0xff]
    %v1992 = vld [vmem:[%s3 + $0x60] sm:$0xff]
    %v1993 = vld [vmem:[%s3 + $0x68] sm:$0xff]
    %v1994 = vld [vmem:[%s3 + $0x70] sm:$0xff]
    %v1995 = vld [vmem:[%s3 + $0x78] sm:$0xff]
    %v1996 = vld [vmem:[%s3 + $0x80] sm:$0xff]
    %v1997 = vld [vmem:[%s3 + $0x88] sm:$0xff]
    %v1998 = vld [vmem:[%s3 + $0x90] sm:$0xff]
    %v1999 = vld [vmem:[%s3 + $0x98] sm:$0xff]
    %v2000 = vld [vmem:[%s3 + $0xa0] sm:$0xff]
    %v2001 = vld [vmem:[%s3 + $0xa8] sm:$0xff]
    %v2002 = vld [vmem:[%s3 + $0xb0] sm:$0xff]
    %v2003 = vld [vmem:[%s3 + $0xb8] sm:$0xff]
    %v2004 = vld [vmem:[%s3 + $0xc0] sm:$0xff]
    %v2005 = vld [vmem:[%s3 + $0xc8] sm:$0xff]
    %v2006 = vld [vmem:[%s3 + $0xd0] sm:$0xff]
    %v2007 = vld [vmem:[%s3 + $0xd8] sm:$0xff]
    %v2008 = vld [vmem:[%s3 + $0xe0] sm:$0xff]
    %v2009 = vld [vmem:[%s3 + $0xe8] sm:$0xff]
    %v2010 = vld [vmem:[%s3 + $0xf0] sm:$0xff]
    %v2011 = vld [vmem:[%s3 + $0xf8] sm:$0xff]
    %v2012 = vld [vmem:[%s3 + $0x100] sm:$0xff]
    %v2013 = vld [vmem:[%s3 + $0x108] sm:$0xff]
    %v2014 = vld [vmem:[%s3 + $0x110] sm:$0xff]
    %v2015 = vld [vmem:[%s3 + $0x118] sm:$0xff]
    %v2016 = vld [vmem:[%s3 + $0x120] sm:$0xff]
    %v2017 = vld [vmem:[%s3 + $0x128] sm:$0xff]
    %v2018 = vld [vmem:[%s3 + $0x130] sm:$0xff]
    %v2019 = vld [vmem:[%s3 + $0x138] sm:$0xff]
    %v2020 = vld [vmem:[%s3 + $0x140] sm:$0xff]
    %v2021 = vld [vmem:[%s3 + $0x148] sm:$0xff]
    %v2022 = vld [vmem:[%s3 + $0x150] sm:$0xff]
    %v2023 = vld [vmem:[%s3 + $0x158] sm:$0xff]
    %v2024 = vld [vmem:[%s3 + $0x160] sm:$0xff]
    %v2025 = vld [vmem:[%s3 + $0x168] sm:$0xff]
    %v2026 = vld [vmem:[%s3 + $0x170] sm:$0xff]
    %v2027 = vld [vmem:[%s3 + $0x178] sm:$0xff]
    %v2028 = vld [vmem:[%s3 + $0x180] sm:$0xff]
    %v2029 = vld [vmem:[%s3 + $0x188] sm:$0xff]
    %v2030 = vld [vmem:[%s3 + $0x190] sm:$0xff]
    %v2031 = vld [vmem:[%s3 + $0x198] sm:$0xff]
    %v2032 = vld [vmem:[%s3 + $0x1a0] sm:$0xff]
    %v2033 = vld [vmem:[%s3 + $0x1a8] sm:$0xff]
    %v2034 = vld [vmem:[%s3 + $0x1b0] sm:$0xff]
    %v2035 = vld [vmem:[%s3 + $0x1b8] sm:$0xff]
    %v2036 = vld [vmem:[%s3 + $0x1c0] sm:$0xff]
    %v2037 = vld [vmem:[%s3 + $0x1c8] sm:$0xff]
    %v2038 = vld [vmem:[%s3 + $0x1d0] sm:$0xff]
    %v2039 = vld [vmem:[%s3 + $0x1d8] sm:$0xff]
    %v2040 = vld [vmem:[%s3 + $0x1e0] sm:$0xff]
    %v2041 = vld [vmem:[%s3 + $0x1e8] sm:$0xff]
    %v2042 = vld [vmem:[%s3 + $0x1f0] sm:$0xff]
    %v2043 = vld [vmem:[%s3 + $0x1f8] sm:$0xff]
    %v2044 = vld [vmem:[%s4] sm:$0x3]
    %v2046 = vlaneseq
    %v2047 = vshrl.u32 %v2046, 7
    %v2048 = vsub.s32 0, %v2047
    %v2049 = vrot.slane %v2044, %v2048
    %v2050 = vlaneseq
    %v2051 = vshrl.u32 %v2050, 7
    %v2052 = vsub.s32 1, %v2051
    %v2053 = vrot.slane %v2044, %v2052
    %v2120 = vunpack.c.l.b16 %v1980
    %v2121 = vunpack.c.h.b16 %v1980
    %v2122 = vunpack.c.l.b16 %v1981
    %v2123 = vunpack.c.h.b16 %v1981
    %v2124 = vunpack.c.l.b16 %v1982
    %v2125 = vunpack.c.h.b16 %v1982
    %v2126 = vunpack.c.l.b16 %v1983
    %v2127 = vunpack.c.h.b16 %v1983
    %v2128 = vunpack.c.l.b16 %v1984
    %v2129 = vunpack.c.h.b16 %v1984
    %v2130 = vunpack.c.l.b16 %v1985
    %v2131 = vunpack.c.h.b16 %v1985
    %v2132 = vunpack.c.l.b16 %v1986
    %v2133 = vunpack.c.h.b16 %v1986
    %v2134 = vunpack.c.l.b16 %v1987
    %v2135 = vunpack.c.h.b16 %v1987
    %v2136 = vunpack.c.l.b16 %v1988
    %v2137 = vunpack.c.h.b16 %v1988
    %v2138 = vunpack.c.l.b16 %v1989
    %v2139 = vunpack.c.h.b16 %v1989
    %v2140 = vunpack.c.l.b16 %v1990
    %v2141 = vunpack.c.h.b16 %v1990
    %v2142 = vunpack.c.l.b16 %v1991
    %v2143 = vunpack.c.h.b16 %v1991
    %v2144 = vunpack.c.l.b16 %v1992
    %v2145 = vunpack.c.h.b16 %v1992
    %v2146 = vunpack.c.l.b16 %v1993
    %v2147 = vunpack.c.h.b16 %v1993
    %v2148 = vunpack.c.l.b16 %v1994
    %v2149 = vunpack.c.h.b16 %v1994
    %v2150 = vunpack.c.l.b16 %v1995
    %v2151 = vunpack.c.h.b16 %v1995
    %v2152 = vunpack.c.l.b16 %v1996
    %v2153 = vunpack.c.h.b16 %v1996
    %v2154 = vunpack.c.l.b16 %v1997
    %v2155 = vunpack.c.h.b16 %v1997
    %v2156 = vunpack.c.l.b16 %v1998
    %v2157 = vunpack.c.h.b16 %v1998
    %v2158 = vunpack.c.l.b16 %v1999
    %v2159 = vunpack.c.h.b16 %v1999
    %v2160 = vunpack.c.l.b16 %v2000
    %v2161 = vunpack.c.h.b16 %v2000
    %v2162 = vunpack.c.l.b16 %v2001
    %v2163 = vunpack.c.h.b16 %v2001
    %v2164 = vunpack.c.l.b16 %v2002
    %v2165 = vunpack.c.h.b16 %v2002
    %v2166 = vunpack.c.l.b16 %v2003
    %v2167 = vunpack.c.h.b16 %v2003
    %v2168 = vunpack.c.l.b16 %v2004
    %v2169 = vunpack.c.h.b16 %v2004
    %v2170 = vunpack.c.l.b16 %v2005
    %v2171 = vunpack.c.h.b16 %v2005
    %v2172 = vunpack.c.l.b16 %v2006
    %v2173 = vunpack.c.h.b16 %v2006
    %v2174 = vunpack.c.l.b16 %v2007
    %v2175 = vunpack.c.h.b16 %v2007
    %v2176 = vunpack.c.l.b16 %v2008
    %v2177 = vunpack.c.h.b16 %v2008
    %v2178 = vunpack.c.l.b16 %v2009
    %v2179 = vunpack.c.h.b16 %v2009
    %v2180 = vunpack.c.l.b16 %v2010
    %v2181 = vunpack.c.h.b16 %v2010
    %v2182 = vunpack.c.l.b16 %v2011
    %v2183 = vunpack.c.h.b16 %v2011
    %v2184 = vunpack.c.l.b16 %v2012
    %v2185 = vunpack.c.h.b16 %v2012
    %v2186 = vunpack.c.l.b16 %v2013
    %v2187 = vunpack.c.h.b16 %v2013
    %v2188 = vunpack.c.l.b16 %v2014
    %v2189 = vunpack.c.h.b16 %v2014
    %v2190 = vunpack.c.l.b16 %v2015
    %v2191 = vunpack.c.h.b16 %v2015
    %v2192 = vunpack.c.l.b16 %v2016
    %v2193 = vunpack.c.h.b16 %v2016
    %v2194 = vunpack.c.l.b16 %v2017
    %v2195 = vunpack.c.h.b16 %v2017
    %v2196 = vunpack.c.l.b16 %v2018
    %v2197 = vunpack.c.h.b16 %v2018
    %v2198 = vunpack.c.l.b16 %v2019
    %v2199 = vunpack.c.h.b16 %v2019
    %v2200 = vunpack.c.l.b16 %v2020
    %v2201 = vunpack.c.h.b16 %v2020
    %v2202 = vunpack.c.l.b16 %v2021
    %v2203 = vunpack.c.h.b16 %v2021
    %v2204 = vunpack.c.l.b16 %v2022
    %v2205 = vunpack.c.h.b16 %v2022
    %v2206 = vunpack.c.l.b16 %v2023
    %v2207 = vunpack.c.h.b16 %v2023
    %v2208 = vunpack.c.l.b16 %v2024
    %v2209 = vunpack.c.h.b16 %v2024
    %v2210 = vunpack.c.l.b16 %v2025
    %v2211 = vunpack.c.h.b16 %v2025
    %v2212 = vunpack.c.l.b16 %v2026
    %v2213 = vunpack.c.h.b16 %v2026
    %v2214 = vunpack.c.l.b16 %v2027
    %v2215 = vunpack.c.h.b16 %v2027
    %v2216 = vunpack.c.l.b16 %v2028
    %v2217 = vunpack.c.h.b16 %v2028
    %v2218 = vunpack.c.l.b16 %v2029
    %v2219 = vunpack.c.h.b16 %v2029
    %v2220 = vunpack.c.l.b16 %v2030
    %v2221 = vunpack.c.h.b16 %v2030
    %v2222 = vunpack.c.l.b16 %v2031
    %v2223 = vunpack.c.h.b16 %v2031
    %v2224 = vunpack.c.l.b16 %v2032
    %v2225 = vunpack.c.h.b16 %v2032
    %v2226 = vunpack.c.l.b16 %v2033
    %v2227 = vunpack.c.h.b16 %v2033
    %v2228 = vunpack.c.l.b16 %v2034
    %v2229 = vunpack.c.h.b16 %v2034
    %v2230 = vunpack.c.l.b16 %v2035
    %v2231 = vunpack.c.h.b16 %v2035
    %v2232 = vunpack.c.l.b16 %v2036
    %v2233 = vunpack.c.h.b16 %v2036
    %v2234 = vunpack.c.l.b16 %v2037
    %v2235 = vunpack.c.h.b16 %v2037
    %v2236 = vunpack.c.l.b16 %v2038
    %v2237 = vunpack.c.h.b16 %v2038
    %v2238 = vunpack.c.l.b16 %v2039
    %v2239 = vunpack.c.h.b16 %v2039
    %v2240 = vunpack.c.l.b16 %v2040
    %v2241 = vunpack.c.h.b16 %v2040
    %v2242 = vunpack.c.l.b16 %v2041
    %v2243 = vunpack.c.h.b16 %v2041
    %v2244 = vunpack.c.l.b16 %v2042
    %v2245 = vunpack.c.h.b16 %v2042
    %v2246 = vunpack.c.l.b16 %v2043
    %v2247 = vunpack.c.h.b16 %v2043
    %v2248 = vpack.c.b16 %v2122, %v2120
    %v2249 = vpack.c.b16 %v2123, %v2121
    %v2250 = vpack.c.b16 %v2126, %v2124
    %v2251 = vpack.c.b16 %v2127, %v2125
    %v2252 = vpack.c.b16 %v2130, %v2128
    %v2253 = vpack.c.b16 %v2131, %v2129
    %v2254 = vpack.c.b16 %v2134, %v2132
    %v2255 = vpack.c.b16 %v2135, %v2133
    %v2256 = vpack.c.b16 %v2138, %v2136
    %v2257 = vpack.c.b16 %v2139, %v2137
    %v2258 = vpack.c.b16 %v2142, %v2140
    %v2259 = vpack.c.b16 %v2143, %v2141
    %v2260 = vpack.c.b16 %v2146, %v2144
    %v2261 = vpack.c.b16 %v2147, %v2145
    %v2262 = vpack.c.b16 %v2150, %v2148
    %v2263 = vpack.c.b16 %v2151, %v2149
    %v2264 = vpack.c.b16 %v2154, %v2152
    %v2265 = vpack.c.b16 %v2155, %v2153
    %v2266 = vpack.c.b16 %v2158, %v2156
    %v2267 = vpack.c.b16 %v2159, %v2157
    %v2268 = vpack.c.b16 %v2162, %v2160
    %v2269 = vpack.c.b16 %v2163, %v2161
    %v2270 = vpack.c.b16 %v2166, %v2164
    %v2271 = vpack.c.b16 %v2167, %v2165
    %v2272 = vpack.c.b16 %v2170, %v2168
    %v2273 = vpack.c.b16 %v2171, %v2169
    %v2274 = vpack.c.b16 %v2174, %v2172
    %v2275 = vpack.c.b16 %v2175, %v2173
    %v2276 = vpack.c.b16 %v2178, %v2176
    %v2277 = vpack.c.b16 %v2179, %v2177
    %v2278 = vpack.c.b16 %v2182, %v2180
    %v2279 = vpack.c.b16 %v2183, %v2181
    %v2280 = vpack.c.b16 %v2186, %v2184
    %v2281 = vpack.c.b16 %v2187, %v2185
    %v2282 = vpack.c.b16 %v2190, %v2188
    %v2283 = vpack.c.b16 %v2191, %v2189
    %v2284 = vpack.c.b16 %v2194, %v2192
    %v2285 = vpack.c.b16 %v2195, %v2193
    %v2286 = vpack.c.b16 %v2198, %v2196
    %v2287 = vpack.c.b16 %v2199, %v2197
    %v2288 = vpack.c.b16 %v2202, %v2200
    %v2289 = vpack.c.b16 %v2203, %v2201
    %v2290 = vpack.c.b16 %v2206, %v2204
    %v2291 = vpack.c.b16 %v2207, %v2205
    %v2292 = vpack.c.b16 %v2210, %v2208
    %v2293 = vpack.c.b16 %v2211, %v2209
    %v2294 = vpack.c.b16 %v2214, %v2212
    %v2295 = vpack.c.b16 %v2215, %v2213
    %v2296 = vpack.c.b16 %v2218, %v2216
    %v2297 = vpack.c.b16 %v2219, %v2217
    %v2298 = vpack.c.b16 %v2222, %v2220
    %v2299 = vpack.c.b16 %v2223, %v2221
    %v2300 = vpack.c.b16 %v2226, %v2224
    %v2301 = vpack.c.b16 %v2227, %v2225
    %v2302 = vpack.c.b16 %v2230, %v2228
    %v2303 = vpack.c.b16 %v2231, %v2229
    %v2304 = vpack.c.b16 %v2234, %v2232
    %v2305 = vpack.c.b16 %v2235, %v2233
    %v2306 = vpack.c.b16 %v2238, %v2236
    %v2307 = vpack.c.b16 %v2239, %v2237
    %v2308 = vpack.c.b16 %v2242, %v2240
    %v2309 = vpack.c.b16 %v2243, %v2241
    %v2310 = vpack.c.b16 %v2246, %v2244
    %v2311 = vpack.c.b16 %v2247, %v2245
    %2376 = vmatprep.subr.bf16.mxu0 %v2249
    %2377 = vmatpush1.bf16.msra.mxu0 %v2248
    %2378 = vmatprep.subr.bf16.mxu0 %v2251
    %2379 = vmatpush1.bf16.msra.mxu0 %v2250
    %2380 = vmatprep.subr.bf16.mxu0 %v2253
    %2381 = vmatpush1.bf16.msra.mxu0 %v2252
    %2382 = vmatprep.subr.bf16.mxu0 %v2255
    %2383 = vmatpush1.bf16.msra.mxu0 %v2254
    %2384 = vmatprep.subr.bf16.mxu0 %v2257
    %2385 = vmatpush1.bf16.msra.mxu0 %v2256
    %2386 = vmatprep.subr.bf16.mxu0 %v2259
    %2387 = vmatpush1.bf16.msra.mxu0 %v2258
    %2388 = vmatprep.subr.bf16.mxu0 %v2261
    %2389 = vmatpush1.bf16.msra.mxu0 %v2260
    %2390 = vmatprep.subr.bf16.mxu0 %v2263
    %2391 = vmatpush1.bf16.msra.mxu0 %v2262
    %2392 = vmatprep.subr.bf16.mxu0 %v2265
    %2393 = vmatpush1.bf16.msra.mxu0 %v2264
    %2394 = vmatprep.subr.bf16.mxu0 %v2267
    %2395 = vmatpush1.bf16.msra.mxu0 %v2266
    %2396 = vmatprep.subr.bf16.mxu0 %v2269
    %2397 = vmatpush1.bf16.msra.mxu0 %v2268
    %2398 = vmatprep.subr.bf16.mxu0 %v2271
    %2399 = vmatpush1.bf16.msra.mxu0 %v2270
    %2400 = vmatprep.subr.bf16.mxu0 %v2273
    %2401 = vmatpush1.bf16.msra.mxu0 %v2272
    %2402 = vmatprep.subr.bf16.mxu0 %v2275
    %2403 = vmatpush1.bf16.msra.mxu0 %v2274
    %2404 = vmatprep.subr.bf16.mxu0 %v2277
    %2405 = vmatpush1.bf16.msra.mxu0 %v2276
    %2406 = vmatprep.subr.bf16.mxu0 %v2279
    %2407 = vmatpush1.bf16.msra.mxu0 %v2278
    %2408 = vmatprep.mubr.bf16.mxu0 %v1977
    %2409 = vmatmul.mubr.bf16.gmra.mrb[0].mxu0 %v1976
    %v2410 = vpop.f32.mrb[0].mxu0
    %v2411 = vadd.f32 %v2049, %v2410
    %v2412 = vpop.f32.mrb[0].mxu0
    %v2413 = vadd.f32 %v2053, %v2412
    %v2414 = vpop.f32.mrb[0].mxu0
    %v2415 = vpop.f32.mrb[0].mxu0
    %2416 = vdwg.mxu0
    %2417 = vmatprep.subr.bf16.mxu0 %v2281
    %2418 = vmatpush1.bf16.msra.mxu0 %v2280
    %2419 = vmatprep.subr.bf16.mxu0 %v2283
    %2420 = vmatpush1.bf16.msra.mxu0 %v2282
    %2421 = vmatprep.subr.bf16.mxu0 %v2285
    %2422 = vmatpush1.bf16.msra.mxu0 %v2284
    %2423 = vmatprep.subr.bf16.mxu0 %v2287
    %2424 = vmatpush1.bf16.msra.mxu0 %v2286
    %2425 = vmatprep.subr.bf16.mxu0 %v2289
    %2426 = vmatpush1.bf16.msra.mxu0 %v2288
    %2427 = vmatprep.subr.bf16.mxu0 %v2291
    %2428 = vmatpush1.bf16.msra.mxu0 %v2290
    %2429 = vmatprep.subr.bf16.mxu0 %v2293
    %2430 = vmatpush1.bf16.msra.mxu0 %v2292
    %2431 = vmatprep.subr.bf16.mxu0 %v2295
    %2432 = vmatpush1.bf16.msra.mxu0 %v2294
    %2433 = vmatprep.subr.bf16.mxu0 %v2297
    %2434 = vmatpush1.bf16.msra.mxu0 %v2296
    %2435 = vmatprep.subr.bf16.mxu0 %v2299
    %2436 = vmatpush1.bf16.msra.mxu0 %v2298
    %2437 = vmatprep.subr.bf16.mxu0 %v2301
    %2438 = vmatpush1.bf16.msra.mxu0 %v2300
    %2439 = vmatprep.subr.bf16.mxu0 %v2303
    %2440 = vmatpush1.bf16.msra.mxu0 %v2302
    %2441 = vmatprep.subr.bf16.mxu0 %v2305
    %2442 = vmatpush1.bf16.msra.mxu0 %v2304
    %2443 = vmatprep.subr.bf16.mxu0 %v2307
    %2444 = vmatpush1.bf16.msra.mxu0 %v2306
    %2445 = vmatprep.subr.bf16.mxu0 %v2309
    %2446 = vmatpush1.bf16.msra.mxu0 %v2308
    %2447 = vmatprep.subr.bf16.mxu0 %v2311
    %2448 = vmatpush1.bf16.msra.mxu0 %v2310
    %2449 = vmatprep.mubr.bf16.mxu0 %v1979
    %2450 = vmatmul.mubr.bf16.gmra.mrb[0].mxu0 %v1978
    %v2451 = vpop.f32.mrb[0].mxu0
    %v2452 = vadd.f32 %v2411, %v2451
    %v2453 = vpop.f32.mrb[0].mxu0
    %v2454 = vadd.f32 %v2413, %v2453
    %v2455 = vpop.f32.mrb[0].mxu0
    %v2456 = vpop.f32.mrb[0].mxu0
    %2457 = vdwg.mxu0
    %v2458 = vmax.f32 %v2452, 0.0
    %v2459 = vmax.f32 %v2454, 0.0
    %v2460 = vld [vmem:[%s5] sm:$0xff]
    %v2461 = vld [vmem:[%s5 + $0x8] sm:$0xff]
    %v2462 = vld [vmem:[%s5 + $0x10] sm:$0xff]
    %v2463 = vld [vmem:[%s5 + $0x18] sm:$0xff]
    %v2464 = vld [vmem:[%s5 + $0x20] sm:$0xff]
    %v2465 = vld [vmem:[%s5 + $0x28] sm:$0xff]
    %v2466 = vld [vmem:[%s5 + $0x30] sm:$0xff]
    %v2467 = vld [vmem:[%s5 + $0x38] sm:$0xff]
    %v2468 = vld [vmem:[%s5 + $0x40] sm:$0xff]
    %v2469 = vld [vmem:[%s5 + $0x48] sm:$0xff]
    %v2470 = vld [vmem:[%s5 + $0x50] sm:$0xff]
    %v2471 = vld [vmem:[%s5 + $0x58] sm:$0xff]
    %v2472 = vld [vmem:[%s5 + $0x60] sm:$0xff]
    %v2473 = vld [vmem:[%s5 + $0x68] sm:$0xff]
    %v2474 = vld [vmem:[%s5 + $0x70] sm:$0xff]
    %v2475 = vld [vmem:[%s5 + $0x78] sm:$0xff]
    %v2476 = vld [vmem:[%s5 + $0x80] sm:$0xff]
    %v2477 = vld [vmem:[%s5 + $0x88] sm:$0xff]
    %v2478 = vld [vmem:[%s5 + $0x90] sm:$0xff]
    %v2479 = vld [vmem:[%s5 + $0x98] sm:$0xff]
    %v2480 = vld [vmem:[%s5 + $0xa0] sm:$0xff]
    %v2481 = vld [vmem:[%s5 + $0xa8] sm:$0xff]
    %v2482 = vld [vmem:[%s5 + $0xb0] sm:$0xff]
    %v2483 = vld [vmem:[%s5 + $0xb8] sm:$0xff]
    %v2484 = vld [vmem:[%s5 + $0xc0] sm:$0xff]
    %v2485 = vld [vmem:[%s5 + $0xc8] sm:$0xff]
    %v2486 = vld [vmem:[%s5 + $0xd0] sm:$0xff]
    %v2487 = vld [vmem:[%s5 + $0xd8] sm:$0xff]
    %v2488 = vld [vmem:[%s5 + $0xe0] sm:$0xff]
    %v2489 = vld [vmem:[%s5 + $0xe8] sm:$0xff]
    %v2490 = vld [vmem:[%s5 + $0xf0] sm:$0xff]
    %v2491 = vld [vmem:[%s5 + $0xf8] sm:$0xff]
    %v2492 = vld [vmem:[%s6] sm:$0x1]
    %v2494 = vlaneseq
    %v2495 = vshrl.u32 %v2494, 7
    %v2496 = vsub.s32 0, %v2495
    %v2497 = vrot.slane %v2492, %v2496
    %2499 = vmatprep.subr.mxu0 0.0
    %2500 = vmatpush1.msra.mxu0 %v2460
    %2501 = vmatprep.subr.mxu0 0.0
    %2502 = vmatpush1.msra.mxu0 %v2461
    %2503 = vmatprep.subr.mxu0 0.0
    %2504 = vmatpush1.msra.mxu0 %v2462
    %2505 = vmatprep.subr.mxu0 0.0
    %2506 = vmatpush1.msra.mxu0 %v2463
    %2507 = vmatprep.subr.mxu0 0.0
    %2508 = vmatpush1.msra.mxu0 %v2464
    %2509 = vmatprep.subr.mxu0 0.0
    %2510 = vmatpush1.msra.mxu0 %v2465
    %2511 = vmatprep.subr.mxu0 0.0
    %2512 = vmatpush1.msra.mxu0 %v2466
    %2513 = vmatprep.subr.mxu0 0.0
    %2514 = vmatpush1.msra.mxu0 %v2467
    %2515 = vmatprep.subr.mxu0 0.0
    %2516 = vmatpush1.msra.mxu0 %v2468
    %2517 = vmatprep.subr.mxu0 0.0
    %2518 = vmatpush1.msra.mxu0 %v2469
    %2519 = vmatprep.subr.mxu0 0.0
    %2520 = vmatpush1.msra.mxu0 %v2470
    %2521 = vmatprep.subr.mxu0 0.0
    %2522 = vmatpush1.msra.mxu0 %v2471
    %2523 = vmatprep.subr.mxu0 0.0
    %2524 = vmatpush1.msra.mxu0 %v2472
    %2525 = vmatprep.subr.mxu0 0.0
    %2526 = vmatpush1.msra.mxu0 %v2473
    %2527 = vmatprep.subr.mxu0 0.0
    %2528 = vmatpush1.msra.mxu0 %v2474
    %2529 = vmatprep.subr.mxu0 0.0
    %2530 = vmatpush1.msra.mxu0 %v2475
    %2531 = vmatprep.subr.mxu0 0.0
    %2532 = vmatpush1.msra.mxu0 %v2476
    %2533 = vmatprep.subr.mxu0 0.0
    %2534 = vmatpush1.msra.mxu0 %v2477
    %2535 = vmatprep.subr.mxu0 0.0
    %2536 = vmatpush1.msra.mxu0 %v2478
    %2537 = vmatprep.subr.mxu0 0.0
    %2538 = vmatpush1.msra.mxu0 %v2479
    %2539 = vmatprep.subr.mxu0 0.0
    %2540 = vmatpush1.msra.mxu0 %v2480
    %2541 = vmatprep.subr.mxu0 0.0
    %2542 = vmatpush1.msra.mxu0 %v2481
    %2543 = vmatprep.subr.mxu0 0.0
    %2544 = vmatpush1.msra.mxu0 %v2482
    %2545 = vmatprep.subr.mxu0 0.0
    %2546 = vmatpush1.msra.mxu0 %v2483
    %2547 = vmatprep.subr.mxu0 0.0
    %2548 = vmatpush1.msra.mxu0 %v2484
    %2549 = vmatprep.subr.mxu0 0.0
    %2550 = vmatpush1.msra.mxu0 %v2485
    %2551 = vmatprep.subr.mxu0 0.0
    %2552 = vmatpush1.msra.mxu0 %v2486
    %2553 = vmatprep.subr.mxu0 0.0
    %2554 = vmatpush1.msra.mxu0 %v2487
    %2555 = vmatprep.subr.mxu0 0.0
    %2556 = vmatpush1.msra.mxu0 %v2488
    %2557 = vmatprep.subr.mxu0 0.0
    %2558 = vmatpush1.msra.mxu0 %v2489
    %2559 = vmatprep.subr.mxu0 0.0
    %2560 = vmatpush1.msra.mxu0 %v2490
    %2561 = vmatprep.subr.mxu0 0.0
    %2562 = vmatpush1.msra.mxu0 %v2491
    %2563 = vmatprep.mubr.f32.mxu0 %v2459
    %2564 = vmatmul.mubr.f32.gmra.mrb[0].mxu0 %v2458
    %v2565 = vpop.f32.mrb[0].mxu0
    %v2566 = vadd.f32 %v2497, %v2565
    %v2567 = vpop.f32.mrb[0].mxu0
    %2568 = vdwg.mxu0
    %v2569 = vxor.u32 %v2566, 2147483648
    %v2570 = vmul.f32 %v2569, 1.442695
    %v2571 = vpow.pop %v2570
    %v2572 = vadd.f32 %v2571, 1.0
    %v2573 = vrcp.pop %v2572
    %v2574 = vmul.f32 1.0, %v2573
    %2575 = vst [vmem:[#allocation2] sm:$0x3] %v2574
    // Predicated region
    $region30: #{local_feature2_forward.7} parent=1 // pred_check
      _
    $region31: #{local_feature2_forward.7} parent=1 // pred_check_branch
      %2577 = sbr.rel (0) target = $region33
    $region32: #{local_feature2_forward.7} parent=1 // pred_region
      %s2579 = ssub.s32 32, 32
      %2580 = vsyncadd [#allocation3], %s2579
      %s2582 = sshll.u32 [#allocation2], 4
      %s2583 = int_to_ptr.vmem [resolvable:$true] %s2582
      %2585 = dma.vmem_to_hbm [thread:$0]  %s2583, 32, %s7, [#allocation3]
    $region33: #{local_feature2_forward.7} parent=1 // pred_fallthru
      _
    // Predicated region
    $region34: #{local_feature2_forward.7} parent=1 // pred_check
      _
    $region35: #{local_feature2_forward.7} parent=1 // pred_check_branch
      %2587 = sbr.rel (0) target = $region37
    $region36: #{local_feature2_forward.7} parent=1 // pred_region
      %2588 = dma.done [#allocation3], 32
    $region37: #{local_feature2_forward.7} parent=1 // pred_fallthru
      _
    %2589 = vsyncpa [#allocation3], 1

</llo_original>
